<compile_context>
chip_gen: v5e
topology: v5e:2x2
jax: 0.10.0
libtpu: 0.0.40
codegen_flags: <defaults>
</compile_context>

<pallas_src>
import functools

import jax
import jax.numpy as jnp
from jax import lax
from jax.experimental import pallas as pl
from jax.experimental.pallas import tpu as pltpu

BF16 = jnp.bfloat16


def _vmem_limit_bytes(fraction=0.85, fallback=64 * 1024 * 1024):
    """Scoped-VMEM limit sized from the actual chip (v7x has half of v5e/v6e)."""
    try:
        return int(pltpu.get_tpu_info().vmem_capacity_bytes * fraction)
    except Exception:
        return fallback


def _compiler_params(sem):
    return pltpu.CompilerParams(dimension_semantics=sem,
                                vmem_limit_bytes=_vmem_limit_bytes())


# ----------------------------------------------------------------------------
# Kernel 1: LayerNorm1 + fused QKV projection (bf16 out)
# ----------------------------------------------------------------------------
def ln1_qkv_kernel(x_ref, g_ref, b_ref, w_ref, bias_ref, qkv_ref, *, eps):
    x = x_ref[...]                                               # (tma, D) f32
    mu = jnp.mean(x, axis=-1, keepdims=True)
    var = jnp.mean((x - mu) ** 2, axis=-1, keepdims=True)
    xn = (x - mu) * lax.rsqrt(var + eps) * g_ref[...] + b_ref[...]
    qkv = jnp.dot(xn.astype(w_ref.dtype), w_ref[...],
                  preferred_element_type=jnp.float32) + bias_ref[...]
    qkv_ref[...] = qkv.astype(qkv_ref.dtype)


def ln1_qkv(x_flat, g1, bt1, wqkv_bf16, bqkv, *, tma, eps):
    T, D = x_flat.shape
    threeD = wqkv_bf16.shape[1]
    Tp = pl.cdiv(T, tma) * tma
    if Tp != T:
        x_flat = jnp.pad(x_flat, ((0, Tp - T), (0, 0)))
    kernel = functools.partial(ln1_qkv_kernel, eps=eps)
    return pl.pallas_call(
        kernel,
        out_shape=jax.ShapeDtypeStruct((Tp, threeD), BF16),
        grid_spec=pltpu.PrefetchScalarGridSpec(
            num_scalar_prefetch=0,
            grid=(Tp // tma,),
            in_specs=[
                pl.BlockSpec((tma, D), lambda i: (i, 0)),
                pl.BlockSpec((1, D), lambda i: (0, 0)),
                pl.BlockSpec((1, D), lambda i: (0, 0)),
                pl.BlockSpec((D, threeD), lambda i: (0, 0)),
                pl.BlockSpec((1, threeD), lambda i: (0, 0)),
            ],
            out_specs=pl.BlockSpec((tma, threeD), lambda i: (i, 0)),
        ),
        compiler_params=_compiler_params(("parallel",)),
    )(x_flat, g1, bt1, wqkv_bf16, bqkv)


# ----------------------------------------------------------------------------
# Kernel 2: per-(batch, q-tile) causal attention + projection + residual + ln2
# ----------------------------------------------------------------------------
def attn_kernel(x_ref, g1_ref, bt1_ref, qkv_ref, wp_ref, bp_ref,
                g2_ref, bt2_ref, o_ref,
                *, n_heads, head_size, seq_len, q_tile, scale, eps):
    qt = pl.program_id(1)
    d_model = n_heads * head_size

    # ln1 of the q rows (residual for `mha(x1) + x1`)
    x = x_ref[0]                                                 # (tq, D) f32
    mu = jnp.mean(x, axis=-1, keepdims=True)
    var = jnp.mean((x - mu) ** 2, axis=-1, keepdims=True)
    xn = (x - mu) * lax.rsqrt(var + eps) * g1_ref[...] + bt1_ref[...]

    qkv = qkv_ref[...]                                           # (S, 3D) bf16
    q_off = pl.multiple_of(qt * q_tile, q_tile)
    q_rows = qkv_ref[pl.ds(q_off, q_tile), :]                    # (tq, 3D) bf16

    # causal mask for this (tq, S) tile only
    row = lax.broadcasted_iota(jnp.int32, (q_tile, seq_len), 0) + q_off
    col = lax.broadcasted_iota(jnp.int32, (q_tile, seq_len), 1)
    causal = row >= col

    head_outs = []
    for h in range(n_heads):                                     # static loop
        lo = h * head_size
        qh = q_rows[:, lo:lo + head_size]                        # (tq, hd) bf16
        kh = qkv[:, d_model + lo:d_model + lo + head_size]       # (S,  hd) bf16
        vh = qkv[:, 2 * d_model + lo:2 * d_model + lo + head_size]
        att = lax.dot_general(qh, kh, (((1,), (1,)), ((), ())),
                              preferred_element_type=jnp.float32) * scale
        att = jnp.where(causal, att, -jnp.inf)
        att = jnp.exp(att - jnp.max(att, axis=-1, keepdims=True))
        att = att * pl.reciprocal(jnp.sum(att, axis=-1, keepdims=True),
                                  approx=True)
        head_outs.append(jnp.dot(att.astype(BF16), vh,
                                 preferred_element_type=jnp.float32))
    heads = jnp.concatenate(head_outs, axis=-1)                  # (tq, D) f32

    # single full-K output projection (bf16 operands, f32 accumulation)
    proj = jnp.dot(heads.astype(BF16), wp_ref[...],
                   preferred_element_type=jnp.float32) + bp_ref[...]
    x2 = proj + xn

    # fused LayerNorm2 (the MoE residual is exactly ln2(x2), so x2 itself is
    # never needed downstream)
    mu2 = jnp.mean(x2, axis=-1, keepdims=True)
    var2 = jnp.mean((x2 - mu2) ** 2, axis=-1, keepdims=True)
    x3 = (x2 - mu2) * lax.rsqrt(var2 + eps) * g2_ref[...] + bt2_ref[...]
    o_ref[...] = x3.astype(o_ref.dtype)


def attention_ln2(x, qkv_flat, pb, *, n_heads, q_tile, eps):
    B, S, D = x.shape
    hd = D // n_heads
    nq = S // q_tile
    kernel = functools.partial(attn_kernel, n_heads=n_heads, head_size=hd,
                               seq_len=S, q_tile=q_tile,
                               scale=1.0 / (D ** 0.5), eps=eps)
    return pl.pallas_call(
        kernel,
        out_shape=jax.ShapeDtypeStruct((B * S, D), jnp.float32),
        grid_spec=pltpu.PrefetchScalarGridSpec(
            num_scalar_prefetch=0,
            grid=(B, nq),
            in_specs=[
                pl.BlockSpec((1, q_tile, D), lambda b, q: (b, q, 0)),   # x
                pl.BlockSpec((1, D), lambda b, q: (0, 0)),              # ln1 gamma
                pl.BlockSpec((1, D), lambda b, q: (0, 0)),              # ln1 beta
                pl.BlockSpec((S, 3 * D), lambda b, q: (b, 0)),          # qkv (seq of batch b)
                pl.BlockSpec((D, D), lambda b, q: (0, 0)),              # Wproj (bf16)
                pl.BlockSpec((1, D), lambda b, q: (0, 0)),              # bproj
                pl.BlockSpec((1, D), lambda b, q: (0, 0)),              # ln2 gamma
                pl.BlockSpec((1, D), lambda b, q: (0, 0)),              # ln2 beta
            ],
            out_specs=pl.BlockSpec((q_tile, D), lambda b, q: (b * nq + q, 0)),
        ),
        compiler_params=_compiler_params(("parallel", "parallel")),
    )(x, pb["g1"], pb["bt1"], qkv_flat, pb["wp_bf16"], pb["bp"],
      pb["g2"], pb["bt2"])


# ----------------------------------------------------------------------------
# Kernel 3: router MLP + top-k mask + exact masked softmax gate
# ----------------------------------------------------------------------------
def router_kernel(x3_ref, wr1_ref, br1_ref, wr2_ref, br2_ref, gate_ref,
                  *, active_experts):
    # f32 router (once per token) so top-k decisions stay faithful to f32 math.
    x3 = x3_ref[...]
    h = jnp.maximum(jnp.dot(x3, wr1_ref[...],
                            preferred_element_type=jnp.float32) + br1_ref[...],
                    0.0)
    score = jnp.dot(h, wr2_ref[...],
                    preferred_element_type=jnp.float32) + br2_ref[...]

    tm_, ep = score.shape
    ids = lax.broadcasted_iota(jnp.int32, (tm_, ep), 1)
    work = score
    keep = jnp.zeros(score.shape, dtype=jnp.bool_)
    for _ in range(active_experts):                              # static, tiny
        m = jnp.max(work, axis=-1, keepdims=True)
        first = jnp.min(jnp.where(work == m, ids, ep), axis=-1, keepdims=True)
        sel = ids == first
        keep = jnp.logical_or(keep, sel)
        work = jnp.where(sel, -jnp.inf, work)

    # exact masked softmax: non-top-k / lane-padding columns get exactly 0
    masked = jnp.where(keep, score, -jnp.inf)
    mx = jnp.max(masked, axis=-1, keepdims=True)
    ex = jnp.exp(masked - mx)
    gate_ref[...] = ex / jnp.sum(ex, axis=-1, keepdims=True)


def router(x3p, wr1, br1, wr2p, br2p, *, tm, active_experts):
    Tp, D = x3p.shape
    H = wr1.shape[1]
    Ep = wr2p.shape[1]
    kernel = functools.partial(router_kernel, active_experts=active_experts)
    return pl.pallas_call(
        kernel,
        out_shape=jax.ShapeDtypeStruct((Tp, Ep), jnp.float32),
        grid_spec=pltpu.PrefetchScalarGridSpec(
            num_scalar_prefetch=0,
            grid=(Tp // tm,),
            in_specs=[
                pl.BlockSpec((tm, D), lambda i: (i, 0)),
                pl.BlockSpec((D, H), lambda i: (0, 0)),
                pl.BlockSpec((1, H), lambda i: (0, 0)),
                pl.BlockSpec((H, Ep), lambda i: (0, 0)),
                pl.BlockSpec((1, Ep), lambda i: (0, 0)),
            ],
            out_specs=pl.BlockSpec((tm, Ep), lambda i: (i, 0)),
        ),
        compiler_params=_compiler_params(("parallel",)),
    )(x3p, wr1, br1, wr2p, br2p)


# ----------------------------------------------------------------------------
# Kernel 4: routed, streamed experts + residual
# ----------------------------------------------------------------------------
def moe_kernel(fetch_ref, x3_ref, gate_ref, w1_ref, b1_ref, w2_ref, b2_ref,
               o_ref, xb_s, acc_s, *, num_experts):
    i = pl.program_id(0)
    e = pl.program_id(1)

    @pl.when(e == 0)
    def _():
        x3 = x3_ref[...]
        acc_s[...] = x3                       # residual = ln2 output (f32)
        xb_s[...] = x3.astype(xb_s.dtype)     # bf16 copy for the MXU

    # Run the expert only if this tile is routed to it (fetch == e). A rerun on
    # an unrouted step whose resident expert happens to equal e is harmless:
    # the gate column is exactly zero, so it adds zero.
    @pl.when(fetch_ref[i, e] == e)
    def _():
        xb = xb_s[...]                                               # (tm, D) bf16
        h = jnp.maximum(
            jnp.dot(xb, w1_ref[0], preferred_element_type=jnp.float32)
            + b1_ref[0], 0.0)
        ye = (jnp.dot(h.astype(w2_ref.dtype), w2_ref[0],
                      preferred_element_type=jnp.float32) + b2_ref[0])
        sel = lax.broadcasted_iota(jnp.int32, gate_ref.shape, 1) == e
        g = jnp.sum(jnp.where(sel, gate_ref[...], 0.0), axis=-1, keepdims=True)
        acc_s[...] += g * ye

    @pl.when(e == num_experts - 1)
    def _():
        o_ref[...] = acc_s[...].astype(o_ref.dtype)


def sparse_moe(x3, pb, *, num_experts, active_experts, tm, eps):
    T, D = x3.shape
    E = num_experts
    H = pb["w1_bf16"].shape[-1]
    Ep = pb["wr2p"].shape[-1]
    Tp = pl.cdiv(T, tm) * tm
    x3p = jnp.pad(x3, ((0, Tp - T), (0, 0))) if Tp != T else x3
    nt = Tp // tm

    gate = router(x3p, pb["wr1"], pb["br1"], pb["wr2p"], pb["br2p"],
                  tm=tm, active_experts=active_experts)          # (Tp, Ep) f32

    # Routed-expert dispatch: for every (token-tile, expert) grid step, which
    # expert's weights should be resident. Unrouted steps keep the previously
    # resident expert (index unchanged -> Pallas skips the weight DMA) and the
    # compute is skipped by pl.when above.
    routed = (gate[:, :E].reshape(nt, tm, E) > 0.0).any(axis=1)  # (nt, E) bool
    eids = jnp.broadcast_to(jnp.arange(E, dtype=jnp.int32), (nt, E)).reshape(-1)

    def _carry(prev, xs):
        r, eid = xs
        cur = jnp.where(r, eid, prev)
        return cur, cur

    _, fetch_flat = lax.scan(_carry, jnp.int32(0), (routed.reshape(-1), eids))
    fetch = fetch_flat.reshape(nt, E).astype(jnp.int32)

    kernel = functools.partial(moe_kernel, num_experts=E)
    out = pl.pallas_call(
        kernel,
        out_shape=jax.ShapeDtypeStruct((Tp, D), jnp.float32),
        grid_spec=pltpu.PrefetchScalarGridSpec(
            num_scalar_prefetch=1,
            grid=(nt, E),                                        # experts innermost
            in_specs=[
                pl.BlockSpec((tm, D), lambda i, e, f: (i, 0)),           # x3 tile
                pl.BlockSpec((tm, Ep), lambda i, e, f: (i, 0)),          # gate tile
                pl.BlockSpec((1, D, H), lambda i, e, f: (f[i, e], 0, 0)),  # expert W1
                pl.BlockSpec((1, 1, H), lambda i, e, f: (f[i, e], 0, 0)),  # expert b1
                pl.BlockSpec((1, H, D), lambda i, e, f: (f[i, e], 0, 0)),  # expert W2
                pl.BlockSpec((1, 1, D), lambda i, e, f: (f[i, e], 0, 0)),  # expert b2
            ],
            out_specs=pl.BlockSpec((tm, D), lambda i, e, f: (i, 0)),
            scratch_shapes=[
                pltpu.VMEM((tm, D), BF16),           # bf16 activations for MXU
                pltpu.VMEM((tm, D), jnp.float32),    # f32 accumulator (+residual)
            ],
        ),
        compiler_params=_compiler_params(("parallel", "arbitrary")),
    )(fetch, x3p, gate,
      pb["w1_bf16"], pb["b1r"], pb["w2_bf16"], pb["b2r"])
    return out[:T]


# ----------------------------------------------------------------------------
# Full block forward
# ----------------------------------------------------------------------------
def block_forward(x, params, *, n_heads, num_experts, active_experts,
                  q_tile=None, tm=256, tma=256, eps=1e-5):
    B, S, D = x.shape
    assert D % n_heads == 0 and S % 8 == 0
    E = num_experts
    H = 4 * D
    if q_tile is None:
        q_tile = 128 if S % 128 == 0 else S
    assert S % q_tile == 0

    # lane-pad router output width; padded columns get -1e30 bias -> never top-k
    Ep = max(128, pl.cdiv(E, 128) * 128)
    wr2p, br2p = params["wr2"], params["br2"]
    if Ep != E:
        wr2p = jnp.pad(wr2p, ((0, 0), (0, Ep - E)))
        br2p = jnp.pad(br2p, ((0, 0), (0, Ep - E)), constant_values=-1e30)

    pb = {
        "g1": params["g1"], "bt1": params["bt1"],
        "g2": params["g2"], "bt2": params["bt2"],
        "wp_bf16": params["wp"].astype(BF16), "bp": params["bp"],
        "wr1": params["wr1"], "br1": params["br1"],
        "wr2p": wr2p, "br2p": br2p,
        "w1_bf16": params["w1"].astype(BF16),
        "b1r": params["b1"].reshape(E, 1, H),
        "w2_bf16": params["w2"].astype(BF16),
        "b2r": params["b2"].reshape(E, 1, D),
    }
    wqkv = jnp.concatenate([params["wq"], params["wk"], params["wv"]],
                           axis=1).astype(BF16)
    bqkv = jnp.concatenate([params["bq"], params["bk"], params["bv"]], axis=1)

    x_flat = x.reshape(B * S, D)
    qkv = ln1_qkv(x_flat, params["g1"], params["bt1"], wqkv, bqkv,
                  tma=tma, eps=eps)                                  # (Tp1, 3D) bf16
    x3 = attention_ln2(x, qkv, pb, n_heads=n_heads, q_tile=q_tile, eps=eps)
    out = sparse_moe(x3, pb, num_experts=E, active_experts=active_experts,
                     tm=tm, eps=eps)
    return out.reshape(B, S, D)


# ----------------------------------------------------------------------------
# deterministic synthetic params + pure-JAX f32 reference
# ----------------------------------------------------------------------------
def init_params(key, embed_size, n_heads, num_experts):
    D, H, E = embed_size, 4 * embed_size, num_experts
    hd = D // n_heads
    it = iter(jax.random.split(key, 24))

    def xavier(k, shape):
        fan_in, fan_out = shape
        lim = (6.0 / (fan_in + fan_out)) ** 0.5
        return jax.random.uniform(k, shape, jnp.float32, -lim, lim)

    def bias(k, shape, fan_in):
        lim = 1.0 / (fan_in ** 0.5)
        return jax.random.uniform(k, shape, jnp.float32, -lim, lim)

    def head_cat_w(k):
        return jnp.concatenate(
            [xavier(kk, (D, hd)) for kk in jax.random.split(k, n_heads)], axis=1)

    def head_cat_b(k):
        return jnp.concatenate(
            [bias(kk, (1, hd), D) for kk in jax.random.split(k, n_heads)], axis=1)

    return {
        "g1": 1.0 + 0.05 * jax.random.normal(next(it), (1, D), jnp.float32),
        "bt1": 0.05 * jax.random.normal(next(it), (1, D), jnp.float32),
        "g2": 1.0 + 0.05 * jax.random.normal(next(it), (1, D), jnp.float32),
        "bt2": 0.05 * jax.random.normal(next(it), (1, D), jnp.float32),
        "wq": head_cat_w(next(it)), "bq": head_cat_b(next(it)),
        "wk": head_cat_w(next(it)), "bk": head_cat_b(next(it)),
        "wv": head_cat_w(next(it)), "bv": head_cat_b(next(it)),
        "wp": xavier(next(it), (D, D)), "bp": bias(next(it), (1, D), D),
        "wr1": xavier(next(it), (D, H)), "br1": bias(next(it), (1, H), D),
        "wr2": xavier(next(it), (H, E)), "br2": bias(next(it), (1, E), H),
        "w1": jnp.stack([xavier(k, (D, H)) for k in jax.random.split(next(it), E)]),
        "b1": jnp.stack([bias(k, (H,), D) for k in jax.random.split(next(it), E)]),
        "w2": jnp.stack([xavier(k, (H, D)) for k in jax.random.split(next(it), E)]),
        "b2": jnp.stack([bias(k, (D,), H) for k in jax.random.split(next(it), E)]),
    }


def block_reference(x, params, *, n_heads, num_experts, active_experts, eps=1e-5):
    """Pure-JAX f32 reference mirroring the PyTorch Block forward.

    Also returns the router scores so the test can identify tokens whose top-k
    routing is a numerical near-tie (inherently unstable under bf16 MXU math).
    """
    B, S, D = x.shape
    hd = D // n_heads

    def ln(z, g, b):
        mu = z.mean(-1, keepdims=True)
        var = ((z - mu) ** 2).mean(-1, keepdims=True)
        return (z - mu) / jnp.sqrt(var + eps) * g + b

    x1 = ln(x, params["g1"], params["bt1"])
    q = x1 @ params["wq"] + params["bq"]
    k = x1 @ params["wk"] + params["bk"]
    v = x1 @ params["wv"] + params["bv"]
    causal = jnp.tril(jnp.ones((S, S), bool))
    heads = []
    for h in range(n_heads):
        sl = slice(h * hd, (h + 1) * hd)
        att = jnp.einsum("bqd,bkd->bqk", q[..., sl], k[..., sl]) / (D ** 0.5)
        att = jnp.where(causal[None], att, -jnp.inf)
        att = jax.nn.softmax(att, axis=-1)
        heads.append(jnp.einsum("bqk,bkd->bqd", att, v[..., sl]))
    x2 = jnp.concatenate(heads, -1) @ params["wp"] + params["bp"] + x1

    x3 = ln(x2, params["g2"], params["bt2"])
    xf = x3.reshape(-1, D)
    hr = jax.nn.relu(xf @ params["wr1"] + params["br1"])
    score = hr @ params["wr2"] + params["br2"]
    _, idx = lax.top_k(score, active_experts)
    mask = jnp.any(jnp.arange(num_experts)[None, :, None] == idx[:, None, :], -1)
    gate = jax.nn.softmax(jnp.where(mask, score, -jnp.inf), -1)
    out = jnp.zeros_like(xf)
    for e in range(num_experts):
        he = jax.nn.relu(xf @ params["w1"][e] + params["b1"][e])
        ye = he @ params["w2"][e] + params["b2"][e]
        out = out + gate[:, e:e + 1] * ye
    return (out + xf).reshape(B, S, D), score


if __name__ == "__main__":
    B, S, D = 2, 8, 32          # batch, seq_len, embed_size
    n_heads = 4
    E, K = 4, 2                 # num_experts, active_experts

    key = jax.random.PRNGKey(0)
    kx, kp = jax.random.split(key)
    x = jax.random.normal(kx, (B, S, D), dtype=jnp.float32)
    params = init_params(kp, D, n_heads, E)

    fwd = jax.jit(functools.partial(block_forward, n_heads=n_heads,
                                    num_experts=E, active_experts=K))
    out = jax.block_until_ready(fwd(x, params))
    assert out.shape == (B, S, D)

    ref, score = block_reference(x, params, n_heads=n_heads, num_experts=E,
                                 active_experts=K)

    # Discrete top-k routing is inherently sensitive to tiny numeric differences
    # (bf16 MXU attention vs f32 reference). Tokens whose k-th/(k+1)-th router
    # scores are separated by more than the bf16 noise floor have identical
    # routing in both implementations; require those to match element-wise.
    srt = jnp.sort(score, axis=-1)
    margin = srt[:, -K] - srt[:, -(K + 1)]
    stable = (margin > 1e-2).reshape(B, S, 1)
    close = jnp.isclose(out, ref, rtol=5e-2, atol=5e-2)
    n_stable = int(jnp.sum(stable))
    assert n_stable >= (B * S) // 2, "too many near-tie routing tokens"
    err = float(jnp.max(jnp.where(stable, jnp.abs(out - ref), 0.0)))
    assert bool(jnp.all(jnp.where(stable, close, True))), (
        "mismatch vs reference on routing-stable tokens, max abs err = %f" % err)

    print("KERNEL_OK")
</pallas_src>

<mosaic_0001>
module attributes {stable_mosaic.version = 11 : i64} {
  func.func @ln1_qkv_kernel(%arg0: i32, %arg1: memref<256x32xf32, #tpu.memory_space<vmem>>, %arg2: memref<1x32xf32, #tpu.memory_space<vmem>>, %arg3: memref<1x32xf32, #tpu.memory_space<vmem>>, %arg4: memref<32x96xbf16, #tpu.memory_space<vmem>>, %arg5: memref<1x96xf32, #tpu.memory_space<vmem>>, %arg6: memref<256x96xbf16, #tpu.memory_space<vmem>>) attributes {dimension_semantics = [#tpu.dimension_semantics<parallel>], iteration_bounds = array<i64: 1>, scalar_prefetch = 0 : i64, scratch_operands = 0 : i64, tpu.core_type = #tpu.core_type<tc>, window_params = [{transform_indices = @transform_0, window_bounds = array<i64: 256, 32>}, {pipeline_mode = #tpu.pipeline_mode<synchronous>, transform_indices = @transform_1, window_bounds = array<i64: 1, 32>}, {pipeline_mode = #tpu.pipeline_mode<synchronous>, transform_indices = @transform_2, window_bounds = array<i64: 1, 32>}, {pipeline_mode = #tpu.pipeline_mode<synchronous>, transform_indices = @transform_3, window_bounds = array<i64: 32, 96>}, {pipeline_mode = #tpu.pipeline_mode<synchronous>, transform_indices = @transform_4, window_bounds = array<i64: 1, 96>}, {transform_indices = @transform_5, window_bounds = array<i64: 256, 96>}]} {
    %c0 = arith.constant 0 : index
    %c0_0 = arith.constant 0 : index
    %0 = vector.load %arg1[%c0, %c0_0] : memref<256x32xf32, #tpu.memory_space<vmem>>, vector<256x32xf32>
    %cst = arith.constant dense<0.000000e+00> : vector<256xf32>
    %1 = vector.multi_reduction <add>, %0, %cst [1] : vector<256x32xf32> to vector<256xf32>
    %2 = vector.shape_cast %1 : vector<256xf32> to vector<256x1xf32>
    %cst_1 = arith.constant 3.200000e+01 : f32
    %3 = vector.broadcast %cst_1 : f32 to vector<256x1xf32>
    %4 = arith.divf %2, %3 : vector<256x1xf32>
    %5 = vector.broadcast %4 : vector<256x1xf32> to vector<256x32xf32>
    %6 = arith.subf %0, %5 : vector<256x32xf32>
    %7 = arith.mulf %6, %6 : vector<256x32xf32>
    %cst_2 = arith.constant dense<0.000000e+00> : vector<256xf32>
    %8 = vector.multi_reduction <add>, %7, %cst_2 [1] : vector<256x32xf32> to vector<256xf32>
    %9 = vector.shape_cast %8 : vector<256xf32> to vector<256x1xf32>
    %cst_3 = arith.constant 3.200000e+01 : f32
    %10 = vector.broadcast %cst_3 : f32 to vector<256x1xf32>
    %11 = arith.divf %9, %10 : vector<256x1xf32>
    %12 = vector.broadcast %4 : vector<256x1xf32> to vector<256x32xf32>
    %13 = arith.subf %0, %12 : vector<256x32xf32>
    %cst_4 = arith.constant 9.99999974E-6 : f32
    %14 = vector.broadcast %cst_4 : f32 to vector<256x1xf32>
    %15 = arith.addf %11, %14 : vector<256x1xf32>
    %16 = math.rsqrt %15 : vector<256x1xf32>
    %17 = vector.broadcast %16 : vector<256x1xf32> to vector<256x32xf32>
    %18 = arith.mulf %13, %17 : vector<256x32xf32>
    %c0_5 = arith.constant 0 : index
    %c0_6 = arith.constant 0 : index
    %19 = vector.load %arg2[%c0_5, %c0_6] : memref<1x32xf32, #tpu.memory_space<vmem>>, vector<1x32xf32>
    %20 = vector.broadcast %19 : vector<1x32xf32> to vector<256x32xf32>
    %21 = arith.mulf %18, %20 : vector<256x32xf32>
    %c0_7 = arith.constant 0 : index
    %c0_8 = arith.constant 0 : index
    %22 = vector.load %arg3[%c0_7, %c0_8] : memref<1x32xf32, #tpu.memory_space<vmem>>, vector<1x32xf32>
    %23 = vector.broadcast %22 : vector<1x32xf32> to vector<256x32xf32>
    %24 = arith.addf %21, %23 : vector<256x32xf32>
    %25 = arith.truncf %24 : vector<256x32xf32> to vector<256x32xbf16>
    %c0_9 = arith.constant 0 : index
    %c0_10 = arith.constant 0 : index
    %26 = vector.load %arg4[%c0_9, %c0_10] : memref<32x96xbf16, #tpu.memory_space<vmem>>, vector<32x96xbf16>
    %cst_11 = arith.constant dense<0.000000e+00> : vector<256x96xf32>
    %27 = tpu.matmul %25, %26, %cst_11 {dimension_numbers = #tpu.dot_dimension_numbers<[1], [0], [0], [1], [0, 0, 1, 1], [], []>} : vector<256x32xbf16>, vector<32x96xbf16>, vector<256x96xf32> -> vector<256x96xf32>
    %c0_12 = arith.constant 0 : index
    %c0_13 = arith.constant 0 : index
    %28 = vector.load %arg5[%c0_12, %c0_13] : memref<1x96xf32, #tpu.memory_space<vmem>>, vector<1x96xf32>
    %29 = vector.broadcast %28 : vector<1x96xf32> to vector<256x96xf32>
    %30 = arith.addf %27, %29 : vector<256x96xf32>
    %31 = arith.truncf %30 : vector<256x96xf32> to vector<256x96xbf16>
    %c0_14 = arith.constant 0 : index
    %c0_15 = arith.constant 0 : index
    %32 = vector.load %arg6[%c0_14, %c0_15] : memref<256x96xbf16, #tpu.memory_space<vmem>>, vector<256x96xbf16>
    tpu.vector_store %arg6[%c0_14, %c0_15], %31 {strides = array<i32>} : memref<256x96xbf16, #tpu.memory_space<vmem>>, vector<256x96xbf16>,
    return
  }
  func.func @transform_0(%arg0: i32) -> (i32, i32) {
    %c0_i32 = arith.constant 0 : i32
    %c0_i32_0 = arith.constant 0 : i32
    return %arg0, %c0_i32 : i32, i32
  }
  func.func @transform_1(%arg0: i32) -> (i32, i32) {
    %c0_i32 = arith.constant 0 : i32
    %c0_i32_0 = arith.constant 0 : i32
    %c0_i32_1 = arith.constant 0 : i32
    return %c0_i32, %c0_i32_0 : i32, i32
  }
  func.func @transform_2(%arg0: i32) -> (i32, i32) {
    %c0_i32 = arith.constant 0 : i32
    %c0_i32_0 = arith.constant 0 : i32
    %c0_i32_1 = arith.constant 0 : i32
    return %c0_i32, %c0_i32_0 : i32, i32
  }
  func.func @transform_3(%arg0: i32) -> (i32, i32) {
    %c0_i32 = arith.constant 0 : i32
    %c0_i32_0 = arith.constant 0 : i32
    %c0_i32_1 = arith.constant 0 : i32
    return %c0_i32, %c0_i32_0 : i32, i32
  }
  func.func @transform_4(%arg0: i32) -> (i32, i32) {
    %c0_i32 = arith.constant 0 : i32
    %c0_i32_0 = arith.constant 0 : i32
    %c0_i32_1 = arith.constant 0 : i32
    return %c0_i32, %c0_i32_0 : i32, i32
  }
  func.func @transform_5(%arg0: i32) -> (i32, i32) {
    %c0_i32 = arith.constant 0 : i32
    %c0_i32_0 = arith.constant 0 : i32
    return %arg0, %c0_i32 : i32, i32
  }
}

module attributes {stable_mosaic.version = 11 : i64} {
  func.func @attn_kernel(%arg0: i32, %arg1: i32, %arg2: memref<1x8x32xf32, #tpu.memory_space<vmem>>, %arg3: memref<1x32xf32, #tpu.memory_space<vmem>>, %arg4: memref<1x32xf32, #tpu.memory_space<vmem>>, %arg5: memref<8x96xbf16, #tpu.memory_space<vmem>>, %arg6: memref<32x32xbf16, #tpu.memory_space<vmem>>, %arg7: memref<1x32xf32, #tpu.memory_space<vmem>>, %arg8: memref<1x32xf32, #tpu.memory_space<vmem>>, %arg9: memref<1x32xf32, #tpu.memory_space<vmem>>, %arg10: memref<8x32xf32, #tpu.memory_space<vmem>>) attributes {dimension_semantics = [#tpu.dimension_semantics<parallel>, #tpu.dimension_semantics<parallel>], iteration_bounds = array<i64: 2, 1>, scalar_prefetch = 0 : i64, scratch_operands = 0 : i64, tpu.core_type = #tpu.core_type<tc>, window_params = [{transform_indices = @transform_0, window_bounds = array<i64: 1, 8, 32>}, {pipeline_mode = #tpu.pipeline_mode<synchronous>, transform_indices = @transform_1, window_bounds = array<i64: 1, 32>}, {pipeline_mode = #tpu.pipeline_mode<synchronous>, transform_indices = @transform_2, window_bounds = array<i64: 1, 32>}, {transform_indices = @transform_3, window_bounds = array<i64: 8, 96>}, {pipeline_mode = #tpu.pipeline_mode<synchronous>, transform_indices = @transform_4, window_bounds = array<i64: 32, 32>}, {pipeline_mode = #tpu.pipeline_mode<synchronous>, transform_indices = @transform_5, window_bounds = array<i64: 1, 32>}, {pipeline_mode = #tpu.pipeline_mode<synchronous>, transform_indices = @transform_6, window_bounds = array<i64: 1, 32>}, {pipeline_mode = #tpu.pipeline_mode<synchronous>, transform_indices = @transform_7, window_bounds = array<i64: 1, 32>}, {transform_indices = @transform_8, window_bounds = array<i64: 8, 32>}]} {
    %c0 = arith.constant 0 : index
    %c0_0 = arith.constant 0 : index
    %c0_1 = arith.constant 0 : index
    %0 = vector.load %arg2[%c0, %c0_0, %c0_1] : memref<1x8x32xf32, #tpu.memory_space<vmem>>, vector<1x8x32xf32>
    %1 = vector.shape_cast %0 : vector<1x8x32xf32> to vector<8x32xf32>
    %cst = arith.constant dense<0.000000e+00> : vector<8xf32>
    %2 = vector.multi_reduction <add>, %1, %cst [1] : vector<8x32xf32> to vector<8xf32>
    %3 = vector.shape_cast %2 : vector<8xf32> to vector<8x1xf32>
    %cst_2 = arith.constant 3.200000e+01 : f32
    %4 = vector.broadcast %cst_2 : f32 to vector<8x1xf32>
    %5 = arith.divf %3, %4 : vector<8x1xf32>
    %6 = vector.broadcast %5 : vector<8x1xf32> to vector<8x32xf32>
    %7 = arith.subf %1, %6 : vector<8x32xf32>
    %8 = arith.mulf %7, %7 : vector<8x32xf32>
    %cst_3 = arith.constant dense<0.000000e+00> : vector<8xf32>
    %9 = vector.multi_reduction <add>, %8, %cst_3 [1] : vector<8x32xf32> to vector<8xf32>
    %10 = vector.shape_cast %9 : vector<8xf32> to vector<8x1xf32>
    %cst_4 = arith.constant 3.200000e+01 : f32
    %11 = vector.broadcast %cst_4 : f32 to vector<8x1xf32>
    %12 = arith.divf %10, %11 : vector<8x1xf32>
    %13 = vector.broadcast %5 : vector<8x1xf32> to vector<8x32xf32>
    %14 = arith.subf %1, %13 : vector<8x32xf32>
    %cst_5 = arith.constant 9.99999974E-6 : f32
    %15 = vector.broadcast %cst_5 : f32 to vector<8x1xf32>
    %16 = arith.addf %12, %15 : vector<8x1xf32>
    %17 = math.rsqrt %16 : vector<8x1xf32>
    %18 = vector.broadcast %17 : vector<8x1xf32> to vector<8x32xf32>
    %19 = arith.mulf %14, %18 : vector<8x32xf32>
    %c0_6 = arith.constant 0 : index
    %c0_7 = arith.constant 0 : index
    %20 = vector.load %arg3[%c0_6, %c0_7] : memref<1x32xf32, #tpu.memory_space<vmem>>, vector<1x32xf32>
    %21 = vector.broadcast %20 : vector<1x32xf32> to vector<8x32xf32>
    %22 = arith.mulf %19, %21 : vector<8x32xf32>
    %c0_8 = arith.constant 0 : index
    %c0_9 = arith.constant 0 : index
    %23 = vector.load %arg4[%c0_8, %c0_9] : memref<1x32xf32, #tpu.memory_space<vmem>>, vector<1x32xf32>
    %24 = vector.broadcast %23 : vector<1x32xf32> to vector<8x32xf32>
    %25 = arith.addf %22, %24 : vector<8x32xf32>
    %c0_10 = arith.constant 0 : index
    %c0_11 = arith.constant 0 : index
    %26 = vector.load %arg5[%c0_10, %c0_11] : memref<8x96xbf16, #tpu.memory_space<vmem>>, vector<8x96xbf16>
    %c8_i32 = arith.constant 8 : i32
    %27 = arith.muli %arg1, %c8_i32 : i32
    %28 = tpu.assume_multiple %27, 8 : i32
    %29 = arith.index_cast %28 : i32 to index
    %c0_12 = arith.constant 0 : index
    %30 = vector.load %arg5[%29, %c0_12] : memref<8x96xbf16, #tpu.memory_space<vmem>>, vector<8x96xbf16>
    %31 = tpu.iota {dimensions = array<i32: 0>} : vector<8x8xi32>
    %32 = vector.broadcast %28 : i32 to vector<8x8xi32>
    %33 = arith.addi %31, %32 : vector<8x8xi32>
    %34 = tpu.iota {dimensions = array<i32: 1>} : vector<8x8xi32>
    %35 = arith.cmpi sge, %33, %34 : vector<8x8xi32>
    %36 = vector.extract_strided_slice %30 {offsets = [0, 0], sizes = [8, 8], strides = [1, 1]} : vector<8x96xbf16> to vector<8x8xbf16>
    %37 = vector.extract_strided_slice %26 {offsets = [0, 32], sizes = [8, 8], strides = [1, 1]} : vector<8x96xbf16> to vector<8x8xbf16>
    %38 = vector.extract_strided_slice %26 {offsets = [0, 64], sizes = [8, 8], strides = [1, 1]} : vector<8x96xbf16> to vector<8x8xbf16>
    %cst_13 = arith.constant dense<0.000000e+00> : vector<8x8xf32>
    %39 = tpu.matmul %36, %37, %cst_13 {dimension_numbers = #tpu.dot_dimension_numbers<[1], [1], [0], [0], [0, 0, 1, 0], [], []>} : vector<8x8xbf16>, vector<8x8xbf16>, vector<8x8xf32> -> vector<8x8xf32>
    %cst_14 = arith.constant 0.176776692 : f32
    %40 = vector.broadcast %cst_14 : f32 to vector<8x8xf32>
    %41 = arith.mulf %39, %40 : vector<8x8xf32>
    %cst_15 = arith.constant 0xFF800000 : f32
    %42 = vector.broadcast %cst_15 : f32 to vector<8x8xf32>
    %43 = arith.select %35, %41, %42 : vector<8x8xi1>, vector<8x8xf32>
    %cst_16 = arith.constant dense<0xFF800000> : vector<8xf32>
    %44 = vector.multi_reduction <maximumf>, %43, %cst_16 [1] : vector<8x8xf32> to vector<8xf32>
    %45 = vector.shape_cast %44 : vector<8xf32> to vector<8x1xf32>
    %46 = vector.broadcast %45 : vector<8x1xf32> to vector<8x8xf32>
    %47 = arith.subf %43, %46 : vector<8x8xf32>
    %48 = math.exp %47 : vector<8x8xf32>
    %cst_17 = arith.constant dense<0.000000e+00> : vector<8xf32>
    %49 = vector.multi_reduction <add>, %48, %cst_17 [1] : vector<8x8xf32> to vector<8xf32>
    %50 = vector.shape_cast %49 : vector<8xf32> to vector<8x1xf32>
    %51 = tpu.reciprocal %50 {approx = true} : vector<8x1xf32> -> vector<8x1xf32>
    %52 = vector.broadcast %51 : vector<8x1xf32> to vector<8x8xf32>
    %53 = arith.mulf %48, %52 : vector<8x8xf32>
    %54 = arith.truncf %53 : vector<8x8xf32> to vector<8x8xbf16>
    %cst_18 = arith.constant dense<0.000000e+00> : vector<8x8xf32>
    %55 = tpu.matmul %54, %38, %cst_18 {dimension_numbers = #tpu.dot_dimension_numbers<[1], [0], [0], [1], [0, 0, 1, 1], [], []>} : vector<8x8xbf16>, vector<8x8xbf16>, vector<8x8xf32> -> vector<8x8xf32>
    %56 = vector.extract_strided_slice %30 {offsets = [0, 8], sizes = [8, 8], strides = [1, 1]} : vector<8x96xbf16> to vector<8x8xbf16>
    %57 = vector.extract_strided_slice %26 {offsets = [0, 40], sizes = [8, 8], strides = [1, 1]} : vector<8x96xbf16> to vector<8x8xbf16>
    %58 = vector.extract_strided_slice %26 {offsets = [0, 72], sizes = [8, 8], strides = [1, 1]} : vector<8x96xbf16> to vector<8x8xbf16>
    %cst_19 = arith.constant dense<0.000000e+00> : vector<8x8xf32>
    %59 = tpu.matmul %56, %57, %cst_19 {dimension_numbers = #tpu.dot_dimension_numbers<[1], [1], [0], [0], [0, 0, 1, 0], [], []>} : vector<8x8xbf16>, vector<8x8xbf16>, vector<8x8xf32> -> vector<8x8xf32>
    %cst_20 = arith.constant 0.176776692 : f32
    %60 = vector.broadcast %cst_20 : f32 to vector<8x8xf32>
    %61 = arith.mulf %59, %60 : vector<8x8xf32>
    %cst_21 = arith.constant 0xFF800000 : f32
    %62 = vector.broadcast %cst_21 : f32 to vector<8x8xf32>
    %63 = arith.select %35, %61, %62 : vector<8x8xi1>, vector<8x8xf32>
    %cst_22 = arith.constant dense<0xFF800000> : vector<8xf32>
    %64 = vector.multi_reduction <maximumf>, %63, %cst_22 [1] : vector<8x8xf32> to vector<8xf32>
    %65 = vector.shape_cast %64 : vector<8xf32> to vector<8x1xf32>
    %66 = vector.broadcast %65 : vector<8x1xf32> to vector<8x8xf32>
    %67 = arith.subf %63, %66 : vector<8x8xf32>
    %68 = math.exp %67 : vector<8x8xf32>
    %cst_23 = arith.constant dense<0.000000e+00> : vector<8xf32>
    %69 = vector.multi_reduction <add>, %68, %cst_23 [1] : vector<8x8xf32> to vector<8xf32>
    %70 = vector.shape_cast %69 : vector<8xf32> to vector<8x1xf32>
    %71 = tpu.reciprocal %70 {approx = true} : vector<8x1xf32> -> vector<8x1xf32>
    %72 = vector.broadcast %71 : vector<8x1xf32> to vector<8x8xf32>
    %73 = arith.mulf %68, %72 : vector<8x8xf32>
    %74 = arith.truncf %73 : vector<8x8xf32> to vector<8x8xbf16>
    %cst_24 = arith.constant dense<0.000000e+00> : vector<8x8xf32>
    %75 = tpu.matmul %74, %58, %cst_24 {dimension_numbers = #tpu.dot_dimension_numbers<[1], [0], [0], [1], [0, 0, 1, 1], [], []>} : vector<8x8xbf16>, vector<8x8xbf16>, vector<8x8xf32> -> vector<8x8xf32>
    %76 = vector.extract_strided_slice %30 {offsets = [0, 16], sizes = [8, 8], strides = [1, 1]} : vector<8x96xbf16> to vector<8x8xbf16>
    %77 = vector.extract_strided_slice %26 {offsets = [0, 48], sizes = [8, 8], strides = [1, 1]} : vector<8x96xbf16> to vector<8x8xbf16>
    %78 = vector.extract_strided_slice %26 {offsets = [0, 80], sizes = [8, 8], strides = [1, 1]} : vector<8x96xbf16> to vector<8x8xbf16>
    %cst_25 = arith.constant dense<0.000000e+00> : vector<8x8xf32>
    %79 = tpu.matmul %76, %77, %cst_25 {dimension_numbers = #tpu.dot_dimension_numbers<[1], [1], [0], [0], [0, 0, 1, 0], [], []>} : vector<8x8xbf16>, vector<8x8xbf16>, vector<8x8xf32> -> vector<8x8xf32>
    %cst_26 = arith.constant 0.176776692 : f32
    %80 = vector.broadcast %cst_26 : f32 to vector<8x8xf32>
    %81 = arith.mulf %79, %80 : vector<8x8xf32>
    %cst_27 = arith.constant 0xFF800000 : f32
    %82 = vector.broadcast %cst_27 : f32 to vector<8x8xf32>
    %83 = arith.select %35, %81, %82 : vector<8x8xi1>, vector<8x8xf32>
    %cst_28 = arith.constant dense<0xFF800000> : vector<8xf32>
    %84 = vector.multi_reduction <maximumf>, %83, %cst_28 [1] : vector<8x8xf32> to vector<8xf32>
    %85 = vector.shape_cast %84 : vector<8xf32> to vector<8x1xf32>
    %86 = vector.broadcast %85 : vector<8x1xf32> to vector<8x8xf32>
    %87 = arith.subf %83, %86 : vector<8x8xf32>
    %88 = math.exp %87 : vector<8x8xf32>
    %cst_29 = arith.constant dense<0.000000e+00> : vector<8xf32>
    %89 = vector.multi_reduction <add>, %88, %cst_29 [1] : vector<8x8xf32> to vector<8xf32>
    %90 = vector.shape_cast %89 : vector<8xf32> to vector<8x1xf32>
    %91 = tpu.reciprocal %90 {approx = true} : vector<8x1xf32> -> vector<8x1xf32>
    %92 = vector.broadcast %91 : vector<8x1xf32> to vector<8x8xf32>
    %93 = arith.mulf %88, %92 : vector<8x8xf32>
    %94 = arith.truncf %93 : vector<8x8xf32> to vector<8x8xbf16>
    %cst_30 = arith.constant dense<0.000000e+00> : vector<8x8xf32>
    %95 = tpu.matmul %94, %78, %cst_30 {dimension_numbers = #tpu.dot_dimension_numbers<[1], [0], [0], [1], [0, 0, 1, 1], [], []>} : vector<8x8xbf16>, vector<8x8xbf16>, vector<8x8xf32> -> vector<8x8xf32>
    %96 = vector.extract_strided_slice %30 {offsets = [0, 24], sizes = [8, 8], strides = [1, 1]} : vector<8x96xbf16> to vector<8x8xbf16>
    %97 = vector.extract_strided_slice %26 {offsets = [0, 56], sizes = [8, 8], strides = [1, 1]} : vector<8x96xbf16> to vector<8x8xbf16>
    %98 = vector.extract_strided_slice %26 {offsets = [0, 88], sizes = [8, 8], strides = [1, 1]} : vector<8x96xbf16> to vector<8x8xbf16>
    %cst_31 = arith.constant dense<0.000000e+00> : vector<8x8xf32>
    %99 = tpu.matmul %96, %97, %cst_31 {dimension_numbers = #tpu.dot_dimension_numbers<[1], [1], [0], [0], [0, 0, 1, 0], [], []>} : vector<8x8xbf16>, vector<8x8xbf16>, vector<8x8xf32> -> vector<8x8xf32>
    %cst_32 = arith.constant 0.176776692 : f32
    %100 = vector.broadcast %cst_32 : f32 to vector<8x8xf32>
    %101 = arith.mulf %99, %100 : vector<8x8xf32>
    %cst_33 = arith.constant 0xFF800000 : f32
    %102 = vector.broadcast %cst_33 : f32 to vector<8x8xf32>
    %103 = arith.select %35, %101, %102 : vector<8x8xi1>, vector<8x8xf32>
    %cst_34 = arith.constant dense<0xFF800000> : vector<8xf32>
    %104 = vector.multi_reduction <maximumf>, %103, %cst_34 [1] : vector<8x8xf32> to vector<8xf32>
    %105 = vector.shape_cast %104 : vector<8xf32> to vector<8x1xf32>
    %106 = vector.broadcast %105 : vector<8x1xf32> to vector<8x8xf32>
    %107 = arith.subf %103, %106 : vector<8x8xf32>
    %108 = math.exp %107 : vector<8x8xf32>
    %cst_35 = arith.constant dense<0.000000e+00> : vector<8xf32>
    %109 = vector.multi_reduction <add>, %108, %cst_35 [1] : vector<8x8xf32> to vector<8xf32>
    %110 = vector.shape_cast %109 : vector<8xf32> to vector<8x1xf32>
    %111 = tpu.reciprocal %110 {approx = true} : vector<8x1xf32> -> vector<8x1xf32>
    %112 = vector.broadcast %111 : vector<8x1xf32> to vector<8x8xf32>
    %113 = arith.mulf %108, %112 : vector<8x8xf32>
    %114 = arith.truncf %113 : vector<8x8xf32> to vector<8x8xbf16>
    %cst_36 = arith.constant dense<0.000000e+00> : vector<8x8xf32>
    %115 = tpu.matmul %114, %98, %cst_36 {dimension_numbers = #tpu.dot_dimension_numbers<[1], [0], [0], [1], [0, 0, 1, 1], [], []>} : vector<8x8xbf16>, vector<8x8xbf16>, vector<8x8xf32> -> vector<8x8xf32>
    %116 = tpu.concatenate %55, %75, %95, %115 in 1 : vector<8x8xf32>, vector<8x8xf32>, vector<8x8xf32>, vector<8x8xf32> -> vector<8x32xf32>
    %117 = arith.truncf %116 : vector<8x32xf32> to vector<8x32xbf16>
    %c0_37 = arith.constant 0 : index
    %c0_38 = arith.constant 0 : index
    %118 = vector.load %arg6[%c0_37, %c0_38] : memref<32x32xbf16, #tpu.memory_space<vmem>>, vector<32x32xbf16>
    %cst_39 = arith.constant dense<0.000000e+00> : vector<8x32xf32>
    %119 = tpu.matmul %117, %118, %cst_39 {dimension_numbers = #tpu.dot_dimension_numbers<[1], [0], [0], [1], [0, 0, 1, 1], [], []>} : vector<8x32xbf16>, vector<32x32xbf16>, vector<8x32xf32> -> vector<8x32xf32>
    %c0_40 = arith.constant 0 : index
    %c0_41 = arith.constant 0 : index
    %120 = vector.load %arg7[%c0_40, %c0_41] : memref<1x32xf32, #tpu.memory_space<vmem>>, vector<1x32xf32>
    %121 = vector.broadcast %120 : vector<1x32xf32> to vector<8x32xf32>
    %122 = arith.addf %119, %121 : vector<8x32xf32>
    %123 = arith.addf %122, %25 : vector<8x32xf32>
    %cst_42 = arith.constant dense<0.000000e+00> : vector<8xf32>
    %124 = vector.multi_reduction <add>, %123, %cst_42 [1] : vector<8x32xf32> to vector<8xf32>
    %125 = vector.shape_cast %124 : vector<8xf32> to vector<8x1xf32>
    %cst_43 = arith.constant 3.200000e+01 : f32
    %126 = vector.broadcast %cst_43 : f32 to vector<8x1xf32>
    %127 = arith.divf %125, %126 : vector<8x1xf32>
    %128 = vector.broadcast %127 : vector<8x1xf32> to vector<8x32xf32>
    %129 = arith.subf %123, %128 : vector<8x32xf32>
    %130 = arith.mulf %129, %129 : vector<8x32xf32>
    %cst_44 = arith.constant dense<0.000000e+00> : vector<8xf32>
    %131 = vector.multi_reduction <add>, %130, %cst_44 [1] : vector<8x32xf32> to vector<8xf32>
    %132 = vector.shape_cast %131 : vector<8xf32> to vector<8x1xf32>
    %cst_45 = arith.constant 3.200000e+01 : f32
    %133 = vector.broadcast %cst_45 : f32 to vector<8x1xf32>
    %134 = arith.divf %132, %133 : vector<8x1xf32>
    %135 = vector.broadcast %127 : vector<8x1xf32> to vector<8x32xf32>
    %136 = arith.subf %123, %135 : vector<8x32xf32>
    %cst_46 = arith.constant 9.99999974E-6 : f32
    %137 = vector.broadcast %cst_46 : f32 to vector<8x1xf32>
    %138 = arith.addf %134, %137 : vector<8x1xf32>
    %139 = math.rsqrt %138 : vector<8x1xf32>
    %140 = vector.broadcast %139 : vector<8x1xf32> to vector<8x32xf32>
    %141 = arith.mulf %136, %140 : vector<8x32xf32>
    %c0_47 = arith.constant 0 : index
    %c0_48 = arith.constant 0 : index
    %142 = vector.load %arg8[%c0_47, %c0_48] : memref<1x32xf32, #tpu.memory_space<vmem>>, vector<1x32xf32>
    %143 = vector.broadcast %142 : vector<1x32xf32> to vector<8x32xf32>
    %144 = arith.mulf %141, %143 : vector<8x32xf32>
    %c0_49 = arith.constant 0 : index
    %c0_50 = arith.constant 0 : index
    %145 = vector.load %arg9[%c0_49, %c0_50] : memref<1x32xf32, #tpu.memory_space<vmem>>, vector<1x32xf32>
    %146 = vector.broadcast %145 : vector<1x32xf32> to vector<8x32xf32>
    %147 = arith.addf %144, %146 : vector<8x32xf32>
    %c0_51 = arith.constant 0 : index
    %c0_52 = arith.constant 0 : index
    %148 = vector.load %arg10[%c0_51, %c0_52] : memref<8x32xf32, #tpu.memory_space<vmem>>, vector<8x32xf32>
    tpu.vector_store %arg10[%c0_51, %c0_52], %147 {strides = array<i32>} : memref<8x32xf32, #tpu.memory_space<vmem>>, vector<8x32xf32>,
    return
  }
  func.func @transform_0(%arg0: i32, %arg1: i32) -> (i32, i32, i32) {
    %c0_i32 = arith.constant 0 : i32
    %c0_i32_0 = arith.constant 0 : i32
    return %arg0, %arg1, %c0_i32 : i32, i32, i32
  }
  func.func @transform_1(%arg0: i32, %arg1: i32) -> (i32, i32) {
    %c0_i32 = arith.constant 0 : i32
    %c0_i32_0 = arith.constant 0 : i32
    %c0_i32_1 = arith.constant 0 : i32
    return %c0_i32, %c0_i32_0 : i32, i32
  }
  func.func @transform_2(%arg0: i32, %arg1: i32) -> (i32, i32) {
    %c0_i32 = arith.constant 0 : i32
    %c0_i32_0 = arith.constant 0 : i32
    %c0_i32_1 = arith.constant 0 : i32
    return %c0_i32, %c0_i32_0 : i32, i32
  }
  func.func @transform_3(%arg0: i32, %arg1: i32) -> (i32, i32) {
    %c0_i32 = arith.constant 0 : i32
    %c0_i32_0 = arith.constant 0 : i32
    return %arg0, %c0_i32 : i32, i32
  }
  func.func @transform_4(%arg0: i32, %arg1: i32) -> (i32, i32) {
    %c0_i32 = arith.constant 0 : i32
    %c0_i32_0 = arith.constant 0 : i32
    %c0_i32_1 = arith.constant 0 : i32
    return %c0_i32, %c0_i32_0 : i32, i32
  }
  func.func @transform_5(%arg0: i32, %arg1: i32) -> (i32, i32) {
    %c0_i32 = arith.constant 0 : i32
    %c0_i32_0 = arith.constant 0 : i32
    %c0_i32_1 = arith.constant 0 : i32
    return %c0_i32, %c0_i32_0 : i32, i32
  }
  func.func @transform_6(%arg0: i32, %arg1: i32) -> (i32, i32) {
    %c0_i32 = arith.constant 0 : i32
    %c0_i32_0 = arith.constant 0 : i32
    %c0_i32_1 = arith.constant 0 : i32
    return %c0_i32, %c0_i32_0 : i32, i32
  }
  func.func @transform_7(%arg0: i32, %arg1: i32) -> (i32, i32) {
    %c0_i32 = arith.constant 0 : i32
    %c0_i32_0 = arith.constant 0 : i32
    %c0_i32_1 = arith.constant 0 : i32
    return %c0_i32, %c0_i32_0 : i32, i32
  }
  func.func @transform_8(%arg0: i32, %arg1: i32) -> (i32, i32) {
    %c1_i32 = arith.constant 1 : i32
    %0 = arith.muli %arg0, %c1_i32 : i32
    %1 = arith.addi %0, %arg1 : i32
    %c0_i32 = arith.constant 0 : i32
    %c0_i32_0 = arith.constant 0 : i32
    return %1, %c0_i32 : i32, i32
  }
}

module attributes {stable_mosaic.version = 11 : i64} {
  func.func @router_kernel(%arg0: i32, %arg1: memref<256x32xf32, #tpu.memory_space<vmem>>, %arg2: memref<32x128xf32, #tpu.memory_space<vmem>>, %arg3: memref<1x128xf32, #tpu.memory_space<vmem>>, %arg4: memref<128x128xf32, #tpu.memory_space<vmem>>, %arg5: memref<1x128xf32, #tpu.memory_space<vmem>>, %arg6: memref<256x128xf32, #tpu.memory_space<vmem>>) attributes {dimension_semantics = [#tpu.dimension_semantics<parallel>], iteration_bounds = array<i64: 1>, scalar_prefetch = 0 : i64, scratch_operands = 0 : i64, tpu.core_type = #tpu.core_type<tc>, window_params = [{transform_indices = @transform_0, window_bounds = array<i64: 256, 32>}, {pipeline_mode = #tpu.pipeline_mode<synchronous>, transform_indices = @transform_1, window_bounds = array<i64: 32, 128>}, {pipeline_mode = #tpu.pipeline_mode<synchronous>, transform_indices = @transform_2, window_bounds = array<i64: 1, 128>}, {pipeline_mode = #tpu.pipeline_mode<synchronous>, transform_indices = @transform_3, window_bounds = array<i64: 128, 128>}, {pipeline_mode = #tpu.pipeline_mode<synchronous>, transform_indices = @transform_4, window_bounds = array<i64: 1, 128>}, {transform_indices = @transform_5, window_bounds = array<i64: 256, 128>}]} {
    %c0 = arith.constant 0 : index
    %c0_0 = arith.constant 0 : index
    %0 = vector.load %arg1[%c0, %c0_0] : memref<256x32xf32, #tpu.memory_space<vmem>>, vector<256x32xf32>
    %c0_1 = arith.constant 0 : index
    %c0_2 = arith.constant 0 : index
    %1 = vector.load %arg2[%c0_1, %c0_2] : memref<32x128xf32, #tpu.memory_space<vmem>>, vector<32x128xf32>
    %cst = arith.constant dense<0.000000e+00> : vector<256x128xf32>
    %2 = tpu.matmul %0, %1, %cst {dimension_numbers = #tpu.dot_dimension_numbers<[1], [0], [0], [1], [0, 0, 1, 1], [], []>} : vector<256x32xf32>, vector<32x128xf32>, vector<256x128xf32> -> vector<256x128xf32>
    %c0_3 = arith.constant 0 : index
    %c0_4 = arith.constant 0 : index
    %3 = vector.load %arg3[%c0_3, %c0_4] : memref<1x128xf32, #tpu.memory_space<vmem>>, vector<1x128xf32>
    %4 = vector.broadcast %3 : vector<1x128xf32> to vector<256x128xf32>
    %5 = arith.addf %2, %4 : vector<256x128xf32>
    %cst_5 = arith.constant 0.000000e+00 : f32
    %6 = vector.broadcast %cst_5 : f32 to vector<256x128xf32>
    %7 = arith.maximumf %5, %6 : vector<256x128xf32>
    %c0_6 = arith.constant 0 : index
    %c0_7 = arith.constant 0 : index
    %8 = vector.load %arg4[%c0_6, %c0_7] : memref<128x128xf32, #tpu.memory_space<vmem>>, vector<128x128xf32>
    %cst_8 = arith.constant dense<0.000000e+00> : vector<256x128xf32>
    %9 = tpu.matmul %7, %8, %cst_8 {dimension_numbers = #tpu.dot_dimension_numbers<[1], [0], [0], [1], [0, 0, 1, 1], [], []>} : vector<256x128xf32>, vector<128x128xf32>, vector<256x128xf32> -> vector<256x128xf32>
    %c0_9 = arith.constant 0 : index
    %c0_10 = arith.constant 0 : index
    %10 = vector.load %arg5[%c0_9, %c0_10] : memref<1x128xf32, #tpu.memory_space<vmem>>, vector<1x128xf32>
    %11 = vector.broadcast %10 : vector<1x128xf32> to vector<256x128xf32>
    %12 = arith.addf %9, %11 : vector<256x128xf32>
    %13 = tpu.iota {dimensions = array<i32: 1>} : vector<256x128xi32>
    %false = arith.constant false
    %14 = vector.broadcast %false : i1 to vector<256x128xi1>
    %cst_11 = arith.constant dense<0xFF800000> : vector<256xf32>
    %15 = vector.multi_reduction <maximumf>, %12, %cst_11 [1] : vector<256x128xf32> to vector<256xf32>
    %16 = vector.shape_cast %15 : vector<256xf32> to vector<256x1xf32>
    %17 = vector.broadcast %16 : vector<256x1xf32> to vector<256x128xf32>
    %18 = arith.cmpf oeq, %12, %17 : vector<256x128xf32>
    %c128_i32 = arith.constant 128 : i32
    %19 = vector.broadcast %c128_i32 : i32 to vector<256x128xi32>
    %20 = arith.select %18, %13, %19 : vector<256x128xi1>, vector<256x128xi32>
    %cst_12 = arith.constant dense<2147483647> : vector<256xi32>
    %21 = vector.multi_reduction <minsi>, %20, %cst_12 [1] : vector<256x128xi32> to vector<256xi32>
    %22 = vector.shape_cast %21 : vector<256xi32> to vector<256x1xi32>
    %23 = vector.broadcast %22 : vector<256x1xi32> to vector<256x128xi32>
    %24 = arith.cmpi eq, %13, %23 : vector<256x128xi32>
    %25 = arith.ori %14, %24 : vector<256x128xi1>
    %cst_13 = arith.constant 0xFF800000 : f32
    %26 = vector.broadcast %cst_13 : f32 to vector<256x128xf32>
    %27 = arith.select %24, %26, %12 : vector<256x128xi1>, vector<256x128xf32>
    %cst_14 = arith.constant dense<0xFF800000> : vector<256xf32>
    %28 = vector.multi_reduction <maximumf>, %27, %cst_14 [1] : vector<256x128xf32> to vector<256xf32>
    %29 = vector.shape_cast %28 : vector<256xf32> to vector<256x1xf32>
    %30 = vector.broadcast %29 : vector<256x1xf32> to vector<256x128xf32>
    %31 = arith.cmpf oeq, %27, %30 : vector<256x128xf32>
    %c128_i32_15 = arith.constant 128 : i32
    %32 = vector.broadcast %c128_i32_15 : i32 to vector<256x128xi32>
    %33 = arith.select %31, %13, %32 : vector<256x128xi1>, vector<256x128xi32>
    %cst_16 = arith.constant dense<2147483647> : vector<256xi32>
    %34 = vector.multi_reduction <minsi>, %33, %cst_16 [1] : vector<256x128xi32> to vector<256xi32>
    %35 = vector.shape_cast %34 : vector<256xi32> to vector<256x1xi32>
    %36 = vector.broadcast %35 : vector<256x1xi32> to vector<256x128xi32>
    %37 = arith.cmpi eq, %13, %36 : vector<256x128xi32>
    %38 = arith.ori %25, %37 : vector<256x128xi1>
    %cst_17 = arith.constant 0xFF800000 : f32
    %39 = vector.broadcast %cst_17 : f32 to vector<256x128xf32>
    %40 = arith.select %38, %12, %39 : vector<256x128xi1>, vector<256x128xf32>
    %cst_18 = arith.constant dense<0xFF800000> : vector<256xf32>
    %41 = vector.multi_reduction <maximumf>, %40, %cst_18 [1] : vector<256x128xf32> to vector<256xf32>
    %42 = vector.shape_cast %41 : vector<256xf32> to vector<256x1xf32>
    %43 = vector.broadcast %42 : vector<256x1xf32> to vector<256x128xf32>
    %44 = arith.subf %40, %43 : vector<256x128xf32>
    %45 = math.exp %44 : vector<256x128xf32>
    %cst_19 = arith.constant dense<0.000000e+00> : vector<256xf32>
    %46 = vector.multi_reduction <add>, %45, %cst_19 [1] : vector<256x128xf32> to vector<256xf32>
    %47 = vector.shape_cast %46 : vector<256xf32> to vector<256x1xf32>
    %48 = vector.broadcast %47 : vector<256x1xf32> to vector<256x128xf32>
    %49 = arith.divf %45, %48 : vector<256x128xf32>
    %c0_20 = arith.constant 0 : index
    %c0_21 = arith.constant 0 : index
    %50 = vector.load %arg6[%c0_20, %c0_21] : memref<256x128xf32, #tpu.memory_space<vmem>>, vector<256x128xf32>
    tpu.vector_store %arg6[%c0_20, %c0_21], %49 {strides = array<i32>} : memref<256x128xf32, #tpu.memory_space<vmem>>, vector<256x128xf32>,
    return
  }
  func.func @transform_0(%arg0: i32) -> (i32, i32) {
    %c0_i32 = arith.constant 0 : i32
    %c0_i32_0 = arith.constant 0 : i32
    return %arg0, %c0_i32 : i32, i32
  }
  func.func @transform_1(%arg0: i32) -> (i32, i32) {
    %c0_i32 = arith.constant 0 : i32
    %c0_i32_0 = arith.constant 0 : i32
    %c0_i32_1 = arith.constant 0 : i32
    return %c0_i32, %c0_i32_0 : i32, i32
  }
  func.func @transform_2(%arg0: i32) -> (i32, i32) {
    %c0_i32 = arith.constant 0 : i32
    %c0_i32_0 = arith.constant 0 : i32
    %c0_i32_1 = arith.constant 0 : i32
    return %c0_i32, %c0_i32_0 : i32, i32
  }
  func.func @transform_3(%arg0: i32) -> (i32, i32) {
    %c0_i32 = arith.constant 0 : i32
    %c0_i32_0 = arith.constant 0 : i32
    %c0_i32_1 = arith.constant 0 : i32
    return %c0_i32, %c0_i32_0 : i32, i32
  }
  func.func @transform_4(%arg0: i32) -> (i32, i32) {
    %c0_i32 = arith.constant 0 : i32
    %c0_i32_0 = arith.constant 0 : i32
    %c0_i32_1 = arith.constant 0 : i32
    return %c0_i32, %c0_i32_0 : i32, i32
  }
  func.func @transform_5(%arg0: i32) -> (i32, i32) {
    %c0_i32 = arith.constant 0 : i32
    %c0_i32_0 = arith.constant 0 : i32
    return %arg0, %c0_i32 : i32, i32
  }
}

module attributes {stable_mosaic.version = 11 : i64} {
  func.func @moe_kernel(%arg0: i32, %arg1: i32, %arg2: memref<1x4xi32, #tpu.memory_space<smem>>, %arg3: memref<256x32xf32, #tpu.memory_space<vmem>>, %arg4: memref<256x128xf32, #tpu.memory_space<vmem>>, %arg5: memref<1x32x128xbf16, #tpu.memory_space<vmem>>, %arg6: memref<1x1x128xf32, #tpu.memory_space<vmem>>, %arg7: memref<1x128x32xbf16, #tpu.memory_space<vmem>>, %arg8: memref<1x1x32xf32, #tpu.memory_space<vmem>>, %arg9: memref<256x32xf32, #tpu.memory_space<vmem>>, %arg10: memref<256x32xbf16, #tpu.memory_space<vmem>>, %arg11: memref<256x32xf32, #tpu.memory_space<vmem>>) attributes {dimension_semantics = [#tpu.dimension_semantics<parallel>, #tpu.dimension_semantics<arbitrary>], iteration_bounds = array<i64: 1, 4>, scalar_prefetch = 1 : i64, scratch_operands = 2 : i64, tpu.core_type = #tpu.core_type<tc>, window_params = [{transform_indices = @transform_0, window_bounds = array<i64: 256, 32>}, {transform_indices = @transform_1, window_bounds = array<i64: 256, 128>}, {transform_indices = @transform_2, window_bounds = array<i64: 1, 32, 128>}, {transform_indices = @transform_3, window_bounds = array<i64: 1, 1, 128>}, {transform_indices = @transform_4, window_bounds = array<i64: 1, 128, 32>}, {transform_indices = @transform_5, window_bounds = array<i64: 1, 1, 32>}, {transform_indices = @transform_6, window_bounds = array<i64: 256, 32>}]} {
    %c0_i32 = arith.constant 0 : i32
    %0 = arith.cmpi eq, %arg1, %c0_i32 : i32
    %1 = arith.extui %0 : i1 to i32
    %c0_i32_0 = arith.constant 0 : i32
    %2 = arith.cmpi ne, %1, %c0_i32_0 : i32
    scf.if %2 {
      %c0 = arith.constant 0 : index
      %c0_3 = arith.constant 0 : index
      %12 = vector.load %arg3[%c0, %c0_3] : memref<256x32xf32, #tpu.memory_space<vmem>>, vector<256x32xf32>
      %c0_4 = arith.constant 0 : index
      %c0_5 = arith.constant 0 : index
      %13 = vector.load %arg11[%c0_4, %c0_5] : memref<256x32xf32, #tpu.memory_space<vmem>>, vector<256x32xf32>
      tpu.vector_store %arg11[%c0_4, %c0_5], %12 {strides = array<i32>} : memref<256x32xf32, #tpu.memory_space<vmem>>, vector<256x32xf32>,
      %14 = arith.truncf %12 : vector<256x32xf32> to vector<256x32xbf16>
      %c0_6 = arith.constant 0 : index
      %c0_7 = arith.constant 0 : index
      %15 = vector.load %arg10[%c0_6, %c0_7] : memref<256x32xbf16, #tpu.memory_space<vmem>>, vector<256x32xbf16>
      tpu.vector_store %arg10[%c0_6, %c0_7], %14 {strides = array<i32>} : memref<256x32xbf16, #tpu.memory_space<vmem>>, vector<256x32xbf16>,
    } else {
    }
    %3 = arith.index_cast %arg0 : i32 to index
    %4 = arith.index_cast %arg1 : i32 to index
    %5 = memref.load %arg2[%3, %4] : memref<1x4xi32, #tpu.memory_space<smem>>
    %6 = arith.cmpi eq, %5, %arg1 : i32
    %7 = arith.extui %6 : i1 to i32
    %c0_i32_1 = arith.constant 0 : i32
    %8 = arith.cmpi ne, %7, %c0_i32_1 : i32
    scf.if %8 {
      %c0 = arith.constant 0 : index
      %c0_3 = arith.constant 0 : index
      %12 = vector.load %arg10[%c0, %c0_3] : memref<256x32xbf16, #tpu.memory_space<vmem>>, vector<256x32xbf16>
      %c0_4 = arith.constant 0 : index
      %c0_5 = arith.constant 0 : index
      %c0_6 = arith.constant 0 : index
      %13 = vector.load %arg5[%c0_4, %c0_5, %c0_6] : memref<1x32x128xbf16, #tpu.memory_space<vmem>>, vector<1x32x128xbf16>
      %14 = vector.shape_cast %13 : vector<1x32x128xbf16> to vector<32x128xbf16>
      %cst = arith.constant dense<0.000000e+00> : vector<256x128xf32>
      %15 = tpu.matmul %12, %14, %cst {dimension_numbers = #tpu.dot_dimension_numbers<[1], [0], [0], [1], [0, 0, 1, 1], [], []>} : vector<256x32xbf16>, vector<32x128xbf16>, vector<256x128xf32> -> vector<256x128xf32>
      %c0_7 = arith.constant 0 : index
      %c0_8 = arith.constant 0 : index
      %c0_9 = arith.constant 0 : index
      %16 = vector.load %arg6[%c0_7, %c0_8, %c0_9] : memref<1x1x128xf32, #tpu.memory_space<vmem>>, vector<1x1x128xf32>
      %17 = vector.shape_cast %16 : vector<1x1x128xf32> to vector<1x128xf32>
      %18 = vector.broadcast %17 : vector<1x128xf32> to vector<256x128xf32>
      %19 = arith.addf %15, %18 : vector<256x128xf32>
      %cst_10 = arith.constant 0.000000e+00 : f32
      %20 = vector.broadcast %cst_10 : f32 to vector<256x128xf32>
      %21 = arith.maximumf %19, %20 : vector<256x128xf32>
      %22 = arith.truncf %21 : vector<256x128xf32> to vector<256x128xbf16>
      %c0_11 = arith.constant 0 : index
      %c0_12 = arith.constant 0 : index
      %c0_13 = arith.constant 0 : index
      %23 = vector.load %arg7[%c0_11, %c0_12, %c0_13] : memref<1x128x32xbf16, #tpu.memory_space<vmem>>, vector<1x128x32xbf16>
      %24 = vector.shape_cast %23 : vector<1x128x32xbf16> to vector<128x32xbf16>
      %cst_14 = arith.constant dense<0.000000e+00> : vector<256x32xf32>
      %25 = tpu.matmul %22, %24, %cst_14 {dimension_numbers = #tpu.dot_dimension_numbers<[1], [0], [0], [1], [0, 0, 1, 1], [], []>} : vector<256x128xbf16>, vector<128x32xbf16>, vector<256x32xf32> -> vector<256x32xf32>
      %c0_15 = arith.constant 0 : index
      %c0_16 = arith.constant 0 : index
      %c0_17 = arith.constant 0 : index
      %26 = vector.load %arg8[%c0_15, %c0_16, %c0_17] : memref<1x1x32xf32, #tpu.memory_space<vmem>>, vector<1x1x32xf32>
      %27 = vector.shape_cast %26 : vector<1x1x32xf32> to vector<1x32xf32>
      %28 = vector.broadcast %27 : vector<1x32xf32> to vector<256x32xf32>
      %29 = arith.addf %25, %28 : vector<256x32xf32>
      %30 = tpu.iota {dimensions = array<i32: 1>} : vector<256x128xi32>
      %31 = vector.broadcast %arg1 : i32 to vector<256x128xi32>
      %32 = arith.cmpi eq, %30, %31 : vector<256x128xi32>
      %c0_18 = arith.constant 0 : index
      %c0_19 = arith.constant 0 : index
      %33 = vector.load %arg4[%c0_18, %c0_19] : memref<256x128xf32, #tpu.memory_space<vmem>>, vector<256x128xf32>
      %cst_20 = arith.constant 0.000000e+00 : f32
      %34 = vector.broadcast %cst_20 : f32 to vector<256x128xf32>
      %35 = arith.select %32, %33, %34 : vector<256x128xi1>, vector<256x128xf32>
      %cst_21 = arith.constant dense<0.000000e+00> : vector<256xf32>
      %36 = vector.multi_reduction <add>, %35, %cst_21 [1] : vector<256x128xf32> to vector<256xf32>
      %37 = vector.shape_cast %36 : vector<256xf32> to vector<256x1xf32>
      %c0_22 = arith.constant 0 : index
      %c0_23 = arith.constant 0 : index
      %38 = vector.load %arg11[%c0_22, %c0_23] : memref<256x32xf32, #tpu.memory_space<vmem>>, vector<256x32xf32>
      %39 = vector.broadcast %37 : vector<256x1xf32> to vector<256x32xf32>
      %40 = arith.mulf %39, %29 : vector<256x32xf32>
      %41 = arith.addf %38, %40 : vector<256x32xf32>
      %c0_24 = arith.constant 0 : index
      %c0_25 = arith.constant 0 : index
      %42 = vector.load %arg11[%c0_24, %c0_25] : memref<256x32xf32, #tpu.memory_space<vmem>>, vector<256x32xf32>
      tpu.vector_store %arg11[%c0_24, %c0_25], %41 {strides = array<i32>} : memref<256x32xf32, #tpu.memory_space<vmem>>, vector<256x32xf32>,
    } else {
    }
    %c3_i32 = arith.constant 3 : i32
    %9 = arith.cmpi eq, %arg1, %c3_i32 : i32
    %10 = arith.extui %9 : i1 to i32
    %c0_i32_2 = arith.constant 0 : i32
    %11 = arith.cmpi ne, %10, %c0_i32_2 : i32
    scf.if %11 {
      %c0 = arith.constant 0 : index
      %c0_3 = arith.constant 0 : index
      %12 = vector.load %arg11[%c0, %c0_3] : memref<256x32xf32, #tpu.memory_space<vmem>>, vector<256x32xf32>
      %c0_4 = arith.constant 0 : index
      %c0_5 = arith.constant 0 : index
      %13 = vector.load %arg9[%c0_4, %c0_5] : memref<256x32xf32, #tpu.memory_space<vmem>>, vector<256x32xf32>
      tpu.vector_store %arg9[%c0_4, %c0_5], %12 {strides = array<i32>} : memref<256x32xf32, #tpu.memory_space<vmem>>, vector<256x32xf32>,
    } else {
    }
    return
  }
  func.func @transform_0(%arg0: i32, %arg1: i32, %arg2: memref<1x4xi32, #tpu.memory_space<smem>>) -> (i32, i32) {
    %c0_i32 = arith.constant 0 : i32
    %c0_i32_0 = arith.constant 0 : i32
    return %arg0, %c0_i32 : i32, i32
  }
  func.func @transform_1(%arg0: i32, %arg1: i32, %arg2: memref<1x4xi32, #tpu.memory_space<smem>>) -> (i32, i32) {
    %c0_i32 = arith.constant 0 : i32
    %c0_i32_0 = arith.constant 0 : i32
    return %arg0, %c0_i32 : i32, i32
  }
  func.func @transform_2(%arg0: i32, %arg1: i32, %arg2: memref<1x4xi32, #tpu.memory_space<smem>>) -> (i32, i32, i32) {
    %0 = arith.index_cast %arg0 : i32 to index
    %1 = arith.index_cast %arg1 : i32 to index
    %2 = memref.load %arg2[%0, %1] : memref<1x4xi32, #tpu.memory_space<smem>>
    %c0_i32 = arith.constant 0 : i32
    %c0_i32_0 = arith.constant 0 : i32
    %c0_i32_1 = arith.constant 0 : i32
    return %2, %c0_i32, %c0_i32_0 : i32, i32, i32
  }
  func.func @transform_3(%arg0: i32, %arg1: i32, %arg2: memref<1x4xi32, #tpu.memory_space<smem>>) -> (i32, i32, i32) {
    %0 = arith.index_cast %arg0 : i32 to index
    %1 = arith.index_cast %arg1 : i32 to index
    %2 = memref.load %arg2[%0, %1] : memref<1x4xi32, #tpu.memory_space<smem>>
    %c0_i32 = arith.constant 0 : i32
    %c0_i32_0 = arith.constant 0 : i32
    %c0_i32_1 = arith.constant 0 : i32
    return %2, %c0_i32, %c0_i32_0 : i32, i32, i32
  }
  func.func @transform_4(%arg0: i32, %arg1: i32, %arg2: memref<1x4xi32, #tpu.memory_space<smem>>) -> (i32, i32, i32) {
    %0 = arith.index_cast %arg0 : i32 to index
    %1 = arith.index_cast %arg1 : i32 to index
    %2 = memref.load %arg2[%0, %1] : memref<1x4xi32, #tpu.memory_space<smem>>
    %c0_i32 = arith.constant 0 : i32
    %c0_i32_0 = arith.constant 0 : i32
    %c0_i32_1 = arith.constant 0 : i32
    return %2, %c0_i32, %c0_i32_0 : i32, i32, i32
  }
  func.func @transform_5(%arg0: i32, %arg1: i32, %arg2: memref<1x4xi32, #tpu.memory_space<smem>>) -> (i32, i32, i32) {
    %0 = arith.index_cast %arg0 : i32 to index
    %1 = arith.index_cast %arg1 : i32 to index
    %2 = memref.load %arg2[%0, %1] : memref<1x4xi32, #tpu.memory_space<smem>>
    %c0_i32 = arith.constant 0 : i32
    %c0_i32_0 = arith.constant 0 : i32
    %c0_i32_1 = arith.constant 0 : i32
    return %2, %c0_i32, %c0_i32_0 : i32, i32, i32
  }
  func.func @transform_6(%arg0: i32, %arg1: i32, %arg2: memref<1x4xi32, #tpu.memory_space<smem>>) -> (i32, i32) {
    %c0_i32 = arith.constant 0 : i32
    %c0_i32_0 = arith.constant 0 : i32
    return %arg0, %c0_i32 : i32, i32
  }
}

</mosaic_0001>

<llo_original>
// kernel: custom-call
$region0: #{custom-call}
  %s0 = inlined_call_operand.vmem [shape: s32[4], index: 0, kind: output, shape index: {}]

// kernel: block_forward.5
$region0: #{block_forward.5}
  #allocation0 [shape = 'u32[]', space=smem, size = 0x4, offset = 0x4, fixed_abs, tag = 'smem constant byte address 0x4 - core index']
  #allocation1 [shape = 'u32[72,128]{1,0:T(1,128)}', space=vmem, size = 0x9000, scoped, tag = 'internal scratch']
  %s0 = inlined_call_operand.vmem [shape: f32[2,8,32], index: 0, kind: input, shape index: {}]
  %s1 = inlined_call_operand.vmem [shape: f32[1,32], index: 1, kind: input, shape index: {}]
  %s2 = inlined_call_operand.vmem [shape: f32[1,32], index: 2, kind: input, shape index: {}]
  %s3 = inlined_call_operand.vmem [shape: bf16[256,96], index: 3, kind: input, shape index: {}]
  %s4 = inlined_call_operand.vmem [shape: bf16[32,32], index: 4, kind: input, shape index: {}]
  %s5 = inlined_call_operand.vmem [shape: f32[1,32], index: 5, kind: input, shape index: {}]
  %s6 = inlined_call_operand.vmem [shape: f32[1,32], index: 6, kind: input, shape index: {}]
  %s7 = inlined_call_operand.vmem [shape: f32[1,32], index: 7, kind: input, shape index: {}]
  %s8 = inlined_call_operand.vmem [shape: f32[16,32], index: 8, kind: output, shape index: {}]
  %s9 = sld [smem:[#allocation0]]
  $region65: #{block_forward.5} parent=0
    _
  %s11 = ssub.s32 1, %s9
  %s12 = scalar_select 0, %s11, %s9
  loop: start=0, step=1, limit=4
  $region2: #{block_forward.5} parent=0 // loop_pre_header
    _
  $region3: #{block_forward.5} parent=0 // loop_header
    %s14 = sphi 0, %s18
    %p15 = scmp.ge.s32.totalorder %s14, 4
    %s21 = sphi 0, %s33
    %s22 = sphi 0, %s29
    %s23 = sphi 0, %s21
    %s24 = sphi 0, %s22
    %s25 = sphi 0, %s23
    %s26 = sphi 0, %s24
    %s38 = sphi 0, %s40
    %s41 = sphi 0, %s38
    %s42 = sphi 0, %s41
    %s58 = sphi 0, %s42
    %s62 = sphi 0, %s62
    %s64 = sphi 0, %s62
    %s65 = sphi 0, %s64
    %s79 = sphi 0, %s65
    %s83 = sphi 0, %s83
    %s85 = sphi 0, %s83
    %s86 = sphi 0, %s85
    %s100 = sphi 0, %s86
    %s106 = sphi 0, %s108
    %s109 = sphi 0, %s106
    %s110 = sphi 0, %s109
    %s126 = sphi 0, %s110
    %s130 = sphi 0, %s130
    %s132 = sphi 0, %s130
    %s133 = sphi 0, %s132
    %s147 = sphi 0, %s133
    %s151 = sphi 0, %s151
    %s153 = sphi 0, %s151
    %s154 = sphi 0, %s153
    %s168 = sphi 0, %s154
    %s172 = sphi 0, %s172
    %s174 = sphi 0, %s172
    %s175 = sphi 0, %s174
    %s189 = sphi 0, %s175
    %s193 = sphi 0, %s193
    %s195 = sphi 0, %s193
    %s196 = sphi 0, %s195
    %s210 = sphi 0, %s196
    %s218 = sphi 0, %s220
    %s221 = sphi 0, %s218
    %s222 = sphi 0, %s221
    %s238 = sphi 0, %s222
  $region4: #{block_forward.5} parent=0 // loop_header_branch
    %17 = sbr.rel (%p15) target = $region8
  $region5: #{block_forward.5} parent=0 // loop_body
    %s19 = ssub.s32 %s14, 1
    %s20 = ssub.s32 %s14, 2
    %s27 = sadd.s32 1, %s22
    %p28 = scmp.ge.s32.totalorder %s27, 1
    %s29 = scalar_select %p28, 0, %s27
    %s30 = sadd.s32 1, %s21
    %s31 = scalar_select %p28, %s30, %s21
    %p32 = scmp.ge.s32.totalorder %s31, 2
    %s33 = scalar_select %p32, 0, %s31
    %s34 = ssub.s32 %s21, %s33
    %s35 = ssub.s32 %s22, %s29
    %s36 = sor.u32 %s34, %s35
    %p37 = scmp.eq.s32.totalorder %s36, 0
    %s39 = sadd.s32 %s38, 1
    %s40 = scalar_select %p37, %s38, %s39
    %p43 = pneg %p37
    %p44 = scmp.eq.s32.totalorder %s14, 1
    %p45 = por %p43, %p44
    %p46 = scmp.ne.s32.totalorder %s38, %s41
    %p47 = scmp.eq.s32.totalorder %s14, 0
    %p48 = por %p46, %p47
    %p49 = scmp.ne.s32.totalorder %s38, %s41
    %p50 = scmp.eq.s32.totalorder %s19, 1
    %p51 = por %p49, %p50
    %p52 = scmp.ne.s32.totalorder %s41, %s42
    %p53 = scmp.eq.s32.totalorder %s19, 0
    %p54 = por %p52, %p53
    %p55 = scmp.ne.s32.totalorder %s41, %s42
    %p56 = scmp.eq.s32.totalorder %s20, 1
    %p57 = por %p55, %p56
    %p59 = scmp.ne.s32.totalorder %s42, %s58
    %p60 = scmp.eq.s32.totalorder %s20, 0
    %p61 = por %p59, %p60
    %s63 = sadd.s32 %s62, 1
    %p66 = scmp.eq.s32.totalorder %s14, 1
    %p67 = scmp.ne.s32.totalorder %s62, %s64
    %p68 = scmp.eq.s32.totalorder %s14, 0
    %p69 = por %p67, %p68
    %p70 = scmp.ne.s32.totalorder %s62, %s64
    %p71 = scmp.eq.s32.totalorder %s19, 1
    %p72 = por %p70, %p71
    %p73 = scmp.ne.s32.totalorder %s64, %s65
    %p74 = scmp.eq.s32.totalorder %s19, 0
    %p75 = por %p73, %p74
    %p76 = scmp.ne.s32.totalorder %s64, %s65
    %p77 = scmp.eq.s32.totalorder %s20, 1
    %p78 = por %p76, %p77
    %p80 = scmp.ne.s32.totalorder %s65, %s79
    %p81 = scmp.eq.s32.totalorder %s20, 0
    %p82 = por %p80, %p81
    %s84 = sadd.s32 %s83, 1
    %p87 = scmp.eq.s32.totalorder %s14, 1
    %p88 = scmp.ne.s32.totalorder %s83, %s85
    %p89 = scmp.eq.s32.totalorder %s14, 0
    %p90 = por %p88, %p89
    %p91 = scmp.ne.s32.totalorder %s83, %s85
    %p92 = scmp.eq.s32.totalorder %s19, 1
    %p93 = por %p91, %p92
    %p94 = scmp.ne.s32.totalorder %s85, %s86
    %p95 = scmp.eq.s32.totalorder %s19, 0
    %p96 = por %p94, %p95
    %p97 = scmp.ne.s32.totalorder %s85, %s86
    %p98 = scmp.eq.s32.totalorder %s20, 1
    %p99 = por %p97, %p98
    %p101 = scmp.ne.s32.totalorder %s86, %s100
    %p102 = scmp.eq.s32.totalorder %s20, 0
    %p103 = por %p101, %p102
    %s104 = ssub.s32 %s21, %s33
    %p105 = scmp.eq.s32.totalorder %s104, 0
    %s107 = sadd.s32 %s106, 1
    %s108 = scalar_select %p105, %s106, %s107
    %p111 = pneg %p105
    %p112 = scmp.eq.s32.totalorder %s14, 1
    %p113 = por %p111, %p112
    %p114 = scmp.ne.s32.totalorder %s106, %s109
    %p115 = scmp.eq.s32.totalorder %s14, 0
    %p116 = por %p114, %p115
    %p117 = scmp.ne.s32.totalorder %s106, %s109
    %p118 = scmp.eq.s32.totalorder %s19, 1
    %p119 = por %p117, %p118
    %p120 = scmp.ne.s32.totalorder %s109, %s110
    %p121 = scmp.eq.s32.totalorder %s19, 0
    %p122 = por %p120, %p121
    %p123 = scmp.ne.s32.totalorder %s109, %s110
    %p124 = scmp.eq.s32.totalorder %s20, 1
    %p125 = por %p123, %p124
    %p127 = scmp.ne.s32.totalorder %s110, %s126
    %p128 = scmp.eq.s32.totalorder %s20, 0
    %p129 = por %p127, %p128
    %s131 = sadd.s32 %s130, 1
    %p134 = scmp.eq.s32.totalorder %s14, 1
    %p135 = scmp.ne.s32.totalorder %s130, %s132
    %p136 = scmp.eq.s32.totalorder %s14, 0
    %p137 = por %p135, %p136
    %p138 = scmp.ne.s32.totalorder %s130, %s132
    %p139 = scmp.eq.s32.totalorder %s19, 1
    %p140 = por %p138, %p139
    %p141 = scmp.ne.s32.totalorder %s132, %s133
    %p142 = scmp.eq.s32.totalorder %s19, 0
    %p143 = por %p141, %p142
    %p144 = scmp.ne.s32.totalorder %s132, %s133
    %p145 = scmp.eq.s32.totalorder %s20, 1
    %p146 = por %p144, %p145
    %p148 = scmp.ne.s32.totalorder %s133, %s147
    %p149 = scmp.eq.s32.totalorder %s20, 0
    %p150 = por %p148, %p149
    %s152 = sadd.s32 %s151, 1
    %p155 = scmp.eq.s32.totalorder %s14, 1
    %p156 = scmp.ne.s32.totalorder %s151, %s153
    %p157 = scmp.eq.s32.totalorder %s14, 0
    %p158 = por %p156, %p157
    %p159 = scmp.ne.s32.totalorder %s151, %s153
    %p160 = scmp.eq.s32.totalorder %s19, 1
    %p161 = por %p159, %p160
    %p162 = scmp.ne.s32.totalorder %s153, %s154
    %p163 = scmp.eq.s32.totalorder %s19, 0
    %p164 = por %p162, %p163
    %p165 = scmp.ne.s32.totalorder %s153, %s154
    %p166 = scmp.eq.s32.totalorder %s20, 1
    %p167 = por %p165, %p166
    %p169 = scmp.ne.s32.totalorder %s154, %s168
    %p170 = scmp.eq.s32.totalorder %s20, 0
    %p171 = por %p169, %p170
    %s173 = sadd.s32 %s172, 1
    %p176 = scmp.eq.s32.totalorder %s14, 1
    %p177 = scmp.ne.s32.totalorder %s172, %s174
    %p178 = scmp.eq.s32.totalorder %s14, 0
    %p179 = por %p177, %p178
    %p180 = scmp.ne.s32.totalorder %s172, %s174
    %p181 = scmp.eq.s32.totalorder %s19, 1
    %p182 = por %p180, %p181
    %p183 = scmp.ne.s32.totalorder %s174, %s175
    %p184 = scmp.eq.s32.totalorder %s19, 0
    %p185 = por %p183, %p184
    %p186 = scmp.ne.s32.totalorder %s174, %s175
    %p187 = scmp.eq.s32.totalorder %s20, 1
    %p188 = por %p186, %p187
    %p190 = scmp.ne.s32.totalorder %s175, %s189
    %p191 = scmp.eq.s32.totalorder %s20, 0
    %p192 = por %p190, %p191
    %s194 = sadd.s32 %s193, 1
    %p197 = scmp.eq.s32.totalorder %s14, 1
    %p198 = scmp.ne.s32.totalorder %s193, %s195
    %p199 = scmp.eq.s32.totalorder %s14, 0
    %p200 = por %p198, %p199
    %p201 = scmp.ne.s32.totalorder %s193, %s195
    %p202 = scmp.eq.s32.totalorder %s19, 1
    %p203 = por %p201, %p202
    %p204 = scmp.ne.s32.totalorder %s195, %s196
    %p205 = scmp.eq.s32.totalorder %s19, 0
    %p206 = por %p204, %p205
    %p207 = scmp.ne.s32.totalorder %s195, %s196
    %p208 = scmp.eq.s32.totalorder %s20, 1
    %p209 = por %p207, %p208
    %p211 = scmp.ne.s32.totalorder %s196, %s210
    %p212 = scmp.eq.s32.totalorder %s20, 0
    %p213 = por %p211, %p212
    %s214 = sadd.s32 %s21, %s22
    %s215 = sadd.s32 %s33, %s29
    %s216 = ssub.s32 %s214, %s215
    %p217 = scmp.eq.s32.totalorder %s216, 0
    %s219 = sadd.s32 %s218, 1
    %s220 = scalar_select %p217, %s218, %s219
    %p223 = pneg %p217
    %p224 = scmp.eq.s32.totalorder %s14, 1
    %p225 = por %p223, %p224
    %p226 = scmp.ne.s32.totalorder %s218, %s221
    %p227 = scmp.eq.s32.totalorder %s14, 0
    %p228 = por %p226, %p227
    %p229 = scmp.ne.s32.totalorder %s218, %s221
    %p230 = scmp.eq.s32.totalorder %s19, 1
    %p231 = por %p229, %p230
    %p232 = scmp.ne.s32.totalorder %s221, %s222
    %p233 = scmp.eq.s32.totalorder %s19, 0
    %p234 = por %p232, %p233
    %p235 = scmp.ne.s32.totalorder %s221, %s222
    %p236 = scmp.eq.s32.totalorder %s20, 1
    %p237 = por %p235, %p236
    %p239 = scmp.ne.s32.totalorder %s222, %s238
    %p240 = scmp.eq.s32.totalorder %s20, 0
    %p241 = por %p239, %p240
    %p242 = scmp.le.s32.totalorder 1, %s14
    %p243 = scmp.lt.s32.totalorder %s14, 3
    %p244 = pnand %p242, %p243
    %p245 = pneg %p244
    // Predicated region
    $region9: #{block_forward.5} parent=5 // pred_check
      _
    $region10: #{block_forward.5} parent=5 // pred_check_branch
      %247 = sbr.rel (%p244) target = $region12
    $region11: #{block_forward.5} parent=5 // pred_region
      %s248 = ssub.s32 %s14, 1
      // Predicated region
      $region13: #{block_forward.5} parent=11 // pred_check
        %p249 = pneg %p75
      $region14: #{block_forward.5} parent=11 // pred_check_branch
        %251 = sbr.rel (%p249) target = $region16
      $region15: #{block_forward.5} parent=11 // pred_region
        _
      $region16: #{block_forward.5} parent=11 // pred_fallthru
        _
      // Predicated region
      $region17: #{block_forward.5} parent=11 // pred_check
        %p252 = pneg %p96
      $region18: #{block_forward.5} parent=11 // pred_check_branch
        %254 = sbr.rel (%p252) target = $region20
      $region19: #{block_forward.5} parent=11 // pred_region
        _
      $region20: #{block_forward.5} parent=11 // pred_fallthru
        _
      // Predicated region
      $region21: #{block_forward.5} parent=11 // pred_check
        %p255 = pneg %p143
      $region22: #{block_forward.5} parent=11 // pred_check_branch
        %257 = sbr.rel (%p255) target = $region24
      $region23: #{block_forward.5} parent=11 // pred_region
        _
      $region24: #{block_forward.5} parent=11 // pred_fallthru
        _
      // Predicated region
      $region25: #{block_forward.5} parent=11 // pred_check
        %p258 = pneg %p164
      $region26: #{block_forward.5} parent=11 // pred_check_branch
        %260 = sbr.rel (%p258) target = $region28
      $region27: #{block_forward.5} parent=11 // pred_region
        _
      $region28: #{block_forward.5} parent=11 // pred_fallthru
        _
      // Predicated region
      $region29: #{block_forward.5} parent=11 // pred_check
        %p261 = pneg %p185
      $region30: #{block_forward.5} parent=11 // pred_check_branch
        %263 = sbr.rel (%p261) target = $region32
      $region31: #{block_forward.5} parent=11 // pred_region
        _
      $region32: #{block_forward.5} parent=11 // pred_fallthru
        _
      // Predicated region
      $region33: #{block_forward.5} parent=11 // pred_check
        %p264 = pneg %p206
      $region34: #{block_forward.5} parent=11 // pred_check_branch
        %266 = sbr.rel (%p264) target = $region36
      $region35: #{block_forward.5} parent=11 // pred_region
        _
      $region36: #{block_forward.5} parent=11 // pred_fallthru
        _
    $region12: #{block_forward.5} parent=5 // pred_fallthru
      _
    %p267 = scmp.lt.s32.totalorder %s14, 2
    // Predicated region
    $region37: #{block_forward.5} parent=5 // pred_check
      %p268 = pneg %p267
    $region38: #{block_forward.5} parent=5 // pred_check_branch
      %270 = sbr.rel (%p268) target = $region40
    $region39: #{block_forward.5} parent=5 // pred_region
      // Predicated region
      $region41: #{block_forward.5} parent=39 // pred_check
        %p271 = pneg %p48
      $region42: #{block_forward.5} parent=39 // pred_check_branch
        %273 = sbr.rel (%p271) target = $region44
      $region43: #{block_forward.5} parent=39 // pred_region
        %p274 = scmp.lt.s32.totalorder %s21, 1
        %s275 = scalar_select %p274, %s21, 1
        %p276 = scmp.lt.s32.totalorder %s22, 0
        %s277 = scalar_select %p276, %s22, 0
        %s278 = sadd.s32 %s277, %s275
        %s279 = smul.addr %s278, 8
        %s280 = scalar_lea.vmem %s0, %s279
      $region44: #{block_forward.5} parent=39 // pred_fallthru
        _
      // Predicated region
      $region45: #{block_forward.5} parent=39 // pred_check
        %p281 = pneg %p116
      $region46: #{block_forward.5} parent=39 // pred_check_branch
        %283 = sbr.rel (%p281) target = $region48
      $region47: #{block_forward.5} parent=39 // pred_region
        %p284 = scmp.lt.s32.totalorder %s21, 31
        %s285 = scalar_select %p284, %s21, 31
        %s286 = smul.addr %s285, 4
        %s287 = scalar_lea.vmem %s3, %s286
      $region48: #{block_forward.5} parent=39 // pred_fallthru
        _
    $region40: #{block_forward.5} parent=5 // pred_fallthru
      _
    %p288 = scmp.le.s32.totalorder 1, %s14
    %p289 = scmp.lt.s32.totalorder %s14, 3
    %p290 = pnand %p288, %p289
    %p291 = pneg %p290
    // Predicated region
    $region49: #{block_forward.5} parent=5 // pred_check
      _
    $region50: #{block_forward.5} parent=5 // pred_check_branch
      %293 = sbr.rel (%p290) target = $region52
    $region51: #{block_forward.5} parent=5 // pred_region
      %s294 = ssub.s32 %s14, 1
      %p295 = scmp.lt.s32.totalorder %s23, 1
      %s296 = scalar_select %p295, %s23, 1
      %p297 = scmp.lt.s32.totalorder %s24, 0
      %s298 = scalar_select %p297, %s24, 0
      %s299 = sadd.s32 %s298, %s296
      %s300 = smul.addr %s299, 8
      %s301 = scalar_lea.vmem %s0, %s300
      %p302 = pneg %p54
      %p303 = pneg %p51
      %p304 = pneg %p75
      %p305 = pneg %p72
      %p306 = pneg %p96
      %p307 = pneg %p93
      %p308 = scmp.lt.s32.totalorder %s23, 31
      %s309 = scalar_select %p308, %s23, 31
      %s310 = smul.addr %s309, 4
      %s311 = scalar_lea.vmem %s3, %s310
      %p312 = pneg %p122
      %p313 = pneg %p119
      %p314 = pneg %p143
      %p315 = pneg %p140
      %p316 = pneg %p164
      %p317 = pneg %p161
      %p318 = pneg %p185
      %p319 = pneg %p182
      %p320 = pneg %p206
      %p321 = pneg %p203
      %p322 = pneg %p234
      %p323 = pneg %p231
      %s324 = sadd.s32 %s23, %s24
      %p325 = scmp.lt.s32.totalorder %s324, 1
      %s326 = scalar_select %p325, %s324, 1
      %s327 = smul.addr %s326, 8
      %s328 = scalar_lea.vmem %s8, %s327
      %p329 = scmp.lt.s32.totalorder %s23, 1
      %s330 = scalar_select %p329, %s23, 1
      %p331 = scmp.lt.s32.totalorder %s24, 0
      %s332 = scalar_select %p331, %s24, 0
      %s333 = sadd.s32 %s332, %s330
      %s334 = smul.addr %s333, 8
      %s335 = scalar_lea.vmem %s0, %s334
      %p336 = scmp.lt.s32.totalorder %s23, 31
      %s337 = scalar_select %p336, %s23, 31
      %s338 = smul.addr %s337, 4
      %s339 = scalar_lea.vmem %s3, %s338
      %s340 = sadd.s32 %s23, %s24
      %p341 = scmp.lt.s32.totalorder %s340, 1
      %s342 = scalar_select %p341, %s340, 1
      %s343 = smul.addr %s342, 8
      %s344 = scalar_lea.vmem %s8, %s343
      %s345 = sadd.s32 %s23, %s24
      %v347 = vld [vmem:[%s335] sm:$0xff]
      %vm348 = vcmask 261120
      %v349 = vsel %vm348, %v347, 0.0
      %350 = vadd.xlane.f32.xlu0 %v349
      %v351 = vpop.xlane.xlu0 %350
      %v352 = vrcp.pop 32.0
      %v353 = vmul.f32 32.0, %v352
      %v354 = vsub.f32 1.0, %v353
      %v355 = vmul.f32 %v352, %v354
      %v356 = vadd.f32 %v352, %v355
      %vm357 = vweird.f32 %v352
      %v358 = vsel %vm357, %v352, %v356
      %v359 = vmul.f32 %v351, %v358
      %v360 = vsub.f32 %v347, %v359
      %v361 = vmul.f32 %v360, %v360
      %v362 = vsel %vm348, %v361, 0.0
      %363 = vadd.xlane.f32.xlu0 %v362
      %v364 = vpop.xlane.xlu0 %363
      %v365 = vmul.f32 %v364, %v358
      %v366 = vadd.f32 %v365, 1e-05
      %v367 = vrsqrt.pop %v366
      %v368 = vmul.f32 %v367, %v366
      %v369 = vmul.f32 %v368, %v367
      %v370 = vmul.f32 0.5, %v369
      %v371 = vsub.f32 1.5, %v370
      %v372 = vmul.f32 %v367, %v371
      %vm373 = vweird.f32 %v366
      %vm374 = vweird.f32 %v367
      %vm375 = vmor %vm373, %vm374
      %v376 = vsel %vm375, %v367, %v372
      %v377 = vmul.f32 %v360, %v376
      %v378 = vld [vmem:[%s1] sm:$0x1]
      %v380 = vperm.slane %v378, 0
      %v382 = vmul.f32 %v377, %v380
      %v383 = vld [vmem:[%s2] sm:$0x1]
      %v385 = vperm.slane %v383, 0
      %v387 = vadd.f32 %v382, %v385
      %v388 = vld [vmem:[%s339] sm:$0xf]
      %s389 = smul.u32 %s24, 8
      %s390 = sshra.s32 %s389, 3
      %s391 = sand.u32 %s389, 7
      %s392 = smul.addr %s390, 4
      %s393 = scalar_lea.vmem %s339, %s392
      %v394 = vld [vmem:[%s393] sm:$0xf]
      %v395 = vlaneseq
      %v396 = vshrl.u32 %v395, 7
      %v397 = vstv %s389
      %v398 = vadd.s32 %v396, %v397
      %v399 = vlaneseq
      %v400 = vand.u32 %v399, 127
      %vm401 = vcmp.ge.s32.totalorder %v398, %v400
      %v403 = vunpack.c.l.b16 %v388
      %v404 = vpack.c.b16 %v403, %v403
      %405 = vrot.lane.b32.xlu0 %v404, 96
      %v406 = vpop.permute.xlu0 %405
      %vm407 = vcmask 64512
      %v409 = vsel %vm407, %v394, 0
      %v412 = vsel %vm407, %v406, 0
      %414 = vmatpush.bf16.xpose.msra.mxu0 0
      %415 = vmatpush.bf16.xpose.msra.mxu0 0
      %416 = vmatpush.bf16.xpose.msra.mxu0 0
      %417 = vmatpush.bf16.xpose.msra.mxu0 0
      %418 = vmatpush.bf16.xpose.msra.mxu0 0
      %419 = vmatpush.bf16.xpose.msra.mxu0 0
      %420 = vmatpush.bf16.xpose.msra.mxu0 0
      %421 = vmatpush.bf16.xpose.msra.mxu0 %v412
      %422 = vmatmul.bf16.gmra.mxu0 %v409
      %v423 = vpop.f32.mrf.mxu0
      %v424 = vadd.f32 0.0, %v423
      %v425 = vpop.f32.mrf.mxu0
      %426 = vdwg.mxu0
      %v427 = vmul.f32 %v424, 0.17677669
      %v428 = vsel %vm401, %v427, -inf
      %v429 = vsel %vm407, %v428, -inf
      %430 = vmax.xlane.f32.xlu0 %v429
      %v431 = vpop.xlane.xlu0 %430
      %v432 = vsub.f32 %v428, %v431
      %v433 = vmul.f32 %v432, 1.442695
      %v434 = vpow.pop %v433
      %v435 = vsel %vm407, %v434, 0.0
      %436 = vadd.xlane.f32.xlu0 %v435
      %v437 = vpop.xlane.xlu0 %436
      %v438 = vrcp.pop %v437
      %v439 = vmul.f32 %v434, %v438
      %v440 = vpack.c.bf16 %v439, %v439
      %441 = vrot.lane.b32.xlu0 %v404, 64
      %v442 = vpop.permute.xlu0 %441
      %v444 = vsel %vm407, %v440, 0
      %vm446 = vcmask 1043456
      %v448 = vsel %vm446, %v442, 0
      %450 = vmatpush.bf16.msra.mxu0 0
      %451 = vmatpush.bf16.msra.mxu0 0
      %452 = vmatpush.bf16.msra.mxu0 0
      %453 = vmatpush.bf16.msra.mxu0 0
      %454 = vmatpush.bf16.msra.mxu0 0
      %455 = vmatpush.bf16.msra.mxu0 0
      %456 = vmatpush.bf16.msra.mxu0 0
      %457 = vmatpush.bf16.msra.mxu0 %v448
      %458 = vmatmul.bf16.gmra.mxu0 %v444
      %v459 = vpop.f32.mrf.mxu0
      %v460 = vadd.f32 0.0, %v459
      %v461 = vpop.f32.mrf.mxu0
      %462 = vdwg.mxu0
      %v464 = vunpack.c.l.b16 %v394
      %v465 = vpack.c.b16 %v464, %v464
      %466 = vrot.lane.b32.xlu0 %v465, 120
      %v467 = vpop.permute.xlu0 %466
      %468 = vrot.lane.b32.xlu0 %v404, 88
      %v469 = vpop.permute.xlu0 %468
      %v471 = vsel %vm407, %v467, 0
      %v474 = vsel %vm407, %v469, 0
      %476 = vmatpush.bf16.xpose.msra.mxu0 0
      %477 = vmatpush.bf16.xpose.msra.mxu0 0
      %478 = vmatpush.bf16.xpose.msra.mxu0 0
      %479 = vmatpush.bf16.xpose.msra.mxu0 0
      %480 = vmatpush.bf16.xpose.msra.mxu0 0
      %481 = vmatpush.bf16.xpose.msra.mxu0 0
      %482 = vmatpush.bf16.xpose.msra.mxu0 0
      %483 = vmatpush.bf16.xpose.msra.mxu0 %v474
      %484 = vmatmul.bf16.gmra.mxu0 %v471
      %v485 = vpop.f32.mrf.mxu0
      %v486 = vadd.f32 0.0, %v485
      %v487 = vpop.f32.mrf.mxu0
      %488 = vdwg.mxu0
      %v489 = vmul.f32 %v486, 0.17677669
      %v490 = vsel %vm401, %v489, -inf
      %v491 = vsel %vm407, %v490, -inf
      %492 = vmax.xlane.f32.xlu0 %v491
      %v493 = vpop.xlane.xlu0 %492
      %v494 = vsub.f32 %v490, %v493
      %v495 = vmul.f32 %v494, 1.442695
      %v496 = vpow.pop %v495
      %v497 = vsel %vm407, %v496, 0.0
      %498 = vadd.xlane.f32.xlu0 %v497
      %v499 = vpop.xlane.xlu0 %498
      %v500 = vrcp.pop %v499
      %v501 = vmul.f32 %v496, %v500
      %v502 = vpack.c.bf16 %v501, %v501
      %503 = vrot.lane.b32.xlu0 %v404, 56
      %v504 = vpop.permute.xlu0 %503
      %v506 = vsel %vm407, %v502, 0
      %v509 = vsel %vm446, %v504, 0
      %511 = vmatpush.bf16.msra.mxu0 0
      %512 = vmatpush.bf16.msra.mxu0 0
      %513 = vmatpush.bf16.msra.mxu0 0
      %514 = vmatpush.bf16.msra.mxu0 0
      %515 = vmatpush.bf16.msra.mxu0 0
      %516 = vmatpush.bf16.msra.mxu0 0
      %517 = vmatpush.bf16.msra.mxu0 0
      %518 = vmatpush.bf16.msra.mxu0 %v509
      %519 = vmatmul.bf16.gmra.mxu0 %v506
      %v520 = vpop.f32.mrf.mxu0
      %v521 = vadd.f32 0.0, %v520
      %v522 = vpop.f32.mrf.mxu0
      %523 = vdwg.mxu0
      %524 = vrot.lane.b32.xlu0 %v465, 112
      %v525 = vpop.permute.xlu0 %524
      %526 = vrot.lane.b32.xlu0 %v404, 80
      %v527 = vpop.permute.xlu0 %526
      %v529 = vsel %vm407, %v525, 0
      %v532 = vsel %vm407, %v527, 0
      %534 = vmatpush.bf16.xpose.msra.mxu0 0
      %535 = vmatpush.bf16.xpose.msra.mxu0 0
      %536 = vmatpush.bf16.xpose.msra.mxu0 0
      %537 = vmatpush.bf16.xpose.msra.mxu0 0
      %538 = vmatpush.bf16.xpose.msra.mxu0 0
      %539 = vmatpush.bf16.xpose.msra.mxu0 0
      %540 = vmatpush.bf16.xpose.msra.mxu0 0
      %541 = vmatpush.bf16.xpose.msra.mxu0 %v532
      %542 = vmatmul.bf16.gmra.mxu0 %v529
      %v543 = vpop.f32.mrf.mxu0
      %v544 = vadd.f32 0.0, %v543
      %v545 = vpop.f32.mrf.mxu0
      %546 = vdwg.mxu0
      %v547 = vmul.f32 %v544, 0.17677669
      %v548 = vsel %vm401, %v547, -inf
      %v549 = vsel %vm407, %v548, -inf
      %550 = vmax.xlane.f32.xlu0 %v549
      %v551 = vpop.xlane.xlu0 %550
      %v552 = vsub.f32 %v548, %v551
      %v553 = vmul.f32 %v552, 1.442695
      %v554 = vpow.pop %v553
      %v555 = vsel %vm407, %v554, 0.0
      %556 = vadd.xlane.f32.xlu0 %v555
      %v557 = vpop.xlane.xlu0 %556
      %v558 = vrcp.pop %v557
      %v559 = vmul.f32 %v554, %v558
      %v560 = vpack.c.bf16 %v559, %v559
      %561 = vrot.lane.b32.xlu0 %v404, 48
      %v562 = vpop.permute.xlu0 %561
      %v564 = vsel %vm407, %v560, 0
      %v567 = vsel %vm446, %v562, 0
      %569 = vmatpush.bf16.msra.mxu0 0
      %570 = vmatpush.bf16.msra.mxu0 0
      %571 = vmatpush.bf16.msra.mxu0 0
      %572 = vmatpush.bf16.msra.mxu0 0
      %573 = vmatpush.bf16.msra.mxu0 0
      %574 = vmatpush.bf16.msra.mxu0 0
      %575 = vmatpush.bf16.msra.mxu0 0
      %576 = vmatpush.bf16.msra.mxu0 %v567
      %577 = vmatmul.bf16.gmra.mxu0 %v564
      %v578 = vpop.f32.mrf.mxu0
      %v579 = vadd.f32 0.0, %v578
      %v580 = vpop.f32.mrf.mxu0
      %581 = vdwg.mxu0
      %582 = vrot.lane.b32.xlu0 %v465, 104
      %v583 = vpop.permute.xlu0 %582
      %584 = vrot.lane.b32.xlu0 %v404, 72
      %v585 = vpop.permute.xlu0 %584
      %v587 = vsel %vm407, %v583, 0
      %v590 = vsel %vm407, %v585, 0
      %592 = vmatpush.bf16.xpose.msra.mxu0 0
      %593 = vmatpush.bf16.xpose.msra.mxu0 0
      %594 = vmatpush.bf16.xpose.msra.mxu0 0
      %595 = vmatpush.bf16.xpose.msra.mxu0 0
      %596 = vmatpush.bf16.xpose.msra.mxu0 0
      %597 = vmatpush.bf16.xpose.msra.mxu0 0
      %598 = vmatpush.bf16.xpose.msra.mxu0 0
      %599 = vmatpush.bf16.xpose.msra.mxu0 %v590
      %600 = vmatmul.bf16.gmra.mxu0 %v587
      %v601 = vpop.f32.mrf.mxu0
      %v602 = vadd.f32 0.0, %v601
      %v603 = vpop.f32.mrf.mxu0
      %604 = vdwg.mxu0
      %v605 = vmul.f32 %v602, 0.17677669
      %v606 = vsel %vm401, %v605, -inf
      %v607 = vsel %vm407, %v606, -inf
      %608 = vmax.xlane.f32.xlu0 %v607
      %v609 = vpop.xlane.xlu0 %608
      %v610 = vsub.f32 %v606, %v609
      %v611 = vmul.f32 %v610, 1.442695
      %v612 = vpow.pop %v611
      %v613 = vsel %vm407, %v612, 0.0
      %614 = vadd.xlane.f32.xlu0 %v613
      %v615 = vpop.xlane.xlu0 %614
      %v616 = vrcp.pop %v615
      %v617 = vmul.f32 %v612, %v616
      %v618 = vpack.c.bf16 %v617, %v617
      %619 = vrot.lane.b32.xlu0 %v404, 40
      %v620 = vpop.permute.xlu0 %619
      %v622 = vsel %vm407, %v618, 0
      %v625 = vsel %vm446, %v620, 0
      %627 = vmatpush.bf16.msra.mxu0 0
      %628 = vmatpush.bf16.msra.mxu0 0
      %629 = vmatpush.bf16.msra.mxu0 0
      %630 = vmatpush.bf16.msra.mxu0 0
      %631 = vmatpush.bf16.msra.mxu0 0
      %632 = vmatpush.bf16.msra.mxu0 0
      %633 = vmatpush.bf16.msra.mxu0 0
      %634 = vmatpush.bf16.msra.mxu0 %v625
      %635 = vmatmul.bf16.gmra.mxu0 %v622
      %v636 = vpop.f32.mrf.mxu0
      %v637 = vadd.f32 0.0, %v636
      %v638 = vpop.f32.mrf.mxu0
      %639 = vdwg.mxu0
      %641 = vrot.lane.b32.xlu0 %v521, 8
      %v642 = vpop.permute.xlu0 %641
      %645 = vrot.lane.b32.xlu0 %v579, 16
      %v646 = vpop.permute.xlu0 %645
      %649 = vrot.lane.b32.xlu0 %v637, 24
      %v650 = vpop.permute.xlu0 %649
      %v652 = vsel %vm407, %v460, %v642
      %vm653 = vcmask 130048
      %v654 = vsel %vm653, %v652, %v646
      %vm655 = vcmask 195584
      %v656 = vsel %vm655, %v654, %v650
      %v657 = vpack.c.bf16 %v656, %v656
      %v658 = vld [vmem:[%s4] sm:$0xf]
      %v659 = vld [vmem:[%s4 + $0x4] sm:$0xf]
      %v660 = vld [vmem:[%s4 + $0x8] sm:$0xf]
      %v661 = vld [vmem:[%s4 + $0xc] sm:$0xf]
      %v662 = vld [vmem:[%s5] sm:$0x1]
      %v664 = vperm.slane %v662, 0
      %v670 = vunpack.c.l.b16 %v658
      %v671 = vunpack.c.l.b16 %v659
      %v672 = vunpack.c.l.b16 %v660
      %v673 = vunpack.c.l.b16 %v661
      %v674 = vpack.c.b16 %v671, %v670
      %v675 = vpack.c.b16 %v673, %v672
      %v679 = vsel %vm348, %v657, 0
      %681 = vmatpush.bf16.msra.mxu0 0
      %682 = vmatpush.bf16.msra.mxu0 0
      %683 = vmatpush.bf16.msra.mxu0 0
      %684 = vmatpush.bf16.msra.mxu0 0
      %685 = vmatpush.bf16.msra.mxu0 0
      %686 = vmatpush.bf16.msra.mxu0 0
      %687 = vmatpush.bf16.msra.mxu0 %v675
      %688 = vmatpush.bf16.msra.mxu0 %v674
      %689 = vmatmul.bf16.gmra.mxu0 %v679
      %v690 = vpop.f32.mrf.mxu0
      %v691 = vadd.f32 %v664, %v690
      %v692 = vpop.f32.mrf.mxu0
      %693 = vdwg.mxu0
      %v694 = vadd.f32 %v691, %v387
      %v695 = vsel %vm348, %v694, 0.0
      %696 = vadd.xlane.f32.xlu0 %v695
      %v697 = vpop.xlane.xlu0 %696
      %v698 = vmul.f32 %v697, %v358
      %v699 = vsub.f32 %v694, %v698
      %v700 = vmul.f32 %v699, %v699
      %v701 = vsel %vm348, %v700, 0.0
      %702 = vadd.xlane.f32.xlu0 %v701
      %v703 = vpop.xlane.xlu0 %702
      %v704 = vmul.f32 %v703, %v358
      %v705 = vadd.f32 %v704, 1e-05
      %v706 = vrsqrt.pop %v705
      %v707 = vmul.f32 %v706, %v705
      %v708 = vmul.f32 %v707, %v706
      %v709 = vmul.f32 0.5, %v708
      %v710 = vsub.f32 1.5, %v709
      %v711 = vmul.f32 %v706, %v710
      %vm712 = vweird.f32 %v705
      %vm713 = vweird.f32 %v706
      %vm714 = vmor %vm712, %vm713
      %v715 = vsel %vm714, %v706, %v711
      %v716 = vmul.f32 %v699, %v715
      %v717 = vld [vmem:[%s6] sm:$0x1]
      %v719 = vperm.slane %v717, 0
      %v721 = vmul.f32 %v716, %v719
      %v722 = vld [vmem:[%s7] sm:$0x1]
      %v724 = vperm.slane %v722, 0
      %v726 = vadd.f32 %v721, %v724
      %727 = vst.msk [vmem:[%s344] sm:$0xff] %vm348, %v726
      %s728 = sadd.s32 %s23, %s24
      %p729 = scmp.lt.s32.totalorder %s728, 1
      %s730 = scalar_select %p729, %s728, 1
      %s731 = smul.addr %s730, 8
      %s732 = scalar_lea.vmem %s8, %s731
      // Predicated region
      $region53: #{block_forward.5} parent=51 // pred_check
        %p733 = pneg %p231
      $region54: #{block_forward.5} parent=51 // pred_check_branch
        %735 = sbr.rel (%p733) target = $region56
      $region55: #{block_forward.5} parent=51 // pred_region
        %s736 = sadd.s32 %s23, %s24
      $region56: #{block_forward.5} parent=51 // pred_fallthru
        _
    $region52: #{block_forward.5} parent=5 // pred_fallthru
      _
    %p737 = scmp.le.s32.totalorder 2, %s14
    // Predicated region
    $region57: #{block_forward.5} parent=5 // pred_check
      %p738 = pneg %p737
    $region58: #{block_forward.5} parent=5 // pred_check_branch
      %740 = sbr.rel (%p738) target = $region60
    $region59: #{block_forward.5} parent=5 // pred_region
      %s741 = ssub.s32 %s14, 2
      // Predicated region
      $region61: #{block_forward.5} parent=59 // pred_check
        %p742 = pneg %p237
      $region62: #{block_forward.5} parent=59 // pred_check_branch
        %744 = sbr.rel (%p742) target = $region64
      $region63: #{block_forward.5} parent=59 // pred_region
        %s745 = sadd.s32 %s25, %s26
        %p746 = scmp.lt.s32.totalorder %s745, 1
        %s747 = scalar_select %p746, %s745, 1
        %s748 = smul.addr %s747, 8
        %s749 = scalar_lea.vmem %s8, %s748
      $region64: #{block_forward.5} parent=59 // pred_fallthru
        _
    $region60: #{block_forward.5} parent=5 // pred_fallthru
      _
  $region6: #{block_forward.5} parent=0 // loop_footer
    %s18 = sadd.s32 1, %s14
  $region7: #{block_forward.5} parent=0 // loop_footer_branch
    %13 = sbr.rel target = $region3
  $region8: #{block_forward.5} parent=0 // loop_exit
    _

// kernel: block_forward.4
$region0: #{block_forward.4}
  #allocation0 [shape = 'u32[]', space=smem, size = 0x4, offset = 0x4, fixed_abs, tag = 'smem constant byte address 0x4 - core index']
  #allocation1 [shape = 'u32[72,128]{1,0:T(1,128)}', space=vmem, size = 0x9000, scoped, tag = 'internal scratch']
  %s0 = inlined_call_operand.vmem [shape: f32[256,32], index: 0, kind: input, shape index: {}]
  %s1 = inlined_call_operand.vmem [shape: f32[1,32], index: 1, kind: input, shape index: {}]
  %s2 = inlined_call_operand.vmem [shape: f32[1,32], index: 2, kind: input, shape index: {}]
  %s3 = inlined_call_operand.vmem [shape: bf16[32,96], index: 3, kind: input, shape index: {}]
  %s4 = inlined_call_operand.vmem [shape: f32[1,96], index: 4, kind: input, shape index: {}]
  %s5 = inlined_call_operand.vmem [shape: bf16[256,96], index: 5, kind: output, shape index: {}]
  %s6 = sld [smem:[#allocation0]]
  $region30: #{block_forward.4} parent=0
    _
  %s8 = ssub.s32 1, %s6
  %s9 = scalar_select 0, %s8, %s6
  // Predicated region
  $region2: #{block_forward.4} parent=0 // pred_check
    _
  $region3: #{block_forward.4} parent=0 // pred_check_branch
    %11 = sbr.rel (0) target = $region5
  $region4: #{block_forward.4} parent=0 // pred_region
    _
  $region5: #{block_forward.4} parent=0 // pred_fallthru
    _
  // Predicated region
  $region6: #{block_forward.4} parent=0 // pred_check
    _
  $region7: #{block_forward.4} parent=0 // pred_check_branch
    %13 = sbr.rel (0) target = $region9
  $region8: #{block_forward.4} parent=0 // pred_region
    _
  $region9: #{block_forward.4} parent=0 // pred_fallthru
    _
  // Predicated region
  $region10: #{block_forward.4} parent=0 // pred_check
    _
  $region11: #{block_forward.4} parent=0 // pred_check_branch
    %15 = sbr.rel (0) target = $region13
  $region12: #{block_forward.4} parent=0 // pred_region
    _
  $region13: #{block_forward.4} parent=0 // pred_fallthru
    _
  // Predicated region
  $region14: #{block_forward.4} parent=0 // pred_check
    _
  $region15: #{block_forward.4} parent=0 // pred_check_branch
    %17 = sbr.rel (0) target = $region17
  $region16: #{block_forward.4} parent=0 // pred_region
    _
  $region17: #{block_forward.4} parent=0 // pred_fallthru
    _
  // Predicated region
  $region18: #{block_forward.4} parent=0 // pred_check
    _
  $region19: #{block_forward.4} parent=0 // pred_check_branch
    %19 = sbr.rel (0) target = $region21
  $region20: #{block_forward.4} parent=0 // pred_region
    _
  $region21: #{block_forward.4} parent=0 // pred_fallthru
    _
  %v21 = vld [vmem:[%s0] sm:$0xff]
  %v22 = vld [vmem:[%s0 + $0x8] sm:$0xff]
  %v23 = vld [vmem:[%s0 + $0x10] sm:$0xff]
  %v24 = vld [vmem:[%s0 + $0x18] sm:$0xff]
  %v25 = vld [vmem:[%s0 + $0x20] sm:$0xff]
  %v26 = vld [vmem:[%s0 + $0x28] sm:$0xff]
  %v27 = vld [vmem:[%s0 + $0x30] sm:$0xff]
  %v28 = vld [vmem:[%s0 + $0x38] sm:$0xff]
  %v29 = vld [vmem:[%s0 + $0x40] sm:$0xff]
  %v30 = vld [vmem:[%s0 + $0x48] sm:$0xff]
  %v31 = vld [vmem:[%s0 + $0x50] sm:$0xff]
  %v32 = vld [vmem:[%s0 + $0x58] sm:$0xff]
  %v33 = vld [vmem:[%s0 + $0x60] sm:$0xff]
  %v34 = vld [vmem:[%s0 + $0x68] sm:$0xff]
  %v35 = vld [vmem:[%s0 + $0x70] sm:$0xff]
  %v36 = vld [vmem:[%s0 + $0x78] sm:$0xff]
  %v37 = vld [vmem:[%s0 + $0x80] sm:$0xff]
  %v38 = vld [vmem:[%s0 + $0x88] sm:$0xff]
  %v39 = vld [vmem:[%s0 + $0x90] sm:$0xff]
  %v40 = vld [vmem:[%s0 + $0x98] sm:$0xff]
  %v41 = vld [vmem:[%s0 + $0xa0] sm:$0xff]
  %v42 = vld [vmem:[%s0 + $0xa8] sm:$0xff]
  %v43 = vld [vmem:[%s0 + $0xb0] sm:$0xff]
  %v44 = vld [vmem:[%s0 + $0xb8] sm:$0xff]
  %v45 = vld [vmem:[%s0 + $0xc0] sm:$0xff]
  %v46 = vld [vmem:[%s0 + $0xc8] sm:$0xff]
  %v47 = vld [vmem:[%s0 + $0xd0] sm:$0xff]
  %v48 = vld [vmem:[%s0 + $0xd8] sm:$0xff]
  %v49 = vld [vmem:[%s0 + $0xe0] sm:$0xff]
  %v50 = vld [vmem:[%s0 + $0xe8] sm:$0xff]
  %v51 = vld [vmem:[%s0 + $0xf0] sm:$0xff]
  %v52 = vld [vmem:[%s0 + $0xf8] sm:$0xff]
  %vm53 = vcmask 261120
  %v54 = vsel %vm53, %v21, 0.0
  %55 = vadd.xlane.f32.xlu0 %v54
  %v56 = vpop.xlane.xlu0 %55
  %v57 = vsel %vm53, %v22, 0.0
  %58 = vadd.xlane.f32.xlu0 %v57
  %v59 = vpop.xlane.xlu0 %58
  %v60 = vsel %vm53, %v23, 0.0
  %61 = vadd.xlane.f32.xlu0 %v60
  %v62 = vpop.xlane.xlu0 %61
  %v63 = vsel %vm53, %v24, 0.0
  %64 = vadd.xlane.f32.xlu0 %v63
  %v65 = vpop.xlane.xlu0 %64
  %v66 = vsel %vm53, %v25, 0.0
  %67 = vadd.xlane.f32.xlu0 %v66
  %v68 = vpop.xlane.xlu0 %67
  %v69 = vsel %vm53, %v26, 0.0
  %70 = vadd.xlane.f32.xlu0 %v69
  %v71 = vpop.xlane.xlu0 %70
  %v72 = vsel %vm53, %v27, 0.0
  %73 = vadd.xlane.f32.xlu0 %v72
  %v74 = vpop.xlane.xlu0 %73
  %v75 = vsel %vm53, %v28, 0.0
  %76 = vadd.xlane.f32.xlu0 %v75
  %v77 = vpop.xlane.xlu0 %76
  %v78 = vsel %vm53, %v29, 0.0
  %79 = vadd.xlane.f32.xlu0 %v78
  %v80 = vpop.xlane.xlu0 %79
  %v81 = vsel %vm53, %v30, 0.0
  %82 = vadd.xlane.f32.xlu0 %v81
  %v83 = vpop.xlane.xlu0 %82
  %v84 = vsel %vm53, %v31, 0.0
  %85 = vadd.xlane.f32.xlu0 %v84
  %v86 = vpop.xlane.xlu0 %85
  %v87 = vsel %vm53, %v32, 0.0
  %88 = vadd.xlane.f32.xlu0 %v87
  %v89 = vpop.xlane.xlu0 %88
  %v90 = vsel %vm53, %v33, 0.0
  %91 = vadd.xlane.f32.xlu0 %v90
  %v92 = vpop.xlane.xlu0 %91
  %v93 = vsel %vm53, %v34, 0.0
  %94 = vadd.xlane.f32.xlu0 %v93
  %v95 = vpop.xlane.xlu0 %94
  %v96 = vsel %vm53, %v35, 0.0
  %97 = vadd.xlane.f32.xlu0 %v96
  %v98 = vpop.xlane.xlu0 %97
  %v99 = vsel %vm53, %v36, 0.0
  %100 = vadd.xlane.f32.xlu0 %v99
  %v101 = vpop.xlane.xlu0 %100
  %v102 = vsel %vm53, %v37, 0.0
  %103 = vadd.xlane.f32.xlu0 %v102
  %v104 = vpop.xlane.xlu0 %103
  %v105 = vsel %vm53, %v38, 0.0
  %106 = vadd.xlane.f32.xlu0 %v105
  %v107 = vpop.xlane.xlu0 %106
  %v108 = vsel %vm53, %v39, 0.0
  %109 = vadd.xlane.f32.xlu0 %v108
  %v110 = vpop.xlane.xlu0 %109
  %v111 = vsel %vm53, %v40, 0.0
  %112 = vadd.xlane.f32.xlu0 %v111
  %v113 = vpop.xlane.xlu0 %112
  %v114 = vsel %vm53, %v41, 0.0
  %115 = vadd.xlane.f32.xlu0 %v114
  %v116 = vpop.xlane.xlu0 %115
  %v117 = vsel %vm53, %v42, 0.0
  %118 = vadd.xlane.f32.xlu0 %v117
  %v119 = vpop.xlane.xlu0 %118
  %v120 = vsel %vm53, %v43, 0.0
  %121 = vadd.xlane.f32.xlu0 %v120
  %v122 = vpop.xlane.xlu0 %121
  %v123 = vsel %vm53, %v44, 0.0
  %124 = vadd.xlane.f32.xlu0 %v123
  %v125 = vpop.xlane.xlu0 %124
  %v126 = vsel %vm53, %v45, 0.0
  %127 = vadd.xlane.f32.xlu0 %v126
  %v128 = vpop.xlane.xlu0 %127
  %v129 = vsel %vm53, %v46, 0.0
  %130 = vadd.xlane.f32.xlu0 %v129
  %v131 = vpop.xlane.xlu0 %130
  %v132 = vsel %vm53, %v47, 0.0
  %133 = vadd.xlane.f32.xlu0 %v132
  %v134 = vpop.xlane.xlu0 %133
  %v135 = vsel %vm53, %v48, 0.0
  %136 = vadd.xlane.f32.xlu0 %v135
  %v137 = vpop.xlane.xlu0 %136
  %v138 = vsel %vm53, %v49, 0.0
  %139 = vadd.xlane.f32.xlu0 %v138
  %v140 = vpop.xlane.xlu0 %139
  %v141 = vsel %vm53, %v50, 0.0
  %142 = vadd.xlane.f32.xlu0 %v141
  %v143 = vpop.xlane.xlu0 %142
  %v144 = vsel %vm53, %v51, 0.0
  %145 = vadd.xlane.f32.xlu0 %v144
  %v146 = vpop.xlane.xlu0 %145
  %v147 = vsel %vm53, %v52, 0.0
  %148 = vadd.xlane.f32.xlu0 %v147
  %v149 = vpop.xlane.xlu0 %148
  %v150 = vrcp.pop 32.0
  %v151 = vmul.f32 32.0, %v150
  %v152 = vsub.f32 1.0, %v151
  %v153 = vmul.f32 %v150, %v152
  %v154 = vadd.f32 %v150, %v153
  %vm155 = vweird.f32 %v150
  %v156 = vsel %vm155, %v150, %v154
  %v157 = vmul.f32 %v56, %v156
  %v158 = vmul.f32 %v59, %v156
  %v159 = vmul.f32 %v62, %v156
  %v160 = vmul.f32 %v65, %v156
  %v161 = vmul.f32 %v68, %v156
  %v162 = vmul.f32 %v71, %v156
  %v163 = vmul.f32 %v74, %v156
  %v164 = vmul.f32 %v77, %v156
  %v165 = vmul.f32 %v80, %v156
  %v166 = vmul.f32 %v83, %v156
  %v167 = vmul.f32 %v86, %v156
  %v168 = vmul.f32 %v89, %v156
  %v169 = vmul.f32 %v92, %v156
  %v170 = vmul.f32 %v95, %v156
  %v171 = vmul.f32 %v98, %v156
  %v172 = vmul.f32 %v101, %v156
  %v173 = vmul.f32 %v104, %v156
  %v174 = vmul.f32 %v107, %v156
  %v175 = vmul.f32 %v110, %v156
  %v176 = vmul.f32 %v113, %v156
  %v177 = vmul.f32 %v116, %v156
  %v178 = vmul.f32 %v119, %v156
  %v179 = vmul.f32 %v122, %v156
  %v180 = vmul.f32 %v125, %v156
  %v181 = vmul.f32 %v128, %v156
  %v182 = vmul.f32 %v131, %v156
  %v183 = vmul.f32 %v134, %v156
  %v184 = vmul.f32 %v137, %v156
  %v185 = vmul.f32 %v140, %v156
  %v186 = vmul.f32 %v143, %v156
  %v187 = vmul.f32 %v146, %v156
  %v188 = vmul.f32 %v149, %v156
  %v189 = vsub.f32 %v21, %v157
  %v190 = vsub.f32 %v22, %v158
  %v191 = vsub.f32 %v23, %v159
  %v192 = vsub.f32 %v24, %v160
  %v193 = vsub.f32 %v25, %v161
  %v194 = vsub.f32 %v26, %v162
  %v195 = vsub.f32 %v27, %v163
  %v196 = vsub.f32 %v28, %v164
  %v197 = vsub.f32 %v29, %v165
  %v198 = vsub.f32 %v30, %v166
  %v199 = vsub.f32 %v31, %v167
  %v200 = vsub.f32 %v32, %v168
  %v201 = vsub.f32 %v33, %v169
  %v202 = vsub.f32 %v34, %v170
  %v203 = vsub.f32 %v35, %v171
  %v204 = vsub.f32 %v36, %v172
  %v205 = vsub.f32 %v37, %v173
  %v206 = vsub.f32 %v38, %v174
  %v207 = vsub.f32 %v39, %v175
  %v208 = vsub.f32 %v40, %v176
  %v209 = vsub.f32 %v41, %v177
  %v210 = vsub.f32 %v42, %v178
  %v211 = vsub.f32 %v43, %v179
  %v212 = vsub.f32 %v44, %v180
  %v213 = vsub.f32 %v45, %v181
  %v214 = vsub.f32 %v46, %v182
  %v215 = vsub.f32 %v47, %v183
  %v216 = vsub.f32 %v48, %v184
  %v217 = vsub.f32 %v49, %v185
  %v218 = vsub.f32 %v50, %v186
  %v219 = vsub.f32 %v51, %v187
  %v220 = vsub.f32 %v52, %v188
  %v221 = vmul.f32 %v189, %v189
  %v222 = vmul.f32 %v190, %v190
  %v223 = vmul.f32 %v191, %v191
  %v224 = vmul.f32 %v192, %v192
  %v225 = vmul.f32 %v193, %v193
  %v226 = vmul.f32 %v194, %v194
  %v227 = vmul.f32 %v195, %v195
  %v228 = vmul.f32 %v196, %v196
  %v229 = vmul.f32 %v197, %v197
  %v230 = vmul.f32 %v198, %v198
  %v231 = vmul.f32 %v199, %v199
  %v232 = vmul.f32 %v200, %v200
  %v233 = vmul.f32 %v201, %v201
  %v234 = vmul.f32 %v202, %v202
  %v235 = vmul.f32 %v203, %v203
  %v236 = vmul.f32 %v204, %v204
  %v237 = vmul.f32 %v205, %v205
  %v238 = vmul.f32 %v206, %v206
  %v239 = vmul.f32 %v207, %v207
  %v240 = vmul.f32 %v208, %v208
  %v241 = vmul.f32 %v209, %v209
  %v242 = vmul.f32 %v210, %v210
  %v243 = vmul.f32 %v211, %v211
  %v244 = vmul.f32 %v212, %v212
  %v245 = vmul.f32 %v213, %v213
  %v246 = vmul.f32 %v214, %v214
  %v247 = vmul.f32 %v215, %v215
  %v248 = vmul.f32 %v216, %v216
  %v249 = vmul.f32 %v217, %v217
  %v250 = vmul.f32 %v218, %v218
  %v251 = vmul.f32 %v219, %v219
  %v252 = vmul.f32 %v220, %v220
  %v253 = vsel %vm53, %v221, 0.0
  %254 = vadd.xlane.f32.xlu0 %v253
  %v255 = vpop.xlane.xlu0 %254
  %v256 = vsel %vm53, %v222, 0.0
  %257 = vadd.xlane.f32.xlu0 %v256
  %v258 = vpop.xlane.xlu0 %257
  %v259 = vsel %vm53, %v223, 0.0
  %260 = vadd.xlane.f32.xlu0 %v259
  %v261 = vpop.xlane.xlu0 %260
  %v262 = vsel %vm53, %v224, 0.0
  %263 = vadd.xlane.f32.xlu0 %v262
  %v264 = vpop.xlane.xlu0 %263
  %v265 = vsel %vm53, %v225, 0.0
  %266 = vadd.xlane.f32.xlu0 %v265
  %v267 = vpop.xlane.xlu0 %266
  %v268 = vsel %vm53, %v226, 0.0
  %269 = vadd.xlane.f32.xlu0 %v268
  %v270 = vpop.xlane.xlu0 %269
  %v271 = vsel %vm53, %v227, 0.0
  %272 = vadd.xlane.f32.xlu0 %v271
  %v273 = vpop.xlane.xlu0 %272
  %v274 = vsel %vm53, %v228, 0.0
  %275 = vadd.xlane.f32.xlu0 %v274
  %v276 = vpop.xlane.xlu0 %275
  %v277 = vsel %vm53, %v229, 0.0
  %278 = vadd.xlane.f32.xlu0 %v277
  %v279 = vpop.xlane.xlu0 %278
  %v280 = vsel %vm53, %v230, 0.0
  %281 = vadd.xlane.f32.xlu0 %v280
  %v282 = vpop.xlane.xlu0 %281
  %v283 = vsel %vm53, %v231, 0.0
  %284 = vadd.xlane.f32.xlu0 %v283
  %v285 = vpop.xlane.xlu0 %284
  %v286 = vsel %vm53, %v232, 0.0
  %287 = vadd.xlane.f32.xlu0 %v286
  %v288 = vpop.xlane.xlu0 %287
  %v289 = vsel %vm53, %v233, 0.0
  %290 = vadd.xlane.f32.xlu0 %v289
  %v291 = vpop.xlane.xlu0 %290
  %v292 = vsel %vm53, %v234, 0.0
  %293 = vadd.xlane.f32.xlu0 %v292
  %v294 = vpop.xlane.xlu0 %293
  %v295 = vsel %vm53, %v235, 0.0
  %296 = vadd.xlane.f32.xlu0 %v295
  %v297 = vpop.xlane.xlu0 %296
  %v298 = vsel %vm53, %v236, 0.0
  %299 = vadd.xlane.f32.xlu0 %v298
  %v300 = vpop.xlane.xlu0 %299
  %v301 = vsel %vm53, %v237, 0.0
  %302 = vadd.xlane.f32.xlu0 %v301
  %v303 = vpop.xlane.xlu0 %302
  %v304 = vsel %vm53, %v238, 0.0
  %305 = vadd.xlane.f32.xlu0 %v304
  %v306 = vpop.xlane.xlu0 %305
  %v307 = vsel %vm53, %v239, 0.0
  %308 = vadd.xlane.f32.xlu0 %v307
  %v309 = vpop.xlane.xlu0 %308
  %v310 = vsel %vm53, %v240, 0.0
  %311 = vadd.xlane.f32.xlu0 %v310
  %v312 = vpop.xlane.xlu0 %311
  %v313 = vsel %vm53, %v241, 0.0
  %314 = vadd.xlane.f32.xlu0 %v313
  %v315 = vpop.xlane.xlu0 %314
  %v316 = vsel %vm53, %v242, 0.0
  %317 = vadd.xlane.f32.xlu0 %v316
  %v318 = vpop.xlane.xlu0 %317
  %v319 = vsel %vm53, %v243, 0.0
  %320 = vadd.xlane.f32.xlu0 %v319
  %v321 = vpop.xlane.xlu0 %320
  %v322 = vsel %vm53, %v244, 0.0
  %323 = vadd.xlane.f32.xlu0 %v322
  %v324 = vpop.xlane.xlu0 %323
  %v325 = vsel %vm53, %v245, 0.0
  %326 = vadd.xlane.f32.xlu0 %v325
  %v327 = vpop.xlane.xlu0 %326
  %v328 = vsel %vm53, %v246, 0.0
  %329 = vadd.xlane.f32.xlu0 %v328
  %v330 = vpop.xlane.xlu0 %329
  %v331 = vsel %vm53, %v247, 0.0
  %332 = vadd.xlane.f32.xlu0 %v331
  %v333 = vpop.xlane.xlu0 %332
  %v334 = vsel %vm53, %v248, 0.0
  %335 = vadd.xlane.f32.xlu0 %v334
  %v336 = vpop.xlane.xlu0 %335
  %v337 = vsel %vm53, %v249, 0.0
  %338 = vadd.xlane.f32.xlu0 %v337
  %v339 = vpop.xlane.xlu0 %338
  %v340 = vsel %vm53, %v250, 0.0
  %341 = vadd.xlane.f32.xlu0 %v340
  %v342 = vpop.xlane.xlu0 %341
  %v343 = vsel %vm53, %v251, 0.0
  %344 = vadd.xlane.f32.xlu0 %v343
  %v345 = vpop.xlane.xlu0 %344
  %v346 = vsel %vm53, %v252, 0.0
  %347 = vadd.xlane.f32.xlu0 %v346
  %v348 = vpop.xlane.xlu0 %347
  %v349 = vmul.f32 %v255, %v156
  %v350 = vmul.f32 %v258, %v156
  %v351 = vmul.f32 %v261, %v156
  %v352 = vmul.f32 %v264, %v156
  %v353 = vmul.f32 %v267, %v156
  %v354 = vmul.f32 %v270, %v156
  %v355 = vmul.f32 %v273, %v156
  %v356 = vmul.f32 %v276, %v156
  %v357 = vmul.f32 %v279, %v156
  %v358 = vmul.f32 %v282, %v156
  %v359 = vmul.f32 %v285, %v156
  %v360 = vmul.f32 %v288, %v156
  %v361 = vmul.f32 %v291, %v156
  %v362 = vmul.f32 %v294, %v156
  %v363 = vmul.f32 %v297, %v156
  %v364 = vmul.f32 %v300, %v156
  %v365 = vmul.f32 %v303, %v156
  %v366 = vmul.f32 %v306, %v156
  %v367 = vmul.f32 %v309, %v156
  %v368 = vmul.f32 %v312, %v156
  %v369 = vmul.f32 %v315, %v156
  %v370 = vmul.f32 %v318, %v156
  %v371 = vmul.f32 %v321, %v156
  %v372 = vmul.f32 %v324, %v156
  %v373 = vmul.f32 %v327, %v156
  %v374 = vmul.f32 %v330, %v156
  %v375 = vmul.f32 %v333, %v156
  %v376 = vmul.f32 %v336, %v156
  %v377 = vmul.f32 %v339, %v156
  %v378 = vmul.f32 %v342, %v156
  %v379 = vmul.f32 %v345, %v156
  %v380 = vmul.f32 %v348, %v156
  %v381 = vadd.f32 %v349, 1e-05
  %v382 = vadd.f32 %v350, 1e-05
  %v383 = vadd.f32 %v351, 1e-05
  %v384 = vadd.f32 %v352, 1e-05
  %v385 = vadd.f32 %v353, 1e-05
  %v386 = vadd.f32 %v354, 1e-05
  %v387 = vadd.f32 %v355, 1e-05
  %v388 = vadd.f32 %v356, 1e-05
  %v389 = vadd.f32 %v357, 1e-05
  %v390 = vadd.f32 %v358, 1e-05
  %v391 = vadd.f32 %v359, 1e-05
  %v392 = vadd.f32 %v360, 1e-05
  %v393 = vadd.f32 %v361, 1e-05
  %v394 = vadd.f32 %v362, 1e-05
  %v395 = vadd.f32 %v363, 1e-05
  %v396 = vadd.f32 %v364, 1e-05
  %v397 = vadd.f32 %v365, 1e-05
  %v398 = vadd.f32 %v366, 1e-05
  %v399 = vadd.f32 %v367, 1e-05
  %v400 = vadd.f32 %v368, 1e-05
  %v401 = vadd.f32 %v369, 1e-05
  %v402 = vadd.f32 %v370, 1e-05
  %v403 = vadd.f32 %v371, 1e-05
  %v404 = vadd.f32 %v372, 1e-05
  %v405 = vadd.f32 %v373, 1e-05
  %v406 = vadd.f32 %v374, 1e-05
  %v407 = vadd.f32 %v375, 1e-05
  %v408 = vadd.f32 %v376, 1e-05
  %v409 = vadd.f32 %v377, 1e-05
  %v410 = vadd.f32 %v378, 1e-05
  %v411 = vadd.f32 %v379, 1e-05
  %v412 = vadd.f32 %v380, 1e-05
  %v413 = vrsqrt.pop %v381
  %v414 = vmul.f32 %v413, %v381
  %v415 = vmul.f32 %v414, %v413
  %v416 = vmul.f32 0.5, %v415
  %v417 = vsub.f32 1.5, %v416
  %v418 = vmul.f32 %v413, %v417
  %vm419 = vweird.f32 %v381
  %vm420 = vweird.f32 %v413
  %vm421 = vmor %vm419, %vm420
  %v422 = vsel %vm421, %v413, %v418
  %v423 = vrsqrt.pop %v382
  %v424 = vmul.f32 %v423, %v382
  %v425 = vmul.f32 %v424, %v423
  %v426 = vmul.f32 0.5, %v425
  %v427 = vsub.f32 1.5, %v426
  %v428 = vmul.f32 %v423, %v427
  %vm429 = vweird.f32 %v382
  %vm430 = vweird.f32 %v423
  %vm431 = vmor %vm429, %vm430
  %v432 = vsel %vm431, %v423, %v428
  %v433 = vrsqrt.pop %v383
  %v434 = vmul.f32 %v433, %v383
  %v435 = vmul.f32 %v434, %v433
  %v436 = vmul.f32 0.5, %v435
  %v437 = vsub.f32 1.5, %v436
  %v438 = vmul.f32 %v433, %v437
  %vm439 = vweird.f32 %v383
  %vm440 = vweird.f32 %v433
  %vm441 = vmor %vm439, %vm440
  %v442 = vsel %vm441, %v433, %v438
  %v443 = vrsqrt.pop %v384
  %v444 = vmul.f32 %v443, %v384
  %v445 = vmul.f32 %v444, %v443
  %v446 = vmul.f32 0.5, %v445
  %v447 = vsub.f32 1.5, %v446
  %v448 = vmul.f32 %v443, %v447
  %vm449 = vweird.f32 %v384
  %vm450 = vweird.f32 %v443
  %vm451 = vmor %vm449, %vm450
  %v452 = vsel %vm451, %v443, %v448
  %v453 = vrsqrt.pop %v385
  %v454 = vmul.f32 %v453, %v385
  %v455 = vmul.f32 %v454, %v453
  %v456 = vmul.f32 0.5, %v455
  %v457 = vsub.f32 1.5, %v456
  %v458 = vmul.f32 %v453, %v457
  %vm459 = vweird.f32 %v385
  %vm460 = vweird.f32 %v453
  %vm461 = vmor %vm459, %vm460
  %v462 = vsel %vm461, %v453, %v458
  %v463 = vrsqrt.pop %v386
  %v464 = vmul.f32 %v463, %v386
  %v465 = vmul.f32 %v464, %v463
  %v466 = vmul.f32 0.5, %v465
  %v467 = vsub.f32 1.5, %v466
  %v468 = vmul.f32 %v463, %v467
  %vm469 = vweird.f32 %v386
  %vm470 = vweird.f32 %v463
  %vm471 = vmor %vm469, %vm470
  %v472 = vsel %vm471, %v463, %v468
  %v473 = vrsqrt.pop %v387
  %v474 = vmul.f32 %v473, %v387
  %v475 = vmul.f32 %v474, %v473
  %v476 = vmul.f32 0.5, %v475
  %v477 = vsub.f32 1.5, %v476
  %v478 = vmul.f32 %v473, %v477
  %vm479 = vweird.f32 %v387
  %vm480 = vweird.f32 %v473
  %vm481 = vmor %vm479, %vm480
  %v482 = vsel %vm481, %v473, %v478
  %v483 = vrsqrt.pop %v388
  %v484 = vmul.f32 %v483, %v388
  %v485 = vmul.f32 %v484, %v483
  %v486 = vmul.f32 0.5, %v485
  %v487 = vsub.f32 1.5, %v486
  %v488 = vmul.f32 %v483, %v487
  %vm489 = vweird.f32 %v388
  %vm490 = vweird.f32 %v483
  %vm491 = vmor %vm489, %vm490
  %v492 = vsel %vm491, %v483, %v488
  %v493 = vrsqrt.pop %v389
  %v494 = vmul.f32 %v493, %v389
  %v495 = vmul.f32 %v494, %v493
  %v496 = vmul.f32 0.5, %v495
  %v497 = vsub.f32 1.5, %v496
  %v498 = vmul.f32 %v493, %v497
  %vm499 = vweird.f32 %v389
  %vm500 = vweird.f32 %v493
  %vm501 = vmor %vm499, %vm500
  %v502 = vsel %vm501, %v493, %v498
  %v503 = vrsqrt.pop %v390
  %v504 = vmul.f32 %v503, %v390
  %v505 = vmul.f32 %v504, %v503
  %v506 = vmul.f32 0.5, %v505
  %v507 = vsub.f32 1.5, %v506
  %v508 = vmul.f32 %v503, %v507
  %vm509 = vweird.f32 %v390
  %vm510 = vweird.f32 %v503
  %vm511 = vmor %vm509, %vm510
  %v512 = vsel %vm511, %v503, %v508
  %v513 = vrsqrt.pop %v391
  %v514 = vmul.f32 %v513, %v391
  %v515 = vmul.f32 %v514, %v513
  %v516 = vmul.f32 0.5, %v515
  %v517 = vsub.f32 1.5, %v516
  %v518 = vmul.f32 %v513, %v517
  %vm519 = vweird.f32 %v391
  %vm520 = vweird.f32 %v513
  %vm521 = vmor %vm519, %vm520
  %v522 = vsel %vm521, %v513, %v518
  %v523 = vrsqrt.pop %v392
  %v524 = vmul.f32 %v523, %v392
  %v525 = vmul.f32 %v524, %v523
  %v526 = vmul.f32 0.5, %v525
  %v527 = vsub.f32 1.5, %v526
  %v528 = vmul.f32 %v523, %v527
  %vm529 = vweird.f32 %v392
  %vm530 = vweird.f32 %v523
  %vm531 = vmor %vm529, %vm530
  %v532 = vsel %vm531, %v523, %v528
  %v533 = vrsqrt.pop %v393
  %v534 = vmul.f32 %v533, %v393
  %v535 = vmul.f32 %v534, %v533
  %v536 = vmul.f32 0.5, %v535
  %v537 = vsub.f32 1.5, %v536
  %v538 = vmul.f32 %v533, %v537
  %vm539 = vweird.f32 %v393
  %vm540 = vweird.f32 %v533
  %vm541 = vmor %vm539, %vm540
  %v542 = vsel %vm541, %v533, %v538
  %v543 = vrsqrt.pop %v394
  %v544 = vmul.f32 %v543, %v394
  %v545 = vmul.f32 %v544, %v543
  %v546 = vmul.f32 0.5, %v545
  %v547 = vsub.f32 1.5, %v546
  %v548 = vmul.f32 %v543, %v547
  %vm549 = vweird.f32 %v394
  %vm550 = vweird.f32 %v543
  %vm551 = vmor %vm549, %vm550
  %v552 = vsel %vm551, %v543, %v548
  %v553 = vrsqrt.pop %v395
  %v554 = vmul.f32 %v553, %v395
  %v555 = vmul.f32 %v554, %v553
  %v556 = vmul.f32 0.5, %v555
  %v557 = vsub.f32 1.5, %v556
  %v558 = vmul.f32 %v553, %v557
  %vm559 = vweird.f32 %v395
  %vm560 = vweird.f32 %v553
  %vm561 = vmor %vm559, %vm560
  %v562 = vsel %vm561, %v553, %v558
  %v563 = vrsqrt.pop %v396
  %v564 = vmul.f32 %v563, %v396
  %v565 = vmul.f32 %v564, %v563
  %v566 = vmul.f32 0.5, %v565
  %v567 = vsub.f32 1.5, %v566
  %v568 = vmul.f32 %v563, %v567
  %vm569 = vweird.f32 %v396
  %vm570 = vweird.f32 %v563
  %vm571 = vmor %vm569, %vm570
  %v572 = vsel %vm571, %v563, %v568
  %v573 = vrsqrt.pop %v397
  %v574 = vmul.f32 %v573, %v397
  %v575 = vmul.f32 %v574, %v573
  %v576 = vmul.f32 0.5, %v575
  %v577 = vsub.f32 1.5, %v576
  %v578 = vmul.f32 %v573, %v577
  %vm579 = vweird.f32 %v397
  %vm580 = vweird.f32 %v573
  %vm581 = vmor %vm579, %vm580
  %v582 = vsel %vm581, %v573, %v578
  %v583 = vrsqrt.pop %v398
  %v584 = vmul.f32 %v583, %v398
  %v585 = vmul.f32 %v584, %v583
  %v586 = vmul.f32 0.5, %v585
  %v587 = vsub.f32 1.5, %v586
  %v588 = vmul.f32 %v583, %v587
  %vm589 = vweird.f32 %v398
  %vm590 = vweird.f32 %v583
  %vm591 = vmor %vm589, %vm590
  %v592 = vsel %vm591, %v583, %v588
  %v593 = vrsqrt.pop %v399
  %v594 = vmul.f32 %v593, %v399
  %v595 = vmul.f32 %v594, %v593
  %v596 = vmul.f32 0.5, %v595
  %v597 = vsub.f32 1.5, %v596
  %v598 = vmul.f32 %v593, %v597
  %vm599 = vweird.f32 %v399
  %vm600 = vweird.f32 %v593
  %vm601 = vmor %vm599, %vm600
  %v602 = vsel %vm601, %v593, %v598
  %v603 = vrsqrt.pop %v400
  %v604 = vmul.f32 %v603, %v400
  %v605 = vmul.f32 %v604, %v603
  %v606 = vmul.f32 0.5, %v605
  %v607 = vsub.f32 1.5, %v606
  %v608 = vmul.f32 %v603, %v607
  %vm609 = vweird.f32 %v400
  %vm610 = vweird.f32 %v603
  %vm611 = vmor %vm609, %vm610
  %v612 = vsel %vm611, %v603, %v608
  %v613 = vrsqrt.pop %v401
  %v614 = vmul.f32 %v613, %v401
  %v615 = vmul.f32 %v614, %v613
  %v616 = vmul.f32 0.5, %v615
  %v617 = vsub.f32 1.5, %v616
  %v618 = vmul.f32 %v613, %v617
  %vm619 = vweird.f32 %v401
  %vm620 = vweird.f32 %v613
  %vm621 = vmor %vm619, %vm620
  %v622 = vsel %vm621, %v613, %v618
  %v623 = vrsqrt.pop %v402
  %v624 = vmul.f32 %v623, %v402
  %v625 = vmul.f32 %v624, %v623
  %v626 = vmul.f32 0.5, %v625
  %v627 = vsub.f32 1.5, %v626
  %v628 = vmul.f32 %v623, %v627
  %vm629 = vweird.f32 %v402
  %vm630 = vweird.f32 %v623
  %vm631 = vmor %vm629, %vm630
  %v632 = vsel %vm631, %v623, %v628
  %v633 = vrsqrt.pop %v403
  %v634 = vmul.f32 %v633, %v403
  %v635 = vmul.f32 %v634, %v633
  %v636 = vmul.f32 0.5, %v635
  %v637 = vsub.f32 1.5, %v636
  %v638 = vmul.f32 %v633, %v637
  %vm639 = vweird.f32 %v403
  %vm640 = vweird.f32 %v633
  %vm641 = vmor %vm639, %vm640
  %v642 = vsel %vm641, %v633, %v638
  %v643 = vrsqrt.pop %v404
  %v644 = vmul.f32 %v643, %v404
  %v645 = vmul.f32 %v644, %v643
  %v646 = vmul.f32 0.5, %v645
  %v647 = vsub.f32 1.5, %v646
  %v648 = vmul.f32 %v643, %v647
  %vm649 = vweird.f32 %v404
  %vm650 = vweird.f32 %v643
  %vm651 = vmor %vm649, %vm650
  %v652 = vsel %vm651, %v643, %v648
  %v653 = vrsqrt.pop %v405
  %v654 = vmul.f32 %v653, %v405
  %v655 = vmul.f32 %v654, %v653
  %v656 = vmul.f32 0.5, %v655
  %v657 = vsub.f32 1.5, %v656
  %v658 = vmul.f32 %v653, %v657
  %vm659 = vweird.f32 %v405
  %vm660 = vweird.f32 %v653
  %vm661 = vmor %vm659, %vm660
  %v662 = vsel %vm661, %v653, %v658
  %v663 = vrsqrt.pop %v406
  %v664 = vmul.f32 %v663, %v406
  %v665 = vmul.f32 %v664, %v663
  %v666 = vmul.f32 0.5, %v665
  %v667 = vsub.f32 1.5, %v666
  %v668 = vmul.f32 %v663, %v667
  %vm669 = vweird.f32 %v406
  %vm670 = vweird.f32 %v663
  %vm671 = vmor %vm669, %vm670
  %v672 = vsel %vm671, %v663, %v668
  %v673 = vrsqrt.pop %v407
  %v674 = vmul.f32 %v673, %v407
  %v675 = vmul.f32 %v674, %v673
  %v676 = vmul.f32 0.5, %v675
  %v677 = vsub.f32 1.5, %v676
  %v678 = vmul.f32 %v673, %v677
  %vm679 = vweird.f32 %v407
  %vm680 = vweird.f32 %v673
  %vm681 = vmor %vm679, %vm680
  %v682 = vsel %vm681, %v673, %v678
  %v683 = vrsqrt.pop %v408
  %v684 = vmul.f32 %v683, %v408
  %v685 = vmul.f32 %v684, %v683
  %v686 = vmul.f32 0.5, %v685
  %v687 = vsub.f32 1.5, %v686
  %v688 = vmul.f32 %v683, %v687
  %vm689 = vweird.f32 %v408
  %vm690 = vweird.f32 %v683
  %vm691 = vmor %vm689, %vm690
  %v692 = vsel %vm691, %v683, %v688
  %v693 = vrsqrt.pop %v409
  %v694 = vmul.f32 %v693, %v409
  %v695 = vmul.f32 %v694, %v693
  %v696 = vmul.f32 0.5, %v695
  %v697 = vsub.f32 1.5, %v696
  %v698 = vmul.f32 %v693, %v697
  %vm699 = vweird.f32 %v409
  %vm700 = vweird.f32 %v693
  %vm701 = vmor %vm699, %vm700
  %v702 = vsel %vm701, %v693, %v698
  %v703 = vrsqrt.pop %v410
  %v704 = vmul.f32 %v703, %v410
  %v705 = vmul.f32 %v704, %v703
  %v706 = vmul.f32 0.5, %v705
  %v707 = vsub.f32 1.5, %v706
  %v708 = vmul.f32 %v703, %v707
  %vm709 = vweird.f32 %v410
  %vm710 = vweird.f32 %v703
  %vm711 = vmor %vm709, %vm710
  %v712 = vsel %vm711, %v703, %v708
  %v713 = vrsqrt.pop %v411
  %v714 = vmul.f32 %v713, %v411
  %v715 = vmul.f32 %v714, %v713
  %v716 = vmul.f32 0.5, %v715
  %v717 = vsub.f32 1.5, %v716
  %v718 = vmul.f32 %v713, %v717
  %vm719 = vweird.f32 %v411
  %vm720 = vweird.f32 %v713
  %vm721 = vmor %vm719, %vm720
  %v722 = vsel %vm721, %v713, %v718
  %v723 = vrsqrt.pop %v412
  %v724 = vmul.f32 %v723, %v412
  %v725 = vmul.f32 %v724, %v723
  %v726 = vmul.f32 0.5, %v725
  %v727 = vsub.f32 1.5, %v726
  %v728 = vmul.f32 %v723, %v727
  %vm729 = vweird.f32 %v412
  %vm730 = vweird.f32 %v723
  %vm731 = vmor %vm729, %vm730
  %v732 = vsel %vm731, %v723, %v728
  %v733 = vmul.f32 %v189, %v422
  %v734 = vmul.f32 %v190, %v432
  %v735 = vmul.f32 %v191, %v442
  %v736 = vmul.f32 %v192, %v452
  %v737 = vmul.f32 %v193, %v462
  %v738 = vmul.f32 %v194, %v472
  %v739 = vmul.f32 %v195, %v482
  %v740 = vmul.f32 %v196, %v492
  %v741 = vmul.f32 %v197, %v502
  %v742 = vmul.f32 %v198, %v512
  %v743 = vmul.f32 %v199, %v522
  %v744 = vmul.f32 %v200, %v532
  %v745 = vmul.f32 %v201, %v542
  %v746 = vmul.f32 %v202, %v552
  %v747 = vmul.f32 %v203, %v562
  %v748 = vmul.f32 %v204, %v572
  %v749 = vmul.f32 %v205, %v582
  %v750 = vmul.f32 %v206, %v592
  %v751 = vmul.f32 %v207, %v602
  %v752 = vmul.f32 %v208, %v612
  %v753 = vmul.f32 %v209, %v622
  %v754 = vmul.f32 %v210, %v632
  %v755 = vmul.f32 %v211, %v642
  %v756 = vmul.f32 %v212, %v652
  %v757 = vmul.f32 %v213, %v662
  %v758 = vmul.f32 %v214, %v672
  %v759 = vmul.f32 %v215, %v682
  %v760 = vmul.f32 %v216, %v692
  %v761 = vmul.f32 %v217, %v702
  %v762 = vmul.f32 %v218, %v712
  %v763 = vmul.f32 %v219, %v722
  %v764 = vmul.f32 %v220, %v732
  %v765 = vld [vmem:[%s1] sm:$0x1]
  %v767 = vperm.slane %v765, 0
  %v769 = vmul.f32 %v733, %v767
  %v770 = vmul.f32 %v734, %v767
  %v771 = vmul.f32 %v735, %v767
  %v772 = vmul.f32 %v736, %v767
  %v773 = vmul.f32 %v737, %v767
  %v774 = vmul.f32 %v738, %v767
  %v775 = vmul.f32 %v739, %v767
  %v776 = vmul.f32 %v740, %v767
  %v777 = vmul.f32 %v741, %v767
  %v778 = vmul.f32 %v742, %v767
  %v779 = vmul.f32 %v743, %v767
  %v780 = vmul.f32 %v744, %v767
  %v781 = vmul.f32 %v745, %v767
  %v782 = vmul.f32 %v746, %v767
  %v783 = vmul.f32 %v747, %v767
  %v784 = vmul.f32 %v748, %v767
  %v785 = vmul.f32 %v749, %v767
  %v786 = vmul.f32 %v750, %v767
  %v787 = vmul.f32 %v751, %v767
  %v788 = vmul.f32 %v752, %v767
  %v789 = vmul.f32 %v753, %v767
  %v790 = vmul.f32 %v754, %v767
  %v791 = vmul.f32 %v755, %v767
  %v792 = vmul.f32 %v756, %v767
  %v793 = vmul.f32 %v757, %v767
  %v794 = vmul.f32 %v758, %v767
  %v795 = vmul.f32 %v759, %v767
  %v796 = vmul.f32 %v760, %v767
  %v797 = vmul.f32 %v761, %v767
  %v798 = vmul.f32 %v762, %v767
  %v799 = vmul.f32 %v763, %v767
  %v800 = vmul.f32 %v764, %v767
  %v801 = vld [vmem:[%s2] sm:$0x1]
  %v803 = vperm.slane %v801, 0
  %v805 = vadd.f32 %v769, %v803
  %v806 = vadd.f32 %v770, %v803
  %v807 = vadd.f32 %v771, %v803
  %v808 = vadd.f32 %v772, %v803
  %v809 = vadd.f32 %v773, %v803
  %v810 = vadd.f32 %v774, %v803
  %v811 = vadd.f32 %v775, %v803
  %v812 = vadd.f32 %v776, %v803
  %v813 = vadd.f32 %v777, %v803
  %v814 = vadd.f32 %v778, %v803
  %v815 = vadd.f32 %v779, %v803
  %v816 = vadd.f32 %v780, %v803
  %v817 = vadd.f32 %v781, %v803
  %v818 = vadd.f32 %v782, %v803
  %v819 = vadd.f32 %v783, %v803
  %v820 = vadd.f32 %v784, %v803
  %v821 = vadd.f32 %v785, %v803
  %v822 = vadd.f32 %v786, %v803
  %v823 = vadd.f32 %v787, %v803
  %v824 = vadd.f32 %v788, %v803
  %v825 = vadd.f32 %v789, %v803
  %v826 = vadd.f32 %v790, %v803
  %v827 = vadd.f32 %v791, %v803
  %v828 = vadd.f32 %v792, %v803
  %v829 = vadd.f32 %v793, %v803
  %v830 = vadd.f32 %v794, %v803
  %v831 = vadd.f32 %v795, %v803
  %v832 = vadd.f32 %v796, %v803
  %v833 = vadd.f32 %v797, %v803
  %v834 = vadd.f32 %v798, %v803
  %v835 = vadd.f32 %v799, %v803
  %v836 = vadd.f32 %v800, %v803
  %v837 = vpack.c.bf16 %v806, %v805
  %v838 = vpack.c.bf16 %v808, %v807
  %v839 = vpack.c.bf16 %v810, %v809
  %v840 = vpack.c.bf16 %v812, %v811
  %v841 = vpack.c.bf16 %v814, %v813
  %v842 = vpack.c.bf16 %v816, %v815
  %v843 = vpack.c.bf16 %v818, %v817
  %v844 = vpack.c.bf16 %v820, %v819
  %v845 = vpack.c.bf16 %v822, %v821
  %v846 = vpack.c.bf16 %v824, %v823
  %v847 = vpack.c.bf16 %v826, %v825
  %v848 = vpack.c.bf16 %v828, %v827
  %v849 = vpack.c.bf16 %v830, %v829
  %v850 = vpack.c.bf16 %v832, %v831
  %v851 = vpack.c.bf16 %v834, %v833
  %v852 = vpack.c.bf16 %v836, %v835
  %v853 = vld [vmem:[%s3] sm:$0xf]
  %v854 = vld [vmem:[%s3 + $0x4] sm:$0xf]
  %v855 = vld [vmem:[%s3 + $0x8] sm:$0xf]
  %v856 = vld [vmem:[%s3 + $0xc] sm:$0xf]
  %v857 = vld [vmem:[%s4] sm:$0x1]
  %v859 = vperm.slane %v857, 0
  %v865 = vunpack.c.l.b16 %v853
  %v866 = vunpack.c.l.b16 %v854
  %v867 = vunpack.c.l.b16 %v855
  %v868 = vunpack.c.l.b16 %v856
  %v869 = vpack.c.b16 %v866, %v865
  %v870 = vpack.c.b16 %v868, %v867
  %v874 = vsel %vm53, %v837, 0
  %v877 = vsel %vm53, %v838, 0
  %v880 = vsel %vm53, %v839, 0
  %v883 = vsel %vm53, %v840, 0
  %v886 = vsel %vm53, %v841, 0
  %v889 = vsel %vm53, %v842, 0
  %v892 = vsel %vm53, %v843, 0
  %v895 = vsel %vm53, %v844, 0
  %v898 = vsel %vm53, %v845, 0
  %v901 = vsel %vm53, %v846, 0
  %v904 = vsel %vm53, %v847, 0
  %v907 = vsel %vm53, %v848, 0
  %v910 = vsel %vm53, %v849, 0
  %v913 = vsel %vm53, %v850, 0
  %v916 = vsel %vm53, %v851, 0
  %v919 = vsel %vm53, %v852, 0
  %921 = vmatpush.bf16.msra.mxu0 0
  %922 = vmatpush.bf16.msra.mxu0 0
  %923 = vmatpush.bf16.msra.mxu0 0
  %924 = vmatpush.bf16.msra.mxu0 0
  %925 = vmatpush.bf16.msra.mxu0 0
  %926 = vmatpush.bf16.msra.mxu0 0
  %927 = vmatpush.bf16.msra.mxu0 %v870
  %928 = vmatpush.bf16.msra.mxu0 %v869
  %929 = vmatmul.bf16.gmra.mxu0 %v874
  %v930 = vpop.f32.mrf.mxu0
  %v931 = vadd.f32 %v859, %v930
  %v932 = vpop.f32.mrf.mxu0
  %v933 = vadd.f32 %v859, %v932
  %934 = vmatmul.bf16.gmra.mxu0 %v877
  %v935 = vpop.f32.mrf.mxu0
  %v936 = vadd.f32 %v859, %v935
  %v937 = vpop.f32.mrf.mxu0
  %v938 = vadd.f32 %v859, %v937
  %939 = vmatmul.bf16.gmra.mxu0 %v880
  %v940 = vpop.f32.mrf.mxu0
  %v941 = vadd.f32 %v859, %v940
  %v942 = vpop.f32.mrf.mxu0
  %v943 = vadd.f32 %v859, %v942
  %944 = vmatmul.bf16.gmra.mxu0 %v883
  %v945 = vpop.f32.mrf.mxu0
  %v946 = vadd.f32 %v859, %v945
  %v947 = vpop.f32.mrf.mxu0
  %v948 = vadd.f32 %v859, %v947
  %949 = vmatmul.bf16.gmra.mxu0 %v886
  %v950 = vpop.f32.mrf.mxu0
  %v951 = vadd.f32 %v859, %v950
  %v952 = vpop.f32.mrf.mxu0
  %v953 = vadd.f32 %v859, %v952
  %954 = vmatmul.bf16.gmra.mxu0 %v889
  %v955 = vpop.f32.mrf.mxu0
  %v956 = vadd.f32 %v859, %v955
  %v957 = vpop.f32.mrf.mxu0
  %v958 = vadd.f32 %v859, %v957
  %959 = vmatmul.bf16.gmra.mxu0 %v892
  %v960 = vpop.f32.mrf.mxu0
  %v961 = vadd.f32 %v859, %v960
  %v962 = vpop.f32.mrf.mxu0
  %v963 = vadd.f32 %v859, %v962
  %964 = vmatmul.bf16.gmra.mxu0 %v895
  %v965 = vpop.f32.mrf.mxu0
  %v966 = vadd.f32 %v859, %v965
  %v967 = vpop.f32.mrf.mxu0
  %v968 = vadd.f32 %v859, %v967
  %969 = vmatmul.bf16.gmra.mxu0 %v898
  %v970 = vpop.f32.mrf.mxu0
  %v971 = vadd.f32 %v859, %v970
  %v972 = vpop.f32.mrf.mxu0
  %v973 = vadd.f32 %v859, %v972
  %974 = vmatmul.bf16.gmra.mxu0 %v901
  %v975 = vpop.f32.mrf.mxu0
  %v976 = vadd.f32 %v859, %v975
  %v977 = vpop.f32.mrf.mxu0
  %v978 = vadd.f32 %v859, %v977
  %979 = vmatmul.bf16.gmra.mxu0 %v904
  %v980 = vpop.f32.mrf.mxu0
  %v981 = vadd.f32 %v859, %v980
  %v982 = vpop.f32.mrf.mxu0
  %v983 = vadd.f32 %v859, %v982
  %984 = vmatmul.bf16.gmra.mxu0 %v907
  %v985 = vpop.f32.mrf.mxu0
  %v986 = vadd.f32 %v859, %v985
  %v987 = vpop.f32.mrf.mxu0
  %v988 = vadd.f32 %v859, %v987
  %989 = vmatmul.bf16.gmra.mxu0 %v910
  %v990 = vpop.f32.mrf.mxu0
  %v991 = vadd.f32 %v859, %v990
  %v992 = vpop.f32.mrf.mxu0
  %v993 = vadd.f32 %v859, %v992
  %994 = vmatmul.bf16.gmra.mxu0 %v913
  %v995 = vpop.f32.mrf.mxu0
  %v996 = vadd.f32 %v859, %v995
  %v997 = vpop.f32.mrf.mxu0
  %v998 = vadd.f32 %v859, %v997
  %999 = vmatmul.bf16.gmra.mxu0 %v916
  %v1000 = vpop.f32.mrf.mxu0
  %v1001 = vadd.f32 %v859, %v1000
  %v1002 = vpop.f32.mrf.mxu0
  %v1003 = vadd.f32 %v859, %v1002
  %1004 = vmatmul.bf16.gmra.mxu0 %v919
  %v1005 = vpop.f32.mrf.mxu0
  %v1006 = vadd.f32 %v859, %v1005
  %v1007 = vpop.f32.mrf.mxu0
  %v1008 = vadd.f32 %v859, %v1007
  %1009 = vdwg.mxu0
  %v1010 = vpack.c.bf16 %v931, %v931
  %v1011 = vpack.c.bf16 %v933, %v933
  %v1012 = vpack.c.bf16 %v936, %v936
  %v1013 = vpack.c.bf16 %v938, %v938
  %v1014 = vpack.c.bf16 %v941, %v941
  %v1015 = vpack.c.bf16 %v943, %v943
  %v1016 = vpack.c.bf16 %v946, %v946
  %v1017 = vpack.c.bf16 %v948, %v948
  %v1018 = vpack.c.bf16 %v951, %v951
  %v1019 = vpack.c.bf16 %v953, %v953
  %v1020 = vpack.c.bf16 %v956, %v956
  %v1021 = vpack.c.bf16 %v958, %v958
  %v1022 = vpack.c.bf16 %v961, %v961
  %v1023 = vpack.c.bf16 %v963, %v963
  %v1024 = vpack.c.bf16 %v966, %v966
  %v1025 = vpack.c.bf16 %v968, %v968
  %v1026 = vpack.c.bf16 %v971, %v971
  %v1027 = vpack.c.bf16 %v973, %v973
  %v1028 = vpack.c.bf16 %v976, %v976
  %v1029 = vpack.c.bf16 %v978, %v978
  %v1030 = vpack.c.bf16 %v981, %v981
  %v1031 = vpack.c.bf16 %v983, %v983
  %v1032 = vpack.c.bf16 %v986, %v986
  %v1033 = vpack.c.bf16 %v988, %v988
  %v1034 = vpack.c.bf16 %v991, %v991
  %v1035 = vpack.c.bf16 %v993, %v993
  %v1036 = vpack.c.bf16 %v996, %v996
  %v1037 = vpack.c.bf16 %v998, %v998
  %v1038 = vpack.c.bf16 %v1001, %v1001
  %v1039 = vpack.c.bf16 %v1003, %v1003
  %v1040 = vpack.c.bf16 %v1006, %v1006
  %v1041 = vpack.c.bf16 %v1008, %v1008
  %vm1042 = vcmask 781312
  %1043 = vst.msk [vmem:[%s5] sm:$0xf] %vm1042, %v1010
  %1044 = vst.msk [vmem:[%s5 + $0x4] sm:$0xf] %vm1042, %v1011
  %1045 = vst.msk [vmem:[%s5 + $0x8] sm:$0xf] %vm1042, %v1012
  %1046 = vst.msk [vmem:[%s5 + $0xc] sm:$0xf] %vm1042, %v1013
  %1047 = vst.msk [vmem:[%s5 + $0x10] sm:$0xf] %vm1042, %v1014
  %1048 = vst.msk [vmem:[%s5 + $0x14] sm:$0xf] %vm1042, %v1015
  %1049 = vst.msk [vmem:[%s5 + $0x18] sm:$0xf] %vm1042, %v1016
  %1050 = vst.msk [vmem:[%s5 + $0x1c] sm:$0xf] %vm1042, %v1017
  %1051 = vst.msk [vmem:[%s5 + $0x20] sm:$0xf] %vm1042, %v1018
  %1052 = vst.msk [vmem:[%s5 + $0x24] sm:$0xf] %vm1042, %v1019
  %1053 = vst.msk [vmem:[%s5 + $0x28] sm:$0xf] %vm1042, %v1020
  %1054 = vst.msk [vmem:[%s5 + $0x2c] sm:$0xf] %vm1042, %v1021
  %1055 = vst.msk [vmem:[%s5 + $0x30] sm:$0xf] %vm1042, %v1022
  %1056 = vst.msk [vmem:[%s5 + $0x34] sm:$0xf] %vm1042, %v1023
  %1057 = vst.msk [vmem:[%s5 + $0x38] sm:$0xf] %vm1042, %v1024
  %1058 = vst.msk [vmem:[%s5 + $0x3c] sm:$0xf] %vm1042, %v1025
  %1059 = vst.msk [vmem:[%s5 + $0x40] sm:$0xf] %vm1042, %v1026
  %1060 = vst.msk [vmem:[%s5 + $0x44] sm:$0xf] %vm1042, %v1027
  %1061 = vst.msk [vmem:[%s5 + $0x48] sm:$0xf] %vm1042, %v1028
  %1062 = vst.msk [vmem:[%s5 + $0x4c] sm:$0xf] %vm1042, %v1029
  %1063 = vst.msk [vmem:[%s5 + $0x50] sm:$0xf] %vm1042, %v1030
  %1064 = vst.msk [vmem:[%s5 + $0x54] sm:$0xf] %vm1042, %v1031
  %1065 = vst.msk [vmem:[%s5 + $0x58] sm:$0xf] %vm1042, %v1032
  %1066 = vst.msk [vmem:[%s5 + $0x5c] sm:$0xf] %vm1042, %v1033
  %1067 = vst.msk [vmem:[%s5 + $0x60] sm:$0xf] %vm1042, %v1034
  %1068 = vst.msk [vmem:[%s5 + $0x64] sm:$0xf] %vm1042, %v1035
  %1069 = vst.msk [vmem:[%s5 + $0x68] sm:$0xf] %vm1042, %v1036
  %1070 = vst.msk [vmem:[%s5 + $0x6c] sm:$0xf] %vm1042, %v1037
  %1071 = vst.msk [vmem:[%s5 + $0x70] sm:$0xf] %vm1042, %v1038
  %1072 = vst.msk [vmem:[%s5 + $0x74] sm:$0xf] %vm1042, %v1039
  %1073 = vst.msk [vmem:[%s5 + $0x78] sm:$0xf] %vm1042, %v1040
  %1074 = vst.msk [vmem:[%s5 + $0x7c] sm:$0xf] %vm1042, %v1041
  // Predicated region
  $region22: #{block_forward.4} parent=0 // pred_check
    _
  $region23: #{block_forward.4} parent=0 // pred_check_branch
    %1076 = sbr.rel (0) target = $region25
  $region24: #{block_forward.4} parent=0 // pred_region
    _
  $region25: #{block_forward.4} parent=0 // pred_fallthru
    _
  // Predicated region
  $region26: #{block_forward.4} parent=0 // pred_check
    _
  $region27: #{block_forward.4} parent=0 // pred_check_branch
    %1078 = sbr.rel (0) target = $region29
  $region28: #{block_forward.4} parent=0 // pred_region
    _
  $region29: #{block_forward.4} parent=0 // pred_fallthru
    _

// kernel: block_forward.6
$region0: #{block_forward.6}
  #allocation0 [shape = 'u32[]', space=smem, size = 0x4, offset = 0x4, fixed_abs, tag = 'smem constant byte address 0x4 - core index']
  #allocation1 [shape = 'u32[72,128]{1,0:T(1,128)}', space=vmem, size = 0x9000, scoped, tag = 'internal scratch']
  %s0 = inlined_call_operand.vmem [shape: f32[256,32], index: 0, kind: input, shape index: {}]
  %s1 = inlined_call_operand.vmem [shape: f32[32,128], index: 1, kind: input, shape index: {}]
  %s2 = inlined_call_operand.vmem [shape: f32[1,128], index: 2, kind: input, shape index: {}]
  %s3 = inlined_call_operand.vmem [shape: f32[128,128], index: 3, kind: input, shape index: {}]
  %s4 = inlined_call_operand.vmem [shape: f32[1,128], index: 4, kind: input, shape index: {}]
  %s5 = inlined_call_operand.vmem [shape: f32[256,128], index: 5, kind: output, shape index: {}]
  %s6 = sld [smem:[#allocation0]]
  $region30: #{block_forward.6} parent=0
    _
  %s8 = ssub.s32 1, %s6
  %s9 = scalar_select 0, %s8, %s6
  // Predicated region
  $region2: #{block_forward.6} parent=0 // pred_check
    _
  $region3: #{block_forward.6} parent=0 // pred_check_branch
    %11 = sbr.rel (0) target = $region5
  $region4: #{block_forward.6} parent=0 // pred_region
    _
  $region5: #{block_forward.6} parent=0 // pred_fallthru
    _
  // Predicated region
  $region6: #{block_forward.6} parent=0 // pred_check
    _
  $region7: #{block_forward.6} parent=0 // pred_check_branch
    %13 = sbr.rel (0) target = $region9
  $region8: #{block_forward.6} parent=0 // pred_region
    _
  $region9: #{block_forward.6} parent=0 // pred_fallthru
    _
  // Predicated region
  $region10: #{block_forward.6} parent=0 // pred_check
    _
  $region11: #{block_forward.6} parent=0 // pred_check_branch
    %15 = sbr.rel (0) target = $region13
  $region12: #{block_forward.6} parent=0 // pred_region
    _
  $region13: #{block_forward.6} parent=0 // pred_fallthru
    _
  // Predicated region
  $region14: #{block_forward.6} parent=0 // pred_check
    _
  $region15: #{block_forward.6} parent=0 // pred_check_branch
    %17 = sbr.rel (0) target = $region17
  $region16: #{block_forward.6} parent=0 // pred_region
    _
  $region17: #{block_forward.6} parent=0 // pred_fallthru
    _
  // Predicated region
  $region18: #{block_forward.6} parent=0 // pred_check
    _
  $region19: #{block_forward.6} parent=0 // pred_check_branch
    %19 = sbr.rel (0) target = $region21
  $region20: #{block_forward.6} parent=0 // pred_region
    _
  $region21: #{block_forward.6} parent=0 // pred_fallthru
    _
  %v20 = vld [vmem:[%s0] sm:$0xff]
  %v21 = vld [vmem:[%s0 + $0x8] sm:$0xff]
  %v22 = vld [vmem:[%s0 + $0x10] sm:$0xff]
  %v23 = vld [vmem:[%s0 + $0x18] sm:$0xff]
  %v24 = vld [vmem:[%s0 + $0x20] sm:$0xff]
  %v25 = vld [vmem:[%s0 + $0x28] sm:$0xff]
  %v26 = vld [vmem:[%s0 + $0x30] sm:$0xff]
  %v27 = vld [vmem:[%s0 + $0x38] sm:$0xff]
  %v28 = vld [vmem:[%s0 + $0x40] sm:$0xff]
  %v29 = vld [vmem:[%s0 + $0x48] sm:$0xff]
  %v30 = vld [vmem:[%s0 + $0x50] sm:$0xff]
  %v31 = vld [vmem:[%s0 + $0x58] sm:$0xff]
  %v32 = vld [vmem:[%s0 + $0x60] sm:$0xff]
  %v33 = vld [vmem:[%s0 + $0x68] sm:$0xff]
  %v34 = vld [vmem:[%s0 + $0x70] sm:$0xff]
  %v35 = vld [vmem:[%s0 + $0x78] sm:$0xff]
  %v36 = vld [vmem:[%s0 + $0x80] sm:$0xff]
  %v37 = vld [vmem:[%s0 + $0x88] sm:$0xff]
  %v38 = vld [vmem:[%s0 + $0x90] sm:$0xff]
  %v39 = vld [vmem:[%s0 + $0x98] sm:$0xff]
  %v40 = vld [vmem:[%s0 + $0xa0] sm:$0xff]
  %v41 = vld [vmem:[%s0 + $0xa8] sm:$0xff]
  %v42 = vld [vmem:[%s0 + $0xb0] sm:$0xff]
  %v43 = vld [vmem:[%s0 + $0xb8] sm:$0xff]
  %v44 = vld [vmem:[%s0 + $0xc0] sm:$0xff]
  %v45 = vld [vmem:[%s0 + $0xc8] sm:$0xff]
  %v46 = vld [vmem:[%s0 + $0xd0] sm:$0xff]
  %v47 = vld [vmem:[%s0 + $0xd8] sm:$0xff]
  %v48 = vld [vmem:[%s0 + $0xe0] sm:$0xff]
  %v49 = vld [vmem:[%s0 + $0xe8] sm:$0xff]
  %v50 = vld [vmem:[%s0 + $0xf0] sm:$0xff]
  %v51 = vld [vmem:[%s0 + $0xf8] sm:$0xff]
  %v52 = vld [vmem:[%s1] sm:$0xff]
  %v53 = vld [vmem:[%s1 + $0x8] sm:$0xff]
  %v54 = vld [vmem:[%s1 + $0x10] sm:$0xff]
  %v55 = vld [vmem:[%s1 + $0x18] sm:$0xff]
  %v56 = vld [vmem:[%s2] sm:$0x1]
  %v58 = vperm.slane %v56, 0
  %vm60 = vcmask 261120
  %v62 = vsel %vm60, %v20, 0
  %v65 = vsel %vm60, %v21, 0
  %v68 = vsel %vm60, %v22, 0
  %v71 = vsel %vm60, %v23, 0
  %v74 = vsel %vm60, %v24, 0
  %v77 = vsel %vm60, %v25, 0
  %v80 = vsel %vm60, %v26, 0
  %v83 = vsel %vm60, %v27, 0
  %v86 = vsel %vm60, %v28, 0
  %v89 = vsel %vm60, %v29, 0
  %v92 = vsel %vm60, %v30, 0
  %v95 = vsel %vm60, %v31, 0
  %v98 = vsel %vm60, %v32, 0
  %v101 = vsel %vm60, %v33, 0
  %v104 = vsel %vm60, %v34, 0
  %v107 = vsel %vm60, %v35, 0
  %v110 = vsel %vm60, %v36, 0
  %v113 = vsel %vm60, %v37, 0
  %v116 = vsel %vm60, %v38, 0
  %v119 = vsel %vm60, %v39, 0
  %v122 = vsel %vm60, %v40, 0
  %v125 = vsel %vm60, %v41, 0
  %v128 = vsel %vm60, %v42, 0
  %v131 = vsel %vm60, %v43, 0
  %v134 = vsel %vm60, %v44, 0
  %v137 = vsel %vm60, %v45, 0
  %v140 = vsel %vm60, %v46, 0
  %v143 = vsel %vm60, %v47, 0
  %v146 = vsel %vm60, %v48, 0
  %v149 = vsel %vm60, %v49, 0
  %v152 = vsel %vm60, %v50, 0
  %v155 = vsel %vm60, %v51, 0
  %157 = vmatpush.msra.mxu0 0.0
  %158 = vmatpush.msra.mxu0 0.0
  %159 = vmatpush.msra.mxu0 0.0
  %160 = vmatpush.msra.mxu0 0.0
  %161 = vmatpush.msra.mxu0 0.0
  %162 = vmatpush.msra.mxu0 0.0
  %163 = vmatpush.msra.mxu0 0.0
  %164 = vmatpush.msra.mxu0 0.0
  %165 = vmatpush.msra.mxu0 0.0
  %166 = vmatpush.msra.mxu0 0.0
  %167 = vmatpush.msra.mxu0 0.0
  %168 = vmatpush.msra.mxu0 0.0
  %169 = vmatpush.msra.mxu0 %v55
  %170 = vmatpush.msra.mxu0 %v54
  %171 = vmatpush.msra.mxu0 %v53
  %172 = vmatpush.msra.mxu0 %v52
  %173 = vmatmul.f32.gmra.mxu0 %v62
  %v174 = vpop.f32.mrf.mxu0
  %v175 = vadd.f32 %v58, %v174
  %176 = vmatmul.f32.gmra.mxu0 %v65
  %v177 = vpop.f32.mrf.mxu0
  %v178 = vadd.f32 %v58, %v177
  %179 = vmatmul.f32.gmra.mxu0 %v68
  %v180 = vpop.f32.mrf.mxu0
  %v181 = vadd.f32 %v58, %v180
  %182 = vmatmul.f32.gmra.mxu0 %v71
  %v183 = vpop.f32.mrf.mxu0
  %v184 = vadd.f32 %v58, %v183
  %185 = vmatmul.f32.gmra.mxu0 %v74
  %v186 = vpop.f32.mrf.mxu0
  %v187 = vadd.f32 %v58, %v186
  %188 = vmatmul.f32.gmra.mxu0 %v77
  %v189 = vpop.f32.mrf.mxu0
  %v190 = vadd.f32 %v58, %v189
  %191 = vmatmul.f32.gmra.mxu0 %v80
  %v192 = vpop.f32.mrf.mxu0
  %v193 = vadd.f32 %v58, %v192
  %194 = vmatmul.f32.gmra.mxu0 %v83
  %v195 = vpop.f32.mrf.mxu0
  %v196 = vadd.f32 %v58, %v195
  %197 = vmatmul.f32.gmra.mxu0 %v86
  %v198 = vpop.f32.mrf.mxu0
  %v199 = vadd.f32 %v58, %v198
  %200 = vmatmul.f32.gmra.mxu0 %v89
  %v201 = vpop.f32.mrf.mxu0
  %v202 = vadd.f32 %v58, %v201
  %203 = vmatmul.f32.gmra.mxu0 %v92
  %v204 = vpop.f32.mrf.mxu0
  %v205 = vadd.f32 %v58, %v204
  %206 = vmatmul.f32.gmra.mxu0 %v95
  %v207 = vpop.f32.mrf.mxu0
  %v208 = vadd.f32 %v58, %v207
  %209 = vmatmul.f32.gmra.mxu0 %v98
  %v210 = vpop.f32.mrf.mxu0
  %v211 = vadd.f32 %v58, %v210
  %212 = vmatmul.f32.gmra.mxu0 %v101
  %v213 = vpop.f32.mrf.mxu0
  %v214 = vadd.f32 %v58, %v213
  %215 = vmatmul.f32.gmra.mxu0 %v104
  %v216 = vpop.f32.mrf.mxu0
  %v217 = vadd.f32 %v58, %v216
  %218 = vmatmul.f32.gmra.mxu0 %v107
  %v219 = vpop.f32.mrf.mxu0
  %v220 = vadd.f32 %v58, %v219
  %221 = vmatmul.f32.gmra.mxu0 %v110
  %v222 = vpop.f32.mrf.mxu0
  %v223 = vadd.f32 %v58, %v222
  %224 = vmatmul.f32.gmra.mxu0 %v113
  %v225 = vpop.f32.mrf.mxu0
  %v226 = vadd.f32 %v58, %v225
  %227 = vmatmul.f32.gmra.mxu0 %v116
  %v228 = vpop.f32.mrf.mxu0
  %v229 = vadd.f32 %v58, %v228
  %230 = vmatmul.f32.gmra.mxu0 %v119
  %v231 = vpop.f32.mrf.mxu0
  %v232 = vadd.f32 %v58, %v231
  %233 = vmatmul.f32.gmra.mxu0 %v122
  %v234 = vpop.f32.mrf.mxu0
  %v235 = vadd.f32 %v58, %v234
  %236 = vmatmul.f32.gmra.mxu0 %v125
  %v237 = vpop.f32.mrf.mxu0
  %v238 = vadd.f32 %v58, %v237
  %239 = vmatmul.f32.gmra.mxu0 %v128
  %v240 = vpop.f32.mrf.mxu0
  %v241 = vadd.f32 %v58, %v240
  %242 = vmatmul.f32.gmra.mxu0 %v131
  %v243 = vpop.f32.mrf.mxu0
  %v244 = vadd.f32 %v58, %v243
  %245 = vmatmul.f32.gmra.mxu0 %v134
  %v246 = vpop.f32.mrf.mxu0
  %v247 = vadd.f32 %v58, %v246
  %248 = vmatmul.f32.gmra.mxu0 %v137
  %v249 = vpop.f32.mrf.mxu0
  %v250 = vadd.f32 %v58, %v249
  %251 = vmatmul.f32.gmra.mxu0 %v140
  %v252 = vpop.f32.mrf.mxu0
  %v253 = vadd.f32 %v58, %v252
  %254 = vmatmul.f32.gmra.mxu0 %v143
  %v255 = vpop.f32.mrf.mxu0
  %v256 = vadd.f32 %v58, %v255
  %257 = vmatmul.f32.gmra.mxu0 %v146
  %v258 = vpop.f32.mrf.mxu0
  %v259 = vadd.f32 %v58, %v258
  %260 = vmatmul.f32.gmra.mxu0 %v149
  %v261 = vpop.f32.mrf.mxu0
  %v262 = vadd.f32 %v58, %v261
  %263 = vmatmul.f32.gmra.mxu0 %v152
  %v264 = vpop.f32.mrf.mxu0
  %v265 = vadd.f32 %v58, %v264
  %266 = vmatmul.f32.gmra.mxu0 %v155
  %v267 = vpop.f32.mrf.mxu0
  %v268 = vadd.f32 %v58, %v267
  %269 = vdwg.mxu0
  %v270 = vmax.f32 %v175, 0.0
  %v271 = vmax.f32 %v178, 0.0
  %v272 = vmax.f32 %v181, 0.0
  %v273 = vmax.f32 %v184, 0.0
  %v274 = vmax.f32 %v187, 0.0
  %v275 = vmax.f32 %v190, 0.0
  %v276 = vmax.f32 %v193, 0.0
  %v277 = vmax.f32 %v196, 0.0
  %v278 = vmax.f32 %v199, 0.0
  %v279 = vmax.f32 %v202, 0.0
  %v280 = vmax.f32 %v205, 0.0
  %v281 = vmax.f32 %v208, 0.0
  %v282 = vmax.f32 %v211, 0.0
  %v283 = vmax.f32 %v214, 0.0
  %v284 = vmax.f32 %v217, 0.0
  %v285 = vmax.f32 %v220, 0.0
  %v286 = vmax.f32 %v223, 0.0
  %v287 = vmax.f32 %v226, 0.0
  %v288 = vmax.f32 %v229, 0.0
  %v289 = vmax.f32 %v232, 0.0
  %v290 = vmax.f32 %v235, 0.0
  %v291 = vmax.f32 %v238, 0.0
  %v292 = vmax.f32 %v241, 0.0
  %v293 = vmax.f32 %v244, 0.0
  %v294 = vmax.f32 %v247, 0.0
  %v295 = vmax.f32 %v250, 0.0
  %v296 = vmax.f32 %v253, 0.0
  %v297 = vmax.f32 %v256, 0.0
  %v298 = vmax.f32 %v259, 0.0
  %v299 = vmax.f32 %v262, 0.0
  %v300 = vmax.f32 %v265, 0.0
  %v301 = vmax.f32 %v268, 0.0
  %v302 = vld [vmem:[%s3] sm:$0xff]
  %v303 = vld [vmem:[%s3 + $0x8] sm:$0xff]
  %v304 = vld [vmem:[%s3 + $0x10] sm:$0xff]
  %v305 = vld [vmem:[%s3 + $0x18] sm:$0xff]
  %v306 = vld [vmem:[%s3 + $0x20] sm:$0xff]
  %v307 = vld [vmem:[%s3 + $0x28] sm:$0xff]
  %v308 = vld [vmem:[%s3 + $0x30] sm:$0xff]
  %v309 = vld [vmem:[%s3 + $0x38] sm:$0xff]
  %v310 = vld [vmem:[%s3 + $0x40] sm:$0xff]
  %v311 = vld [vmem:[%s3 + $0x48] sm:$0xff]
  %v312 = vld [vmem:[%s3 + $0x50] sm:$0xff]
  %v313 = vld [vmem:[%s3 + $0x58] sm:$0xff]
  %v314 = vld [vmem:[%s3 + $0x60] sm:$0xff]
  %v315 = vld [vmem:[%s3 + $0x68] sm:$0xff]
  %v316 = vld [vmem:[%s3 + $0x70] sm:$0xff]
  %v317 = vld [vmem:[%s3 + $0x78] sm:$0xff]
  %v318 = vld [vmem:[%s4] sm:$0x1]
  %v320 = vperm.slane %v318, 0
  %322 = vmatpush.msra.mxu0 %v317
  %323 = vmatpush.msra.mxu0 %v316
  %324 = vmatpush.msra.mxu0 %v315
  %325 = vmatpush.msra.mxu0 %v314
  %326 = vmatpush.msra.mxu0 %v313
  %327 = vmatpush.msra.mxu0 %v312
  %328 = vmatpush.msra.mxu0 %v311
  %329 = vmatpush.msra.mxu0 %v310
  %330 = vmatpush.msra.mxu0 %v309
  %331 = vmatpush.msra.mxu0 %v308
  %332 = vmatpush.msra.mxu0 %v307
  %333 = vmatpush.msra.mxu0 %v306
  %334 = vmatpush.msra.mxu0 %v305
  %335 = vmatpush.msra.mxu0 %v304
  %336 = vmatpush.msra.mxu0 %v303
  %337 = vmatpush.msra.mxu0 %v302
  %338 = vmatmul.f32.gmra.mxu0 %v270
  %v339 = vpop.f32.mrf.mxu0
  %v340 = vadd.f32 %v320, %v339
  %341 = vmatmul.f32.gmra.mxu0 %v271
  %v342 = vpop.f32.mrf.mxu0
  %v343 = vadd.f32 %v320, %v342
  %344 = vmatmul.f32.gmra.mxu0 %v272
  %v345 = vpop.f32.mrf.mxu0
  %v346 = vadd.f32 %v320, %v345
  %347 = vmatmul.f32.gmra.mxu0 %v273
  %v348 = vpop.f32.mrf.mxu0
  %v349 = vadd.f32 %v320, %v348
  %350 = vmatmul.f32.gmra.mxu0 %v274
  %v351 = vpop.f32.mrf.mxu0
  %v352 = vadd.f32 %v320, %v351
  %353 = vmatmul.f32.gmra.mxu0 %v275
  %v354 = vpop.f32.mrf.mxu0
  %v355 = vadd.f32 %v320, %v354
  %356 = vmatmul.f32.gmra.mxu0 %v276
  %v357 = vpop.f32.mrf.mxu0
  %v358 = vadd.f32 %v320, %v357
  %359 = vmatmul.f32.gmra.mxu0 %v277
  %v360 = vpop.f32.mrf.mxu0
  %v361 = vadd.f32 %v320, %v360
  %362 = vmatmul.f32.gmra.mxu0 %v278
  %v363 = vpop.f32.mrf.mxu0
  %v364 = vadd.f32 %v320, %v363
  %365 = vmatmul.f32.gmra.mxu0 %v279
  %v366 = vpop.f32.mrf.mxu0
  %v367 = vadd.f32 %v320, %v366
  %368 = vmatmul.f32.gmra.mxu0 %v280
  %v369 = vpop.f32.mrf.mxu0
  %v370 = vadd.f32 %v320, %v369
  %371 = vmatmul.f32.gmra.mxu0 %v281
  %v372 = vpop.f32.mrf.mxu0
  %v373 = vadd.f32 %v320, %v372
  %374 = vmatmul.f32.gmra.mxu0 %v282
  %v375 = vpop.f32.mrf.mxu0
  %v376 = vadd.f32 %v320, %v375
  %377 = vmatmul.f32.gmra.mxu0 %v283
  %v378 = vpop.f32.mrf.mxu0
  %v379 = vadd.f32 %v320, %v378
  %380 = vmatmul.f32.gmra.mxu0 %v284
  %v381 = vpop.f32.mrf.mxu0
  %v382 = vadd.f32 %v320, %v381
  %383 = vmatmul.f32.gmra.mxu0 %v285
  %v384 = vpop.f32.mrf.mxu0
  %v385 = vadd.f32 %v320, %v384
  %386 = vmatmul.f32.gmra.mxu0 %v286
  %v387 = vpop.f32.mrf.mxu0
  %v388 = vadd.f32 %v320, %v387
  %389 = vmatmul.f32.gmra.mxu0 %v287
  %v390 = vpop.f32.mrf.mxu0
  %v391 = vadd.f32 %v320, %v390
  %392 = vmatmul.f32.gmra.mxu0 %v288
  %v393 = vpop.f32.mrf.mxu0
  %v394 = vadd.f32 %v320, %v393
  %395 = vmatmul.f32.gmra.mxu0 %v289
  %v396 = vpop.f32.mrf.mxu0
  %v397 = vadd.f32 %v320, %v396
  %398 = vmatmul.f32.gmra.mxu0 %v290
  %v399 = vpop.f32.mrf.mxu0
  %v400 = vadd.f32 %v320, %v399
  %401 = vmatmul.f32.gmra.mxu0 %v291
  %v402 = vpop.f32.mrf.mxu0
  %v403 = vadd.f32 %v320, %v402
  %404 = vmatmul.f32.gmra.mxu0 %v292
  %v405 = vpop.f32.mrf.mxu0
  %v406 = vadd.f32 %v320, %v405
  %407 = vmatmul.f32.gmra.mxu0 %v293
  %v408 = vpop.f32.mrf.mxu0
  %v409 = vadd.f32 %v320, %v408
  %410 = vmatmul.f32.gmra.mxu0 %v294
  %v411 = vpop.f32.mrf.mxu0
  %v412 = vadd.f32 %v320, %v411
  %413 = vmatmul.f32.gmra.mxu0 %v295
  %v414 = vpop.f32.mrf.mxu0
  %v415 = vadd.f32 %v320, %v414
  %416 = vmatmul.f32.gmra.mxu0 %v296
  %v417 = vpop.f32.mrf.mxu0
  %v418 = vadd.f32 %v320, %v417
  %419 = vmatmul.f32.gmra.mxu0 %v297
  %v420 = vpop.f32.mrf.mxu0
  %v421 = vadd.f32 %v320, %v420
  %422 = vmatmul.f32.gmra.mxu0 %v298
  %v423 = vpop.f32.mrf.mxu0
  %v424 = vadd.f32 %v320, %v423
  %425 = vmatmul.f32.gmra.mxu0 %v299
  %v426 = vpop.f32.mrf.mxu0
  %v427 = vadd.f32 %v320, %v426
  %428 = vmatmul.f32.gmra.mxu0 %v300
  %v429 = vpop.f32.mrf.mxu0
  %v430 = vadd.f32 %v320, %v429
  %431 = vmatmul.f32.gmra.mxu0 %v301
  %v432 = vpop.f32.mrf.mxu0
  %v433 = vadd.f32 %v320, %v432
  %434 = vdwg.mxu0
  %v435 = vlaneseq
  %v436 = vand.u32 %v435, 127
  %437 = vmax.xlane.f32.xlu0 %v340
  %v438 = vpop.xlane.xlu0 %437
  %439 = vmax.xlane.f32.xlu0 %v343
  %v440 = vpop.xlane.xlu0 %439
  %441 = vmax.xlane.f32.xlu0 %v346
  %v442 = vpop.xlane.xlu0 %441
  %443 = vmax.xlane.f32.xlu0 %v349
  %v444 = vpop.xlane.xlu0 %443
  %445 = vmax.xlane.f32.xlu0 %v352
  %v446 = vpop.xlane.xlu0 %445
  %447 = vmax.xlane.f32.xlu0 %v355
  %v448 = vpop.xlane.xlu0 %447
  %449 = vmax.xlane.f32.xlu0 %v358
  %v450 = vpop.xlane.xlu0 %449
  %451 = vmax.xlane.f32.xlu0 %v361
  %v452 = vpop.xlane.xlu0 %451
  %453 = vmax.xlane.f32.xlu0 %v364
  %v454 = vpop.xlane.xlu0 %453
  %455 = vmax.xlane.f32.xlu0 %v367
  %v456 = vpop.xlane.xlu0 %455
  %457 = vmax.xlane.f32.xlu0 %v370
  %v458 = vpop.xlane.xlu0 %457
  %459 = vmax.xlane.f32.xlu0 %v373
  %v460 = vpop.xlane.xlu0 %459
  %461 = vmax.xlane.f32.xlu0 %v376
  %v462 = vpop.xlane.xlu0 %461
  %463 = vmax.xlane.f32.xlu0 %v379
  %v464 = vpop.xlane.xlu0 %463
  %465 = vmax.xlane.f32.xlu0 %v382
  %v466 = vpop.xlane.xlu0 %465
  %467 = vmax.xlane.f32.xlu0 %v385
  %v468 = vpop.xlane.xlu0 %467
  %469 = vmax.xlane.f32.xlu0 %v388
  %v470 = vpop.xlane.xlu0 %469
  %471 = vmax.xlane.f32.xlu0 %v391
  %v472 = vpop.xlane.xlu0 %471
  %473 = vmax.xlane.f32.xlu0 %v394
  %v474 = vpop.xlane.xlu0 %473
  %475 = vmax.xlane.f32.xlu0 %v397
  %v476 = vpop.xlane.xlu0 %475
  %477 = vmax.xlane.f32.xlu0 %v400
  %v478 = vpop.xlane.xlu0 %477
  %479 = vmax.xlane.f32.xlu0 %v403
  %v480 = vpop.xlane.xlu0 %479
  %481 = vmax.xlane.f32.xlu0 %v406
  %v482 = vpop.xlane.xlu0 %481
  %483 = vmax.xlane.f32.xlu0 %v409
  %v484 = vpop.xlane.xlu0 %483
  %485 = vmax.xlane.f32.xlu0 %v412
  %v486 = vpop.xlane.xlu0 %485
  %487 = vmax.xlane.f32.xlu0 %v415
  %v488 = vpop.xlane.xlu0 %487
  %489 = vmax.xlane.f32.xlu0 %v418
  %v490 = vpop.xlane.xlu0 %489
  %491 = vmax.xlane.f32.xlu0 %v421
  %v492 = vpop.xlane.xlu0 %491
  %493 = vmax.xlane.f32.xlu0 %v424
  %v494 = vpop.xlane.xlu0 %493
  %495 = vmax.xlane.f32.xlu0 %v427
  %v496 = vpop.xlane.xlu0 %495
  %497 = vmax.xlane.f32.xlu0 %v430
  %v498 = vpop.xlane.xlu0 %497
  %499 = vmax.xlane.f32.xlu0 %v433
  %v500 = vpop.xlane.xlu0 %499
  %vm501 = vcmp.eq.f32.partialorder %v340, %v438
  %vm502 = vcmp.eq.f32.partialorder %v343, %v440
  %vm503 = vcmp.eq.f32.partialorder %v346, %v442
  %vm504 = vcmp.eq.f32.partialorder %v349, %v444
  %vm505 = vcmp.eq.f32.partialorder %v352, %v446
  %vm506 = vcmp.eq.f32.partialorder %v355, %v448
  %vm507 = vcmp.eq.f32.partialorder %v358, %v450
  %vm508 = vcmp.eq.f32.partialorder %v361, %v452
  %vm509 = vcmp.eq.f32.partialorder %v364, %v454
  %vm510 = vcmp.eq.f32.partialorder %v367, %v456
  %vm511 = vcmp.eq.f32.partialorder %v370, %v458
  %vm512 = vcmp.eq.f32.partialorder %v373, %v460
  %vm513 = vcmp.eq.f32.partialorder %v376, %v462
  %vm514 = vcmp.eq.f32.partialorder %v379, %v464
  %vm515 = vcmp.eq.f32.partialorder %v382, %v466
  %vm516 = vcmp.eq.f32.partialorder %v385, %v468
  %vm517 = vcmp.eq.f32.partialorder %v388, %v470
  %vm518 = vcmp.eq.f32.partialorder %v391, %v472
  %vm519 = vcmp.eq.f32.partialorder %v394, %v474
  %vm520 = vcmp.eq.f32.partialorder %v397, %v476
  %vm521 = vcmp.eq.f32.partialorder %v400, %v478
  %vm522 = vcmp.eq.f32.partialorder %v403, %v480
  %vm523 = vcmp.eq.f32.partialorder %v406, %v482
  %vm524 = vcmp.eq.f32.partialorder %v409, %v484
  %vm525 = vcmp.eq.f32.partialorder %v412, %v486
  %vm526 = vcmp.eq.f32.partialorder %v415, %v488
  %vm527 = vcmp.eq.f32.partialorder %v418, %v490
  %vm528 = vcmp.eq.f32.partialorder %v421, %v492
  %vm529 = vcmp.eq.f32.partialorder %v424, %v494
  %vm530 = vcmp.eq.f32.partialorder %v427, %v496
  %vm531 = vcmp.eq.f32.partialorder %v430, %v498
  %vm532 = vcmp.eq.f32.partialorder %v433, %v500
  %v533 = vsel %vm501, %v436, 128
  %v534 = vsel %vm502, %v436, 128
  %v535 = vsel %vm503, %v436, 128
  %v536 = vsel %vm504, %v436, 128
  %v537 = vsel %vm505, %v436, 128
  %v538 = vsel %vm506, %v436, 128
  %v539 = vsel %vm507, %v436, 128
  %v540 = vsel %vm508, %v436, 128
  %v541 = vsel %vm509, %v436, 128
  %v542 = vsel %vm510, %v436, 128
  %v543 = vsel %vm511, %v436, 128
  %v544 = vsel %vm512, %v436, 128
  %v545 = vsel %vm513, %v436, 128
  %v546 = vsel %vm514, %v436, 128
  %v547 = vsel %vm515, %v436, 128
  %v548 = vsel %vm516, %v436, 128
  %v549 = vsel %vm517, %v436, 128
  %v550 = vsel %vm518, %v436, 128
  %v551 = vsel %vm519, %v436, 128
  %v552 = vsel %vm520, %v436, 128
  %v553 = vsel %vm521, %v436, 128
  %v554 = vsel %vm522, %v436, 128
  %v555 = vsel %vm523, %v436, 128
  %v556 = vsel %vm524, %v436, 128
  %v557 = vsel %vm525, %v436, 128
  %v558 = vsel %vm526, %v436, 128
  %v559 = vsel %vm527, %v436, 128
  %v560 = vsel %vm528, %v436, 128
  %v561 = vsel %vm529, %v436, 128
  %v562 = vsel %vm530, %v436, 128
  %v563 = vsel %vm531, %v436, 128
  %v564 = vsel %vm532, %v436, 128
  %v565 = vand.u32 %v533, 65535
  %v566 = vshra.s32 %v533, 16
  %v567 = vcvt.s32.f32 %v565
  %v568 = vcvt.s32.f32 %v566
  %569 = vmin.xlane.f32.xlu0 %v568
  %v570 = vpop.xlane.xlu0 %569
  %vm571 = vcmp.eq.f32.partialorder %v568, %v570
  %v572 = vsel %vm571, %v567, inf
  %573 = vmin.xlane.f32.xlu0 %v572
  %v574 = vpop.xlane.xlu0 %573
  %v575 = vcvt.f32.s32 %v574
  %v576 = vcvt.f32.s32 %v570
  %v577 = vshll.u32 %v576, 16
  %v578 = vadd.s32 %v577, %v575
  %v579 = vand.u32 %v534, 65535
  %v580 = vshra.s32 %v534, 16
  %v581 = vcvt.s32.f32 %v579
  %v582 = vcvt.s32.f32 %v580
  %583 = vmin.xlane.f32.xlu0 %v582
  %v584 = vpop.xlane.xlu0 %583
  %vm585 = vcmp.eq.f32.partialorder %v582, %v584
  %v586 = vsel %vm585, %v581, inf
  %587 = vmin.xlane.f32.xlu0 %v586
  %v588 = vpop.xlane.xlu0 %587
  %v589 = vcvt.f32.s32 %v588
  %v590 = vcvt.f32.s32 %v584
  %v591 = vshll.u32 %v590, 16
  %v592 = vadd.s32 %v591, %v589
  %v593 = vand.u32 %v535, 65535
  %v594 = vshra.s32 %v535, 16
  %v595 = vcvt.s32.f32 %v593
  %v596 = vcvt.s32.f32 %v594
  %597 = vmin.xlane.f32.xlu0 %v596
  %v598 = vpop.xlane.xlu0 %597
  %vm599 = vcmp.eq.f32.partialorder %v596, %v598
  %v600 = vsel %vm599, %v595, inf
  %601 = vmin.xlane.f32.xlu0 %v600
  %v602 = vpop.xlane.xlu0 %601
  %v603 = vcvt.f32.s32 %v602
  %v604 = vcvt.f32.s32 %v598
  %v605 = vshll.u32 %v604, 16
  %v606 = vadd.s32 %v605, %v603
  %v607 = vand.u32 %v536, 65535
  %v608 = vshra.s32 %v536, 16
  %v609 = vcvt.s32.f32 %v607
  %v610 = vcvt.s32.f32 %v608
  %611 = vmin.xlane.f32.xlu0 %v610
  %v612 = vpop.xlane.xlu0 %611
  %vm613 = vcmp.eq.f32.partialorder %v610, %v612
  %v614 = vsel %vm613, %v609, inf
  %615 = vmin.xlane.f32.xlu0 %v614
  %v616 = vpop.xlane.xlu0 %615
  %v617 = vcvt.f32.s32 %v616
  %v618 = vcvt.f32.s32 %v612
  %v619 = vshll.u32 %v618, 16
  %v620 = vadd.s32 %v619, %v617
  %v621 = vand.u32 %v537, 65535
  %v622 = vshra.s32 %v537, 16
  %v623 = vcvt.s32.f32 %v621
  %v624 = vcvt.s32.f32 %v622
  %625 = vmin.xlane.f32.xlu0 %v624
  %v626 = vpop.xlane.xlu0 %625
  %vm627 = vcmp.eq.f32.partialorder %v624, %v626
  %v628 = vsel %vm627, %v623, inf
  %629 = vmin.xlane.f32.xlu0 %v628
  %v630 = vpop.xlane.xlu0 %629
  %v631 = vcvt.f32.s32 %v630
  %v632 = vcvt.f32.s32 %v626
  %v633 = vshll.u32 %v632, 16
  %v634 = vadd.s32 %v633, %v631
  %v635 = vand.u32 %v538, 65535
  %v636 = vshra.s32 %v538, 16
  %v637 = vcvt.s32.f32 %v635
  %v638 = vcvt.s32.f32 %v636
  %639 = vmin.xlane.f32.xlu0 %v638
  %v640 = vpop.xlane.xlu0 %639
  %vm641 = vcmp.eq.f32.partialorder %v638, %v640
  %v642 = vsel %vm641, %v637, inf
  %643 = vmin.xlane.f32.xlu0 %v642
  %v644 = vpop.xlane.xlu0 %643
  %v645 = vcvt.f32.s32 %v644
  %v646 = vcvt.f32.s32 %v640
  %v647 = vshll.u32 %v646, 16
  %v648 = vadd.s32 %v647, %v645
  %v649 = vand.u32 %v539, 65535
  %v650 = vshra.s32 %v539, 16
  %v651 = vcvt.s32.f32 %v649
  %v652 = vcvt.s32.f32 %v650
  %653 = vmin.xlane.f32.xlu0 %v652
  %v654 = vpop.xlane.xlu0 %653
  %vm655 = vcmp.eq.f32.partialorder %v652, %v654
  %v656 = vsel %vm655, %v651, inf
  %657 = vmin.xlane.f32.xlu0 %v656
  %v658 = vpop.xlane.xlu0 %657
  %v659 = vcvt.f32.s32 %v658
  %v660 = vcvt.f32.s32 %v654
  %v661 = vshll.u32 %v660, 16
  %v662 = vadd.s32 %v661, %v659
  %v663 = vand.u32 %v540, 65535
  %v664 = vshra.s32 %v540, 16
  %v665 = vcvt.s32.f32 %v663
  %v666 = vcvt.s32.f32 %v664
  %667 = vmin.xlane.f32.xlu0 %v666
  %v668 = vpop.xlane.xlu0 %667
  %vm669 = vcmp.eq.f32.partialorder %v666, %v668
  %v670 = vsel %vm669, %v665, inf
  %671 = vmin.xlane.f32.xlu0 %v670
  %v672 = vpop.xlane.xlu0 %671
  %v673 = vcvt.f32.s32 %v672
  %v674 = vcvt.f32.s32 %v668
  %v675 = vshll.u32 %v674, 16
  %v676 = vadd.s32 %v675, %v673
  %v677 = vand.u32 %v541, 65535
  %v678 = vshra.s32 %v541, 16
  %v679 = vcvt.s32.f32 %v677
  %v680 = vcvt.s32.f32 %v678
  %681 = vmin.xlane.f32.xlu0 %v680
  %v682 = vpop.xlane.xlu0 %681
  %vm683 = vcmp.eq.f32.partialorder %v680, %v682
  %v684 = vsel %vm683, %v679, inf
  %685 = vmin.xlane.f32.xlu0 %v684
  %v686 = vpop.xlane.xlu0 %685
  %v687 = vcvt.f32.s32 %v686
  %v688 = vcvt.f32.s32 %v682
  %v689 = vshll.u32 %v688, 16
  %v690 = vadd.s32 %v689, %v687
  %v691 = vand.u32 %v542, 65535
  %v692 = vshra.s32 %v542, 16
  %v693 = vcvt.s32.f32 %v691
  %v694 = vcvt.s32.f32 %v692
  %695 = vmin.xlane.f32.xlu0 %v694
  %v696 = vpop.xlane.xlu0 %695
  %vm697 = vcmp.eq.f32.partialorder %v694, %v696
  %v698 = vsel %vm697, %v693, inf
  %699 = vmin.xlane.f32.xlu0 %v698
  %v700 = vpop.xlane.xlu0 %699
  %v701 = vcvt.f32.s32 %v700
  %v702 = vcvt.f32.s32 %v696
  %v703 = vshll.u32 %v702, 16
  %v704 = vadd.s32 %v703, %v701
  %v705 = vand.u32 %v543, 65535
  %v706 = vshra.s32 %v543, 16
  %v707 = vcvt.s32.f32 %v705
  %v708 = vcvt.s32.f32 %v706
  %709 = vmin.xlane.f32.xlu0 %v708
  %v710 = vpop.xlane.xlu0 %709
  %vm711 = vcmp.eq.f32.partialorder %v708, %v710
  %v712 = vsel %vm711, %v707, inf
  %713 = vmin.xlane.f32.xlu0 %v712
  %v714 = vpop.xlane.xlu0 %713
  %v715 = vcvt.f32.s32 %v714
  %v716 = vcvt.f32.s32 %v710
  %v717 = vshll.u32 %v716, 16
  %v718 = vadd.s32 %v717, %v715
  %v719 = vand.u32 %v544, 65535
  %v720 = vshra.s32 %v544, 16
  %v721 = vcvt.s32.f32 %v719
  %v722 = vcvt.s32.f32 %v720
  %723 = vmin.xlane.f32.xlu0 %v722
  %v724 = vpop.xlane.xlu0 %723
  %vm725 = vcmp.eq.f32.partialorder %v722, %v724
  %v726 = vsel %vm725, %v721, inf
  %727 = vmin.xlane.f32.xlu0 %v726
  %v728 = vpop.xlane.xlu0 %727
  %v729 = vcvt.f32.s32 %v728
  %v730 = vcvt.f32.s32 %v724
  %v731 = vshll.u32 %v730, 16
  %v732 = vadd.s32 %v731, %v729
  %v733 = vand.u32 %v545, 65535
  %v734 = vshra.s32 %v545, 16
  %v735 = vcvt.s32.f32 %v733
  %v736 = vcvt.s32.f32 %v734
  %737 = vmin.xlane.f32.xlu0 %v736
  %v738 = vpop.xlane.xlu0 %737
  %vm739 = vcmp.eq.f32.partialorder %v736, %v738
  %v740 = vsel %vm739, %v735, inf
  %741 = vmin.xlane.f32.xlu0 %v740
  %v742 = vpop.xlane.xlu0 %741
  %v743 = vcvt.f32.s32 %v742
  %v744 = vcvt.f32.s32 %v738
  %v745 = vshll.u32 %v744, 16
  %v746 = vadd.s32 %v745, %v743
  %v747 = vand.u32 %v546, 65535
  %v748 = vshra.s32 %v546, 16
  %v749 = vcvt.s32.f32 %v747
  %v750 = vcvt.s32.f32 %v748
  %751 = vmin.xlane.f32.xlu0 %v750
  %v752 = vpop.xlane.xlu0 %751
  %vm753 = vcmp.eq.f32.partialorder %v750, %v752
  %v754 = vsel %vm753, %v749, inf
  %755 = vmin.xlane.f32.xlu0 %v754
  %v756 = vpop.xlane.xlu0 %755
  %v757 = vcvt.f32.s32 %v756
  %v758 = vcvt.f32.s32 %v752
  %v759 = vshll.u32 %v758, 16
  %v760 = vadd.s32 %v759, %v757
  %v761 = vand.u32 %v547, 65535
  %v762 = vshra.s32 %v547, 16
  %v763 = vcvt.s32.f32 %v761
  %v764 = vcvt.s32.f32 %v762
  %765 = vmin.xlane.f32.xlu0 %v764
  %v766 = vpop.xlane.xlu0 %765
  %vm767 = vcmp.eq.f32.partialorder %v764, %v766
  %v768 = vsel %vm767, %v763, inf
  %769 = vmin.xlane.f32.xlu0 %v768
  %v770 = vpop.xlane.xlu0 %769
  %v771 = vcvt.f32.s32 %v770
  %v772 = vcvt.f32.s32 %v766
  %v773 = vshll.u32 %v772, 16
  %v774 = vadd.s32 %v773, %v771
  %v775 = vand.u32 %v548, 65535
  %v776 = vshra.s32 %v548, 16
  %v777 = vcvt.s32.f32 %v775
  %v778 = vcvt.s32.f32 %v776
  %779 = vmin.xlane.f32.xlu0 %v778
  %v780 = vpop.xlane.xlu0 %779
  %vm781 = vcmp.eq.f32.partialorder %v778, %v780
  %v782 = vsel %vm781, %v777, inf
  %783 = vmin.xlane.f32.xlu0 %v782
  %v784 = vpop.xlane.xlu0 %783
  %v785 = vcvt.f32.s32 %v784
  %v786 = vcvt.f32.s32 %v780
  %v787 = vshll.u32 %v786, 16
  %v788 = vadd.s32 %v787, %v785
  %v789 = vand.u32 %v549, 65535
  %v790 = vshra.s32 %v549, 16
  %v791 = vcvt.s32.f32 %v789
  %v792 = vcvt.s32.f32 %v790
  %793 = vmin.xlane.f32.xlu0 %v792
  %v794 = vpop.xlane.xlu0 %793
  %vm795 = vcmp.eq.f32.partialorder %v792, %v794
  %v796 = vsel %vm795, %v791, inf
  %797 = vmin.xlane.f32.xlu0 %v796
  %v798 = vpop.xlane.xlu0 %797
  %v799 = vcvt.f32.s32 %v798
  %v800 = vcvt.f32.s32 %v794
  %v801 = vshll.u32 %v800, 16
  %v802 = vadd.s32 %v801, %v799
  %v803 = vand.u32 %v550, 65535
  %v804 = vshra.s32 %v550, 16
  %v805 = vcvt.s32.f32 %v803
  %v806 = vcvt.s32.f32 %v804
  %807 = vmin.xlane.f32.xlu0 %v806
  %v808 = vpop.xlane.xlu0 %807
  %vm809 = vcmp.eq.f32.partialorder %v806, %v808
  %v810 = vsel %vm809, %v805, inf
  %811 = vmin.xlane.f32.xlu0 %v810
  %v812 = vpop.xlane.xlu0 %811
  %v813 = vcvt.f32.s32 %v812
  %v814 = vcvt.f32.s32 %v808
  %v815 = vshll.u32 %v814, 16
  %v816 = vadd.s32 %v815, %v813
  %v817 = vand.u32 %v551, 65535
  %v818 = vshra.s32 %v551, 16
  %v819 = vcvt.s32.f32 %v817
  %v820 = vcvt.s32.f32 %v818
  %821 = vmin.xlane.f32.xlu0 %v820
  %v822 = vpop.xlane.xlu0 %821
  %vm823 = vcmp.eq.f32.partialorder %v820, %v822
  %v824 = vsel %vm823, %v819, inf
  %825 = vmin.xlane.f32.xlu0 %v824
  %v826 = vpop.xlane.xlu0 %825
  %v827 = vcvt.f32.s32 %v826
  %v828 = vcvt.f32.s32 %v822
  %v829 = vshll.u32 %v828, 16
  %v830 = vadd.s32 %v829, %v827
  %v831 = vand.u32 %v552, 65535
  %v832 = vshra.s32 %v552, 16
  %v833 = vcvt.s32.f32 %v831
  %v834 = vcvt.s32.f32 %v832
  %835 = vmin.xlane.f32.xlu0 %v834
  %v836 = vpop.xlane.xlu0 %835
  %vm837 = vcmp.eq.f32.partialorder %v834, %v836
  %v838 = vsel %vm837, %v833, inf
  %839 = vmin.xlane.f32.xlu0 %v838
  %v840 = vpop.xlane.xlu0 %839
  %v841 = vcvt.f32.s32 %v840
  %v842 = vcvt.f32.s32 %v836
  %v843 = vshll.u32 %v842, 16
  %v844 = vadd.s32 %v843, %v841
  %v845 = vand.u32 %v553, 65535
  %v846 = vshra.s32 %v553, 16
  %v847 = vcvt.s32.f32 %v845
  %v848 = vcvt.s32.f32 %v846
  %849 = vmin.xlane.f32.xlu0 %v848
  %v850 = vpop.xlane.xlu0 %849
  %vm851 = vcmp.eq.f32.partialorder %v848, %v850
  %v852 = vsel %vm851, %v847, inf
  %853 = vmin.xlane.f32.xlu0 %v852
  %v854 = vpop.xlane.xlu0 %853
  %v855 = vcvt.f32.s32 %v854
  %v856 = vcvt.f32.s32 %v850
  %v857 = vshll.u32 %v856, 16
  %v858 = vadd.s32 %v857, %v855
  %v859 = vand.u32 %v554, 65535
  %v860 = vshra.s32 %v554, 16
  %v861 = vcvt.s32.f32 %v859
  %v862 = vcvt.s32.f32 %v860
  %863 = vmin.xlane.f32.xlu0 %v862
  %v864 = vpop.xlane.xlu0 %863
  %vm865 = vcmp.eq.f32.partialorder %v862, %v864
  %v866 = vsel %vm865, %v861, inf
  %867 = vmin.xlane.f32.xlu0 %v866
  %v868 = vpop.xlane.xlu0 %867
  %v869 = vcvt.f32.s32 %v868
  %v870 = vcvt.f32.s32 %v864
  %v871 = vshll.u32 %v870, 16
  %v872 = vadd.s32 %v871, %v869
  %v873 = vand.u32 %v555, 65535
  %v874 = vshra.s32 %v555, 16
  %v875 = vcvt.s32.f32 %v873
  %v876 = vcvt.s32.f32 %v874
  %877 = vmin.xlane.f32.xlu0 %v876
  %v878 = vpop.xlane.xlu0 %877
  %vm879 = vcmp.eq.f32.partialorder %v876, %v878
  %v880 = vsel %vm879, %v875, inf
  %881 = vmin.xlane.f32.xlu0 %v880
  %v882 = vpop.xlane.xlu0 %881
  %v883 = vcvt.f32.s32 %v882
  %v884 = vcvt.f32.s32 %v878
  %v885 = vshll.u32 %v884, 16
  %v886 = vadd.s32 %v885, %v883
  %v887 = vand.u32 %v556, 65535
  %v888 = vshra.s32 %v556, 16
  %v889 = vcvt.s32.f32 %v887
  %v890 = vcvt.s32.f32 %v888
  %891 = vmin.xlane.f32.xlu0 %v890
  %v892 = vpop.xlane.xlu0 %891
  %vm893 = vcmp.eq.f32.partialorder %v890, %v892
  %v894 = vsel %vm893, %v889, inf
  %895 = vmin.xlane.f32.xlu0 %v894
  %v896 = vpop.xlane.xlu0 %895
  %v897 = vcvt.f32.s32 %v896
  %v898 = vcvt.f32.s32 %v892
  %v899 = vshll.u32 %v898, 16
  %v900 = vadd.s32 %v899, %v897
  %v901 = vand.u32 %v557, 65535
  %v902 = vshra.s32 %v557, 16
  %v903 = vcvt.s32.f32 %v901
  %v904 = vcvt.s32.f32 %v902
  %905 = vmin.xlane.f32.xlu0 %v904
  %v906 = vpop.xlane.xlu0 %905
  %vm907 = vcmp.eq.f32.partialorder %v904, %v906
  %v908 = vsel %vm907, %v903, inf
  %909 = vmin.xlane.f32.xlu0 %v908
  %v910 = vpop.xlane.xlu0 %909
  %v911 = vcvt.f32.s32 %v910
  %v912 = vcvt.f32.s32 %v906
  %v913 = vshll.u32 %v912, 16
  %v914 = vadd.s32 %v913, %v911
  %v915 = vand.u32 %v558, 65535
  %v916 = vshra.s32 %v558, 16
  %v917 = vcvt.s32.f32 %v915
  %v918 = vcvt.s32.f32 %v916
  %919 = vmin.xlane.f32.xlu0 %v918
  %v920 = vpop.xlane.xlu0 %919
  %vm921 = vcmp.eq.f32.partialorder %v918, %v920
  %v922 = vsel %vm921, %v917, inf
  %923 = vmin.xlane.f32.xlu0 %v922
  %v924 = vpop.xlane.xlu0 %923
  %v925 = vcvt.f32.s32 %v924
  %v926 = vcvt.f32.s32 %v920
  %v927 = vshll.u32 %v926, 16
  %v928 = vadd.s32 %v927, %v925
  %v929 = vand.u32 %v559, 65535
  %v930 = vshra.s32 %v559, 16
  %v931 = vcvt.s32.f32 %v929
  %v932 = vcvt.s32.f32 %v930
  %933 = vmin.xlane.f32.xlu0 %v932
  %v934 = vpop.xlane.xlu0 %933
  %vm935 = vcmp.eq.f32.partialorder %v932, %v934
  %v936 = vsel %vm935, %v931, inf
  %937 = vmin.xlane.f32.xlu0 %v936
  %v938 = vpop.xlane.xlu0 %937
  %v939 = vcvt.f32.s32 %v938
  %v940 = vcvt.f32.s32 %v934
  %v941 = vshll.u32 %v940, 16
  %v942 = vadd.s32 %v941, %v939
  %v943 = vand.u32 %v560, 65535
  %v944 = vshra.s32 %v560, 16
  %v945 = vcvt.s32.f32 %v943
  %v946 = vcvt.s32.f32 %v944
  %947 = vmin.xlane.f32.xlu0 %v946
  %v948 = vpop.xlane.xlu0 %947
  %vm949 = vcmp.eq.f32.partialorder %v946, %v948
  %v950 = vsel %vm949, %v945, inf
  %951 = vmin.xlane.f32.xlu0 %v950
  %v952 = vpop.xlane.xlu0 %951
  %v953 = vcvt.f32.s32 %v952
  %v954 = vcvt.f32.s32 %v948
  %v955 = vshll.u32 %v954, 16
  %v956 = vadd.s32 %v955, %v953
  %v957 = vand.u32 %v561, 65535
  %v958 = vshra.s32 %v561, 16
  %v959 = vcvt.s32.f32 %v957
  %v960 = vcvt.s32.f32 %v958
  %961 = vmin.xlane.f32.xlu0 %v960
  %v962 = vpop.xlane.xlu0 %961
  %vm963 = vcmp.eq.f32.partialorder %v960, %v962
  %v964 = vsel %vm963, %v959, inf
  %965 = vmin.xlane.f32.xlu0 %v964
  %v966 = vpop.xlane.xlu0 %965
  %v967 = vcvt.f32.s32 %v966
  %v968 = vcvt.f32.s32 %v962
  %v969 = vshll.u32 %v968, 16
  %v970 = vadd.s32 %v969, %v967
  %v971 = vand.u32 %v562, 65535
  %v972 = vshra.s32 %v562, 16
  %v973 = vcvt.s32.f32 %v971
  %v974 = vcvt.s32.f32 %v972
  %975 = vmin.xlane.f32.xlu0 %v974
  %v976 = vpop.xlane.xlu0 %975
  %vm977 = vcmp.eq.f32.partialorder %v974, %v976
  %v978 = vsel %vm977, %v973, inf
  %979 = vmin.xlane.f32.xlu0 %v978
  %v980 = vpop.xlane.xlu0 %979
  %v981 = vcvt.f32.s32 %v980
  %v982 = vcvt.f32.s32 %v976
  %v983 = vshll.u32 %v982, 16
  %v984 = vadd.s32 %v983, %v981
  %v985 = vand.u32 %v563, 65535
  %v986 = vshra.s32 %v563, 16
  %v987 = vcvt.s32.f32 %v985
  %v988 = vcvt.s32.f32 %v986
  %989 = vmin.xlane.f32.xlu0 %v988
  %v990 = vpop.xlane.xlu0 %989
  %vm991 = vcmp.eq.f32.partialorder %v988, %v990
  %v992 = vsel %vm991, %v987, inf
  %993 = vmin.xlane.f32.xlu0 %v992
  %v994 = vpop.xlane.xlu0 %993
  %v995 = vcvt.f32.s32 %v994
  %v996 = vcvt.f32.s32 %v990
  %v997 = vshll.u32 %v996, 16
  %v998 = vadd.s32 %v997, %v995
  %v999 = vand.u32 %v564, 65535
  %v1000 = vshra.s32 %v564, 16
  %v1001 = vcvt.s32.f32 %v999
  %v1002 = vcvt.s32.f32 %v1000
  %1003 = vmin.xlane.f32.xlu0 %v1002
  %v1004 = vpop.xlane.xlu0 %1003
  %vm1005 = vcmp.eq.f32.partialorder %v1002, %v1004
  %v1006 = vsel %vm1005, %v1001, inf
  %1007 = vmin.xlane.f32.xlu0 %v1006
  %v1008 = vpop.xlane.xlu0 %1007
  %v1009 = vcvt.f32.s32 %v1008
  %v1010 = vcvt.f32.s32 %v1004
  %v1011 = vshll.u32 %v1010, 16
  %v1012 = vadd.s32 %v1011, %v1009
  %vm1013 = vcmp.eq.s32.totalorder %v436, %v578
  %vm1014 = vcmp.eq.s32.totalorder %v436, %v592
  %vm1015 = vcmp.eq.s32.totalorder %v436, %v606
  %vm1016 = vcmp.eq.s32.totalorder %v436, %v620
  %vm1017 = vcmp.eq.s32.totalorder %v436, %v634
  %vm1018 = vcmp.eq.s32.totalorder %v436, %v648
  %vm1019 = vcmp.eq.s32.totalorder %v436, %v662
  %vm1020 = vcmp.eq.s32.totalorder %v436, %v676
  %vm1021 = vcmp.eq.s32.totalorder %v436, %v690
  %vm1022 = vcmp.eq.s32.totalorder %v436, %v704
  %vm1023 = vcmp.eq.s32.totalorder %v436, %v718
  %vm1024 = vcmp.eq.s32.totalorder %v436, %v732
  %vm1025 = vcmp.eq.s32.totalorder %v436, %v746
  %vm1026 = vcmp.eq.s32.totalorder %v436, %v760
  %vm1027 = vcmp.eq.s32.totalorder %v436, %v774
  %vm1028 = vcmp.eq.s32.totalorder %v436, %v788
  %vm1029 = vcmp.eq.s32.totalorder %v436, %v802
  %vm1030 = vcmp.eq.s32.totalorder %v436, %v816
  %vm1031 = vcmp.eq.s32.totalorder %v436, %v830
  %vm1032 = vcmp.eq.s32.totalorder %v436, %v844
  %vm1033 = vcmp.eq.s32.totalorder %v436, %v858
  %vm1034 = vcmp.eq.s32.totalorder %v436, %v872
  %vm1035 = vcmp.eq.s32.totalorder %v436, %v886
  %vm1036 = vcmp.eq.s32.totalorder %v436, %v900
  %vm1037 = vcmp.eq.s32.totalorder %v436, %v914
  %vm1038 = vcmp.eq.s32.totalorder %v436, %v928
  %vm1039 = vcmp.eq.s32.totalorder %v436, %v942
  %vm1040 = vcmp.eq.s32.totalorder %v436, %v956
  %vm1041 = vcmp.eq.s32.totalorder %v436, %v970
  %vm1042 = vcmp.eq.s32.totalorder %v436, %v984
  %vm1043 = vcmp.eq.s32.totalorder %v436, %v998
  %vm1044 = vcmp.eq.s32.totalorder %v436, %v1012
  %v1045 = vsel %vm1013, -inf, %v340
  %v1046 = vsel %vm1014, -inf, %v343
  %v1047 = vsel %vm1015, -inf, %v346
  %v1048 = vsel %vm1016, -inf, %v349
  %v1049 = vsel %vm1017, -inf, %v352
  %v1050 = vsel %vm1018, -inf, %v355
  %v1051 = vsel %vm1019, -inf, %v358
  %v1052 = vsel %vm1020, -inf, %v361
  %v1053 = vsel %vm1021, -inf, %v364
  %v1054 = vsel %vm1022, -inf, %v367
  %v1055 = vsel %vm1023, -inf, %v370
  %v1056 = vsel %vm1024, -inf, %v373
  %v1057 = vsel %vm1025, -inf, %v376
  %v1058 = vsel %vm1026, -inf, %v379
  %v1059 = vsel %vm1027, -inf, %v382
  %v1060 = vsel %vm1028, -inf, %v385
  %v1061 = vsel %vm1029, -inf, %v388
  %v1062 = vsel %vm1030, -inf, %v391
  %v1063 = vsel %vm1031, -inf, %v394
  %v1064 = vsel %vm1032, -inf, %v397
  %v1065 = vsel %vm1033, -inf, %v400
  %v1066 = vsel %vm1034, -inf, %v403
  %v1067 = vsel %vm1035, -inf, %v406
  %v1068 = vsel %vm1036, -inf, %v409
  %v1069 = vsel %vm1037, -inf, %v412
  %v1070 = vsel %vm1038, -inf, %v415
  %v1071 = vsel %vm1039, -inf, %v418
  %v1072 = vsel %vm1040, -inf, %v421
  %v1073 = vsel %vm1041, -inf, %v424
  %v1074 = vsel %vm1042, -inf, %v427
  %v1075 = vsel %vm1043, -inf, %v430
  %v1076 = vsel %vm1044, -inf, %v433
  %1077 = vmax.xlane.f32.xlu0 %v1045
  %v1078 = vpop.xlane.xlu0 %1077
  %1079 = vmax.xlane.f32.xlu0 %v1046
  %v1080 = vpop.xlane.xlu0 %1079
  %1081 = vmax.xlane.f32.xlu0 %v1047
  %v1082 = vpop.xlane.xlu0 %1081
  %1083 = vmax.xlane.f32.xlu0 %v1048
  %v1084 = vpop.xlane.xlu0 %1083
  %1085 = vmax.xlane.f32.xlu0 %v1049
  %v1086 = vpop.xlane.xlu0 %1085
  %1087 = vmax.xlane.f32.xlu0 %v1050
  %v1088 = vpop.xlane.xlu0 %1087
  %1089 = vmax.xlane.f32.xlu0 %v1051
  %v1090 = vpop.xlane.xlu0 %1089
  %1091 = vmax.xlane.f32.xlu0 %v1052
  %v1092 = vpop.xlane.xlu0 %1091
  %1093 = vmax.xlane.f32.xlu0 %v1053
  %v1094 = vpop.xlane.xlu0 %1093
  %1095 = vmax.xlane.f32.xlu0 %v1054
  %v1096 = vpop.xlane.xlu0 %1095
  %1097 = vmax.xlane.f32.xlu0 %v1055
  %v1098 = vpop.xlane.xlu0 %1097
  %1099 = vmax.xlane.f32.xlu0 %v1056
  %v1100 = vpop.xlane.xlu0 %1099
  %1101 = vmax.xlane.f32.xlu0 %v1057
  %v1102 = vpop.xlane.xlu0 %1101
  %1103 = vmax.xlane.f32.xlu0 %v1058
  %v1104 = vpop.xlane.xlu0 %1103
  %1105 = vmax.xlane.f32.xlu0 %v1059
  %v1106 = vpop.xlane.xlu0 %1105
  %1107 = vmax.xlane.f32.xlu0 %v1060
  %v1108 = vpop.xlane.xlu0 %1107
  %1109 = vmax.xlane.f32.xlu0 %v1061
  %v1110 = vpop.xlane.xlu0 %1109
  %1111 = vmax.xlane.f32.xlu0 %v1062
  %v1112 = vpop.xlane.xlu0 %1111
  %1113 = vmax.xlane.f32.xlu0 %v1063
  %v1114 = vpop.xlane.xlu0 %1113
  %1115 = vmax.xlane.f32.xlu0 %v1064
  %v1116 = vpop.xlane.xlu0 %1115
  %1117 = vmax.xlane.f32.xlu0 %v1065
  %v1118 = vpop.xlane.xlu0 %1117
  %1119 = vmax.xlane.f32.xlu0 %v1066
  %v1120 = vpop.xlane.xlu0 %1119
  %1121 = vmax.xlane.f32.xlu0 %v1067
  %v1122 = vpop.xlane.xlu0 %1121
  %1123 = vmax.xlane.f32.xlu0 %v1068
  %v1124 = vpop.xlane.xlu0 %1123
  %1125 = vmax.xlane.f32.xlu0 %v1069
  %v1126 = vpop.xlane.xlu0 %1125
  %1127 = vmax.xlane.f32.xlu0 %v1070
  %v1128 = vpop.xlane.xlu0 %1127
  %1129 = vmax.xlane.f32.xlu0 %v1071
  %v1130 = vpop.xlane.xlu0 %1129
  %1131 = vmax.xlane.f32.xlu0 %v1072
  %v1132 = vpop.xlane.xlu0 %1131
  %1133 = vmax.xlane.f32.xlu0 %v1073
  %v1134 = vpop.xlane.xlu0 %1133
  %1135 = vmax.xlane.f32.xlu0 %v1074
  %v1136 = vpop.xlane.xlu0 %1135
  %1137 = vmax.xlane.f32.xlu0 %v1075
  %v1138 = vpop.xlane.xlu0 %1137
  %1139 = vmax.xlane.f32.xlu0 %v1076
  %v1140 = vpop.xlane.xlu0 %1139
  %vm1141 = vcmp.eq.f32.partialorder %v1045, %v1078
  %vm1142 = vcmp.eq.f32.partialorder %v1046, %v1080
  %vm1143 = vcmp.eq.f32.partialorder %v1047, %v1082
  %vm1144 = vcmp.eq.f32.partialorder %v1048, %v1084
  %vm1145 = vcmp.eq.f32.partialorder %v1049, %v1086
  %vm1146 = vcmp.eq.f32.partialorder %v1050, %v1088
  %vm1147 = vcmp.eq.f32.partialorder %v1051, %v1090
  %vm1148 = vcmp.eq.f32.partialorder %v1052, %v1092
  %vm1149 = vcmp.eq.f32.partialorder %v1053, %v1094
  %vm1150 = vcmp.eq.f32.partialorder %v1054, %v1096
  %vm1151 = vcmp.eq.f32.partialorder %v1055, %v1098
  %vm1152 = vcmp.eq.f32.partialorder %v1056, %v1100
  %vm1153 = vcmp.eq.f32.partialorder %v1057, %v1102
  %vm1154 = vcmp.eq.f32.partialorder %v1058, %v1104
  %vm1155 = vcmp.eq.f32.partialorder %v1059, %v1106
  %vm1156 = vcmp.eq.f32.partialorder %v1060, %v1108
  %vm1157 = vcmp.eq.f32.partialorder %v1061, %v1110
  %vm1158 = vcmp.eq.f32.partialorder %v1062, %v1112
  %vm1159 = vcmp.eq.f32.partialorder %v1063, %v1114
  %vm1160 = vcmp.eq.f32.partialorder %v1064, %v1116
  %vm1161 = vcmp.eq.f32.partialorder %v1065, %v1118
  %vm1162 = vcmp.eq.f32.partialorder %v1066, %v1120
  %vm1163 = vcmp.eq.f32.partialorder %v1067, %v1122
  %vm1164 = vcmp.eq.f32.partialorder %v1068, %v1124
  %vm1165 = vcmp.eq.f32.partialorder %v1069, %v1126
  %vm1166 = vcmp.eq.f32.partialorder %v1070, %v1128
  %vm1167 = vcmp.eq.f32.partialorder %v1071, %v1130
  %vm1168 = vcmp.eq.f32.partialorder %v1072, %v1132
  %vm1169 = vcmp.eq.f32.partialorder %v1073, %v1134
  %vm1170 = vcmp.eq.f32.partialorder %v1074, %v1136
  %vm1171 = vcmp.eq.f32.partialorder %v1075, %v1138
  %vm1172 = vcmp.eq.f32.partialorder %v1076, %v1140
  %v1173 = vsel %vm1141, %v436, 128
  %v1174 = vsel %vm1142, %v436, 128
  %v1175 = vsel %vm1143, %v436, 128
  %v1176 = vsel %vm1144, %v436, 128
  %v1177 = vsel %vm1145, %v436, 128
  %v1178 = vsel %vm1146, %v436, 128
  %v1179 = vsel %vm1147, %v436, 128
  %v1180 = vsel %vm1148, %v436, 128
  %v1181 = vsel %vm1149, %v436, 128
  %v1182 = vsel %vm1150, %v436, 128
  %v1183 = vsel %vm1151, %v436, 128
  %v1184 = vsel %vm1152, %v436, 128
  %v1185 = vsel %vm1153, %v436, 128
  %v1186 = vsel %vm1154, %v436, 128
  %v1187 = vsel %vm1155, %v436, 128
  %v1188 = vsel %vm1156, %v436, 128
  %v1189 = vsel %vm1157, %v436, 128
  %v1190 = vsel %vm1158, %v436, 128
  %v1191 = vsel %vm1159, %v436, 128
  %v1192 = vsel %vm1160, %v436, 128
  %v1193 = vsel %vm1161, %v436, 128
  %v1194 = vsel %vm1162, %v436, 128
  %v1195 = vsel %vm1163, %v436, 128
  %v1196 = vsel %vm1164, %v436, 128
  %v1197 = vsel %vm1165, %v436, 128
  %v1198 = vsel %vm1166, %v436, 128
  %v1199 = vsel %vm1167, %v436, 128
  %v1200 = vsel %vm1168, %v436, 128
  %v1201 = vsel %vm1169, %v436, 128
  %v1202 = vsel %vm1170, %v436, 128
  %v1203 = vsel %vm1171, %v436, 128
  %v1204 = vsel %vm1172, %v436, 128
  %v1205 = vand.u32 %v1173, 65535
  %v1206 = vshra.s32 %v1173, 16
  %v1207 = vcvt.s32.f32 %v1205
  %v1208 = vcvt.s32.f32 %v1206
  %1209 = vmin.xlane.f32.xlu0 %v1208
  %v1210 = vpop.xlane.xlu0 %1209
  %vm1211 = vcmp.eq.f32.partialorder %v1208, %v1210
  %v1212 = vsel %vm1211, %v1207, inf
  %1213 = vmin.xlane.f32.xlu0 %v1212
  %v1214 = vpop.xlane.xlu0 %1213
  %v1215 = vcvt.f32.s32 %v1214
  %v1216 = vcvt.f32.s32 %v1210
  %v1217 = vshll.u32 %v1216, 16
  %v1218 = vadd.s32 %v1217, %v1215
  %v1219 = vand.u32 %v1174, 65535
  %v1220 = vshra.s32 %v1174, 16
  %v1221 = vcvt.s32.f32 %v1219
  %v1222 = vcvt.s32.f32 %v1220
  %1223 = vmin.xlane.f32.xlu0 %v1222
  %v1224 = vpop.xlane.xlu0 %1223
  %vm1225 = vcmp.eq.f32.partialorder %v1222, %v1224
  %v1226 = vsel %vm1225, %v1221, inf
  %1227 = vmin.xlane.f32.xlu0 %v1226
  %v1228 = vpop.xlane.xlu0 %1227
  %v1229 = vcvt.f32.s32 %v1228
  %v1230 = vcvt.f32.s32 %v1224
  %v1231 = vshll.u32 %v1230, 16
  %v1232 = vadd.s32 %v1231, %v1229
  %v1233 = vand.u32 %v1175, 65535
  %v1234 = vshra.s32 %v1175, 16
  %v1235 = vcvt.s32.f32 %v1233
  %v1236 = vcvt.s32.f32 %v1234
  %1237 = vmin.xlane.f32.xlu0 %v1236
  %v1238 = vpop.xlane.xlu0 %1237
  %vm1239 = vcmp.eq.f32.partialorder %v1236, %v1238
  %v1240 = vsel %vm1239, %v1235, inf
  %1241 = vmin.xlane.f32.xlu0 %v1240
  %v1242 = vpop.xlane.xlu0 %1241
  %v1243 = vcvt.f32.s32 %v1242
  %v1244 = vcvt.f32.s32 %v1238
  %v1245 = vshll.u32 %v1244, 16
  %v1246 = vadd.s32 %v1245, %v1243
  %v1247 = vand.u32 %v1176, 65535
  %v1248 = vshra.s32 %v1176, 16
  %v1249 = vcvt.s32.f32 %v1247
  %v1250 = vcvt.s32.f32 %v1248
  %1251 = vmin.xlane.f32.xlu0 %v1250
  %v1252 = vpop.xlane.xlu0 %1251
  %vm1253 = vcmp.eq.f32.partialorder %v1250, %v1252
  %v1254 = vsel %vm1253, %v1249, inf
  %1255 = vmin.xlane.f32.xlu0 %v1254
  %v1256 = vpop.xlane.xlu0 %1255
  %v1257 = vcvt.f32.s32 %v1256
  %v1258 = vcvt.f32.s32 %v1252
  %v1259 = vshll.u32 %v1258, 16
  %v1260 = vadd.s32 %v1259, %v1257
  %v1261 = vand.u32 %v1177, 65535
  %v1262 = vshra.s32 %v1177, 16
  %v1263 = vcvt.s32.f32 %v1261
  %v1264 = vcvt.s32.f32 %v1262
  %1265 = vmin.xlane.f32.xlu0 %v1264
  %v1266 = vpop.xlane.xlu0 %1265
  %vm1267 = vcmp.eq.f32.partialorder %v1264, %v1266
  %v1268 = vsel %vm1267, %v1263, inf
  %1269 = vmin.xlane.f32.xlu0 %v1268
  %v1270 = vpop.xlane.xlu0 %1269
  %v1271 = vcvt.f32.s32 %v1270
  %v1272 = vcvt.f32.s32 %v1266
  %v1273 = vshll.u32 %v1272, 16
  %v1274 = vadd.s32 %v1273, %v1271
  %v1275 = vand.u32 %v1178, 65535
  %v1276 = vshra.s32 %v1178, 16
  %v1277 = vcvt.s32.f32 %v1275
  %v1278 = vcvt.s32.f32 %v1276
  %1279 = vmin.xlane.f32.xlu0 %v1278
  %v1280 = vpop.xlane.xlu0 %1279
  %vm1281 = vcmp.eq.f32.partialorder %v1278, %v1280
  %v1282 = vsel %vm1281, %v1277, inf
  %1283 = vmin.xlane.f32.xlu0 %v1282
  %v1284 = vpop.xlane.xlu0 %1283
  %v1285 = vcvt.f32.s32 %v1284
  %v1286 = vcvt.f32.s32 %v1280
  %v1287 = vshll.u32 %v1286, 16
  %v1288 = vadd.s32 %v1287, %v1285
  %v1289 = vand.u32 %v1179, 65535
  %v1290 = vshra.s32 %v1179, 16
  %v1291 = vcvt.s32.f32 %v1289
  %v1292 = vcvt.s32.f32 %v1290
  %1293 = vmin.xlane.f32.xlu0 %v1292
  %v1294 = vpop.xlane.xlu0 %1293
  %vm1295 = vcmp.eq.f32.partialorder %v1292, %v1294
  %v1296 = vsel %vm1295, %v1291, inf
  %1297 = vmin.xlane.f32.xlu0 %v1296
  %v1298 = vpop.xlane.xlu0 %1297
  %v1299 = vcvt.f32.s32 %v1298
  %v1300 = vcvt.f32.s32 %v1294
  %v1301 = vshll.u32 %v1300, 16
  %v1302 = vadd.s32 %v1301, %v1299
  %v1303 = vand.u32 %v1180, 65535
  %v1304 = vshra.s32 %v1180, 16
  %v1305 = vcvt.s32.f32 %v1303
  %v1306 = vcvt.s32.f32 %v1304
  %1307 = vmin.xlane.f32.xlu0 %v1306
  %v1308 = vpop.xlane.xlu0 %1307
  %vm1309 = vcmp.eq.f32.partialorder %v1306, %v1308
  %v1310 = vsel %vm1309, %v1305, inf
  %1311 = vmin.xlane.f32.xlu0 %v1310
  %v1312 = vpop.xlane.xlu0 %1311
  %v1313 = vcvt.f32.s32 %v1312
  %v1314 = vcvt.f32.s32 %v1308
  %v1315 = vshll.u32 %v1314, 16
  %v1316 = vadd.s32 %v1315, %v1313
  %v1317 = vand.u32 %v1181, 65535
  %v1318 = vshra.s32 %v1181, 16
  %v1319 = vcvt.s32.f32 %v1317
  %v1320 = vcvt.s32.f32 %v1318
  %1321 = vmin.xlane.f32.xlu0 %v1320
  %v1322 = vpop.xlane.xlu0 %1321
  %vm1323 = vcmp.eq.f32.partialorder %v1320, %v1322
  %v1324 = vsel %vm1323, %v1319, inf
  %1325 = vmin.xlane.f32.xlu0 %v1324
  %v1326 = vpop.xlane.xlu0 %1325
  %v1327 = vcvt.f32.s32 %v1326
  %v1328 = vcvt.f32.s32 %v1322
  %v1329 = vshll.u32 %v1328, 16
  %v1330 = vadd.s32 %v1329, %v1327
  %v1331 = vand.u32 %v1182, 65535
  %v1332 = vshra.s32 %v1182, 16
  %v1333 = vcvt.s32.f32 %v1331
  %v1334 = vcvt.s32.f32 %v1332
  %1335 = vmin.xlane.f32.xlu0 %v1334
  %v1336 = vpop.xlane.xlu0 %1335
  %vm1337 = vcmp.eq.f32.partialorder %v1334, %v1336
  %v1338 = vsel %vm1337, %v1333, inf
  %1339 = vmin.xlane.f32.xlu0 %v1338
  %v1340 = vpop.xlane.xlu0 %1339
  %v1341 = vcvt.f32.s32 %v1340
  %v1342 = vcvt.f32.s32 %v1336
  %v1343 = vshll.u32 %v1342, 16
  %v1344 = vadd.s32 %v1343, %v1341
  %v1345 = vand.u32 %v1183, 65535
  %v1346 = vshra.s32 %v1183, 16
  %v1347 = vcvt.s32.f32 %v1345
  %v1348 = vcvt.s32.f32 %v1346
  %1349 = vmin.xlane.f32.xlu0 %v1348
  %v1350 = vpop.xlane.xlu0 %1349
  %vm1351 = vcmp.eq.f32.partialorder %v1348, %v1350
  %v1352 = vsel %vm1351, %v1347, inf
  %1353 = vmin.xlane.f32.xlu0 %v1352
  %v1354 = vpop.xlane.xlu0 %1353
  %v1355 = vcvt.f32.s32 %v1354
  %v1356 = vcvt.f32.s32 %v1350
  %v1357 = vshll.u32 %v1356, 16
  %v1358 = vadd.s32 %v1357, %v1355
  %v1359 = vand.u32 %v1184, 65535
  %v1360 = vshra.s32 %v1184, 16
  %v1361 = vcvt.s32.f32 %v1359
  %v1362 = vcvt.s32.f32 %v1360
  %1363 = vmin.xlane.f32.xlu0 %v1362
  %v1364 = vpop.xlane.xlu0 %1363
  %vm1365 = vcmp.eq.f32.partialorder %v1362, %v1364
  %v1366 = vsel %vm1365, %v1361, inf
  %1367 = vmin.xlane.f32.xlu0 %v1366
  %v1368 = vpop.xlane.xlu0 %1367
  %v1369 = vcvt.f32.s32 %v1368
  %v1370 = vcvt.f32.s32 %v1364
  %v1371 = vshll.u32 %v1370, 16
  %v1372 = vadd.s32 %v1371, %v1369
  %v1373 = vand.u32 %v1185, 65535
  %v1374 = vshra.s32 %v1185, 16
  %v1375 = vcvt.s32.f32 %v1373
  %v1376 = vcvt.s32.f32 %v1374
  %1377 = vmin.xlane.f32.xlu0 %v1376
  %v1378 = vpop.xlane.xlu0 %1377
  %vm1379 = vcmp.eq.f32.partialorder %v1376, %v1378
  %v1380 = vsel %vm1379, %v1375, inf
  %1381 = vmin.xlane.f32.xlu0 %v1380
  %v1382 = vpop.xlane.xlu0 %1381
  %v1383 = vcvt.f32.s32 %v1382
  %v1384 = vcvt.f32.s32 %v1378
  %v1385 = vshll.u32 %v1384, 16
  %v1386 = vadd.s32 %v1385, %v1383
  %v1387 = vand.u32 %v1186, 65535
  %v1388 = vshra.s32 %v1186, 16
  %v1389 = vcvt.s32.f32 %v1387
  %v1390 = vcvt.s32.f32 %v1388
  %1391 = vmin.xlane.f32.xlu0 %v1390
  %v1392 = vpop.xlane.xlu0 %1391
  %vm1393 = vcmp.eq.f32.partialorder %v1390, %v1392
  %v1394 = vsel %vm1393, %v1389, inf
  %1395 = vmin.xlane.f32.xlu0 %v1394
  %v1396 = vpop.xlane.xlu0 %1395
  %v1397 = vcvt.f32.s32 %v1396
  %v1398 = vcvt.f32.s32 %v1392
  %v1399 = vshll.u32 %v1398, 16
  %v1400 = vadd.s32 %v1399, %v1397
  %v1401 = vand.u32 %v1187, 65535
  %v1402 = vshra.s32 %v1187, 16
  %v1403 = vcvt.s32.f32 %v1401
  %v1404 = vcvt.s32.f32 %v1402
  %1405 = vmin.xlane.f32.xlu0 %v1404
  %v1406 = vpop.xlane.xlu0 %1405
  %vm1407 = vcmp.eq.f32.partialorder %v1404, %v1406
  %v1408 = vsel %vm1407, %v1403, inf
  %1409 = vmin.xlane.f32.xlu0 %v1408
  %v1410 = vpop.xlane.xlu0 %1409
  %v1411 = vcvt.f32.s32 %v1410
  %v1412 = vcvt.f32.s32 %v1406
  %v1413 = vshll.u32 %v1412, 16
  %v1414 = vadd.s32 %v1413, %v1411
  %v1415 = vand.u32 %v1188, 65535
  %v1416 = vshra.s32 %v1188, 16
  %v1417 = vcvt.s32.f32 %v1415
  %v1418 = vcvt.s32.f32 %v1416
  %1419 = vmin.xlane.f32.xlu0 %v1418
  %v1420 = vpop.xlane.xlu0 %1419
  %vm1421 = vcmp.eq.f32.partialorder %v1418, %v1420
  %v1422 = vsel %vm1421, %v1417, inf
  %1423 = vmin.xlane.f32.xlu0 %v1422
  %v1424 = vpop.xlane.xlu0 %1423
  %v1425 = vcvt.f32.s32 %v1424
  %v1426 = vcvt.f32.s32 %v1420
  %v1427 = vshll.u32 %v1426, 16
  %v1428 = vadd.s32 %v1427, %v1425
  %v1429 = vand.u32 %v1189, 65535
  %v1430 = vshra.s32 %v1189, 16
  %v1431 = vcvt.s32.f32 %v1429
  %v1432 = vcvt.s32.f32 %v1430
  %1433 = vmin.xlane.f32.xlu0 %v1432
  %v1434 = vpop.xlane.xlu0 %1433
  %vm1435 = vcmp.eq.f32.partialorder %v1432, %v1434
  %v1436 = vsel %vm1435, %v1431, inf
  %1437 = vmin.xlane.f32.xlu0 %v1436
  %v1438 = vpop.xlane.xlu0 %1437
  %v1439 = vcvt.f32.s32 %v1438
  %v1440 = vcvt.f32.s32 %v1434
  %v1441 = vshll.u32 %v1440, 16
  %v1442 = vadd.s32 %v1441, %v1439
  %v1443 = vand.u32 %v1190, 65535
  %v1444 = vshra.s32 %v1190, 16
  %v1445 = vcvt.s32.f32 %v1443
  %v1446 = vcvt.s32.f32 %v1444
  %1447 = vmin.xlane.f32.xlu0 %v1446
  %v1448 = vpop.xlane.xlu0 %1447
  %vm1449 = vcmp.eq.f32.partialorder %v1446, %v1448
  %v1450 = vsel %vm1449, %v1445, inf
  %1451 = vmin.xlane.f32.xlu0 %v1450
  %v1452 = vpop.xlane.xlu0 %1451
  %v1453 = vcvt.f32.s32 %v1452
  %v1454 = vcvt.f32.s32 %v1448
  %v1455 = vshll.u32 %v1454, 16
  %v1456 = vadd.s32 %v1455, %v1453
  %v1457 = vand.u32 %v1191, 65535
  %v1458 = vshra.s32 %v1191, 16
  %v1459 = vcvt.s32.f32 %v1457
  %v1460 = vcvt.s32.f32 %v1458
  %1461 = vmin.xlane.f32.xlu0 %v1460
  %v1462 = vpop.xlane.xlu0 %1461
  %vm1463 = vcmp.eq.f32.partialorder %v1460, %v1462
  %v1464 = vsel %vm1463, %v1459, inf
  %1465 = vmin.xlane.f32.xlu0 %v1464
  %v1466 = vpop.xlane.xlu0 %1465
  %v1467 = vcvt.f32.s32 %v1466
  %v1468 = vcvt.f32.s32 %v1462
  %v1469 = vshll.u32 %v1468, 16
  %v1470 = vadd.s32 %v1469, %v1467
  %v1471 = vand.u32 %v1192, 65535
  %v1472 = vshra.s32 %v1192, 16
  %v1473 = vcvt.s32.f32 %v1471
  %v1474 = vcvt.s32.f32 %v1472
  %1475 = vmin.xlane.f32.xlu0 %v1474
  %v1476 = vpop.xlane.xlu0 %1475
  %vm1477 = vcmp.eq.f32.partialorder %v1474, %v1476
  %v1478 = vsel %vm1477, %v1473, inf
  %1479 = vmin.xlane.f32.xlu0 %v1478
  %v1480 = vpop.xlane.xlu0 %1479
  %v1481 = vcvt.f32.s32 %v1480
  %v1482 = vcvt.f32.s32 %v1476
  %v1483 = vshll.u32 %v1482, 16
  %v1484 = vadd.s32 %v1483, %v1481
  %v1485 = vand.u32 %v1193, 65535
  %v1486 = vshra.s32 %v1193, 16
  %v1487 = vcvt.s32.f32 %v1485
  %v1488 = vcvt.s32.f32 %v1486
  %1489 = vmin.xlane.f32.xlu0 %v1488
  %v1490 = vpop.xlane.xlu0 %1489
  %vm1491 = vcmp.eq.f32.partialorder %v1488, %v1490
  %v1492 = vsel %vm1491, %v1487, inf
  %1493 = vmin.xlane.f32.xlu0 %v1492
  %v1494 = vpop.xlane.xlu0 %1493
  %v1495 = vcvt.f32.s32 %v1494
  %v1496 = vcvt.f32.s32 %v1490
  %v1497 = vshll.u32 %v1496, 16
  %v1498 = vadd.s32 %v1497, %v1495
  %v1499 = vand.u32 %v1194, 65535
  %v1500 = vshra.s32 %v1194, 16
  %v1501 = vcvt.s32.f32 %v1499
  %v1502 = vcvt.s32.f32 %v1500
  %1503 = vmin.xlane.f32.xlu0 %v1502
  %v1504 = vpop.xlane.xlu0 %1503
  %vm1505 = vcmp.eq.f32.partialorder %v1502, %v1504
  %v1506 = vsel %vm1505, %v1501, inf
  %1507 = vmin.xlane.f32.xlu0 %v1506
  %v1508 = vpop.xlane.xlu0 %1507
  %v1509 = vcvt.f32.s32 %v1508
  %v1510 = vcvt.f32.s32 %v1504
  %v1511 = vshll.u32 %v1510, 16
  %v1512 = vadd.s32 %v1511, %v1509
  %v1513 = vand.u32 %v1195, 65535
  %v1514 = vshra.s32 %v1195, 16
  %v1515 = vcvt.s32.f32 %v1513
  %v1516 = vcvt.s32.f32 %v1514
  %1517 = vmin.xlane.f32.xlu0 %v1516
  %v1518 = vpop.xlane.xlu0 %1517
  %vm1519 = vcmp.eq.f32.partialorder %v1516, %v1518
  %v1520 = vsel %vm1519, %v1515, inf
  %1521 = vmin.xlane.f32.xlu0 %v1520
  %v1522 = vpop.xlane.xlu0 %1521
  %v1523 = vcvt.f32.s32 %v1522
  %v1524 = vcvt.f32.s32 %v1518
  %v1525 = vshll.u32 %v1524, 16
  %v1526 = vadd.s32 %v1525, %v1523
  %v1527 = vand.u32 %v1196, 65535
  %v1528 = vshra.s32 %v1196, 16
  %v1529 = vcvt.s32.f32 %v1527
  %v1530 = vcvt.s32.f32 %v1528
  %1531 = vmin.xlane.f32.xlu0 %v1530
  %v1532 = vpop.xlane.xlu0 %1531
  %vm1533 = vcmp.eq.f32.partialorder %v1530, %v1532
  %v1534 = vsel %vm1533, %v1529, inf
  %1535 = vmin.xlane.f32.xlu0 %v1534
  %v1536 = vpop.xlane.xlu0 %1535
  %v1537 = vcvt.f32.s32 %v1536
  %v1538 = vcvt.f32.s32 %v1532
  %v1539 = vshll.u32 %v1538, 16
  %v1540 = vadd.s32 %v1539, %v1537
  %v1541 = vand.u32 %v1197, 65535
  %v1542 = vshra.s32 %v1197, 16
  %v1543 = vcvt.s32.f32 %v1541
  %v1544 = vcvt.s32.f32 %v1542
  %1545 = vmin.xlane.f32.xlu0 %v1544
  %v1546 = vpop.xlane.xlu0 %1545
  %vm1547 = vcmp.eq.f32.partialorder %v1544, %v1546
  %v1548 = vsel %vm1547, %v1543, inf
  %1549 = vmin.xlane.f32.xlu0 %v1548
  %v1550 = vpop.xlane.xlu0 %1549
  %v1551 = vcvt.f32.s32 %v1550
  %v1552 = vcvt.f32.s32 %v1546
  %v1553 = vshll.u32 %v1552, 16
  %v1554 = vadd.s32 %v1553, %v1551
  %v1555 = vand.u32 %v1198, 65535
  %v1556 = vshra.s32 %v1198, 16
  %v1557 = vcvt.s32.f32 %v1555
  %v1558 = vcvt.s32.f32 %v1556
  %1559 = vmin.xlane.f32.xlu0 %v1558
  %v1560 = vpop.xlane.xlu0 %1559
  %vm1561 = vcmp.eq.f32.partialorder %v1558, %v1560
  %v1562 = vsel %vm1561, %v1557, inf
  %1563 = vmin.xlane.f32.xlu0 %v1562
  %v1564 = vpop.xlane.xlu0 %1563
  %v1565 = vcvt.f32.s32 %v1564
  %v1566 = vcvt.f32.s32 %v1560
  %v1567 = vshll.u32 %v1566, 16
  %v1568 = vadd.s32 %v1567, %v1565
  %v1569 = vand.u32 %v1199, 65535
  %v1570 = vshra.s32 %v1199, 16
  %v1571 = vcvt.s32.f32 %v1569
  %v1572 = vcvt.s32.f32 %v1570
  %1573 = vmin.xlane.f32.xlu0 %v1572
  %v1574 = vpop.xlane.xlu0 %1573
  %vm1575 = vcmp.eq.f32.partialorder %v1572, %v1574
  %v1576 = vsel %vm1575, %v1571, inf
  %1577 = vmin.xlane.f32.xlu0 %v1576
  %v1578 = vpop.xlane.xlu0 %1577
  %v1579 = vcvt.f32.s32 %v1578
  %v1580 = vcvt.f32.s32 %v1574
  %v1581 = vshll.u32 %v1580, 16
  %v1582 = vadd.s32 %v1581, %v1579
  %v1583 = vand.u32 %v1200, 65535
  %v1584 = vshra.s32 %v1200, 16
  %v1585 = vcvt.s32.f32 %v1583
  %v1586 = vcvt.s32.f32 %v1584
  %1587 = vmin.xlane.f32.xlu0 %v1586
  %v1588 = vpop.xlane.xlu0 %1587
  %vm1589 = vcmp.eq.f32.partialorder %v1586, %v1588
  %v1590 = vsel %vm1589, %v1585, inf
  %1591 = vmin.xlane.f32.xlu0 %v1590
  %v1592 = vpop.xlane.xlu0 %1591
  %v1593 = vcvt.f32.s32 %v1592
  %v1594 = vcvt.f32.s32 %v1588
  %v1595 = vshll.u32 %v1594, 16
  %v1596 = vadd.s32 %v1595, %v1593
  %v1597 = vand.u32 %v1201, 65535
  %v1598 = vshra.s32 %v1201, 16
  %v1599 = vcvt.s32.f32 %v1597
  %v1600 = vcvt.s32.f32 %v1598
  %1601 = vmin.xlane.f32.xlu0 %v1600
  %v1602 = vpop.xlane.xlu0 %1601
  %vm1603 = vcmp.eq.f32.partialorder %v1600, %v1602
  %v1604 = vsel %vm1603, %v1599, inf
  %1605 = vmin.xlane.f32.xlu0 %v1604
  %v1606 = vpop.xlane.xlu0 %1605
  %v1607 = vcvt.f32.s32 %v1606
  %v1608 = vcvt.f32.s32 %v1602
  %v1609 = vshll.u32 %v1608, 16
  %v1610 = vadd.s32 %v1609, %v1607
  %v1611 = vand.u32 %v1202, 65535
  %v1612 = vshra.s32 %v1202, 16
  %v1613 = vcvt.s32.f32 %v1611
  %v1614 = vcvt.s32.f32 %v1612
  %1615 = vmin.xlane.f32.xlu0 %v1614
  %v1616 = vpop.xlane.xlu0 %1615
  %vm1617 = vcmp.eq.f32.partialorder %v1614, %v1616
  %v1618 = vsel %vm1617, %v1613, inf
  %1619 = vmin.xlane.f32.xlu0 %v1618
  %v1620 = vpop.xlane.xlu0 %1619
  %v1621 = vcvt.f32.s32 %v1620
  %v1622 = vcvt.f32.s32 %v1616
  %v1623 = vshll.u32 %v1622, 16
  %v1624 = vadd.s32 %v1623, %v1621
  %v1625 = vand.u32 %v1203, 65535
  %v1626 = vshra.s32 %v1203, 16
  %v1627 = vcvt.s32.f32 %v1625
  %v1628 = vcvt.s32.f32 %v1626
  %1629 = vmin.xlane.f32.xlu0 %v1628
  %v1630 = vpop.xlane.xlu0 %1629
  %vm1631 = vcmp.eq.f32.partialorder %v1628, %v1630
  %v1632 = vsel %vm1631, %v1627, inf
  %1633 = vmin.xlane.f32.xlu0 %v1632
  %v1634 = vpop.xlane.xlu0 %1633
  %v1635 = vcvt.f32.s32 %v1634
  %v1636 = vcvt.f32.s32 %v1630
  %v1637 = vshll.u32 %v1636, 16
  %v1638 = vadd.s32 %v1637, %v1635
  %v1639 = vand.u32 %v1204, 65535
  %v1640 = vshra.s32 %v1204, 16
  %v1641 = vcvt.s32.f32 %v1639
  %v1642 = vcvt.s32.f32 %v1640
  %1643 = vmin.xlane.f32.xlu0 %v1642
  %v1644 = vpop.xlane.xlu0 %1643
  %vm1645 = vcmp.eq.f32.partialorder %v1642, %v1644
  %v1646 = vsel %vm1645, %v1641, inf
  %1647 = vmin.xlane.f32.xlu0 %v1646
  %v1648 = vpop.xlane.xlu0 %1647
  %v1649 = vcvt.f32.s32 %v1648
  %v1650 = vcvt.f32.s32 %v1644
  %v1651 = vshll.u32 %v1650, 16
  %v1652 = vadd.s32 %v1651, %v1649
  %vm1653 = vcmp.eq.s32.totalorder %v436, %v1218
  %vm1654 = vcmp.eq.s32.totalorder %v436, %v1232
  %vm1655 = vcmp.eq.s32.totalorder %v436, %v1246
  %vm1656 = vcmp.eq.s32.totalorder %v436, %v1260
  %vm1657 = vcmp.eq.s32.totalorder %v436, %v1274
  %vm1658 = vcmp.eq.s32.totalorder %v436, %v1288
  %vm1659 = vcmp.eq.s32.totalorder %v436, %v1302
  %vm1660 = vcmp.eq.s32.totalorder %v436, %v1316
  %vm1661 = vcmp.eq.s32.totalorder %v436, %v1330
  %vm1662 = vcmp.eq.s32.totalorder %v436, %v1344
  %vm1663 = vcmp.eq.s32.totalorder %v436, %v1358
  %vm1664 = vcmp.eq.s32.totalorder %v436, %v1372
  %vm1665 = vcmp.eq.s32.totalorder %v436, %v1386
  %vm1666 = vcmp.eq.s32.totalorder %v436, %v1400
  %vm1667 = vcmp.eq.s32.totalorder %v436, %v1414
  %vm1668 = vcmp.eq.s32.totalorder %v436, %v1428
  %vm1669 = vcmp.eq.s32.totalorder %v436, %v1442
  %vm1670 = vcmp.eq.s32.totalorder %v436, %v1456
  %vm1671 = vcmp.eq.s32.totalorder %v436, %v1470
  %vm1672 = vcmp.eq.s32.totalorder %v436, %v1484
  %vm1673 = vcmp.eq.s32.totalorder %v436, %v1498
  %vm1674 = vcmp.eq.s32.totalorder %v436, %v1512
  %vm1675 = vcmp.eq.s32.totalorder %v436, %v1526
  %vm1676 = vcmp.eq.s32.totalorder %v436, %v1540
  %vm1677 = vcmp.eq.s32.totalorder %v436, %v1554
  %vm1678 = vcmp.eq.s32.totalorder %v436, %v1568
  %vm1679 = vcmp.eq.s32.totalorder %v436, %v1582
  %vm1680 = vcmp.eq.s32.totalorder %v436, %v1596
  %vm1681 = vcmp.eq.s32.totalorder %v436, %v1610
  %vm1682 = vcmp.eq.s32.totalorder %v436, %v1624
  %vm1683 = vcmp.eq.s32.totalorder %v436, %v1638
  %vm1684 = vcmp.eq.s32.totalorder %v436, %v1652
  %vm1685 = vmor %vm1013, %vm1653
  %vm1686 = vmor %vm1014, %vm1654
  %vm1687 = vmor %vm1015, %vm1655
  %vm1688 = vmor %vm1016, %vm1656
  %vm1689 = vmor %vm1017, %vm1657
  %vm1690 = vmor %vm1018, %vm1658
  %vm1691 = vmor %vm1019, %vm1659
  %vm1692 = vmor %vm1020, %vm1660
  %vm1693 = vmor %vm1021, %vm1661
  %vm1694 = vmor %vm1022, %vm1662
  %vm1695 = vmor %vm1023, %vm1663
  %vm1696 = vmor %vm1024, %vm1664
  %vm1697 = vmor %vm1025, %vm1665
  %vm1698 = vmor %vm1026, %vm1666
  %vm1699 = vmor %vm1027, %vm1667
  %vm1700 = vmor %vm1028, %vm1668
  %vm1701 = vmor %vm1029, %vm1669
  %vm1702 = vmor %vm1030, %vm1670
  %vm1703 = vmor %vm1031, %vm1671
  %vm1704 = vmor %vm1032, %vm1672
  %vm1705 = vmor %vm1033, %vm1673
  %vm1706 = vmor %vm1034, %vm1674
  %vm1707 = vmor %vm1035, %vm1675
  %vm1708 = vmor %vm1036, %vm1676
  %vm1709 = vmor %vm1037, %vm1677
  %vm1710 = vmor %vm1038, %vm1678
  %vm1711 = vmor %vm1039, %vm1679
  %vm1712 = vmor %vm1040, %vm1680
  %vm1713 = vmor %vm1041, %vm1681
  %vm1714 = vmor %vm1042, %vm1682
  %vm1715 = vmor %vm1043, %vm1683
  %vm1716 = vmor %vm1044, %vm1684
  %v1717 = vsel %vm1685, %v340, -inf
  %v1718 = vsel %vm1686, %v343, -inf
  %v1719 = vsel %vm1687, %v346, -inf
  %v1720 = vsel %vm1688, %v349, -inf
  %v1721 = vsel %vm1689, %v352, -inf
  %v1722 = vsel %vm1690, %v355, -inf
  %v1723 = vsel %vm1691, %v358, -inf
  %v1724 = vsel %vm1692, %v361, -inf
  %v1725 = vsel %vm1693, %v364, -inf
  %v1726 = vsel %vm1694, %v367, -inf
  %v1727 = vsel %vm1695, %v370, -inf
  %v1728 = vsel %vm1696, %v373, -inf
  %v1729 = vsel %vm1697, %v376, -inf
  %v1730 = vsel %vm1698, %v379, -inf
  %v1731 = vsel %vm1699, %v382, -inf
  %v1732 = vsel %vm1700, %v385, -inf
  %v1733 = vsel %vm1701, %v388, -inf
  %v1734 = vsel %vm1702, %v391, -inf
  %v1735 = vsel %vm1703, %v394, -inf
  %v1736 = vsel %vm1704, %v397, -inf
  %v1737 = vsel %vm1705, %v400, -inf
  %v1738 = vsel %vm1706, %v403, -inf
  %v1739 = vsel %vm1707, %v406, -inf
  %v1740 = vsel %vm1708, %v409, -inf
  %v1741 = vsel %vm1709, %v412, -inf
  %v1742 = vsel %vm1710, %v415, -inf
  %v1743 = vsel %vm1711, %v418, -inf
  %v1744 = vsel %vm1712, %v421, -inf
  %v1745 = vsel %vm1713, %v424, -inf
  %v1746 = vsel %vm1714, %v427, -inf
  %v1747 = vsel %vm1715, %v430, -inf
  %v1748 = vsel %vm1716, %v433, -inf
  %1749 = vmax.xlane.f32.xlu0 %v1717
  %v1750 = vpop.xlane.xlu0 %1749
  %1751 = vmax.xlane.f32.xlu0 %v1718
  %v1752 = vpop.xlane.xlu0 %1751
  %1753 = vmax.xlane.f32.xlu0 %v1719
  %v1754 = vpop.xlane.xlu0 %1753
  %1755 = vmax.xlane.f32.xlu0 %v1720
  %v1756 = vpop.xlane.xlu0 %1755
  %1757 = vmax.xlane.f32.xlu0 %v1721
  %v1758 = vpop.xlane.xlu0 %1757
  %1759 = vmax.xlane.f32.xlu0 %v1722
  %v1760 = vpop.xlane.xlu0 %1759
  %1761 = vmax.xlane.f32.xlu0 %v1723
  %v1762 = vpop.xlane.xlu0 %1761
  %1763 = vmax.xlane.f32.xlu0 %v1724
  %v1764 = vpop.xlane.xlu0 %1763
  %1765 = vmax.xlane.f32.xlu0 %v1725
  %v1766 = vpop.xlane.xlu0 %1765
  %1767 = vmax.xlane.f32.xlu0 %v1726
  %v1768 = vpop.xlane.xlu0 %1767
  %1769 = vmax.xlane.f32.xlu0 %v1727
  %v1770 = vpop.xlane.xlu0 %1769
  %1771 = vmax.xlane.f32.xlu0 %v1728
  %v1772 = vpop.xlane.xlu0 %1771
  %1773 = vmax.xlane.f32.xlu0 %v1729
  %v1774 = vpop.xlane.xlu0 %1773
  %1775 = vmax.xlane.f32.xlu0 %v1730
  %v1776 = vpop.xlane.xlu0 %1775
  %1777 = vmax.xlane.f32.xlu0 %v1731
  %v1778 = vpop.xlane.xlu0 %1777
  %1779 = vmax.xlane.f32.xlu0 %v1732
  %v1780 = vpop.xlane.xlu0 %1779
  %1781 = vmax.xlane.f32.xlu0 %v1733
  %v1782 = vpop.xlane.xlu0 %1781
  %1783 = vmax.xlane.f32.xlu0 %v1734
  %v1784 = vpop.xlane.xlu0 %1783
  %1785 = vmax.xlane.f32.xlu0 %v1735
  %v1786 = vpop.xlane.xlu0 %1785
  %1787 = vmax.xlane.f32.xlu0 %v1736
  %v1788 = vpop.xlane.xlu0 %1787
  %1789 = vmax.xlane.f32.xlu0 %v1737
  %v1790 = vpop.xlane.xlu0 %1789
  %1791 = vmax.xlane.f32.xlu0 %v1738
  %v1792 = vpop.xlane.xlu0 %1791
  %1793 = vmax.xlane.f32.xlu0 %v1739
  %v1794 = vpop.xlane.xlu0 %1793
  %1795 = vmax.xlane.f32.xlu0 %v1740
  %v1796 = vpop.xlane.xlu0 %1795
  %1797 = vmax.xlane.f32.xlu0 %v1741
  %v1798 = vpop.xlane.xlu0 %1797
  %1799 = vmax.xlane.f32.xlu0 %v1742
  %v1800 = vpop.xlane.xlu0 %1799
  %1801 = vmax.xlane.f32.xlu0 %v1743
  %v1802 = vpop.xlane.xlu0 %1801
  %1803 = vmax.xlane.f32.xlu0 %v1744
  %v1804 = vpop.xlane.xlu0 %1803
  %1805 = vmax.xlane.f32.xlu0 %v1745
  %v1806 = vpop.xlane.xlu0 %1805
  %1807 = vmax.xlane.f32.xlu0 %v1746
  %v1808 = vpop.xlane.xlu0 %1807
  %1809 = vmax.xlane.f32.xlu0 %v1747
  %v1810 = vpop.xlane.xlu0 %1809
  %1811 = vmax.xlane.f32.xlu0 %v1748
  %v1812 = vpop.xlane.xlu0 %1811
  %v1813 = vsub.f32 %v1717, %v1750
  %v1814 = vsub.f32 %v1718, %v1752
  %v1815 = vsub.f32 %v1719, %v1754
  %v1816 = vsub.f32 %v1720, %v1756
  %v1817 = vsub.f32 %v1721, %v1758
  %v1818 = vsub.f32 %v1722, %v1760
  %v1819 = vsub.f32 %v1723, %v1762
  %v1820 = vsub.f32 %v1724, %v1764
  %v1821 = vsub.f32 %v1725, %v1766
  %v1822 = vsub.f32 %v1726, %v1768
  %v1823 = vsub.f32 %v1727, %v1770
  %v1824 = vsub.f32 %v1728, %v1772
  %v1825 = vsub.f32 %v1729, %v1774
  %v1826 = vsub.f32 %v1730, %v1776
  %v1827 = vsub.f32 %v1731, %v1778
  %v1828 = vsub.f32 %v1732, %v1780
  %v1829 = vsub.f32 %v1733, %v1782
  %v1830 = vsub.f32 %v1734, %v1784
  %v1831 = vsub.f32 %v1735, %v1786
  %v1832 = vsub.f32 %v1736, %v1788
  %v1833 = vsub.f32 %v1737, %v1790
  %v1834 = vsub.f32 %v1738, %v1792
  %v1835 = vsub.f32 %v1739, %v1794
  %v1836 = vsub.f32 %v1740, %v1796
  %v1837 = vsub.f32 %v1741, %v1798
  %v1838 = vsub.f32 %v1742, %v1800
  %v1839 = vsub.f32 %v1743, %v1802
  %v1840 = vsub.f32 %v1744, %v1804
  %v1841 = vsub.f32 %v1745, %v1806
  %v1842 = vsub.f32 %v1746, %v1808
  %v1843 = vsub.f32 %v1747, %v1810
  %v1844 = vsub.f32 %v1748, %v1812
  %v1845 = vmul.f32 %v1813, 1.442695
  %v1846 = vpow.pop %v1845
  %v1847 = vmul.f32 %v1814, 1.442695
  %v1848 = vpow.pop %v1847
  %v1849 = vmul.f32 %v1815, 1.442695
  %v1850 = vpow.pop %v1849
  %v1851 = vmul.f32 %v1816, 1.442695
  %v1852 = vpow.pop %v1851
  %v1853 = vmul.f32 %v1817, 1.442695
  %v1854 = vpow.pop %v1853
  %v1855 = vmul.f32 %v1818, 1.442695
  %v1856 = vpow.pop %v1855
  %v1857 = vmul.f32 %v1819, 1.442695
  %v1858 = vpow.pop %v1857
  %v1859 = vmul.f32 %v1820, 1.442695
  %v1860 = vpow.pop %v1859
  %v1861 = vmul.f32 %v1821, 1.442695
  %v1862 = vpow.pop %v1861
  %v1863 = vmul.f32 %v1822, 1.442695
  %v1864 = vpow.pop %v1863
  %v1865 = vmul.f32 %v1823, 1.442695
  %v1866 = vpow.pop %v1865
  %v1867 = vmul.f32 %v1824, 1.442695
  %v1868 = vpow.pop %v1867
  %v1869 = vmul.f32 %v1825, 1.442695
  %v1870 = vpow.pop %v1869
  %v1871 = vmul.f32 %v1826, 1.442695
  %v1872 = vpow.pop %v1871
  %v1873 = vmul.f32 %v1827, 1.442695
  %v1874 = vpow.pop %v1873
  %v1875 = vmul.f32 %v1828, 1.442695
  %v1876 = vpow.pop %v1875
  %v1877 = vmul.f32 %v1829, 1.442695
  %v1878 = vpow.pop %v1877
  %v1879 = vmul.f32 %v1830, 1.442695
  %v1880 = vpow.pop %v1879
  %v1881 = vmul.f32 %v1831, 1.442695
  %v1882 = vpow.pop %v1881
  %v1883 = vmul.f32 %v1832, 1.442695
  %v1884 = vpow.pop %v1883
  %v1885 = vmul.f32 %v1833, 1.442695
  %v1886 = vpow.pop %v1885
  %v1887 = vmul.f32 %v1834, 1.442695
  %v1888 = vpow.pop %v1887
  %v1889 = vmul.f32 %v1835, 1.442695
  %v1890 = vpow.pop %v1889
  %v1891 = vmul.f32 %v1836, 1.442695
  %v1892 = vpow.pop %v1891
  %v1893 = vmul.f32 %v1837, 1.442695
  %v1894 = vpow.pop %v1893
  %v1895 = vmul.f32 %v1838, 1.442695
  %v1896 = vpow.pop %v1895
  %v1897 = vmul.f32 %v1839, 1.442695
  %v1898 = vpow.pop %v1897
  %v1899 = vmul.f32 %v1840, 1.442695
  %v1900 = vpow.pop %v1899
  %v1901 = vmul.f32 %v1841, 1.442695
  %v1902 = vpow.pop %v1901
  %v1903 = vmul.f32 %v1842, 1.442695
  %v1904 = vpow.pop %v1903
  %v1905 = vmul.f32 %v1843, 1.442695
  %v1906 = vpow.pop %v1905
  %v1907 = vmul.f32 %v1844, 1.442695
  %v1908 = vpow.pop %v1907
  %1909 = vadd.xlane.f32.xlu0 %v1846
  %v1910 = vpop.xlane.xlu0 %1909
  %1911 = vadd.xlane.f32.xlu0 %v1848
  %v1912 = vpop.xlane.xlu0 %1911
  %1913 = vadd.xlane.f32.xlu0 %v1850
  %v1914 = vpop.xlane.xlu0 %1913
  %1915 = vadd.xlane.f32.xlu0 %v1852
  %v1916 = vpop.xlane.xlu0 %1915
  %1917 = vadd.xlane.f32.xlu0 %v1854
  %v1918 = vpop.xlane.xlu0 %1917
  %1919 = vadd.xlane.f32.xlu0 %v1856
  %v1920 = vpop.xlane.xlu0 %1919
  %1921 = vadd.xlane.f32.xlu0 %v1858
  %v1922 = vpop.xlane.xlu0 %1921
  %1923 = vadd.xlane.f32.xlu0 %v1860
  %v1924 = vpop.xlane.xlu0 %1923
  %1925 = vadd.xlane.f32.xlu0 %v1862
  %v1926 = vpop.xlane.xlu0 %1925
  %1927 = vadd.xlane.f32.xlu0 %v1864
  %v1928 = vpop.xlane.xlu0 %1927
  %1929 = vadd.xlane.f32.xlu0 %v1866
  %v1930 = vpop.xlane.xlu0 %1929
  %1931 = vadd.xlane.f32.xlu0 %v1868
  %v1932 = vpop.xlane.xlu0 %1931
  %1933 = vadd.xlane.f32.xlu0 %v1870
  %v1934 = vpop.xlane.xlu0 %1933
  %1935 = vadd.xlane.f32.xlu0 %v1872
  %v1936 = vpop.xlane.xlu0 %1935
  %1937 = vadd.xlane.f32.xlu0 %v1874
  %v1938 = vpop.xlane.xlu0 %1937
  %1939 = vadd.xlane.f32.xlu0 %v1876
  %v1940 = vpop.xlane.xlu0 %1939
  %1941 = vadd.xlane.f32.xlu0 %v1878
  %v1942 = vpop.xlane.xlu0 %1941
  %1943 = vadd.xlane.f32.xlu0 %v1880
  %v1944 = vpop.xlane.xlu0 %1943
  %1945 = vadd.xlane.f32.xlu0 %v1882
  %v1946 = vpop.xlane.xlu0 %1945
  %1947 = vadd.xlane.f32.xlu0 %v1884
  %v1948 = vpop.xlane.xlu0 %1947
  %1949 = vadd.xlane.f32.xlu0 %v1886
  %v1950 = vpop.xlane.xlu0 %1949
  %1951 = vadd.xlane.f32.xlu0 %v1888
  %v1952 = vpop.xlane.xlu0 %1951
  %1953 = vadd.xlane.f32.xlu0 %v1890
  %v1954 = vpop.xlane.xlu0 %1953
  %1955 = vadd.xlane.f32.xlu0 %v1892
  %v1956 = vpop.xlane.xlu0 %1955
  %1957 = vadd.xlane.f32.xlu0 %v1894
  %v1958 = vpop.xlane.xlu0 %1957
  %1959 = vadd.xlane.f32.xlu0 %v1896
  %v1960 = vpop.xlane.xlu0 %1959
  %1961 = vadd.xlane.f32.xlu0 %v1898
  %v1962 = vpop.xlane.xlu0 %1961
  %1963 = vadd.xlane.f32.xlu0 %v1900
  %v1964 = vpop.xlane.xlu0 %1963
  %1965 = vadd.xlane.f32.xlu0 %v1902
  %v1966 = vpop.xlane.xlu0 %1965
  %1967 = vadd.xlane.f32.xlu0 %v1904
  %v1968 = vpop.xlane.xlu0 %1967
  %1969 = vadd.xlane.f32.xlu0 %v1906
  %v1970 = vpop.xlane.xlu0 %1969
  %1971 = vadd.xlane.f32.xlu0 %v1908
  %v1972 = vpop.xlane.xlu0 %1971
  %v1973 = vrcp.pop %v1910
  %v1974 = vmul.f32 %v1910, %v1973
  %v1975 = vsub.f32 1.0, %v1974
  %v1976 = vmul.f32 %v1973, %v1975
  %v1977 = vadd.f32 %v1973, %v1976
  %vm1978 = vweird.f32 %v1910
  %vm1979 = vweird.f32 %v1973
  %vm1980 = vmor %vm1978, %vm1979
  %v1981 = vsel %vm1980, %v1973, %v1977
  %v1982 = vand.u32 2147483647, %v1910
  %vm1983 = vcmp.eq.f32.partialorder %v1982, 8.507059e+37
  %v1984 = vand.u32 %v1910, 2147483648
  %v1985 = vor.u32 1.1754944e-38, %v1984
  %v1986 = vsel %vm1983, %v1985, %v1981
  %v1987 = vmul.f32 %v1846, %v1986
  %v1988 = vrcp.pop %v1912
  %v1989 = vmul.f32 %v1912, %v1988
  %v1990 = vsub.f32 1.0, %v1989
  %v1991 = vmul.f32 %v1988, %v1990
  %v1992 = vadd.f32 %v1988, %v1991
  %vm1993 = vweird.f32 %v1912
  %vm1994 = vweird.f32 %v1988
  %vm1995 = vmor %vm1993, %vm1994
  %v1996 = vsel %vm1995, %v1988, %v1992
  %v1997 = vand.u32 2147483647, %v1912
  %vm1998 = vcmp.eq.f32.partialorder %v1997, 8.507059e+37
  %v1999 = vand.u32 %v1912, 2147483648
  %v2000 = vor.u32 1.1754944e-38, %v1999
  %v2001 = vsel %vm1998, %v2000, %v1996
  %v2002 = vmul.f32 %v1848, %v2001
  %v2003 = vrcp.pop %v1914
  %v2004 = vmul.f32 %v1914, %v2003
  %v2005 = vsub.f32 1.0, %v2004
  %v2006 = vmul.f32 %v2003, %v2005
  %v2007 = vadd.f32 %v2003, %v2006
  %vm2008 = vweird.f32 %v1914
  %vm2009 = vweird.f32 %v2003
  %vm2010 = vmor %vm2008, %vm2009
  %v2011 = vsel %vm2010, %v2003, %v2007
  %v2012 = vand.u32 2147483647, %v1914
  %vm2013 = vcmp.eq.f32.partialorder %v2012, 8.507059e+37
  %v2014 = vand.u32 %v1914, 2147483648
  %v2015 = vor.u32 1.1754944e-38, %v2014
  %v2016 = vsel %vm2013, %v2015, %v2011
  %v2017 = vmul.f32 %v1850, %v2016
  %v2018 = vrcp.pop %v1916
  %v2019 = vmul.f32 %v1916, %v2018
  %v2020 = vsub.f32 1.0, %v2019
  %v2021 = vmul.f32 %v2018, %v2020
  %v2022 = vadd.f32 %v2018, %v2021
  %vm2023 = vweird.f32 %v1916
  %vm2024 = vweird.f32 %v2018
  %vm2025 = vmor %vm2023, %vm2024
  %v2026 = vsel %vm2025, %v2018, %v2022
  %v2027 = vand.u32 2147483647, %v1916
  %vm2028 = vcmp.eq.f32.partialorder %v2027, 8.507059e+37
  %v2029 = vand.u32 %v1916, 2147483648
  %v2030 = vor.u32 1.1754944e-38, %v2029
  %v2031 = vsel %vm2028, %v2030, %v2026
  %v2032 = vmul.f32 %v1852, %v2031
  %v2033 = vrcp.pop %v1918
  %v2034 = vmul.f32 %v1918, %v2033
  %v2035 = vsub.f32 1.0, %v2034
  %v2036 = vmul.f32 %v2033, %v2035
  %v2037 = vadd.f32 %v2033, %v2036
  %vm2038 = vweird.f32 %v1918
  %vm2039 = vweird.f32 %v2033
  %vm2040 = vmor %vm2038, %vm2039
  %v2041 = vsel %vm2040, %v2033, %v2037
  %v2042 = vand.u32 2147483647, %v1918
  %vm2043 = vcmp.eq.f32.partialorder %v2042, 8.507059e+37
  %v2044 = vand.u32 %v1918, 2147483648
  %v2045 = vor.u32 1.1754944e-38, %v2044
  %v2046 = vsel %vm2043, %v2045, %v2041
  %v2047 = vmul.f32 %v1854, %v2046
  %v2048 = vrcp.pop %v1920
  %v2049 = vmul.f32 %v1920, %v2048
  %v2050 = vsub.f32 1.0, %v2049
  %v2051 = vmul.f32 %v2048, %v2050
  %v2052 = vadd.f32 %v2048, %v2051
  %vm2053 = vweird.f32 %v1920
  %vm2054 = vweird.f32 %v2048
  %vm2055 = vmor %vm2053, %vm2054
  %v2056 = vsel %vm2055, %v2048, %v2052
  %v2057 = vand.u32 2147483647, %v1920
  %vm2058 = vcmp.eq.f32.partialorder %v2057, 8.507059e+37
  %v2059 = vand.u32 %v1920, 2147483648
  %v2060 = vor.u32 1.1754944e-38, %v2059
  %v2061 = vsel %vm2058, %v2060, %v2056
  %v2062 = vmul.f32 %v1856, %v2061
  %v2063 = vrcp.pop %v1922
  %v2064 = vmul.f32 %v1922, %v2063
  %v2065 = vsub.f32 1.0, %v2064
  %v2066 = vmul.f32 %v2063, %v2065
  %v2067 = vadd.f32 %v2063, %v2066
  %vm2068 = vweird.f32 %v1922
  %vm2069 = vweird.f32 %v2063
  %vm2070 = vmor %vm2068, %vm2069
  %v2071 = vsel %vm2070, %v2063, %v2067
  %v2072 = vand.u32 2147483647, %v1922
  %vm2073 = vcmp.eq.f32.partialorder %v2072, 8.507059e+37
  %v2074 = vand.u32 %v1922, 2147483648
  %v2075 = vor.u32 1.1754944e-38, %v2074
  %v2076 = vsel %vm2073, %v2075, %v2071
  %v2077 = vmul.f32 %v1858, %v2076
  %v2078 = vrcp.pop %v1924
  %v2079 = vmul.f32 %v1924, %v2078
  %v2080 = vsub.f32 1.0, %v2079
  %v2081 = vmul.f32 %v2078, %v2080
  %v2082 = vadd.f32 %v2078, %v2081
  %vm2083 = vweird.f32 %v1924
  %vm2084 = vweird.f32 %v2078
  %vm2085 = vmor %vm2083, %vm2084
  %v2086 = vsel %vm2085, %v2078, %v2082
  %v2087 = vand.u32 2147483647, %v1924
  %vm2088 = vcmp.eq.f32.partialorder %v2087, 8.507059e+37
  %v2089 = vand.u32 %v1924, 2147483648
  %v2090 = vor.u32 1.1754944e-38, %v2089
  %v2091 = vsel %vm2088, %v2090, %v2086
  %v2092 = vmul.f32 %v1860, %v2091
  %v2093 = vrcp.pop %v1926
  %v2094 = vmul.f32 %v1926, %v2093
  %v2095 = vsub.f32 1.0, %v2094
  %v2096 = vmul.f32 %v2093, %v2095
  %v2097 = vadd.f32 %v2093, %v2096
  %vm2098 = vweird.f32 %v1926
  %vm2099 = vweird.f32 %v2093
  %vm2100 = vmor %vm2098, %vm2099
  %v2101 = vsel %vm2100, %v2093, %v2097
  %v2102 = vand.u32 2147483647, %v1926
  %vm2103 = vcmp.eq.f32.partialorder %v2102, 8.507059e+37
  %v2104 = vand.u32 %v1926, 2147483648
  %v2105 = vor.u32 1.1754944e-38, %v2104
  %v2106 = vsel %vm2103, %v2105, %v2101
  %v2107 = vmul.f32 %v1862, %v2106
  %v2108 = vrcp.pop %v1928
  %v2109 = vmul.f32 %v1928, %v2108
  %v2110 = vsub.f32 1.0, %v2109
  %v2111 = vmul.f32 %v2108, %v2110
  %v2112 = vadd.f32 %v2108, %v2111
  %vm2113 = vweird.f32 %v1928
  %vm2114 = vweird.f32 %v2108
  %vm2115 = vmor %vm2113, %vm2114
  %v2116 = vsel %vm2115, %v2108, %v2112
  %v2117 = vand.u32 2147483647, %v1928
  %vm2118 = vcmp.eq.f32.partialorder %v2117, 8.507059e+37
  %v2119 = vand.u32 %v1928, 2147483648
  %v2120 = vor.u32 1.1754944e-38, %v2119
  %v2121 = vsel %vm2118, %v2120, %v2116
  %v2122 = vmul.f32 %v1864, %v2121
  %v2123 = vrcp.pop %v1930
  %v2124 = vmul.f32 %v1930, %v2123
  %v2125 = vsub.f32 1.0, %v2124
  %v2126 = vmul.f32 %v2123, %v2125
  %v2127 = vadd.f32 %v2123, %v2126
  %vm2128 = vweird.f32 %v1930
  %vm2129 = vweird.f32 %v2123
  %vm2130 = vmor %vm2128, %vm2129
  %v2131 = vsel %vm2130, %v2123, %v2127
  %v2132 = vand.u32 2147483647, %v1930
  %vm2133 = vcmp.eq.f32.partialorder %v2132, 8.507059e+37
  %v2134 = vand.u32 %v1930, 2147483648
  %v2135 = vor.u32 1.1754944e-38, %v2134
  %v2136 = vsel %vm2133, %v2135, %v2131
  %v2137 = vmul.f32 %v1866, %v2136
  %v2138 = vrcp.pop %v1932
  %v2139 = vmul.f32 %v1932, %v2138
  %v2140 = vsub.f32 1.0, %v2139
  %v2141 = vmul.f32 %v2138, %v2140
  %v2142 = vadd.f32 %v2138, %v2141
  %vm2143 = vweird.f32 %v1932
  %vm2144 = vweird.f32 %v2138
  %vm2145 = vmor %vm2143, %vm2144
  %v2146 = vsel %vm2145, %v2138, %v2142
  %v2147 = vand.u32 2147483647, %v1932
  %vm2148 = vcmp.eq.f32.partialorder %v2147, 8.507059e+37
  %v2149 = vand.u32 %v1932, 2147483648
  %v2150 = vor.u32 1.1754944e-38, %v2149
  %v2151 = vsel %vm2148, %v2150, %v2146
  %v2152 = vmul.f32 %v1868, %v2151
  %v2153 = vrcp.pop %v1934
  %v2154 = vmul.f32 %v1934, %v2153
  %v2155 = vsub.f32 1.0, %v2154
  %v2156 = vmul.f32 %v2153, %v2155
  %v2157 = vadd.f32 %v2153, %v2156
  %vm2158 = vweird.f32 %v1934
  %vm2159 = vweird.f32 %v2153
  %vm2160 = vmor %vm2158, %vm2159
  %v2161 = vsel %vm2160, %v2153, %v2157
  %v2162 = vand.u32 2147483647, %v1934
  %vm2163 = vcmp.eq.f32.partialorder %v2162, 8.507059e+37
  %v2164 = vand.u32 %v1934, 2147483648
  %v2165 = vor.u32 1.1754944e-38, %v2164
  %v2166 = vsel %vm2163, %v2165, %v2161
  %v2167 = vmul.f32 %v1870, %v2166
  %v2168 = vrcp.pop %v1936
  %v2169 = vmul.f32 %v1936, %v2168
  %v2170 = vsub.f32 1.0, %v2169
  %v2171 = vmul.f32 %v2168, %v2170
  %v2172 = vadd.f32 %v2168, %v2171
  %vm2173 = vweird.f32 %v1936
  %vm2174 = vweird.f32 %v2168
  %vm2175 = vmor %vm2173, %vm2174
  %v2176 = vsel %vm2175, %v2168, %v2172
  %v2177 = vand.u32 2147483647, %v1936
  %vm2178 = vcmp.eq.f32.partialorder %v2177, 8.507059e+37
  %v2179 = vand.u32 %v1936, 2147483648
  %v2180 = vor.u32 1.1754944e-38, %v2179
  %v2181 = vsel %vm2178, %v2180, %v2176
  %v2182 = vmul.f32 %v1872, %v2181
  %v2183 = vrcp.pop %v1938
  %v2184 = vmul.f32 %v1938, %v2183
  %v2185 = vsub.f32 1.0, %v2184
  %v2186 = vmul.f32 %v2183, %v2185
  %v2187 = vadd.f32 %v2183, %v2186
  %vm2188 = vweird.f32 %v1938
  %vm2189 = vweird.f32 %v2183
  %vm2190 = vmor %vm2188, %vm2189
  %v2191 = vsel %vm2190, %v2183, %v2187
  %v2192 = vand.u32 2147483647, %v1938
  %vm2193 = vcmp.eq.f32.partialorder %v2192, 8.507059e+37
  %v2194 = vand.u32 %v1938, 2147483648
  %v2195 = vor.u32 1.1754944e-38, %v2194
  %v2196 = vsel %vm2193, %v2195, %v2191
  %v2197 = vmul.f32 %v1874, %v2196
  %v2198 = vrcp.pop %v1940
  %v2199 = vmul.f32 %v1940, %v2198
  %v2200 = vsub.f32 1.0, %v2199
  %v2201 = vmul.f32 %v2198, %v2200
  %v2202 = vadd.f32 %v2198, %v2201
  %vm2203 = vweird.f32 %v1940
  %vm2204 = vweird.f32 %v2198
  %vm2205 = vmor %vm2203, %vm2204
  %v2206 = vsel %vm2205, %v2198, %v2202
  %v2207 = vand.u32 2147483647, %v1940
  %vm2208 = vcmp.eq.f32.partialorder %v2207, 8.507059e+37
  %v2209 = vand.u32 %v1940, 2147483648
  %v2210 = vor.u32 1.1754944e-38, %v2209
  %v2211 = vsel %vm2208, %v2210, %v2206
  %v2212 = vmul.f32 %v1876, %v2211
  %v2213 = vrcp.pop %v1942
  %v2214 = vmul.f32 %v1942, %v2213
  %v2215 = vsub.f32 1.0, %v2214
  %v2216 = vmul.f32 %v2213, %v2215
  %v2217 = vadd.f32 %v2213, %v2216
  %vm2218 = vweird.f32 %v1942
  %vm2219 = vweird.f32 %v2213
  %vm2220 = vmor %vm2218, %vm2219
  %v2221 = vsel %vm2220, %v2213, %v2217
  %v2222 = vand.u32 2147483647, %v1942
  %vm2223 = vcmp.eq.f32.partialorder %v2222, 8.507059e+37
  %v2224 = vand.u32 %v1942, 2147483648
  %v2225 = vor.u32 1.1754944e-38, %v2224
  %v2226 = vsel %vm2223, %v2225, %v2221
  %v2227 = vmul.f32 %v1878, %v2226
  %v2228 = vrcp.pop %v1944
  %v2229 = vmul.f32 %v1944, %v2228
  %v2230 = vsub.f32 1.0, %v2229
  %v2231 = vmul.f32 %v2228, %v2230
  %v2232 = vadd.f32 %v2228, %v2231
  %vm2233 = vweird.f32 %v1944
  %vm2234 = vweird.f32 %v2228
  %vm2235 = vmor %vm2233, %vm2234
  %v2236 = vsel %vm2235, %v2228, %v2232
  %v2237 = vand.u32 2147483647, %v1944
  %vm2238 = vcmp.eq.f32.partialorder %v2237, 8.507059e+37
  %v2239 = vand.u32 %v1944, 2147483648
  %v2240 = vor.u32 1.1754944e-38, %v2239
  %v2241 = vsel %vm2238, %v2240, %v2236
  %v2242 = vmul.f32 %v1880, %v2241
  %v2243 = vrcp.pop %v1946
  %v2244 = vmul.f32 %v1946, %v2243
  %v2245 = vsub.f32 1.0, %v2244
  %v2246 = vmul.f32 %v2243, %v2245
  %v2247 = vadd.f32 %v2243, %v2246
  %vm2248 = vweird.f32 %v1946
  %vm2249 = vweird.f32 %v2243
  %vm2250 = vmor %vm2248, %vm2249
  %v2251 = vsel %vm2250, %v2243, %v2247
  %v2252 = vand.u32 2147483647, %v1946
  %vm2253 = vcmp.eq.f32.partialorder %v2252, 8.507059e+37
  %v2254 = vand.u32 %v1946, 2147483648
  %v2255 = vor.u32 1.1754944e-38, %v2254
  %v2256 = vsel %vm2253, %v2255, %v2251
  %v2257 = vmul.f32 %v1882, %v2256
  %v2258 = vrcp.pop %v1948
  %v2259 = vmul.f32 %v1948, %v2258
  %v2260 = vsub.f32 1.0, %v2259
  %v2261 = vmul.f32 %v2258, %v2260
  %v2262 = vadd.f32 %v2258, %v2261
  %vm2263 = vweird.f32 %v1948
  %vm2264 = vweird.f32 %v2258
  %vm2265 = vmor %vm2263, %vm2264
  %v2266 = vsel %vm2265, %v2258, %v2262
  %v2267 = vand.u32 2147483647, %v1948
  %vm2268 = vcmp.eq.f32.partialorder %v2267, 8.507059e+37
  %v2269 = vand.u32 %v1948, 2147483648
  %v2270 = vor.u32 1.1754944e-38, %v2269
  %v2271 = vsel %vm2268, %v2270, %v2266
  %v2272 = vmul.f32 %v1884, %v2271
  %v2273 = vrcp.pop %v1950
  %v2274 = vmul.f32 %v1950, %v2273
  %v2275 = vsub.f32 1.0, %v2274
  %v2276 = vmul.f32 %v2273, %v2275
  %v2277 = vadd.f32 %v2273, %v2276
  %vm2278 = vweird.f32 %v1950
  %vm2279 = vweird.f32 %v2273
  %vm2280 = vmor %vm2278, %vm2279
  %v2281 = vsel %vm2280, %v2273, %v2277
  %v2282 = vand.u32 2147483647, %v1950
  %vm2283 = vcmp.eq.f32.partialorder %v2282, 8.507059e+37
  %v2284 = vand.u32 %v1950, 2147483648
  %v2285 = vor.u32 1.1754944e-38, %v2284
  %v2286 = vsel %vm2283, %v2285, %v2281
  %v2287 = vmul.f32 %v1886, %v2286
  %v2288 = vrcp.pop %v1952
  %v2289 = vmul.f32 %v1952, %v2288
  %v2290 = vsub.f32 1.0, %v2289
  %v2291 = vmul.f32 %v2288, %v2290
  %v2292 = vadd.f32 %v2288, %v2291
  %vm2293 = vweird.f32 %v1952
  %vm2294 = vweird.f32 %v2288
  %vm2295 = vmor %vm2293, %vm2294
  %v2296 = vsel %vm2295, %v2288, %v2292
  %v2297 = vand.u32 2147483647, %v1952
  %vm2298 = vcmp.eq.f32.partialorder %v2297, 8.507059e+37
  %v2299 = vand.u32 %v1952, 2147483648
  %v2300 = vor.u32 1.1754944e-38, %v2299
  %v2301 = vsel %vm2298, %v2300, %v2296
  %v2302 = vmul.f32 %v1888, %v2301
  %v2303 = vrcp.pop %v1954
  %v2304 = vmul.f32 %v1954, %v2303
  %v2305 = vsub.f32 1.0, %v2304
  %v2306 = vmul.f32 %v2303, %v2305
  %v2307 = vadd.f32 %v2303, %v2306
  %vm2308 = vweird.f32 %v1954
  %vm2309 = vweird.f32 %v2303
  %vm2310 = vmor %vm2308, %vm2309
  %v2311 = vsel %vm2310, %v2303, %v2307
  %v2312 = vand.u32 2147483647, %v1954
  %vm2313 = vcmp.eq.f32.partialorder %v2312, 8.507059e+37
  %v2314 = vand.u32 %v1954, 2147483648
  %v2315 = vor.u32 1.1754944e-38, %v2314
  %v2316 = vsel %vm2313, %v2315, %v2311
  %v2317 = vmul.f32 %v1890, %v2316
  %v2318 = vrcp.pop %v1956
  %v2319 = vmul.f32 %v1956, %v2318
  %v2320 = vsub.f32 1.0, %v2319
  %v2321 = vmul.f32 %v2318, %v2320
  %v2322 = vadd.f32 %v2318, %v2321
  %vm2323 = vweird.f32 %v1956
  %vm2324 = vweird.f32 %v2318
  %vm2325 = vmor %vm2323, %vm2324
  %v2326 = vsel %vm2325, %v2318, %v2322
  %v2327 = vand.u32 2147483647, %v1956
  %vm2328 = vcmp.eq.f32.partialorder %v2327, 8.507059e+37
  %v2329 = vand.u32 %v1956, 2147483648
  %v2330 = vor.u32 1.1754944e-38, %v2329
  %v2331 = vsel %vm2328, %v2330, %v2326
  %v2332 = vmul.f32 %v1892, %v2331
  %v2333 = vrcp.pop %v1958
  %v2334 = vmul.f32 %v1958, %v2333
  %v2335 = vsub.f32 1.0, %v2334
  %v2336 = vmul.f32 %v2333, %v2335
  %v2337 = vadd.f32 %v2333, %v2336
  %vm2338 = vweird.f32 %v1958
  %vm2339 = vweird.f32 %v2333
  %vm2340 = vmor %vm2338, %vm2339
  %v2341 = vsel %vm2340, %v2333, %v2337
  %v2342 = vand.u32 2147483647, %v1958
  %vm2343 = vcmp.eq.f32.partialorder %v2342, 8.507059e+37
  %v2344 = vand.u32 %v1958, 2147483648
  %v2345 = vor.u32 1.1754944e-38, %v2344
  %v2346 = vsel %vm2343, %v2345, %v2341
  %v2347 = vmul.f32 %v1894, %v2346
  %v2348 = vrcp.pop %v1960
  %v2349 = vmul.f32 %v1960, %v2348
  %v2350 = vsub.f32 1.0, %v2349
  %v2351 = vmul.f32 %v2348, %v2350
  %v2352 = vadd.f32 %v2348, %v2351
  %vm2353 = vweird.f32 %v1960
  %vm2354 = vweird.f32 %v2348
  %vm2355 = vmor %vm2353, %vm2354
  %v2356 = vsel %vm2355, %v2348, %v2352
  %v2357 = vand.u32 2147483647, %v1960
  %vm2358 = vcmp.eq.f32.partialorder %v2357, 8.507059e+37
  %v2359 = vand.u32 %v1960, 2147483648
  %v2360 = vor.u32 1.1754944e-38, %v2359
  %v2361 = vsel %vm2358, %v2360, %v2356
  %v2362 = vmul.f32 %v1896, %v2361
  %v2363 = vrcp.pop %v1962
  %v2364 = vmul.f32 %v1962, %v2363
  %v2365 = vsub.f32 1.0, %v2364
  %v2366 = vmul.f32 %v2363, %v2365
  %v2367 = vadd.f32 %v2363, %v2366
  %vm2368 = vweird.f32 %v1962
  %vm2369 = vweird.f32 %v2363
  %vm2370 = vmor %vm2368, %vm2369
  %v2371 = vsel %vm2370, %v2363, %v2367
  %v2372 = vand.u32 2147483647, %v1962
  %vm2373 = vcmp.eq.f32.partialorder %v2372, 8.507059e+37
  %v2374 = vand.u32 %v1962, 2147483648
  %v2375 = vor.u32 1.1754944e-38, %v2374
  %v2376 = vsel %vm2373, %v2375, %v2371
  %v2377 = vmul.f32 %v1898, %v2376
  %v2378 = vrcp.pop %v1964
  %v2379 = vmul.f32 %v1964, %v2378
  %v2380 = vsub.f32 1.0, %v2379
  %v2381 = vmul.f32 %v2378, %v2380
  %v2382 = vadd.f32 %v2378, %v2381
  %vm2383 = vweird.f32 %v1964
  %vm2384 = vweird.f32 %v2378
  %vm2385 = vmor %vm2383, %vm2384
  %v2386 = vsel %vm2385, %v2378, %v2382
  %v2387 = vand.u32 2147483647, %v1964
  %vm2388 = vcmp.eq.f32.partialorder %v2387, 8.507059e+37
  %v2389 = vand.u32 %v1964, 2147483648
  %v2390 = vor.u32 1.1754944e-38, %v2389
  %v2391 = vsel %vm2388, %v2390, %v2386
  %v2392 = vmul.f32 %v1900, %v2391
  %v2393 = vrcp.pop %v1966
  %v2394 = vmul.f32 %v1966, %v2393
  %v2395 = vsub.f32 1.0, %v2394
  %v2396 = vmul.f32 %v2393, %v2395
  %v2397 = vadd.f32 %v2393, %v2396
  %vm2398 = vweird.f32 %v1966
  %vm2399 = vweird.f32 %v2393
  %vm2400 = vmor %vm2398, %vm2399
  %v2401 = vsel %vm2400, %v2393, %v2397
  %v2402 = vand.u32 2147483647, %v1966
  %vm2403 = vcmp.eq.f32.partialorder %v2402, 8.507059e+37
  %v2404 = vand.u32 %v1966, 2147483648
  %v2405 = vor.u32 1.1754944e-38, %v2404
  %v2406 = vsel %vm2403, %v2405, %v2401
  %v2407 = vmul.f32 %v1902, %v2406
  %v2408 = vrcp.pop %v1968
  %v2409 = vmul.f32 %v1968, %v2408
  %v2410 = vsub.f32 1.0, %v2409
  %v2411 = vmul.f32 %v2408, %v2410
  %v2412 = vadd.f32 %v2408, %v2411
  %vm2413 = vweird.f32 %v1968
  %vm2414 = vweird.f32 %v2408
  %vm2415 = vmor %vm2413, %vm2414
  %v2416 = vsel %vm2415, %v2408, %v2412
  %v2417 = vand.u32 2147483647, %v1968
  %vm2418 = vcmp.eq.f32.partialorder %v2417, 8.507059e+37
  %v2419 = vand.u32 %v1968, 2147483648
  %v2420 = vor.u32 1.1754944e-38, %v2419
  %v2421 = vsel %vm2418, %v2420, %v2416
  %v2422 = vmul.f32 %v1904, %v2421
  %v2423 = vrcp.pop %v1970
  %v2424 = vmul.f32 %v1970, %v2423
  %v2425 = vsub.f32 1.0, %v2424
  %v2426 = vmul.f32 %v2423, %v2425
  %v2427 = vadd.f32 %v2423, %v2426
  %vm2428 = vweird.f32 %v1970
  %vm2429 = vweird.f32 %v2423
  %vm2430 = vmor %vm2428, %vm2429
  %v2431 = vsel %vm2430, %v2423, %v2427
  %v2432 = vand.u32 2147483647, %v1970
  %vm2433 = vcmp.eq.f32.partialorder %v2432, 8.507059e+37
  %v2434 = vand.u32 %v1970, 2147483648
  %v2435 = vor.u32 1.1754944e-38, %v2434
  %v2436 = vsel %vm2433, %v2435, %v2431
  %v2437 = vmul.f32 %v1906, %v2436
  %v2438 = vrcp.pop %v1972
  %v2439 = vmul.f32 %v1972, %v2438
  %v2440 = vsub.f32 1.0, %v2439
  %v2441 = vmul.f32 %v2438, %v2440
  %v2442 = vadd.f32 %v2438, %v2441
  %vm2443 = vweird.f32 %v1972
  %vm2444 = vweird.f32 %v2438
  %vm2445 = vmor %vm2443, %vm2444
  %v2446 = vsel %vm2445, %v2438, %v2442
  %v2447 = vand.u32 2147483647, %v1972
  %vm2448 = vcmp.eq.f32.partialorder %v2447, 8.507059e+37
  %v2449 = vand.u32 %v1972, 2147483648
  %v2450 = vor.u32 1.1754944e-38, %v2449
  %v2451 = vsel %vm2448, %v2450, %v2446
  %v2452 = vmul.f32 %v1908, %v2451
  %2453 = vst [vmem:[%s5] sm:$0xff] %v1987
  %2454 = vst [vmem:[%s5 + $0x8] sm:$0xff] %v2002
  %2455 = vst [vmem:[%s5 + $0x10] sm:$0xff] %v2017
  %2456 = vst [vmem:[%s5 + $0x18] sm:$0xff] %v2032
  %2457 = vst [vmem:[%s5 + $0x20] sm:$0xff] %v2047
  %2458 = vst [vmem:[%s5 + $0x28] sm:$0xff] %v2062
  %2459 = vst [vmem:[%s5 + $0x30] sm:$0xff] %v2077
  %2460 = vst [vmem:[%s5 + $0x38] sm:$0xff] %v2092
  %2461 = vst [vmem:[%s5 + $0x40] sm:$0xff] %v2107
  %2462 = vst [vmem:[%s5 + $0x48] sm:$0xff] %v2122
  %2463 = vst [vmem:[%s5 + $0x50] sm:$0xff] %v2137
  %2464 = vst [vmem:[%s5 + $0x58] sm:$0xff] %v2152
  %2465 = vst [vmem:[%s5 + $0x60] sm:$0xff] %v2167
  %2466 = vst [vmem:[%s5 + $0x68] sm:$0xff] %v2182
  %2467 = vst [vmem:[%s5 + $0x70] sm:$0xff] %v2197
  %2468 = vst [vmem:[%s5 + $0x78] sm:$0xff] %v2212
  %2469 = vst [vmem:[%s5 + $0x80] sm:$0xff] %v2227
  %2470 = vst [vmem:[%s5 + $0x88] sm:$0xff] %v2242
  %2471 = vst [vmem:[%s5 + $0x90] sm:$0xff] %v2257
  %2472 = vst [vmem:[%s5 + $0x98] sm:$0xff] %v2272
  %2473 = vst [vmem:[%s5 + $0xa0] sm:$0xff] %v2287
  %2474 = vst [vmem:[%s5 + $0xa8] sm:$0xff] %v2302
  %2475 = vst [vmem:[%s5 + $0xb0] sm:$0xff] %v2317
  %2476 = vst [vmem:[%s5 + $0xb8] sm:$0xff] %v2332
  %2477 = vst [vmem:[%s5 + $0xc0] sm:$0xff] %v2347
  %2478 = vst [vmem:[%s5 + $0xc8] sm:$0xff] %v2362
  %2479 = vst [vmem:[%s5 + $0xd0] sm:$0xff] %v2377
  %2480 = vst [vmem:[%s5 + $0xd8] sm:$0xff] %v2392
  %2481 = vst [vmem:[%s5 + $0xe0] sm:$0xff] %v2407
  %2482 = vst [vmem:[%s5 + $0xe8] sm:$0xff] %v2422
  %2483 = vst [vmem:[%s5 + $0xf0] sm:$0xff] %v2437
  %2484 = vst [vmem:[%s5 + $0xf8] sm:$0xff] %v2452
  // Predicated region
  $region22: #{block_forward.6} parent=0 // pred_check
    _
  $region23: #{block_forward.6} parent=0 // pred_check_branch
    %2486 = sbr.rel (0) target = $region25
  $region24: #{block_forward.6} parent=0 // pred_region
    _
  $region25: #{block_forward.6} parent=0 // pred_fallthru
    _
  // Predicated region
  $region26: #{block_forward.6} parent=0 // pred_check
    _
  $region27: #{block_forward.6} parent=0 // pred_check_branch
    %2488 = sbr.rel (0) target = $region29
  $region28: #{block_forward.6} parent=0 // pred_region
    _
  $region29: #{block_forward.6} parent=0 // pred_fallthru
    _

// kernel: block_forward.7
$region0: #{block_forward.7}
  #allocation0 [shape = 'u32[]', space=smem, size = 0x4, offset = 0x4, fixed_abs, tag = 'smem constant byte address 0x4 - core index']
  #allocation1 [shape = 'u32[72,128]{1,0:T(1,128)}', space=vmem, size = 0x9000, scoped, tag = 'internal scratch']
  #allocation2 [shape = 'bf16[256,32]{1,0:T(8,128)(2,1)}', space=vmem, size = 0x10000, scoped, tag = 'scratch operand']
  #allocation3 [shape = 'f32[256,32]{1,0:T(8,128)}', space=vmem, size = 0x20000, scoped, tag = 'scratch operand']
  #allocation4 [shape = 's32[1]{0}', space=sflag, size = 0x4, scoped, tag = 'scoped memory for block_forward.7']
  #allocation5 [shape = 'u8[512]{0}', space=smem, size = 0x200, scoped, tag = 'prefetched SMEM operand 0']
  %s0 = inlined_call_operand.vmem [shape: s32[1,4], index: 0, kind: input, shape index: {}]
  %s1 = inlined_call_operand.vmem [shape: f32[256,32], index: 1, kind: input, shape index: {}]
  %s2 = inlined_call_operand.vmem [shape: f32[256,128], index: 2, kind: input, shape index: {}]
  %s3 = inlined_call_operand.vmem [shape: bf16[4,32,128], index: 3, kind: input, shape index: {}]
  %s4 = inlined_call_operand.vmem [shape: f32[4,1,128], index: 4, kind: input, shape index: {}]
  %s5 = inlined_call_operand.vmem [shape: bf16[4,128,32], index: 5, kind: input, shape index: {}]
  %s6 = inlined_call_operand.vmem [shape: f32[4,1,32], index: 6, kind: input, shape index: {}]
  %s7 = inlined_call_operand.vmem [shape: f32[256,32], index: 7, kind: output, shape index: {}]
  %s8 = sld [smem:[#allocation0]]
  $region69: #{block_forward.7} parent=0
    _
  %s10 = ssub.s32 1, %s8
  %s11 = scalar_select 0, %s10, %s8
  %s13 = sshll.u32 %s0, 4
  %s14 = int_to_ptr.vmem [resolvable:$true] %s13
  %16 = dma.vmem_to_smem %s14, 16, [#allocation5], [#allocation4]
  %18 = dma.done [#allocation4], 16
  %19 = sfence
  loop: start=0, step=1, limit=6
  $region2: #{block_forward.7} parent=0 // loop_pre_header
    _
  $region3: #{block_forward.7} parent=0 // loop_header
    %s21 = sphi 0, %s25
    %p22 = scmp.ge.s32.totalorder %s21, 6
    %s28 = sphi 0, %s40
    %s29 = sphi 0, %s36
    %s30 = sphi 0, %s28
    %s31 = sphi 0, %s29
    %s32 = sphi 0, %s30
    %s33 = sphi 0, %s31
    %s43 = sphi 0, %s45
    %s46 = sphi 0, %s43
    %s47 = sphi 0, %s46
    %s63 = sphi 0, %s47
    %s69 = sphi 0, %s71
    %s72 = sphi 0, %s69
    %s73 = sphi 0, %s72
    %s89 = sphi 0, %s73
    %s111 = sphi 0, %s113
    %s114 = sphi 0, %s111
    %s115 = sphi 0, %s114
    %s131 = sphi 0, %s115
    %s153 = sphi 0, %s155
    %s156 = sphi 0, %s153
    %s157 = sphi 0, %s156
    %s173 = sphi 0, %s157
    %s195 = sphi 0, %s197
    %s198 = sphi 0, %s195
    %s199 = sphi 0, %s198
    %s215 = sphi 0, %s199
    %s237 = sphi 0, %s239
    %s240 = sphi 0, %s237
    %s241 = sphi 0, %s240
    %s257 = sphi 0, %s241
    %s263 = sphi 0, %s265
    %s266 = sphi 0, %s263
    %s267 = sphi 0, %s266
    %s283 = sphi 0, %s267
  $region4: #{block_forward.7} parent=0 // loop_header_branch
    %24 = sbr.rel (%p22) target = $region8
  $region5: #{block_forward.7} parent=0 // loop_body
    %s26 = ssub.s32 %s21, 1
    %s27 = ssub.s32 %s21, 2
    %s34 = sadd.s32 1, %s29
    %p35 = scmp.ge.s32.totalorder %s34, 4
    %s36 = scalar_select %p35, 0, %s34
    %s37 = sadd.s32 1, %s28
    %s38 = scalar_select %p35, %s37, %s28
    %p39 = scmp.ge.s32.totalorder %s38, 1
    %s40 = scalar_select %p39, 0, %s38
    %s41 = ssub.s32 %s28, %s40
    %p42 = scmp.eq.s32.totalorder %s41, 0
    %s44 = sadd.s32 %s43, 1
    %s45 = scalar_select %p42, %s43, %s44
    %p48 = pneg %p42
    %p49 = scmp.eq.s32.totalorder %s21, 3
    %p50 = por %p48, %p49
    %p51 = scmp.ne.s32.totalorder %s43, %s46
    %p52 = scmp.eq.s32.totalorder %s21, 0
    %p53 = por %p51, %p52
    %p54 = scmp.ne.s32.totalorder %s43, %s46
    %p55 = scmp.eq.s32.totalorder %s26, 3
    %p56 = por %p54, %p55
    %p57 = scmp.ne.s32.totalorder %s46, %s47
    %p58 = scmp.eq.s32.totalorder %s26, 0
    %p59 = por %p57, %p58
    %p60 = scmp.ne.s32.totalorder %s46, %s47
    %p61 = scmp.eq.s32.totalorder %s27, 3
    %p62 = por %p60, %p61
    %p64 = scmp.ne.s32.totalorder %s47, %s63
    %p65 = scmp.eq.s32.totalorder %s27, 0
    %p66 = por %p64, %p65
    %s67 = ssub.s32 %s28, %s40
    %p68 = scmp.eq.s32.totalorder %s67, 0
    %s70 = sadd.s32 %s69, 1
    %s71 = scalar_select %p68, %s69, %s70
    %p74 = pneg %p68
    %p75 = scmp.eq.s32.totalorder %s21, 3
    %p76 = por %p74, %p75
    %p77 = scmp.ne.s32.totalorder %s69, %s72
    %p78 = scmp.eq.s32.totalorder %s21, 0
    %p79 = por %p77, %p78
    %p80 = scmp.ne.s32.totalorder %s69, %s72
    %p81 = scmp.eq.s32.totalorder %s26, 3
    %p82 = por %p80, %p81
    %p83 = scmp.ne.s32.totalorder %s72, %s73
    %p84 = scmp.eq.s32.totalorder %s26, 0
    %p85 = por %p83, %p84
    %p86 = scmp.ne.s32.totalorder %s72, %s73
    %p87 = scmp.eq.s32.totalorder %s27, 3
    %p88 = por %p86, %p87
    %p90 = scmp.ne.s32.totalorder %s73, %s89
    %p91 = scmp.eq.s32.totalorder %s27, 0
    %p92 = por %p90, %p91
    %s93 = sshra.s32 %s29, 7
    %s94 = sand.u32 %s29, 127
    %s95 = sadd.s32 %s93, %s28
    %s96 = smul.u32 %s95, 128
    %s97 = sshra.s32 %s29, 7
    %s98 = sand.u32 %s29, 127
    %s99 = sadd.s32 %s96, %s98
    %s100 = sld [smem:[#allocation5 + %s99]]
    %s101 = sshra.s32 %s36, 7
    %s102 = sand.u32 %s36, 127
    %s103 = sadd.s32 %s101, %s40
    %s104 = smul.u32 %s103, 128
    %s105 = sshra.s32 %s36, 7
    %s106 = sand.u32 %s36, 127
    %s107 = sadd.s32 %s104, %s106
    %s108 = sld [smem:[#allocation5 + %s107]]
    %s109 = ssub.s32 %s100, %s108
    %p110 = scmp.eq.s32.totalorder %s109, 0
    %s112 = sadd.s32 %s111, 1
    %s113 = scalar_select %p110, %s111, %s112
    %p116 = pneg %p110
    %p117 = scmp.eq.s32.totalorder %s21, 3
    %p118 = por %p116, %p117
    %p119 = scmp.ne.s32.totalorder %s111, %s114
    %p120 = scmp.eq.s32.totalorder %s21, 0
    %p121 = por %p119, %p120
    %p122 = scmp.ne.s32.totalorder %s111, %s114
    %p123 = scmp.eq.s32.totalorder %s26, 3
    %p124 = por %p122, %p123
    %p125 = scmp.ne.s32.totalorder %s114, %s115
    %p126 = scmp.eq.s32.totalorder %s26, 0
    %p127 = por %p125, %p126
    %p128 = scmp.ne.s32.totalorder %s114, %s115
    %p129 = scmp.eq.s32.totalorder %s27, 3
    %p130 = por %p128, %p129
    %p132 = scmp.ne.s32.totalorder %s115, %s131
    %p133 = scmp.eq.s32.totalorder %s27, 0
    %p134 = por %p132, %p133
    %s135 = sshra.s32 %s29, 7
    %s136 = sand.u32 %s29, 127
    %s137 = sadd.s32 %s135, %s28
    %s138 = smul.u32 %s137, 128
    %s139 = sshra.s32 %s29, 7
    %s140 = sand.u32 %s29, 127
    %s141 = sadd.s32 %s138, %s140
    %s142 = sld [smem:[#allocation5 + %s141]]
    %s143 = sshra.s32 %s36, 7
    %s144 = sand.u32 %s36, 127
    %s145 = sadd.s32 %s143, %s40
    %s146 = smul.u32 %s145, 128
    %s147 = sshra.s32 %s36, 7
    %s148 = sand.u32 %s36, 127
    %s149 = sadd.s32 %s146, %s148
    %s150 = sld [smem:[#allocation5 + %s149]]
    %s151 = ssub.s32 %s142, %s150
    %p152 = scmp.eq.s32.totalorder %s151, 0
    %s154 = sadd.s32 %s153, 1
    %s155 = scalar_select %p152, %s153, %s154
    %p158 = pneg %p152
    %p159 = scmp.eq.s32.totalorder %s21, 3
    %p160 = por %p158, %p159
    %p161 = scmp.ne.s32.totalorder %s153, %s156
    %p162 = scmp.eq.s32.totalorder %s21, 0
    %p163 = por %p161, %p162
    %p164 = scmp.ne.s32.totalorder %s153, %s156
    %p165 = scmp.eq.s32.totalorder %s26, 3
    %p166 = por %p164, %p165
    %p167 = scmp.ne.s32.totalorder %s156, %s157
    %p168 = scmp.eq.s32.totalorder %s26, 0
    %p169 = por %p167, %p168
    %p170 = scmp.ne.s32.totalorder %s156, %s157
    %p171 = scmp.eq.s32.totalorder %s27, 3
    %p172 = por %p170, %p171
    %p174 = scmp.ne.s32.totalorder %s157, %s173
    %p175 = scmp.eq.s32.totalorder %s27, 0
    %p176 = por %p174, %p175
    %s177 = sshra.s32 %s29, 7
    %s178 = sand.u32 %s29, 127
    %s179 = sadd.s32 %s177, %s28
    %s180 = smul.u32 %s179, 128
    %s181 = sshra.s32 %s29, 7
    %s182 = sand.u32 %s29, 127
    %s183 = sadd.s32 %s180, %s182
    %s184 = sld [smem:[#allocation5 + %s183]]
    %s185 = sshra.s32 %s36, 7
    %s186 = sand.u32 %s36, 127
    %s187 = sadd.s32 %s185, %s40
    %s188 = smul.u32 %s187, 128
    %s189 = sshra.s32 %s36, 7
    %s190 = sand.u32 %s36, 127
    %s191 = sadd.s32 %s188, %s190
    %s192 = sld [smem:[#allocation5 + %s191]]
    %s193 = ssub.s32 %s184, %s192
    %p194 = scmp.eq.s32.totalorder %s193, 0
    %s196 = sadd.s32 %s195, 1
    %s197 = scalar_select %p194, %s195, %s196
    %p200 = pneg %p194
    %p201 = scmp.eq.s32.totalorder %s21, 3
    %p202 = por %p200, %p201
    %p203 = scmp.ne.s32.totalorder %s195, %s198
    %p204 = scmp.eq.s32.totalorder %s21, 0
    %p205 = por %p203, %p204
    %p206 = scmp.ne.s32.totalorder %s195, %s198
    %p207 = scmp.eq.s32.totalorder %s26, 3
    %p208 = por %p206, %p207
    %p209 = scmp.ne.s32.totalorder %s198, %s199
    %p210 = scmp.eq.s32.totalorder %s26, 0
    %p211 = por %p209, %p210
    %p212 = scmp.ne.s32.totalorder %s198, %s199
    %p213 = scmp.eq.s32.totalorder %s27, 3
    %p214 = por %p212, %p213
    %p216 = scmp.ne.s32.totalorder %s199, %s215
    %p217 = scmp.eq.s32.totalorder %s27, 0
    %p218 = por %p216, %p217
    %s219 = sshra.s32 %s29, 7
    %s220 = sand.u32 %s29, 127
    %s221 = sadd.s32 %s219, %s28
    %s222 = smul.u32 %s221, 128
    %s223 = sshra.s32 %s29, 7
    %s224 = sand.u32 %s29, 127
    %s225 = sadd.s32 %s222, %s224
    %s226 = sld [smem:[#allocation5 + %s225]]
    %s227 = sshra.s32 %s36, 7
    %s228 = sand.u32 %s36, 127
    %s229 = sadd.s32 %s227, %s40
    %s230 = smul.u32 %s229, 128
    %s231 = sshra.s32 %s36, 7
    %s232 = sand.u32 %s36, 127
    %s233 = sadd.s32 %s230, %s232
    %s234 = sld [smem:[#allocation5 + %s233]]
    %s235 = ssub.s32 %s226, %s234
    %p236 = scmp.eq.s32.totalorder %s235, 0
    %s238 = sadd.s32 %s237, 1
    %s239 = scalar_select %p236, %s237, %s238
    %p242 = pneg %p236
    %p243 = scmp.eq.s32.totalorder %s21, 3
    %p244 = por %p242, %p243
    %p245 = scmp.ne.s32.totalorder %s237, %s240
    %p246 = scmp.eq.s32.totalorder %s21, 0
    %p247 = por %p245, %p246
    %p248 = scmp.ne.s32.totalorder %s237, %s240
    %p249 = scmp.eq.s32.totalorder %s26, 3
    %p250 = por %p248, %p249
    %p251 = scmp.ne.s32.totalorder %s240, %s241
    %p252 = scmp.eq.s32.totalorder %s26, 0
    %p253 = por %p251, %p252
    %p254 = scmp.ne.s32.totalorder %s240, %s241
    %p255 = scmp.eq.s32.totalorder %s27, 3
    %p256 = por %p254, %p255
    %p258 = scmp.ne.s32.totalorder %s241, %s257
    %p259 = scmp.eq.s32.totalorder %s27, 0
    %p260 = por %p258, %p259
    %s261 = ssub.s32 %s28, %s40
    %p262 = scmp.eq.s32.totalorder %s261, 0
    %s264 = sadd.s32 %s263, 1
    %s265 = scalar_select %p262, %s263, %s264
    %p268 = pneg %p262
    %p269 = scmp.eq.s32.totalorder %s21, 3
    %p270 = por %p268, %p269
    %p271 = scmp.ne.s32.totalorder %s263, %s266
    %p272 = scmp.eq.s32.totalorder %s21, 0
    %p273 = por %p271, %p272
    %p274 = scmp.ne.s32.totalorder %s263, %s266
    %p275 = scmp.eq.s32.totalorder %s26, 3
    %p276 = por %p274, %p275
    %p277 = scmp.ne.s32.totalorder %s266, %s267
    %p278 = scmp.eq.s32.totalorder %s26, 0
    %p279 = por %p277, %p278
    %p280 = scmp.ne.s32.totalorder %s266, %s267
    %p281 = scmp.eq.s32.totalorder %s27, 3
    %p282 = por %p280, %p281
    %p284 = scmp.ne.s32.totalorder %s267, %s283
    %p285 = scmp.eq.s32.totalorder %s27, 0
    %p286 = por %p284, %p285
    %p287 = scmp.le.s32.totalorder 1, %s21
    %p288 = scmp.lt.s32.totalorder %s21, 5
    %p289 = pnand %p287, %p288
    %p290 = pneg %p289
    // Predicated region
    $region9: #{block_forward.7} parent=5 // pred_check
      _
    $region10: #{block_forward.7} parent=5 // pred_check_branch
      %292 = sbr.rel (%p289) target = $region12
    $region11: #{block_forward.7} parent=5 // pred_region
      %s293 = ssub.s32 %s21, 1
      // Predicated region
      $region13: #{block_forward.7} parent=11 // pred_check
        %p294 = pneg %p59
      $region14: #{block_forward.7} parent=11 // pred_check_branch
        %296 = sbr.rel (%p294) target = $region16
      $region15: #{block_forward.7} parent=11 // pred_region
        %s297 = smul.u32 32, %s30
        %p298 = scmp.lt.s32.totalorder %s297, 31
        %s299 = scalar_select %p298, %s297, 31
        %s300 = smul.addr %s299, 8
        %s301 = scalar_lea.vmem %s1, %s300
        %s302 = smul.u32 32, %s30
      $region16: #{block_forward.7} parent=11 // pred_fallthru
        _
      // Predicated region
      $region17: #{block_forward.7} parent=11 // pred_check
        %p303 = pneg %p85
      $region18: #{block_forward.7} parent=11 // pred_check_branch
        %305 = sbr.rel (%p303) target = $region20
      $region19: #{block_forward.7} parent=11 // pred_region
        %s306 = smul.u32 32, %s30
        %p307 = scmp.lt.s32.totalorder %s306, 31
        %s308 = scalar_select %p307, %s306, 31
        %s309 = smul.addr %s308, 8
        %s310 = scalar_lea.vmem %s2, %s309
        %s311 = smul.u32 32, %s30
      $region20: #{block_forward.7} parent=11 // pred_fallthru
        _
    $region12: #{block_forward.7} parent=5 // pred_fallthru
      _
    %p312 = scmp.lt.s32.totalorder %s21, 4
    // Predicated region
    $region21: #{block_forward.7} parent=5 // pred_check
      %p313 = pneg %p312
    $region22: #{block_forward.7} parent=5 // pred_check_branch
      %315 = sbr.rel (%p313) target = $region24
    $region23: #{block_forward.7} parent=5 // pred_region
      // Predicated region
      $region25: #{block_forward.7} parent=23 // pred_check
        %p316 = pneg %p121
      $region26: #{block_forward.7} parent=23 // pred_check_branch
        %318 = sbr.rel (%p316) target = $region28
      $region27: #{block_forward.7} parent=23 // pred_region
        %s319 = sshra.s32 %s29, 7
        %s320 = sand.u32 %s29, 127
        %s321 = sadd.s32 %s319, %s28
        %s322 = smul.u32 %s321, 128
        %s323 = sshra.s32 %s29, 7
        %s324 = sand.u32 %s29, 127
        %s325 = sadd.s32 %s322, %s324
        %s326 = sld [smem:[#allocation5 + %s325]]
        %p327 = scmp.lt.s32.totalorder %s326, 3
        %s328 = scalar_select %p327, %s326, 3
        %s329 = smul.addr %s328, 4
        %s330 = smul.addr %s329, 4
        %s331 = scalar_lea.vmem %s3, %s330
        %s332 = sshra.s32 %s29, 7
        %s333 = sand.u32 %s29, 127
        %s334 = sadd.s32 %s332, %s28
        %s335 = smul.u32 %s334, 128
        %s336 = sshra.s32 %s29, 7
        %s337 = sand.u32 %s29, 127
        %s338 = sadd.s32 %s335, %s337
        %s339 = sld [smem:[#allocation5 + %s338]]
      $region28: #{block_forward.7} parent=23 // pred_fallthru
        _
      // Predicated region
      $region29: #{block_forward.7} parent=23 // pred_check
        %p340 = pneg %p163
      $region30: #{block_forward.7} parent=23 // pred_check_branch
        %342 = sbr.rel (%p340) target = $region32
      $region31: #{block_forward.7} parent=23 // pred_region
        %s343 = sshra.s32 %s29, 7
        %s344 = sand.u32 %s29, 127
        %s345 = sadd.s32 %s343, %s28
        %s346 = smul.u32 %s345, 128
        %s347 = sshra.s32 %s29, 7
        %s348 = sand.u32 %s29, 127
        %s349 = sadd.s32 %s346, %s348
        %s350 = sld [smem:[#allocation5 + %s349]]
        %p351 = scmp.lt.s32.totalorder %s350, 3
        %s352 = scalar_select %p351, %s350, 3
        %s353 = scalar_lea.vmem %s4, %s352
        %s354 = sshra.s32 %s29, 7
        %s355 = sand.u32 %s29, 127
        %s356 = sadd.s32 %s354, %s28
        %s357 = smul.u32 %s356, 128
        %s358 = sshra.s32 %s29, 7
        %s359 = sand.u32 %s29, 127
        %s360 = sadd.s32 %s357, %s359
        %s361 = sld [smem:[#allocation5 + %s360]]
      $region32: #{block_forward.7} parent=23 // pred_fallthru
        _
      // Predicated region
      $region33: #{block_forward.7} parent=23 // pred_check
        %p362 = pneg %p205
      $region34: #{block_forward.7} parent=23 // pred_check_branch
        %364 = sbr.rel (%p362) target = $region36
      $region35: #{block_forward.7} parent=23 // pred_region
        %s365 = sshra.s32 %s29, 7
        %s366 = sand.u32 %s29, 127
        %s367 = sadd.s32 %s365, %s28
        %s368 = smul.u32 %s367, 128
        %s369 = sshra.s32 %s29, 7
        %s370 = sand.u32 %s29, 127
        %s371 = sadd.s32 %s368, %s370
        %s372 = sld [smem:[#allocation5 + %s371]]
        %p373 = scmp.lt.s32.totalorder %s372, 3
        %s374 = scalar_select %p373, %s372, 3
        %s375 = smul.addr %s374, 16
        %s376 = smul.addr %s375, 4
        %s377 = scalar_lea.vmem %s5, %s376
        %s378 = sshra.s32 %s29, 7
        %s379 = sand.u32 %s29, 127
        %s380 = sadd.s32 %s378, %s28
        %s381 = smul.u32 %s380, 128
        %s382 = sshra.s32 %s29, 7
        %s383 = sand.u32 %s29, 127
        %s384 = sadd.s32 %s381, %s383
        %s385 = sld [smem:[#allocation5 + %s384]]
      $region36: #{block_forward.7} parent=23 // pred_fallthru
        _
      // Predicated region
      $region37: #{block_forward.7} parent=23 // pred_check
        %p386 = pneg %p247
      $region38: #{block_forward.7} parent=23 // pred_check_branch
        %388 = sbr.rel (%p386) target = $region40
      $region39: #{block_forward.7} parent=23 // pred_region
        %s389 = sshra.s32 %s29, 7
        %s390 = sand.u32 %s29, 127
        %s391 = sadd.s32 %s389, %s28
        %s392 = smul.u32 %s391, 128
        %s393 = sshra.s32 %s29, 7
        %s394 = sand.u32 %s29, 127
        %s395 = sadd.s32 %s392, %s394
        %s396 = sld [smem:[#allocation5 + %s395]]
        %p397 = scmp.lt.s32.totalorder %s396, 3
        %s398 = scalar_select %p397, %s396, 3
        %s399 = scalar_lea.vmem %s6, %s398
        %s400 = sshra.s32 %s29, 7
        %s401 = sand.u32 %s29, 127
        %s402 = sadd.s32 %s400, %s28
        %s403 = smul.u32 %s402, 128
        %s404 = sshra.s32 %s29, 7
        %s405 = sand.u32 %s29, 127
        %s406 = sadd.s32 %s403, %s405
        %s407 = sld [smem:[#allocation5 + %s406]]
      $region40: #{block_forward.7} parent=23 // pred_fallthru
        _
    $region24: #{block_forward.7} parent=5 // pred_fallthru
      _
    %p408 = scmp.le.s32.totalorder 1, %s21
    %p409 = scmp.lt.s32.totalorder %s21, 5
    %p410 = pnand %p408, %p409
    %p411 = pneg %p410
    // Predicated region
    $region41: #{block_forward.7} parent=5 // pred_check
      _
    $region42: #{block_forward.7} parent=5 // pred_check_branch
      %413 = sbr.rel (%p410) target = $region44
    $region43: #{block_forward.7} parent=5 // pred_region
      %s414 = ssub.s32 %s21, 1
      %s415 = smul.u32 32, %s30
      %p416 = scmp.lt.s32.totalorder %s415, 31
      %s417 = scalar_select %p416, %s415, 31
      %s418 = smul.addr %s417, 8
      %s419 = scalar_lea.vmem %s1, %s418
      %p420 = pneg %p59
      %p421 = pneg %p56
      %s422 = smul.u32 32, %s30
      %p423 = scmp.lt.s32.totalorder %s422, 31
      %s424 = scalar_select %p423, %s422, 31
      %s425 = smul.addr %s424, 8
      %s426 = scalar_lea.vmem %s2, %s425
      %p427 = pneg %p85
      %p428 = pneg %p82
      %s429 = sshra.s32 %s31, 7
      %s430 = sand.u32 %s31, 127
      %s431 = sadd.s32 %s429, %s30
      %s432 = smul.u32 %s431, 128
      %s433 = sshra.s32 %s31, 7
      %s434 = sand.u32 %s31, 127
      %s435 = sadd.s32 %s432, %s434
      %s436 = sld [smem:[#allocation5 + %s435]]
      %p437 = scmp.lt.s32.totalorder %s436, 3
      %s438 = scalar_select %p437, %s436, 3
      %s439 = smul.addr %s438, 4
      %s440 = smul.addr %s439, 4
      %s441 = scalar_lea.vmem %s3, %s440
      %p442 = pneg %p127
      %p443 = pneg %p124
      %s444 = sshra.s32 %s31, 7
      %s445 = sand.u32 %s31, 127
      %s446 = sadd.s32 %s444, %s30
      %s447 = smul.u32 %s446, 128
      %s448 = sshra.s32 %s31, 7
      %s449 = sand.u32 %s31, 127
      %s450 = sadd.s32 %s447, %s449
      %s451 = sld [smem:[#allocation5 + %s450]]
      %p452 = scmp.lt.s32.totalorder %s451, 3
      %s453 = scalar_select %p452, %s451, 3
      %s454 = scalar_lea.vmem %s4, %s453
      %p455 = pneg %p169
      %p456 = pneg %p166
      %s457 = sshra.s32 %s31, 7
      %s458 = sand.u32 %s31, 127
      %s459 = sadd.s32 %s457, %s30
      %s460 = smul.u32 %s459, 128
      %s461 = sshra.s32 %s31, 7
      %s462 = sand.u32 %s31, 127
      %s463 = sadd.s32 %s460, %s462
      %s464 = sld [smem:[#allocation5 + %s463]]
      %p465 = scmp.lt.s32.totalorder %s464, 3
      %s466 = scalar_select %p465, %s464, 3
      %s467 = smul.addr %s466, 16
      %s468 = smul.addr %s467, 4
      %s469 = scalar_lea.vmem %s5, %s468
      %p470 = pneg %p211
      %p471 = pneg %p208
      %s472 = sshra.s32 %s31, 7
      %s473 = sand.u32 %s31, 127
      %s474 = sadd.s32 %s472, %s30
      %s475 = smul.u32 %s474, 128
      %s476 = sshra.s32 %s31, 7
      %s477 = sand.u32 %s31, 127
      %s478 = sadd.s32 %s475, %s477
      %s479 = sld [smem:[#allocation5 + %s478]]
      %p480 = scmp.lt.s32.totalorder %s479, 3
      %s481 = scalar_select %p480, %s479, 3
      %s482 = scalar_lea.vmem %s6, %s481
      %p483 = pneg %p253
      %p484 = pneg %p250
      %p485 = pneg %p279
      %p486 = pneg %p276
      %s487 = smul.u32 32, %s30
      %p488 = scmp.lt.s32.totalorder %s487, 31
      %s489 = scalar_select %p488, %s487, 31
      %s490 = smul.addr %s489, 8
      %s491 = scalar_lea.vmem %s7, %s490
      %s492 = smul.u32 32, %s30
      %p493 = scmp.lt.s32.totalorder %s492, 31
      %s494 = scalar_select %p493, %s492, 31
      %s495 = smul.addr %s494, 8
      %s496 = scalar_lea.vmem %s1, %s495
      %s497 = smul.u32 32, %s30
      %s498 = smul.u32 32, %s30
      %p499 = scmp.lt.s32.totalorder %s498, 31
      %s500 = scalar_select %p499, %s498, 31
      %s501 = smul.addr %s500, 8
      %s502 = scalar_lea.vmem %s2, %s501
      %s503 = smul.u32 32, %s30
      %s504 = sshra.s32 %s31, 7
      %s505 = sand.u32 %s31, 127
      %s506 = sadd.s32 %s504, %s30
      %s507 = smul.u32 %s506, 128
      %s508 = sshra.s32 %s31, 7
      %s509 = sand.u32 %s31, 127
      %s510 = sadd.s32 %s507, %s509
      %s511 = sld [smem:[#allocation5 + %s510]]
      %p512 = scmp.lt.s32.totalorder %s511, 3
      %s513 = scalar_select %p512, %s511, 3
      %s514 = smul.addr %s513, 4
      %s515 = smul.addr %s514, 4
      %s516 = scalar_lea.vmem %s3, %s515
      %s517 = sshra.s32 %s31, 7
      %s518 = sand.u32 %s31, 127
      %s519 = sadd.s32 %s517, %s30
      %s520 = smul.u32 %s519, 128
      %s521 = sshra.s32 %s31, 7
      %s522 = sand.u32 %s31, 127
      %s523 = sadd.s32 %s520, %s522
      %s524 = sld [smem:[#allocation5 + %s523]]
      %s525 = sshra.s32 %s31, 7
      %s526 = sand.u32 %s31, 127
      %s527 = sadd.s32 %s525, %s30
      %s528 = smul.u32 %s527, 128
      %s529 = sshra.s32 %s31, 7
      %s530 = sand.u32 %s31, 127
      %s531 = sadd.s32 %s528, %s530
      %s532 = sld [smem:[#allocation5 + %s531]]
      %p533 = scmp.lt.s32.totalorder %s532, 3
      %s534 = scalar_select %p533, %s532, 3
      %s535 = scalar_lea.vmem %s4, %s534
      %s536 = sshra.s32 %s31, 7
      %s537 = sand.u32 %s31, 127
      %s538 = sadd.s32 %s536, %s30
      %s539 = smul.u32 %s538, 128
      %s540 = sshra.s32 %s31, 7
      %s541 = sand.u32 %s31, 127
      %s542 = sadd.s32 %s539, %s541
      %s543 = sld [smem:[#allocation5 + %s542]]
      %s544 = sshra.s32 %s31, 7
      %s545 = sand.u32 %s31, 127
      %s546 = sadd.s32 %s544, %s30
      %s547 = smul.u32 %s546, 128
      %s548 = sshra.s32 %s31, 7
      %s549 = sand.u32 %s31, 127
      %s550 = sadd.s32 %s547, %s549
      %s551 = sld [smem:[#allocation5 + %s550]]
      %p552 = scmp.lt.s32.totalorder %s551, 3
      %s553 = scalar_select %p552, %s551, 3
      %s554 = smul.addr %s553, 16
      %s555 = smul.addr %s554, 4
      %s556 = scalar_lea.vmem %s5, %s555
      %s557 = sshra.s32 %s31, 7
      %s558 = sand.u32 %s31, 127
      %s559 = sadd.s32 %s557, %s30
      %s560 = smul.u32 %s559, 128
      %s561 = sshra.s32 %s31, 7
      %s562 = sand.u32 %s31, 127
      %s563 = sadd.s32 %s560, %s562
      %s564 = sld [smem:[#allocation5 + %s563]]
      %s565 = sshra.s32 %s31, 7
      %s566 = sand.u32 %s31, 127
      %s567 = sadd.s32 %s565, %s30
      %s568 = smul.u32 %s567, 128
      %s569 = sshra.s32 %s31, 7
      %s570 = sand.u32 %s31, 127
      %s571 = sadd.s32 %s568, %s570
      %s572 = sld [smem:[#allocation5 + %s571]]
      %p573 = scmp.lt.s32.totalorder %s572, 3
      %s574 = scalar_select %p573, %s572, 3
      %s575 = scalar_lea.vmem %s6, %s574
      %s576 = sshra.s32 %s31, 7
      %s577 = sand.u32 %s31, 127
      %s578 = sadd.s32 %s576, %s30
      %s579 = smul.u32 %s578, 128
      %s580 = sshra.s32 %s31, 7
      %s581 = sand.u32 %s31, 127
      %s582 = sadd.s32 %s579, %s581
      %s583 = sld [smem:[#allocation5 + %s582]]
      %s584 = smul.u32 32, %s30
      %p585 = scmp.lt.s32.totalorder %s584, 31
      %s586 = scalar_select %p585, %s584, 31
      %s587 = smul.addr %s586, 8
      %s588 = scalar_lea.vmem %s7, %s587
      %s589 = smul.u32 32, %s30
      %p591 = scmp.eq.s32.totalorder %s31, 0
      // Predicated region
      $region45: #{block_forward.7} parent=43 // pred_check
        %p592 = pneg %p591
      $region46: #{block_forward.7} parent=43 // pred_check_branch
        %594 = sbr.rel (%p592) target = $region48
      $region47: #{block_forward.7} parent=43 // pred_region
        %v595 = vld [vmem:[%s496] sm:$0xff]
        %v596 = vld [vmem:[%s496 + $0x8] sm:$0xff]
        %v597 = vld [vmem:[%s496 + $0x10] sm:$0xff]
        %v598 = vld [vmem:[%s496 + $0x18] sm:$0xff]
        %v599 = vld [vmem:[%s496 + $0x20] sm:$0xff]
        %v600 = vld [vmem:[%s496 + $0x28] sm:$0xff]
        %v601 = vld [vmem:[%s496 + $0x30] sm:$0xff]
        %v602 = vld [vmem:[%s496 + $0x38] sm:$0xff]
        %v603 = vld [vmem:[%s496 + $0x40] sm:$0xff]
        %v604 = vld [vmem:[%s496 + $0x48] sm:$0xff]
        %v605 = vld [vmem:[%s496 + $0x50] sm:$0xff]
        %v606 = vld [vmem:[%s496 + $0x58] sm:$0xff]
        %v607 = vld [vmem:[%s496 + $0x60] sm:$0xff]
        %v608 = vld [vmem:[%s496 + $0x68] sm:$0xff]
        %v609 = vld [vmem:[%s496 + $0x70] sm:$0xff]
        %v610 = vld [vmem:[%s496 + $0x78] sm:$0xff]
        %v611 = vld [vmem:[%s496 + $0x80] sm:$0xff]
        %v612 = vld [vmem:[%s496 + $0x88] sm:$0xff]
        %v613 = vld [vmem:[%s496 + $0x90] sm:$0xff]
        %v614 = vld [vmem:[%s496 + $0x98] sm:$0xff]
        %v615 = vld [vmem:[%s496 + $0xa0] sm:$0xff]
        %v616 = vld [vmem:[%s496 + $0xa8] sm:$0xff]
        %v617 = vld [vmem:[%s496 + $0xb0] sm:$0xff]
        %v618 = vld [vmem:[%s496 + $0xb8] sm:$0xff]
        %v619 = vld [vmem:[%s496 + $0xc0] sm:$0xff]
        %v620 = vld [vmem:[%s496 + $0xc8] sm:$0xff]
        %v621 = vld [vmem:[%s496 + $0xd0] sm:$0xff]
        %v622 = vld [vmem:[%s496 + $0xd8] sm:$0xff]
        %v623 = vld [vmem:[%s496 + $0xe0] sm:$0xff]
        %v624 = vld [vmem:[%s496 + $0xe8] sm:$0xff]
        %v625 = vld [vmem:[%s496 + $0xf0] sm:$0xff]
        %v626 = vld [vmem:[%s496 + $0xf8] sm:$0xff]
        %vm627 = vcmask 261120
        %628 = vst.msk [vmem:[#allocation3] sm:$0xff] %vm627, %v595
        %629 = vst.msk [vmem:[#allocation3 + $0x8] sm:$0xff] %vm627, %v596
        %630 = vst.msk [vmem:[#allocation3 + $0x10] sm:$0xff] %vm627, %v597
        %631 = vst.msk [vmem:[#allocation3 + $0x18] sm:$0xff] %vm627, %v598
        %632 = vst.msk [vmem:[#allocation3 + $0x20] sm:$0xff] %vm627, %v599
        %633 = vst.msk [vmem:[#allocation3 + $0x28] sm:$0xff] %vm627, %v600
        %634 = vst.msk [vmem:[#allocation3 + $0x30] sm:$0xff] %vm627, %v601
        %635 = vst.msk [vmem:[#allocation3 + $0x38] sm:$0xff] %vm627, %v602
        %636 = vst.msk [vmem:[#allocation3 + $0x40] sm:$0xff] %vm627, %v603
        %637 = vst.msk [vmem:[#allocation3 + $0x48] sm:$0xff] %vm627, %v604
        %638 = vst.msk [vmem:[#allocation3 + $0x50] sm:$0xff] %vm627, %v605
        %639 = vst.msk [vmem:[#allocation3 + $0x58] sm:$0xff] %vm627, %v606
        %640 = vst.msk [vmem:[#allocation3 + $0x60] sm:$0xff] %vm627, %v607
        %641 = vst.msk [vmem:[#allocation3 + $0x68] sm:$0xff] %vm627, %v608
        %642 = vst.msk [vmem:[#allocation3 + $0x70] sm:$0xff] %vm627, %v609
        %643 = vst.msk [vmem:[#allocation3 + $0x78] sm:$0xff] %vm627, %v610
        %644 = vst.msk [vmem:[#allocation3 + $0x80] sm:$0xff] %vm627, %v611
        %645 = vst.msk [vmem:[#allocation3 + $0x88] sm:$0xff] %vm627, %v612
        %646 = vst.msk [vmem:[#allocation3 + $0x90] sm:$0xff] %vm627, %v613
        %647 = vst.msk [vmem:[#allocation3 + $0x98] sm:$0xff] %vm627, %v614
        %648 = vst.msk [vmem:[#allocation3 + $0xa0] sm:$0xff] %vm627, %v615
        %649 = vst.msk [vmem:[#allocation3 + $0xa8] sm:$0xff] %vm627, %v616
        %650 = vst.msk [vmem:[#allocation3 + $0xb0] sm:$0xff] %vm627, %v617
        %651 = vst.msk [vmem:[#allocation3 + $0xb8] sm:$0xff] %vm627, %v618
        %652 = vst.msk [vmem:[#allocation3 + $0xc0] sm:$0xff] %vm627, %v619
        %653 = vst.msk [vmem:[#allocation3 + $0xc8] sm:$0xff] %vm627, %v620
        %654 = vst.msk [vmem:[#allocation3 + $0xd0] sm:$0xff] %vm627, %v621
        %655 = vst.msk [vmem:[#allocation3 + $0xd8] sm:$0xff] %vm627, %v622
        %656 = vst.msk [vmem:[#allocation3 + $0xe0] sm:$0xff] %vm627, %v623
        %657 = vst.msk [vmem:[#allocation3 + $0xe8] sm:$0xff] %vm627, %v624
        %658 = vst.msk [vmem:[#allocation3 + $0xf0] sm:$0xff] %vm627, %v625
        %659 = vst.msk [vmem:[#allocation3 + $0xf8] sm:$0xff] %vm627, %v626
        %v660 = vpack.c.bf16 %v595, %v595
        %v661 = vpack.c.bf16 %v596, %v596
        %v662 = vpack.c.bf16 %v597, %v597
        %v663 = vpack.c.bf16 %v598, %v598
        %v664 = vpack.c.bf16 %v599, %v599
        %v665 = vpack.c.bf16 %v600, %v600
        %v666 = vpack.c.bf16 %v601, %v601
        %v667 = vpack.c.bf16 %v602, %v602
        %v668 = vpack.c.bf16 %v603, %v603
        %v669 = vpack.c.bf16 %v604, %v604
        %v670 = vpack.c.bf16 %v605, %v605
        %v671 = vpack.c.bf16 %v606, %v606
        %v672 = vpack.c.bf16 %v607, %v607
        %v673 = vpack.c.bf16 %v608, %v608
        %v674 = vpack.c.bf16 %v609, %v609
        %v675 = vpack.c.bf16 %v610, %v610
        %v676 = vpack.c.bf16 %v611, %v611
        %v677 = vpack.c.bf16 %v612, %v612
        %v678 = vpack.c.bf16 %v613, %v613
        %v679 = vpack.c.bf16 %v614, %v614
        %v680 = vpack.c.bf16 %v615, %v615
        %v681 = vpack.c.bf16 %v616, %v616
        %v682 = vpack.c.bf16 %v617, %v617
        %v683 = vpack.c.bf16 %v618, %v618
        %v684 = vpack.c.bf16 %v619, %v619
        %v685 = vpack.c.bf16 %v620, %v620
        %v686 = vpack.c.bf16 %v621, %v621
        %v687 = vpack.c.bf16 %v622, %v622
        %v688 = vpack.c.bf16 %v623, %v623
        %v689 = vpack.c.bf16 %v624, %v624
        %v690 = vpack.c.bf16 %v625, %v625
        %v691 = vpack.c.bf16 %v626, %v626
        %vm692 = vcmask 257024
        %693 = vst.msk [vmem:[#allocation2] sm:$0xf] %vm692, %v660
        %694 = vst.msk [vmem:[#allocation2 + $0x4] sm:$0xf] %vm692, %v661
        %695 = vst.msk [vmem:[#allocation2 + $0x8] sm:$0xf] %vm692, %v662
        %696 = vst.msk [vmem:[#allocation2 + $0xc] sm:$0xf] %vm692, %v663
        %697 = vst.msk [vmem:[#allocation2 + $0x10] sm:$0xf] %vm692, %v664
        %698 = vst.msk [vmem:[#allocation2 + $0x14] sm:$0xf] %vm692, %v665
        %699 = vst.msk [vmem:[#allocation2 + $0x18] sm:$0xf] %vm692, %v666
        %700 = vst.msk [vmem:[#allocation2 + $0x1c] sm:$0xf] %vm692, %v667
        %701 = vst.msk [vmem:[#allocation2 + $0x20] sm:$0xf] %vm692, %v668
        %702 = vst.msk [vmem:[#allocation2 + $0x24] sm:$0xf] %vm692, %v669
        %703 = vst.msk [vmem:[#allocation2 + $0x28] sm:$0xf] %vm692, %v670
        %704 = vst.msk [vmem:[#allocation2 + $0x2c] sm:$0xf] %vm692, %v671
        %705 = vst.msk [vmem:[#allocation2 + $0x30] sm:$0xf] %vm692, %v672
        %706 = vst.msk [vmem:[#allocation2 + $0x34] sm:$0xf] %vm692, %v673
        %707 = vst.msk [vmem:[#allocation2 + $0x38] sm:$0xf] %vm692, %v674
        %708 = vst.msk [vmem:[#allocation2 + $0x3c] sm:$0xf] %vm692, %v675
        %709 = vst.msk [vmem:[#allocation2 + $0x40] sm:$0xf] %vm692, %v676
        %710 = vst.msk [vmem:[#allocation2 + $0x44] sm:$0xf] %vm692, %v677
        %711 = vst.msk [vmem:[#allocation2 + $0x48] sm:$0xf] %vm692, %v678
        %712 = vst.msk [vmem:[#allocation2 + $0x4c] sm:$0xf] %vm692, %v679
        %713 = vst.msk [vmem:[#allocation2 + $0x50] sm:$0xf] %vm692, %v680
        %714 = vst.msk [vmem:[#allocation2 + $0x54] sm:$0xf] %vm692, %v681
        %715 = vst.msk [vmem:[#allocation2 + $0x58] sm:$0xf] %vm692, %v682
        %716 = vst.msk [vmem:[#allocation2 + $0x5c] sm:$0xf] %vm692, %v683
        %717 = vst.msk [vmem:[#allocation2 + $0x60] sm:$0xf] %vm692, %v684
        %718 = vst.msk [vmem:[#allocation2 + $0x64] sm:$0xf] %vm692, %v685
        %719 = vst.msk [vmem:[#allocation2 + $0x68] sm:$0xf] %vm692, %v686
        %720 = vst.msk [vmem:[#allocation2 + $0x6c] sm:$0xf] %vm692, %v687
        %721 = vst.msk [vmem:[#allocation2 + $0x70] sm:$0xf] %vm692, %v688
        %722 = vst.msk [vmem:[#allocation2 + $0x74] sm:$0xf] %vm692, %v689
        %723 = vst.msk [vmem:[#allocation2 + $0x78] sm:$0xf] %vm692, %v690
        %724 = vst.msk [vmem:[#allocation2 + $0x7c] sm:$0xf] %vm692, %v691
      $region48: #{block_forward.7} parent=43 // pred_fallthru
        _
      %s725 = sshra.s32 %s31, 7
      %s726 = sand.u32 %s31, 127
      %s727 = sadd.s32 %s725, %s30
      %s728 = smul.u32 %s727, 128
      %s729 = sshra.s32 %s31, 7
      %s730 = sand.u32 %s31, 127
      %s731 = sadd.s32 %s728, %s730
      %s732 = sld [smem:[#allocation5 + %s731]]
      %p733 = scmp.eq.s32.totalorder %s732, %s31
      // Predicated region
      $region49: #{block_forward.7} parent=43 // pred_check
        %p734 = pneg %p733
      $region50: #{block_forward.7} parent=43 // pred_check_branch
        %736 = sbr.rel (%p734) target = $region52
      $region51: #{block_forward.7} parent=43 // pred_region
        %v737 = vld [vmem:[#allocation2] sm:$0xf]
        %v738 = vld [vmem:[#allocation2 + $0x4] sm:$0xf]
        %v739 = vld [vmem:[#allocation2 + $0x8] sm:$0xf]
        %v740 = vld [vmem:[#allocation2 + $0xc] sm:$0xf]
        %v741 = vld [vmem:[#allocation2 + $0x10] sm:$0xf]
        %v742 = vld [vmem:[#allocation2 + $0x14] sm:$0xf]
        %v743 = vld [vmem:[#allocation2 + $0x18] sm:$0xf]
        %v744 = vld [vmem:[#allocation2 + $0x1c] sm:$0xf]
        %v745 = vld [vmem:[#allocation2 + $0x20] sm:$0xf]
        %v746 = vld [vmem:[#allocation2 + $0x24] sm:$0xf]
        %v747 = vld [vmem:[#allocation2 + $0x28] sm:$0xf]
        %v748 = vld [vmem:[#allocation2 + $0x2c] sm:$0xf]
        %v749 = vld [vmem:[#allocation2 + $0x30] sm:$0xf]
        %v750 = vld [vmem:[#allocation2 + $0x34] sm:$0xf]
        %v751 = vld [vmem:[#allocation2 + $0x38] sm:$0xf]
        %v752 = vld [vmem:[#allocation2 + $0x3c] sm:$0xf]
        %v753 = vld [vmem:[#allocation2 + $0x40] sm:$0xf]
        %v754 = vld [vmem:[#allocation2 + $0x44] sm:$0xf]
        %v755 = vld [vmem:[#allocation2 + $0x48] sm:$0xf]
        %v756 = vld [vmem:[#allocation2 + $0x4c] sm:$0xf]
        %v757 = vld [vmem:[#allocation2 + $0x50] sm:$0xf]
        %v758 = vld [vmem:[#allocation2 + $0x54] sm:$0xf]
        %v759 = vld [vmem:[#allocation2 + $0x58] sm:$0xf]
        %v760 = vld [vmem:[#allocation2 + $0x5c] sm:$0xf]
        %v761 = vld [vmem:[#allocation2 + $0x60] sm:$0xf]
        %v762 = vld [vmem:[#allocation2 + $0x64] sm:$0xf]
        %v763 = vld [vmem:[#allocation2 + $0x68] sm:$0xf]
        %v764 = vld [vmem:[#allocation2 + $0x6c] sm:$0xf]
        %v765 = vld [vmem:[#allocation2 + $0x70] sm:$0xf]
        %v766 = vld [vmem:[#allocation2 + $0x74] sm:$0xf]
        %v767 = vld [vmem:[#allocation2 + $0x78] sm:$0xf]
        %v768 = vld [vmem:[#allocation2 + $0x7c] sm:$0xf]
        %v769 = vld [vmem:[%s516] sm:$0xf]
        %v770 = vld [vmem:[%s516 + $0x4] sm:$0xf]
        %v771 = vld [vmem:[%s516 + $0x8] sm:$0xf]
        %v772 = vld [vmem:[%s516 + $0xc] sm:$0xf]
        %v773 = vld [vmem:[%s535] sm:$0x1]
        %v775 = vperm.slane %v773, 0
        %v809 = vunpack.c.l.b16 %v737
        %v810 = vunpack.c.l.b16 %v738
        %v811 = vunpack.c.l.b16 %v739
        %v812 = vunpack.c.l.b16 %v740
        %v813 = vunpack.c.l.b16 %v741
        %v814 = vunpack.c.l.b16 %v742
        %v815 = vunpack.c.l.b16 %v743
        %v816 = vunpack.c.l.b16 %v744
        %v817 = vunpack.c.l.b16 %v745
        %v818 = vunpack.c.l.b16 %v746
        %v819 = vunpack.c.l.b16 %v747
        %v820 = vunpack.c.l.b16 %v748
        %v821 = vunpack.c.l.b16 %v749
        %v822 = vunpack.c.l.b16 %v750
        %v823 = vunpack.c.l.b16 %v751
        %v824 = vunpack.c.l.b16 %v752
        %v825 = vunpack.c.l.b16 %v753
        %v826 = vunpack.c.l.b16 %v754
        %v827 = vunpack.c.l.b16 %v755
        %v828 = vunpack.c.l.b16 %v756
        %v829 = vunpack.c.l.b16 %v757
        %v830 = vunpack.c.l.b16 %v758
        %v831 = vunpack.c.l.b16 %v759
        %v832 = vunpack.c.l.b16 %v760
        %v833 = vunpack.c.l.b16 %v761
        %v834 = vunpack.c.l.b16 %v762
        %v835 = vunpack.c.l.b16 %v763
        %v836 = vunpack.c.l.b16 %v764
        %v837 = vunpack.c.l.b16 %v765
        %v838 = vunpack.c.l.b16 %v766
        %v839 = vunpack.c.l.b16 %v767
        %v840 = vunpack.c.l.b16 %v768
        %v841 = vpack.c.b16 %v810, %v809
        %v842 = vpack.c.b16 %v812, %v811
        %v843 = vpack.c.b16 %v814, %v813
        %v844 = vpack.c.b16 %v816, %v815
        %v845 = vpack.c.b16 %v818, %v817
        %v846 = vpack.c.b16 %v820, %v819
        %v847 = vpack.c.b16 %v822, %v821
        %v848 = vpack.c.b16 %v824, %v823
        %v849 = vpack.c.b16 %v826, %v825
        %v850 = vpack.c.b16 %v828, %v827
        %v851 = vpack.c.b16 %v830, %v829
        %v852 = vpack.c.b16 %v832, %v831
        %v853 = vpack.c.b16 %v834, %v833
        %v854 = vpack.c.b16 %v836, %v835
        %v855 = vpack.c.b16 %v838, %v837
        %v856 = vpack.c.b16 %v840, %v839
        %v861 = vunpack.c.l.b16 %v769
        %v862 = vunpack.c.l.b16 %v770
        %v863 = vunpack.c.l.b16 %v771
        %v864 = vunpack.c.l.b16 %v772
        %v865 = vpack.c.b16 %v862, %v861
        %v866 = vpack.c.b16 %v864, %v863
        %vm869 = vcmask 261120
        %v871 = vsel %vm869, %v841, 0
        %v874 = vsel %vm869, %v842, 0
        %v877 = vsel %vm869, %v843, 0
        %v880 = vsel %vm869, %v844, 0
        %v883 = vsel %vm869, %v845, 0
        %v886 = vsel %vm869, %v846, 0
        %v889 = vsel %vm869, %v847, 0
        %v892 = vsel %vm869, %v848, 0
        %v895 = vsel %vm869, %v849, 0
        %v898 = vsel %vm869, %v850, 0
        %v901 = vsel %vm869, %v851, 0
        %v904 = vsel %vm869, %v852, 0
        %v907 = vsel %vm869, %v853, 0
        %v910 = vsel %vm869, %v854, 0
        %v913 = vsel %vm869, %v855, 0
        %v916 = vsel %vm869, %v856, 0
        %918 = vmatpush.bf16.msra.mxu0 0
        %919 = vmatpush.bf16.msra.mxu0 0
        %920 = vmatpush.bf16.msra.mxu0 0
        %921 = vmatpush.bf16.msra.mxu0 0
        %922 = vmatpush.bf16.msra.mxu0 0
        %923 = vmatpush.bf16.msra.mxu0 0
        %924 = vmatpush.bf16.msra.mxu0 %v866
        %925 = vmatpush.bf16.msra.mxu0 %v865
        %926 = vmatmul.bf16.gmra.mxu0 %v871
        %v927 = vpop.f32.mrf.mxu0
        %v928 = vadd.f32 %v775, %v927
        %v929 = vpop.f32.mrf.mxu0
        %v930 = vadd.f32 %v775, %v929
        %931 = vmatmul.bf16.gmra.mxu0 %v874
        %v932 = vpop.f32.mrf.mxu0
        %v933 = vadd.f32 %v775, %v932
        %v934 = vpop.f32.mrf.mxu0
        %v935 = vadd.f32 %v775, %v934
        %936 = vmatmul.bf16.gmra.mxu0 %v877
        %v937 = vpop.f32.mrf.mxu0
        %v938 = vadd.f32 %v775, %v937
        %v939 = vpop.f32.mrf.mxu0
        %v940 = vadd.f32 %v775, %v939
        %941 = vmatmul.bf16.gmra.mxu0 %v880
        %v942 = vpop.f32.mrf.mxu0
        %v943 = vadd.f32 %v775, %v942
        %v944 = vpop.f32.mrf.mxu0
        %v945 = vadd.f32 %v775, %v944
        %946 = vmatmul.bf16.gmra.mxu0 %v883
        %v947 = vpop.f32.mrf.mxu0
        %v948 = vadd.f32 %v775, %v947
        %v949 = vpop.f32.mrf.mxu0
        %v950 = vadd.f32 %v775, %v949
        %951 = vmatmul.bf16.gmra.mxu0 %v886
        %v952 = vpop.f32.mrf.mxu0
        %v953 = vadd.f32 %v775, %v952
        %v954 = vpop.f32.mrf.mxu0
        %v955 = vadd.f32 %v775, %v954
        %956 = vmatmul.bf16.gmra.mxu0 %v889
        %v957 = vpop.f32.mrf.mxu0
        %v958 = vadd.f32 %v775, %v957
        %v959 = vpop.f32.mrf.mxu0
        %v960 = vadd.f32 %v775, %v959
        %961 = vmatmul.bf16.gmra.mxu0 %v892
        %v962 = vpop.f32.mrf.mxu0
        %v963 = vadd.f32 %v775, %v962
        %v964 = vpop.f32.mrf.mxu0
        %v965 = vadd.f32 %v775, %v964
        %966 = vmatmul.bf16.gmra.mxu0 %v895
        %v967 = vpop.f32.mrf.mxu0
        %v968 = vadd.f32 %v775, %v967
        %v969 = vpop.f32.mrf.mxu0
        %v970 = vadd.f32 %v775, %v969
        %971 = vmatmul.bf16.gmra.mxu0 %v898
        %v972 = vpop.f32.mrf.mxu0
        %v973 = vadd.f32 %v775, %v972
        %v974 = vpop.f32.mrf.mxu0
        %v975 = vadd.f32 %v775, %v974
        %976 = vmatmul.bf16.gmra.mxu0 %v901
        %v977 = vpop.f32.mrf.mxu0
        %v978 = vadd.f32 %v775, %v977
        %v979 = vpop.f32.mrf.mxu0
        %v980 = vadd.f32 %v775, %v979
        %981 = vmatmul.bf16.gmra.mxu0 %v904
        %v982 = vpop.f32.mrf.mxu0
        %v983 = vadd.f32 %v775, %v982
        %v984 = vpop.f32.mrf.mxu0
        %v985 = vadd.f32 %v775, %v984
        %986 = vmatmul.bf16.gmra.mxu0 %v907
        %v987 = vpop.f32.mrf.mxu0
        %v988 = vadd.f32 %v775, %v987
        %v989 = vpop.f32.mrf.mxu0
        %v990 = vadd.f32 %v775, %v989
        %991 = vmatmul.bf16.gmra.mxu0 %v910
        %v992 = vpop.f32.mrf.mxu0
        %v993 = vadd.f32 %v775, %v992
        %v994 = vpop.f32.mrf.mxu0
        %v995 = vadd.f32 %v775, %v994
        %996 = vmatmul.bf16.gmra.mxu0 %v913
        %v997 = vpop.f32.mrf.mxu0
        %v998 = vadd.f32 %v775, %v997
        %v999 = vpop.f32.mrf.mxu0
        %v1000 = vadd.f32 %v775, %v999
        %1001 = vmatmul.bf16.gmra.mxu0 %v916
        %v1002 = vpop.f32.mrf.mxu0
        %v1003 = vadd.f32 %v775, %v1002
        %v1004 = vpop.f32.mrf.mxu0
        %v1005 = vadd.f32 %v775, %v1004
        %1006 = vdwg.mxu0
        %v1007 = vmax.f32 %v928, 0.0
        %v1008 = vmax.f32 %v930, 0.0
        %v1009 = vmax.f32 %v933, 0.0
        %v1010 = vmax.f32 %v935, 0.0
        %v1011 = vmax.f32 %v938, 0.0
        %v1012 = vmax.f32 %v940, 0.0
        %v1013 = vmax.f32 %v943, 0.0
        %v1014 = vmax.f32 %v945, 0.0
        %v1015 = vmax.f32 %v948, 0.0
        %v1016 = vmax.f32 %v950, 0.0
        %v1017 = vmax.f32 %v953, 0.0
        %v1018 = vmax.f32 %v955, 0.0
        %v1019 = vmax.f32 %v958, 0.0
        %v1020 = vmax.f32 %v960, 0.0
        %v1021 = vmax.f32 %v963, 0.0
        %v1022 = vmax.f32 %v965, 0.0
        %v1023 = vmax.f32 %v968, 0.0
        %v1024 = vmax.f32 %v970, 0.0
        %v1025 = vmax.f32 %v973, 0.0
        %v1026 = vmax.f32 %v975, 0.0
        %v1027 = vmax.f32 %v978, 0.0
        %v1028 = vmax.f32 %v980, 0.0
        %v1029 = vmax.f32 %v983, 0.0
        %v1030 = vmax.f32 %v985, 0.0
        %v1031 = vmax.f32 %v988, 0.0
        %v1032 = vmax.f32 %v990, 0.0
        %v1033 = vmax.f32 %v993, 0.0
        %v1034 = vmax.f32 %v995, 0.0
        %v1035 = vmax.f32 %v998, 0.0
        %v1036 = vmax.f32 %v1000, 0.0
        %v1037 = vmax.f32 %v1003, 0.0
        %v1038 = vmax.f32 %v1005, 0.0
        %v1039 = vpack.c.bf16 %v1008, %v1007
        %v1040 = vpack.c.bf16 %v1010, %v1009
        %v1041 = vpack.c.bf16 %v1012, %v1011
        %v1042 = vpack.c.bf16 %v1014, %v1013
        %v1043 = vpack.c.bf16 %v1016, %v1015
        %v1044 = vpack.c.bf16 %v1018, %v1017
        %v1045 = vpack.c.bf16 %v1020, %v1019
        %v1046 = vpack.c.bf16 %v1022, %v1021
        %v1047 = vpack.c.bf16 %v1024, %v1023
        %v1048 = vpack.c.bf16 %v1026, %v1025
        %v1049 = vpack.c.bf16 %v1028, %v1027
        %v1050 = vpack.c.bf16 %v1030, %v1029
        %v1051 = vpack.c.bf16 %v1032, %v1031
        %v1052 = vpack.c.bf16 %v1034, %v1033
        %v1053 = vpack.c.bf16 %v1036, %v1035
        %v1054 = vpack.c.bf16 %v1038, %v1037
        %v1055 = vld [vmem:[%s556] sm:$0xf]
        %v1056 = vld [vmem:[%s556 + $0x4] sm:$0xf]
        %v1057 = vld [vmem:[%s556 + $0x8] sm:$0xf]
        %v1058 = vld [vmem:[%s556 + $0xc] sm:$0xf]
        %v1059 = vld [vmem:[%s556 + $0x10] sm:$0xf]
        %v1060 = vld [vmem:[%s556 + $0x14] sm:$0xf]
        %v1061 = vld [vmem:[%s556 + $0x18] sm:$0xf]
        %v1062 = vld [vmem:[%s556 + $0x1c] sm:$0xf]
        %v1063 = vld [vmem:[%s556 + $0x20] sm:$0xf]
        %v1064 = vld [vmem:[%s556 + $0x24] sm:$0xf]
        %v1065 = vld [vmem:[%s556 + $0x28] sm:$0xf]
        %v1066 = vld [vmem:[%s556 + $0x2c] sm:$0xf]
        %v1067 = vld [vmem:[%s556 + $0x30] sm:$0xf]
        %v1068 = vld [vmem:[%s556 + $0x34] sm:$0xf]
        %v1069 = vld [vmem:[%s556 + $0x38] sm:$0xf]
        %v1070 = vld [vmem:[%s556 + $0x3c] sm:$0xf]
        %v1071 = vld [vmem:[%s575] sm:$0x1]
        %v1073 = vperm.slane %v1071, 0
        %v1091 = vunpack.c.l.b16 %v1055
        %v1092 = vunpack.c.l.b16 %v1056
        %v1093 = vunpack.c.l.b16 %v1057
        %v1094 = vunpack.c.l.b16 %v1058
        %v1095 = vunpack.c.l.b16 %v1059
        %v1096 = vunpack.c.l.b16 %v1060
        %v1097 = vunpack.c.l.b16 %v1061
        %v1098 = vunpack.c.l.b16 %v1062
        %v1099 = vunpack.c.l.b16 %v1063
        %v1100 = vunpack.c.l.b16 %v1064
        %v1101 = vunpack.c.l.b16 %v1065
        %v1102 = vunpack.c.l.b16 %v1066
        %v1103 = vunpack.c.l.b16 %v1067
        %v1104 = vunpack.c.l.b16 %v1068
        %v1105 = vunpack.c.l.b16 %v1069
        %v1106 = vunpack.c.l.b16 %v1070
        %v1107 = vpack.c.b16 %v1092, %v1091
        %v1108 = vpack.c.b16 %v1094, %v1093
        %v1109 = vpack.c.b16 %v1096, %v1095
        %v1110 = vpack.c.b16 %v1098, %v1097
        %v1111 = vpack.c.b16 %v1100, %v1099
        %v1112 = vpack.c.b16 %v1102, %v1101
        %v1113 = vpack.c.b16 %v1104, %v1103
        %v1114 = vpack.c.b16 %v1106, %v1105
        %1123 = vmatpush.bf16.msra.mxu0 %v1114
        %1124 = vmatpush.bf16.msra.mxu0 %v1113
        %1125 = vmatpush.bf16.msra.mxu0 %v1112
        %1126 = vmatpush.bf16.msra.mxu0 %v1111
        %1127 = vmatpush.bf16.msra.mxu0 %v1110
        %1128 = vmatpush.bf16.msra.mxu0 %v1109
        %1129 = vmatpush.bf16.msra.mxu0 %v1108
        %1130 = vmatpush.bf16.msra.mxu0 %v1107
        %1131 = vmatmul.bf16.gmra.mxu0 %v1039
        %v1132 = vpop.f32.mrf.mxu0
        %v1133 = vadd.f32 %v1073, %v1132
        %v1134 = vpop.f32.mrf.mxu0
        %v1135 = vadd.f32 %v1073, %v1134
        %1136 = vmatmul.bf16.gmra.mxu0 %v1040
        %v1137 = vpop.f32.mrf.mxu0
        %v1138 = vadd.f32 %v1073, %v1137
        %v1139 = vpop.f32.mrf.mxu0
        %v1140 = vadd.f32 %v1073, %v1139
        %1141 = vmatmul.bf16.gmra.mxu0 %v1041
        %v1142 = vpop.f32.mrf.mxu0
        %v1143 = vadd.f32 %v1073, %v1142
        %v1144 = vpop.f32.mrf.mxu0
        %v1145 = vadd.f32 %v1073, %v1144
        %1146 = vmatmul.bf16.gmra.mxu0 %v1042
        %v1147 = vpop.f32.mrf.mxu0
        %v1148 = vadd.f32 %v1073, %v1147
        %v1149 = vpop.f32.mrf.mxu0
        %v1150 = vadd.f32 %v1073, %v1149
        %1151 = vmatmul.bf16.gmra.mxu0 %v1043
        %v1152 = vpop.f32.mrf.mxu0
        %v1153 = vadd.f32 %v1073, %v1152
        %v1154 = vpop.f32.mrf.mxu0
        %v1155 = vadd.f32 %v1073, %v1154
        %1156 = vmatmul.bf16.gmra.mxu0 %v1044
        %v1157 = vpop.f32.mrf.mxu0
        %v1158 = vadd.f32 %v1073, %v1157
        %v1159 = vpop.f32.mrf.mxu0
        %v1160 = vadd.f32 %v1073, %v1159
        %1161 = vmatmul.bf16.gmra.mxu0 %v1045
        %v1162 = vpop.f32.mrf.mxu0
        %v1163 = vadd.f32 %v1073, %v1162
        %v1164 = vpop.f32.mrf.mxu0
        %v1165 = vadd.f32 %v1073, %v1164
        %1166 = vmatmul.bf16.gmra.mxu0 %v1046
        %v1167 = vpop.f32.mrf.mxu0
        %v1168 = vadd.f32 %v1073, %v1167
        %v1169 = vpop.f32.mrf.mxu0
        %v1170 = vadd.f32 %v1073, %v1169
        %1171 = vmatmul.bf16.gmra.mxu0 %v1047
        %v1172 = vpop.f32.mrf.mxu0
        %v1173 = vadd.f32 %v1073, %v1172
        %v1174 = vpop.f32.mrf.mxu0
        %v1175 = vadd.f32 %v1073, %v1174
        %1176 = vmatmul.bf16.gmra.mxu0 %v1048
        %v1177 = vpop.f32.mrf.mxu0
        %v1178 = vadd.f32 %v1073, %v1177
        %v1179 = vpop.f32.mrf.mxu0
        %v1180 = vadd.f32 %v1073, %v1179
        %1181 = vmatmul.bf16.gmra.mxu0 %v1049
        %v1182 = vpop.f32.mrf.mxu0
        %v1183 = vadd.f32 %v1073, %v1182
        %v1184 = vpop.f32.mrf.mxu0
        %v1185 = vadd.f32 %v1073, %v1184
        %1186 = vmatmul.bf16.gmra.mxu0 %v1050
        %v1187 = vpop.f32.mrf.mxu0
        %v1188 = vadd.f32 %v1073, %v1187
        %v1189 = vpop.f32.mrf.mxu0
        %v1190 = vadd.f32 %v1073, %v1189
        %1191 = vmatmul.bf16.gmra.mxu0 %v1051
        %v1192 = vpop.f32.mrf.mxu0
        %v1193 = vadd.f32 %v1073, %v1192
        %v1194 = vpop.f32.mrf.mxu0
        %v1195 = vadd.f32 %v1073, %v1194
        %1196 = vmatmul.bf16.gmra.mxu0 %v1052
        %v1197 = vpop.f32.mrf.mxu0
        %v1198 = vadd.f32 %v1073, %v1197
        %v1199 = vpop.f32.mrf.mxu0
        %v1200 = vadd.f32 %v1073, %v1199
        %1201 = vmatmul.bf16.gmra.mxu0 %v1053
        %v1202 = vpop.f32.mrf.mxu0
        %v1203 = vadd.f32 %v1073, %v1202
        %v1204 = vpop.f32.mrf.mxu0
        %v1205 = vadd.f32 %v1073, %v1204
        %1206 = vmatmul.bf16.gmra.mxu0 %v1054
        %v1207 = vpop.f32.mrf.mxu0
        %v1208 = vadd.f32 %v1073, %v1207
        %v1209 = vpop.f32.mrf.mxu0
        %v1210 = vadd.f32 %v1073, %v1209
        %1211 = vdwg.mxu0
        %v1212 = vlaneseq
        %v1213 = vand.u32 %v1212, 127
        %v1214 = vstv %s31
        %vm1215 = vcmp.eq.s32.totalorder %v1213, %v1214
        %v1216 = vld [vmem:[%s502] sm:$0xff]
        %v1217 = vld [vmem:[%s502 + $0x8] sm:$0xff]
        %v1218 = vld [vmem:[%s502 + $0x10] sm:$0xff]
        %v1219 = vld [vmem:[%s502 + $0x18] sm:$0xff]
        %v1220 = vld [vmem:[%s502 + $0x20] sm:$0xff]
        %v1221 = vld [vmem:[%s502 + $0x28] sm:$0xff]
        %v1222 = vld [vmem:[%s502 + $0x30] sm:$0xff]
        %v1223 = vld [vmem:[%s502 + $0x38] sm:$0xff]
        %v1224 = vld [vmem:[%s502 + $0x40] sm:$0xff]
        %v1225 = vld [vmem:[%s502 + $0x48] sm:$0xff]
        %v1226 = vld [vmem:[%s502 + $0x50] sm:$0xff]
        %v1227 = vld [vmem:[%s502 + $0x58] sm:$0xff]
        %v1228 = vld [vmem:[%s502 + $0x60] sm:$0xff]
        %v1229 = vld [vmem:[%s502 + $0x68] sm:$0xff]
        %v1230 = vld [vmem:[%s502 + $0x70] sm:$0xff]
        %v1231 = vld [vmem:[%s502 + $0x78] sm:$0xff]
        %v1232 = vld [vmem:[%s502 + $0x80] sm:$0xff]
        %v1233 = vld [vmem:[%s502 + $0x88] sm:$0xff]
        %v1234 = vld [vmem:[%s502 + $0x90] sm:$0xff]
        %v1235 = vld [vmem:[%s502 + $0x98] sm:$0xff]
        %v1236 = vld [vmem:[%s502 + $0xa0] sm:$0xff]
        %v1237 = vld [vmem:[%s502 + $0xa8] sm:$0xff]
        %v1238 = vld [vmem:[%s502 + $0xb0] sm:$0xff]
        %v1239 = vld [vmem:[%s502 + $0xb8] sm:$0xff]
        %v1240 = vld [vmem:[%s502 + $0xc0] sm:$0xff]
        %v1241 = vld [vmem:[%s502 + $0xc8] sm:$0xff]
        %v1242 = vld [vmem:[%s502 + $0xd0] sm:$0xff]
        %v1243 = vld [vmem:[%s502 + $0xd8] sm:$0xff]
        %v1244 = vld [vmem:[%s502 + $0xe0] sm:$0xff]
        %v1245 = vld [vmem:[%s502 + $0xe8] sm:$0xff]
        %v1246 = vld [vmem:[%s502 + $0xf0] sm:$0xff]
        %v1247 = vld [vmem:[%s502 + $0xf8] sm:$0xff]
        %v1248 = vsel %vm1215, %v1216, 0.0
        %v1249 = vsel %vm1215, %v1217, 0.0
        %v1250 = vsel %vm1215, %v1218, 0.0
        %v1251 = vsel %vm1215, %v1219, 0.0
        %v1252 = vsel %vm1215, %v1220, 0.0
        %v1253 = vsel %vm1215, %v1221, 0.0
        %v1254 = vsel %vm1215, %v1222, 0.0
        %v1255 = vsel %vm1215, %v1223, 0.0
        %v1256 = vsel %vm1215, %v1224, 0.0
        %v1257 = vsel %vm1215, %v1225, 0.0
        %v1258 = vsel %vm1215, %v1226, 0.0
        %v1259 = vsel %vm1215, %v1227, 0.0
        %v1260 = vsel %vm1215, %v1228, 0.0
        %v1261 = vsel %vm1215, %v1229, 0.0
        %v1262 = vsel %vm1215, %v1230, 0.0
        %v1263 = vsel %vm1215, %v1231, 0.0
        %v1264 = vsel %vm1215, %v1232, 0.0
        %v1265 = vsel %vm1215, %v1233, 0.0
        %v1266 = vsel %vm1215, %v1234, 0.0
        %v1267 = vsel %vm1215, %v1235, 0.0
        %v1268 = vsel %vm1215, %v1236, 0.0
        %v1269 = vsel %vm1215, %v1237, 0.0
        %v1270 = vsel %vm1215, %v1238, 0.0
        %v1271 = vsel %vm1215, %v1239, 0.0
        %v1272 = vsel %vm1215, %v1240, 0.0
        %v1273 = vsel %vm1215, %v1241, 0.0
        %v1274 = vsel %vm1215, %v1242, 0.0
        %v1275 = vsel %vm1215, %v1243, 0.0
        %v1276 = vsel %vm1215, %v1244, 0.0
        %v1277 = vsel %vm1215, %v1245, 0.0
        %v1278 = vsel %vm1215, %v1246, 0.0
        %v1279 = vsel %vm1215, %v1247, 0.0
        %1280 = vadd.xlane.f32.xlu0 %v1248
        %v1281 = vpop.xlane.xlu0 %1280
        %1282 = vadd.xlane.f32.xlu0 %v1249
        %v1283 = vpop.xlane.xlu0 %1282
        %1284 = vadd.xlane.f32.xlu0 %v1250
        %v1285 = vpop.xlane.xlu0 %1284
        %1286 = vadd.xlane.f32.xlu0 %v1251
        %v1287 = vpop.xlane.xlu0 %1286
        %1288 = vadd.xlane.f32.xlu0 %v1252
        %v1289 = vpop.xlane.xlu0 %1288
        %1290 = vadd.xlane.f32.xlu0 %v1253
        %v1291 = vpop.xlane.xlu0 %1290
        %1292 = vadd.xlane.f32.xlu0 %v1254
        %v1293 = vpop.xlane.xlu0 %1292
        %1294 = vadd.xlane.f32.xlu0 %v1255
        %v1295 = vpop.xlane.xlu0 %1294
        %1296 = vadd.xlane.f32.xlu0 %v1256
        %v1297 = vpop.xlane.xlu0 %1296
        %1298 = vadd.xlane.f32.xlu0 %v1257
        %v1299 = vpop.xlane.xlu0 %1298
        %1300 = vadd.xlane.f32.xlu0 %v1258
        %v1301 = vpop.xlane.xlu0 %1300
        %1302 = vadd.xlane.f32.xlu0 %v1259
        %v1303 = vpop.xlane.xlu0 %1302
        %1304 = vadd.xlane.f32.xlu0 %v1260
        %v1305 = vpop.xlane.xlu0 %1304
        %1306 = vadd.xlane.f32.xlu0 %v1261
        %v1307 = vpop.xlane.xlu0 %1306
        %1308 = vadd.xlane.f32.xlu0 %v1262
        %v1309 = vpop.xlane.xlu0 %1308
        %1310 = vadd.xlane.f32.xlu0 %v1263
        %v1311 = vpop.xlane.xlu0 %1310
        %1312 = vadd.xlane.f32.xlu0 %v1264
        %v1313 = vpop.xlane.xlu0 %1312
        %1314 = vadd.xlane.f32.xlu0 %v1265
        %v1315 = vpop.xlane.xlu0 %1314
        %1316 = vadd.xlane.f32.xlu0 %v1266
        %v1317 = vpop.xlane.xlu0 %1316
        %1318 = vadd.xlane.f32.xlu0 %v1267
        %v1319 = vpop.xlane.xlu0 %1318
        %1320 = vadd.xlane.f32.xlu0 %v1268
        %v1321 = vpop.xlane.xlu0 %1320
        %1322 = vadd.xlane.f32.xlu0 %v1269
        %v1323 = vpop.xlane.xlu0 %1322
        %1324 = vadd.xlane.f32.xlu0 %v1270
        %v1325 = vpop.xlane.xlu0 %1324
        %1326 = vadd.xlane.f32.xlu0 %v1271
        %v1327 = vpop.xlane.xlu0 %1326
        %1328 = vadd.xlane.f32.xlu0 %v1272
        %v1329 = vpop.xlane.xlu0 %1328
        %1330 = vadd.xlane.f32.xlu0 %v1273
        %v1331 = vpop.xlane.xlu0 %1330
        %1332 = vadd.xlane.f32.xlu0 %v1274
        %v1333 = vpop.xlane.xlu0 %1332
        %1334 = vadd.xlane.f32.xlu0 %v1275
        %v1335 = vpop.xlane.xlu0 %1334
        %1336 = vadd.xlane.f32.xlu0 %v1276
        %v1337 = vpop.xlane.xlu0 %1336
        %1338 = vadd.xlane.f32.xlu0 %v1277
        %v1339 = vpop.xlane.xlu0 %1338
        %1340 = vadd.xlane.f32.xlu0 %v1278
        %v1341 = vpop.xlane.xlu0 %1340
        %1342 = vadd.xlane.f32.xlu0 %v1279
        %v1343 = vpop.xlane.xlu0 %1342
        %v1344 = vld [vmem:[#allocation3] sm:$0xff]
        %v1345 = vld [vmem:[#allocation3 + $0x8] sm:$0xff]
        %v1346 = vld [vmem:[#allocation3 + $0x10] sm:$0xff]
        %v1347 = vld [vmem:[#allocation3 + $0x18] sm:$0xff]
        %v1348 = vld [vmem:[#allocation3 + $0x20] sm:$0xff]
        %v1349 = vld [vmem:[#allocation3 + $0x28] sm:$0xff]
        %v1350 = vld [vmem:[#allocation3 + $0x30] sm:$0xff]
        %v1351 = vld [vmem:[#allocation3 + $0x38] sm:$0xff]
        %v1352 = vld [vmem:[#allocation3 + $0x40] sm:$0xff]
        %v1353 = vld [vmem:[#allocation3 + $0x48] sm:$0xff]
        %v1354 = vld [vmem:[#allocation3 + $0x50] sm:$0xff]
        %v1355 = vld [vmem:[#allocation3 + $0x58] sm:$0xff]
        %v1356 = vld [vmem:[#allocation3 + $0x60] sm:$0xff]
        %v1357 = vld [vmem:[#allocation3 + $0x68] sm:$0xff]
        %v1358 = vld [vmem:[#allocation3 + $0x70] sm:$0xff]
        %v1359 = vld [vmem:[#allocation3 + $0x78] sm:$0xff]
        %v1360 = vld [vmem:[#allocation3 + $0x80] sm:$0xff]
        %v1361 = vld [vmem:[#allocation3 + $0x88] sm:$0xff]
        %v1362 = vld [vmem:[#allocation3 + $0x90] sm:$0xff]
        %v1363 = vld [vmem:[#allocation3 + $0x98] sm:$0xff]
        %v1364 = vld [vmem:[#allocation3 + $0xa0] sm:$0xff]
        %v1365 = vld [vmem:[#allocation3 + $0xa8] sm:$0xff]
        %v1366 = vld [vmem:[#allocation3 + $0xb0] sm:$0xff]
        %v1367 = vld [vmem:[#allocation3 + $0xb8] sm:$0xff]
        %v1368 = vld [vmem:[#allocation3 + $0xc0] sm:$0xff]
        %v1369 = vld [vmem:[#allocation3 + $0xc8] sm:$0xff]
        %v1370 = vld [vmem:[#allocation3 + $0xd0] sm:$0xff]
        %v1371 = vld [vmem:[#allocation3 + $0xd8] sm:$0xff]
        %v1372 = vld [vmem:[#allocation3 + $0xe0] sm:$0xff]
        %v1373 = vld [vmem:[#allocation3 + $0xe8] sm:$0xff]
        %v1374 = vld [vmem:[#allocation3 + $0xf0] sm:$0xff]
        %v1375 = vld [vmem:[#allocation3 + $0xf8] sm:$0xff]
        %v1376 = vmul.f32 %v1281, %v1133
        %v1377 = vmul.f32 %v1283, %v1135
        %v1378 = vmul.f32 %v1285, %v1138
        %v1379 = vmul.f32 %v1287, %v1140
        %v1380 = vmul.f32 %v1289, %v1143
        %v1381 = vmul.f32 %v1291, %v1145
        %v1382 = vmul.f32 %v1293, %v1148
        %v1383 = vmul.f32 %v1295, %v1150
        %v1384 = vmul.f32 %v1297, %v1153
        %v1385 = vmul.f32 %v1299, %v1155
        %v1386 = vmul.f32 %v1301, %v1158
        %v1387 = vmul.f32 %v1303, %v1160
        %v1388 = vmul.f32 %v1305, %v1163
        %v1389 = vmul.f32 %v1307, %v1165
        %v1390 = vmul.f32 %v1309, %v1168
        %v1391 = vmul.f32 %v1311, %v1170
        %v1392 = vmul.f32 %v1313, %v1173
        %v1393 = vmul.f32 %v1315, %v1175
        %v1394 = vmul.f32 %v1317, %v1178
        %v1395 = vmul.f32 %v1319, %v1180
        %v1396 = vmul.f32 %v1321, %v1183
        %v1397 = vmul.f32 %v1323, %v1185
        %v1398 = vmul.f32 %v1325, %v1188
        %v1399 = vmul.f32 %v1327, %v1190
        %v1400 = vmul.f32 %v1329, %v1193
        %v1401 = vmul.f32 %v1331, %v1195
        %v1402 = vmul.f32 %v1333, %v1198
        %v1403 = vmul.f32 %v1335, %v1200
        %v1404 = vmul.f32 %v1337, %v1203
        %v1405 = vmul.f32 %v1339, %v1205
        %v1406 = vmul.f32 %v1341, %v1208
        %v1407 = vmul.f32 %v1343, %v1210
        %v1408 = vadd.f32 %v1344, %v1376
        %v1409 = vadd.f32 %v1345, %v1377
        %v1410 = vadd.f32 %v1346, %v1378
        %v1411 = vadd.f32 %v1347, %v1379
        %v1412 = vadd.f32 %v1348, %v1380
        %v1413 = vadd.f32 %v1349, %v1381
        %v1414 = vadd.f32 %v1350, %v1382
        %v1415 = vadd.f32 %v1351, %v1383
        %v1416 = vadd.f32 %v1352, %v1384
        %v1417 = vadd.f32 %v1353, %v1385
        %v1418 = vadd.f32 %v1354, %v1386
        %v1419 = vadd.f32 %v1355, %v1387
        %v1420 = vadd.f32 %v1356, %v1388
        %v1421 = vadd.f32 %v1357, %v1389
        %v1422 = vadd.f32 %v1358, %v1390
        %v1423 = vadd.f32 %v1359, %v1391
        %v1424 = vadd.f32 %v1360, %v1392
        %v1425 = vadd.f32 %v1361, %v1393
        %v1426 = vadd.f32 %v1362, %v1394
        %v1427 = vadd.f32 %v1363, %v1395
        %v1428 = vadd.f32 %v1364, %v1396
        %v1429 = vadd.f32 %v1365, %v1397
        %v1430 = vadd.f32 %v1366, %v1398
        %v1431 = vadd.f32 %v1367, %v1399
        %v1432 = vadd.f32 %v1368, %v1400
        %v1433 = vadd.f32 %v1369, %v1401
        %v1434 = vadd.f32 %v1370, %v1402
        %v1435 = vadd.f32 %v1371, %v1403
        %v1436 = vadd.f32 %v1372, %v1404
        %v1437 = vadd.f32 %v1373, %v1405
        %v1438 = vadd.f32 %v1374, %v1406
        %v1439 = vadd.f32 %v1375, %v1407
        %1440 = vst.msk [vmem:[#allocation3] sm:$0xff] %vm869, %v1408
        %1441 = vst.msk [vmem:[#allocation3 + $0x8] sm:$0xff] %vm869, %v1409
        %1442 = vst.msk [vmem:[#allocation3 + $0x10] sm:$0xff] %vm869, %v1410
        %1443 = vst.msk [vmem:[#allocation3 + $0x18] sm:$0xff] %vm869, %v1411
        %1444 = vst.msk [vmem:[#allocation3 + $0x20] sm:$0xff] %vm869, %v1412
        %1445 = vst.msk [vmem:[#allocation3 + $0x28] sm:$0xff] %vm869, %v1413
        %1446 = vst.msk [vmem:[#allocation3 + $0x30] sm:$0xff] %vm869, %v1414
        %1447 = vst.msk [vmem:[#allocation3 + $0x38] sm:$0xff] %vm869, %v1415
        %1448 = vst.msk [vmem:[#allocation3 + $0x40] sm:$0xff] %vm869, %v1416
        %1449 = vst.msk [vmem:[#allocation3 + $0x48] sm:$0xff] %vm869, %v1417
        %1450 = vst.msk [vmem:[#allocation3 + $0x50] sm:$0xff] %vm869, %v1418
        %1451 = vst.msk [vmem:[#allocation3 + $0x58] sm:$0xff] %vm869, %v1419
        %1452 = vst.msk [vmem:[#allocation3 + $0x60] sm:$0xff] %vm869, %v1420
        %1453 = vst.msk [vmem:[#allocation3 + $0x68] sm:$0xff] %vm869, %v1421
        %1454 = vst.msk [vmem:[#allocation3 + $0x70] sm:$0xff] %vm869, %v1422
        %1455 = vst.msk [vmem:[#allocation3 + $0x78] sm:$0xff] %vm869, %v1423
        %1456 = vst.msk [vmem:[#allocation3 + $0x80] sm:$0xff] %vm869, %v1424
        %1457 = vst.msk [vmem:[#allocation3 + $0x88] sm:$0xff] %vm869, %v1425
        %1458 = vst.msk [vmem:[#allocation3 + $0x90] sm:$0xff] %vm869, %v1426
        %1459 = vst.msk [vmem:[#allocation3 + $0x98] sm:$0xff] %vm869, %v1427
        %1460 = vst.msk [vmem:[#allocation3 + $0xa0] sm:$0xff] %vm869, %v1428
        %1461 = vst.msk [vmem:[#allocation3 + $0xa8] sm:$0xff] %vm869, %v1429
        %1462 = vst.msk [vmem:[#allocation3 + $0xb0] sm:$0xff] %vm869, %v1430
        %1463 = vst.msk [vmem:[#allocation3 + $0xb8] sm:$0xff] %vm869, %v1431
        %1464 = vst.msk [vmem:[#allocation3 + $0xc0] sm:$0xff] %vm869, %v1432
        %1465 = vst.msk [vmem:[#allocation3 + $0xc8] sm:$0xff] %vm869, %v1433
        %1466 = vst.msk [vmem:[#allocation3 + $0xd0] sm:$0xff] %vm869, %v1434
        %1467 = vst.msk [vmem:[#allocation3 + $0xd8] sm:$0xff] %vm869, %v1435
        %1468 = vst.msk [vmem:[#allocation3 + $0xe0] sm:$0xff] %vm869, %v1436
        %1469 = vst.msk [vmem:[#allocation3 + $0xe8] sm:$0xff] %vm869, %v1437
        %1470 = vst.msk [vmem:[#allocation3 + $0xf0] sm:$0xff] %vm869, %v1438
        %1471 = vst.msk [vmem:[#allocation3 + $0xf8] sm:$0xff] %vm869, %v1439
      $region52: #{block_forward.7} parent=43 // pred_fallthru
        _
      %p1472 = scmp.eq.s32.totalorder %s31, 3
      // Predicated region
      $region53: #{block_forward.7} parent=43 // pred_check
        %p1473 = pneg %p1472
      $region54: #{block_forward.7} parent=43 // pred_check_branch
        %1475 = sbr.rel (%p1473) target = $region56
      $region55: #{block_forward.7} parent=43 // pred_region
        %v1476 = vld [vmem:[#allocation3] sm:$0xff]
        %v1477 = vld [vmem:[#allocation3 + $0x8] sm:$0xff]
        %v1478 = vld [vmem:[#allocation3 + $0x10] sm:$0xff]
        %v1479 = vld [vmem:[#allocation3 + $0x18] sm:$0xff]
        %v1480 = vld [vmem:[#allocation3 + $0x20] sm:$0xff]
        %v1481 = vld [vmem:[#allocation3 + $0x28] sm:$0xff]
        %v1482 = vld [vmem:[#allocation3 + $0x30] sm:$0xff]
        %v1483 = vld [vmem:[#allocation3 + $0x38] sm:$0xff]
        %v1484 = vld [vmem:[#allocation3 + $0x40] sm:$0xff]
        %v1485 = vld [vmem:[#allocation3 + $0x48] sm:$0xff]
        %v1486 = vld [vmem:[#allocation3 + $0x50] sm:$0xff]
        %v1487 = vld [vmem:[#allocation3 + $0x58] sm:$0xff]
        %v1488 = vld [vmem:[#allocation3 + $0x60] sm:$0xff]
        %v1489 = vld [vmem:[#allocation3 + $0x68] sm:$0xff]
        %v1490 = vld [vmem:[#allocation3 + $0x70] sm:$0xff]
        %v1491 = vld [vmem:[#allocation3 + $0x78] sm:$0xff]
        %v1492 = vld [vmem:[#allocation3 + $0x80] sm:$0xff]
        %v1493 = vld [vmem:[#allocation3 + $0x88] sm:$0xff]
        %v1494 = vld [vmem:[#allocation3 + $0x90] sm:$0xff]
        %v1495 = vld [vmem:[#allocation3 + $0x98] sm:$0xff]
        %v1496 = vld [vmem:[#allocation3 + $0xa0] sm:$0xff]
        %v1497 = vld [vmem:[#allocation3 + $0xa8] sm:$0xff]
        %v1498 = vld [vmem:[#allocation3 + $0xb0] sm:$0xff]
        %v1499 = vld [vmem:[#allocation3 + $0xb8] sm:$0xff]
        %v1500 = vld [vmem:[#allocation3 + $0xc0] sm:$0xff]
        %v1501 = vld [vmem:[#allocation3 + $0xc8] sm:$0xff]
        %v1502 = vld [vmem:[#allocation3 + $0xd0] sm:$0xff]
        %v1503 = vld [vmem:[#allocation3 + $0xd8] sm:$0xff]
        %v1504 = vld [vmem:[#allocation3 + $0xe0] sm:$0xff]
        %v1505 = vld [vmem:[#allocation3 + $0xe8] sm:$0xff]
        %v1506 = vld [vmem:[#allocation3 + $0xf0] sm:$0xff]
        %v1507 = vld [vmem:[#allocation3 + $0xf8] sm:$0xff]
        %vm1508 = vcmask 261120
        %1509 = vst.msk [vmem:[%s588] sm:$0xff] %vm1508, %v1476
        %1510 = vst.msk [vmem:[%s588 + $0x8] sm:$0xff] %vm1508, %v1477
        %1511 = vst.msk [vmem:[%s588 + $0x10] sm:$0xff] %vm1508, %v1478
        %1512 = vst.msk [vmem:[%s588 + $0x18] sm:$0xff] %vm1508, %v1479
        %1513 = vst.msk [vmem:[%s588 + $0x20] sm:$0xff] %vm1508, %v1480
        %1514 = vst.msk [vmem:[%s588 + $0x28] sm:$0xff] %vm1508, %v1481
        %1515 = vst.msk [vmem:[%s588 + $0x30] sm:$0xff] %vm1508, %v1482
        %1516 = vst.msk [vmem:[%s588 + $0x38] sm:$0xff] %vm1508, %v1483
        %1517 = vst.msk [vmem:[%s588 + $0x40] sm:$0xff] %vm1508, %v1484
        %1518 = vst.msk [vmem:[%s588 + $0x48] sm:$0xff] %vm1508, %v1485
        %1519 = vst.msk [vmem:[%s588 + $0x50] sm:$0xff] %vm1508, %v1486
        %1520 = vst.msk [vmem:[%s588 + $0x58] sm:$0xff] %vm1508, %v1487
        %1521 = vst.msk [vmem:[%s588 + $0x60] sm:$0xff] %vm1508, %v1488
        %1522 = vst.msk [vmem:[%s588 + $0x68] sm:$0xff] %vm1508, %v1489
        %1523 = vst.msk [vmem:[%s588 + $0x70] sm:$0xff] %vm1508, %v1490
        %1524 = vst.msk [vmem:[%s588 + $0x78] sm:$0xff] %vm1508, %v1491
        %1525 = vst.msk [vmem:[%s588 + $0x80] sm:$0xff] %vm1508, %v1492
        %1526 = vst.msk [vmem:[%s588 + $0x88] sm:$0xff] %vm1508, %v1493
        %1527 = vst.msk [vmem:[%s588 + $0x90] sm:$0xff] %vm1508, %v1494
        %1528 = vst.msk [vmem:[%s588 + $0x98] sm:$0xff] %vm1508, %v1495
        %1529 = vst.msk [vmem:[%s588 + $0xa0] sm:$0xff] %vm1508, %v1496
        %1530 = vst.msk [vmem:[%s588 + $0xa8] sm:$0xff] %vm1508, %v1497
        %1531 = vst.msk [vmem:[%s588 + $0xb0] sm:$0xff] %vm1508, %v1498
        %1532 = vst.msk [vmem:[%s588 + $0xb8] sm:$0xff] %vm1508, %v1499
        %1533 = vst.msk [vmem:[%s588 + $0xc0] sm:$0xff] %vm1508, %v1500
        %1534 = vst.msk [vmem:[%s588 + $0xc8] sm:$0xff] %vm1508, %v1501
        %1535 = vst.msk [vmem:[%s588 + $0xd0] sm:$0xff] %vm1508, %v1502
        %1536 = vst.msk [vmem:[%s588 + $0xd8] sm:$0xff] %vm1508, %v1503
        %1537 = vst.msk [vmem:[%s588 + $0xe0] sm:$0xff] %vm1508, %v1504
        %1538 = vst.msk [vmem:[%s588 + $0xe8] sm:$0xff] %vm1508, %v1505
        %1539 = vst.msk [vmem:[%s588 + $0xf0] sm:$0xff] %vm1508, %v1506
        %1540 = vst.msk [vmem:[%s588 + $0xf8] sm:$0xff] %vm1508, %v1507
      $region56: #{block_forward.7} parent=43 // pred_fallthru
        _
      %s1541 = smul.u32 32, %s30
      %p1542 = scmp.lt.s32.totalorder %s1541, 31
      %s1543 = scalar_select %p1542, %s1541, 31
      %s1544 = smul.addr %s1543, 8
      %s1545 = scalar_lea.vmem %s7, %s1544
      // Predicated region
      $region57: #{block_forward.7} parent=43 // pred_check
        %p1546 = pneg %p276
      $region58: #{block_forward.7} parent=43 // pred_check_branch
        %1548 = sbr.rel (%p1546) target = $region60
      $region59: #{block_forward.7} parent=43 // pred_region
        %s1549 = smul.u32 32, %s30
      $region60: #{block_forward.7} parent=43 // pred_fallthru
        _
      // Predicated region
      $region61: #{block_forward.7} parent=43 // pred_check
        %p1550 = pneg %p276
      $region62: #{block_forward.7} parent=43 // pred_check_branch
        %1552 = sbr.rel (%p1550) target = $region64
      $region63: #{block_forward.7} parent=43 // pred_region
        %s1553 = smul.u32 32, %s30
        %p1554 = scmp.lt.s32.totalorder %s1553, 31
        %s1555 = scalar_select %p1554, %s1553, 31
        %s1556 = smul.addr %s1555, 8
        %s1557 = scalar_lea.vmem %s7, %s1556
      $region64: #{block_forward.7} parent=43 // pred_fallthru
        _
    $region44: #{block_forward.7} parent=5 // pred_fallthru
      _
    %p1558 = scmp.le.s32.totalorder 2, %s21
    // Predicated region
    $region65: #{block_forward.7} parent=5 // pred_check
      %p1559 = pneg %p1558
    $region66: #{block_forward.7} parent=5 // pred_check_branch
      %1561 = sbr.rel (%p1559) target = $region68
    $region67: #{block_forward.7} parent=5 // pred_region
      %s1562 = ssub.s32 %s21, 2
    $region68: #{block_forward.7} parent=5 // pred_fallthru
      _
  $region6: #{block_forward.7} parent=0 // loop_footer
    %s25 = sadd.s32 1, %s21
  $region7: #{block_forward.7} parent=0 // loop_footer_branch
    %20 = sbr.rel target = $region3
  $region8: #{block_forward.7} parent=0 // loop_exit
    _

</llo_original>
